<compile_context>
chip_gen: v5e
topology: v5e:2x2
jax: 0.10.0
libtpu: 0.0.40
codegen_flags: <defaults>
</compile_context>

<pallas_src>
import jax
import jax.numpy as jnp
from jax.experimental import pallas as pl
from jax.experimental.pallas import tpu as pltpu

# ---- model hyperparameters (from the reference script) ----
n_embd = 64
n_head = 8
head_size = n_embd // n_head          # 8
n_layer = 8
block_size = 500
vocab_size = 101                      # HeartGPT vocabulary
# lm_head is None in __init__ and attached at fine-tune time; we attach a
# deterministic classification head here.
n_classes = 2
LN_EPS = 1e-5
NEG_INF = -1e9
LANE = 128
KB = 128                              # query/key block width (causal tiling)
HEAD_PAD = 128                        # lm_head output padded to one lane width


def _layernorm(x, g, b):
    # PyTorch nn.LayerNorm semantics: biased variance, eps inside the sqrt.
    mu = jnp.mean(x, axis=-1, keepdims=True)
    xc = x - mu
    var = jnp.mean(xc * xc, axis=-1, keepdims=True)
    return xc * jax.lax.rsqrt(var + LN_EPS) * g + b


# ---------------------------------------------------------------------------
# Fused kernel: grid = (batch, layer).  Residual stream lives in x_scr (VMEM).
# ---------------------------------------------------------------------------
def fused_kernel(x_ref,
                 ln1g_ref, ln1b_ref, wqkv_ref, wo_ref, bo_ref,
                 ln2g_ref, ln2b_ref, w1_ref, b1_ref, w2_ref, b2_ref,
                 lnfg_ref, lnfb_ref, wl_ref, bl_ref,
                 o_ref, x_scr):
    layer = pl.program_id(1)

    @pl.when(layer == 0)
    def _():
        x_scr[...] = x_ref[0]

    x = x_scr[...]                          # (T, C) f32 residual stream
    T, C = x.shape
    nb = T // KB                            # number of 128-wide seq blocks
    scale = float(n_embd) ** -0.5           # n_embd scaling, per reference

    # Intra-block causal additive bias for the diagonal key block.  The
    # relative (row, col) pattern is identical for every diagonal block, so it
    # is built once per grid step (cheap VPU filler, hides under MXU/EUP).
    rows = jax.lax.broadcasted_iota(jnp.int32, (KB, KB), 0)
    cols = jax.lax.broadcasted_iota(jnp.int32, (KB, KB), 1)
    diag_bias = jnp.where(rows >= cols, 0.0, NEG_INF).astype(jnp.float32)

    # ---- multi-head self-attention on LN1(x) ----
    xn = _layernorm(x, ln1g_ref[0], ln1b_ref[0])
    qkv = jnp.dot(xn.astype(jnp.bfloat16), wqkv_ref[0],
                  preferred_element_type=jnp.float32)            # (T, 3C)
    q16 = (qkv[:, :C] * scale).astype(jnp.bfloat16)              # scale folded into q
    kT = jnp.transpose(qkv[:, C:2 * C])                          # (C, T) f32, once/layer
    v16 = qkv[:, 2 * C:].astype(jnp.bfloat16)                    # (T, C)

    wo = wo_ref[0]                                               # (C, C) bf16
    sa_blocks = []
    for qb in range(nb):                    # static unroll over query blocks
        W = (qb + 1) * KB                   # visible key width (causal skip)
        sa_blk = jnp.zeros((KB, C), jnp.float32)
        for h in range(n_head):             # static unroll over heads
            lo = h * head_size
            hi = lo + head_size
            qh = q16[qb * KB:(qb + 1) * KB, lo:hi]               # (KB, hs) bf16
            kh = kT[lo:hi, :W].astype(jnp.bfloat16)              # (hs, W)  bf16
            vh = v16[:W, lo:hi]                                  # (W, hs)  bf16

            wei = jnp.dot(qh, kh, preferred_element_type=jnp.float32)  # (KB, W)
            # causal mask only touches the diagonal key block
            if qb == 0:
                wei = wei + diag_bias
            else:
                wei = jnp.concatenate(
                    [wei[:, :qb * KB], wei[:, qb * KB:] + diag_bias], axis=-1)

            m = jnp.max(wei, axis=-1, keepdims=True)
            p = jnp.exp(wei - m)             # masked entries underflow to 0
            # TODO(synk): on v6e/v7x the exp could run in bf16 (keep the row
            # sum in f32) for ~2x EUP throughput; kept f32 here for v5e.
            l = jnp.sum(p, axis=-1, keepdims=True)               # (KB, 1) f32
            # attention dropout: identity in eval mode
            oh = jnp.dot(p.astype(jnp.bfloat16), vh,
                         preferred_element_type=jnp.float32)     # (KB, hs)
            # normalise AFTER the PV matmul: softmax(s) @ v == diag(1/l) P V
            oh = oh * pl.reciprocal(l, approx=True)
            # concat_h(oh) @ Wo == sum_h oh @ Wo[h*hs:(h+1)*hs]  -> no concat
            sa_blk = sa_blk + jnp.dot(oh.astype(jnp.bfloat16), wo[lo:hi, :],
                                      preferred_element_type=jnp.float32)
        sa_blocks.append(sa_blk)
    sa = sa_blocks[0] if nb == 1 else jnp.concatenate(sa_blocks, axis=0)

    x = x + sa + bo_ref[0]                  # proj bias; proj dropout = identity

    # ---- feed-forward on LN2(x) ----
    xn2 = _layernorm(x, ln2g_ref[0], ln2b_ref[0])
    hdn = jnp.dot(xn2.astype(jnp.bfloat16), w1_ref[0],
                  preferred_element_type=jnp.float32) + b1_ref[0]
    hdn = jnp.maximum(hdn, 0.0)
    ff = jnp.dot(hdn.astype(jnp.bfloat16), w2_ref[0],
                 preferred_element_type=jnp.float32) + b2_ref[0]
    x = x + ff                              # ffwd dropout = identity
    x_scr[...] = x

    # ---- final LayerNorm + lm_head, only after the last block ----
    @pl.when(layer == pl.num_programs(1) - 1)
    def _():
        xf = _layernorm(x, lnfg_ref[...], lnfb_ref[...])
        o_ref[0] = (jnp.dot(xf.astype(jnp.bfloat16), wl_ref[...],
                            preferred_element_type=jnp.float32)
                    + bl_ref[...]).astype(o_ref.dtype)


# ---------------------------------------------------------------------------
# Wrapper: one pallas_call for the whole stack.
# ---------------------------------------------------------------------------
def _fused_forward(x, p):
    B, T_pad, C = x.shape

    def full_spec(a):                       # 2-D shared (final LN / lm_head)
        return pl.BlockSpec(a.shape, lambda b, l: (0, 0))

    def per_layer(a):                       # 3-D stacked per-layer weights
        return pl.BlockSpec((1,) + a.shape[1:], lambda b, l: (l, 0, 0))

    in_specs = [
        pl.BlockSpec((1, T_pad, C), lambda b, l: (b, 0, 0)),     # x
        per_layer(p["ln1_g"]), per_layer(p["ln1_b"]),
        per_layer(p["wqkv"]), per_layer(p["wo"]), per_layer(p["bo"]),
        per_layer(p["ln2_g"]), per_layer(p["ln2_b"]),
        per_layer(p["w1"]), per_layer(p["b1"]),
        per_layer(p["w2"]), per_layer(p["b2"]),
        full_spec(p["lnf_g"]), full_spec(p["lnf_b"]),
        full_spec(p["wl"]), full_spec(p["bl"]),
    ]
    out_spec = pl.BlockSpec((1, T_pad, HEAD_PAD), lambda b, l: (b, 0, 0))

    # TODO(synk): for large batches, block several batch rows per grid step to
    # amortize per-layer weight DMA and enlarge M for the MXU.
    return pl.pallas_call(
        fused_kernel,
        out_shape=jax.ShapeDtypeStruct((B, T_pad, HEAD_PAD), jnp.bfloat16),
        grid_spec=pltpu.PrefetchScalarGridSpec(
            num_scalar_prefetch=0,
            grid=(B, n_layer),
            in_specs=in_specs,
            out_specs=out_spec,
            scratch_shapes=[pltpu.VMEM((T_pad, C), jnp.float32)]),
        compiler_params=pltpu.CompilerParams(
            dimension_semantics=("parallel", "arbitrary")),
    )(x,
      p["ln1_g"], p["ln1_b"], p["wqkv"], p["wo"], p["bo"],
      p["ln2_g"], p["ln2_b"], p["w1"], p["b1"], p["w2"], p["b2"],
      p["lnf_g"], p["lnf_b"], p["wl"], p["bl"])


@jax.jit
def heart_gpt_forward(idx, params):
    B, T = idx.shape
    C = n_embd
    T_pad = max(LANE, ((T + LANE - 1) // LANE) * LANE)

    tok_emb = jnp.take(params["tok_emb"], idx, axis=0)           # (B, T, C)
    pos_emb = params["pos_emb"][:T]                              # (T, C)
    x = (tok_emb + pos_emb[None]).astype(jnp.float32)
    x = jnp.pad(x, ((0, 0), (0, T_pad - T), (0, 0)))             # pad rows = 0

    logits = _fused_forward(x, params)                           # (B, T_pad, 128) bf16
    return logits[:, :T, :n_classes].astype(jnp.float32)


# ---------------------------------------------------------------------------
# Deterministic parameter construction (synthetic weights, not a checkpoint).
# ---------------------------------------------------------------------------
def init_params(key):
    def nrm(k, shape, std=0.02, dtype=jnp.float32):
        return (std * jax.random.normal(k, shape, dtype=jnp.float32)).astype(dtype)

    keys = jax.random.split(key, 8)
    L, C = n_layer, n_embd
    bf16 = jnp.bfloat16
    params = {
        "tok_emb": nrm(keys[0], (vocab_size, C)),
        "pos_emb": nrm(keys[1], (block_size, C)),
        "ln1_g": jnp.ones((L, 1, C), jnp.float32),
        "ln1_b": jnp.zeros((L, 1, C), jnp.float32),
        "wqkv": nrm(keys[2], (L, C, 3 * C), dtype=bf16),   # fused q|k|v proj
        "wo": nrm(keys[3], (L, C, C), dtype=bf16),         # output projection
        "bo": jnp.zeros((L, 1, C), jnp.float32),
        "ln2_g": jnp.ones((L, 1, C), jnp.float32),
        "ln2_b": jnp.zeros((L, 1, C), jnp.float32),
        "w1": nrm(keys[4], (L, C, 4 * C), dtype=bf16),
        "b1": jnp.zeros((L, 1, 4 * C), jnp.float32),
        "w2": nrm(keys[5], (L, 4 * C, C), dtype=bf16),
        "b2": jnp.zeros((L, 1, C), jnp.float32),
        "lnf_g": jnp.ones((1, C), jnp.float32),
        "lnf_b": jnp.zeros((1, C), jnp.float32),
    }
    # lm_head padded to 128 output columns (lane-dense store); only the first
    # n_classes columns are real.
    wl = jnp.zeros((C, HEAD_PAD), jnp.float32)
    wl = wl.at[:, :n_classes].set(nrm(keys[6], (C, n_classes)))
    params["wl"] = wl.astype(bf16)
    params["bl"] = jnp.zeros((1, HEAD_PAD), jnp.float32)
    return params


if __name__ == "__main__":
    key = jax.random.PRNGKey(0)
    k_param, k_idx = jax.random.split(key)

    params = init_params(k_param)

    B, T = 2, 8
    idx = jax.random.randint(k_idx, (B, T), 0, vocab_size, dtype=jnp.int32)

    logits = heart_gpt_forward(idx, params)
    jax.block_until_ready(logits)

    assert logits.shape == (B, T, n_classes), logits.shape
    assert bool(jnp.all(jnp.isfinite(logits))), "non-finite logits"
    print("KERNEL_OK")
</pallas_src>

<mosaic_0001>
module attributes {stable_mosaic.version = 11 : i64} {
  func.func @fused_kernel(%arg0: i32, %arg1: i32, %arg2: memref<1x128x64xf32, #tpu.memory_space<vmem>>, %arg3: memref<1x1x64xf32, #tpu.memory_space<vmem>>, %arg4: memref<1x1x64xf32, #tpu.memory_space<vmem>>, %arg5: memref<1x64x192xbf16, #tpu.memory_space<vmem>>, %arg6: memref<1x64x64xbf16, #tpu.memory_space<vmem>>, %arg7: memref<1x1x64xf32, #tpu.memory_space<vmem>>, %arg8: memref<1x1x64xf32, #tpu.memory_space<vmem>>, %arg9: memref<1x1x64xf32, #tpu.memory_space<vmem>>, %arg10: memref<1x64x256xbf16, #tpu.memory_space<vmem>>, %arg11: memref<1x1x256xf32, #tpu.memory_space<vmem>>, %arg12: memref<1x256x64xbf16, #tpu.memory_space<vmem>>, %arg13: memref<1x1x64xf32, #tpu.memory_space<vmem>>, %arg14: memref<1x64xf32, #tpu.memory_space<vmem>>, %arg15: memref<1x64xf32, #tpu.memory_space<vmem>>, %arg16: memref<64x128xbf16, #tpu.memory_space<vmem>>, %arg17: memref<1x128xf32, #tpu.memory_space<vmem>>, %arg18: memref<1x128x128xbf16, #tpu.memory_space<vmem>>, %arg19: memref<128x64xf32, #tpu.memory_space<vmem>>) attributes {dimension_semantics = [#tpu.dimension_semantics<parallel>, #tpu.dimension_semantics<arbitrary>], iteration_bounds = array<i64: 2, 8>, scalar_prefetch = 0 : i64, scratch_operands = 1 : i64, tpu.core_type = #tpu.core_type<tc>, window_params = [{transform_indices = @transform_0, window_bounds = array<i64: 1, 128, 64>}, {transform_indices = @transform_1, window_bounds = array<i64: 1, 1, 64>}, {transform_indices = @transform_2, window_bounds = array<i64: 1, 1, 64>}, {transform_indices = @transform_3, window_bounds = array<i64: 1, 64, 192>}, {transform_indices = @transform_4, window_bounds = array<i64: 1, 64, 64>}, {transform_indices = @transform_5, window_bounds = array<i64: 1, 1, 64>}, {transform_indices = @transform_6, window_bounds = array<i64: 1, 1, 64>}, {transform_indices = @transform_7, window_bounds = array<i64: 1, 1, 64>}, {transform_indices = @transform_8, window_bounds = array<i64: 1, 64, 256>}, {transform_indices = @transform_9, window_bounds = array<i64: 1, 1, 256>}, {transform_indices = @transform_10, window_bounds = array<i64: 1, 256, 64>}, {transform_indices = @transform_11, window_bounds = array<i64: 1, 1, 64>}, {pipeline_mode = #tpu.pipeline_mode<synchronous>, transform_indices = @transform_12, window_bounds = array<i64: 1, 64>}, {pipeline_mode = #tpu.pipeline_mode<synchronous>, transform_indices = @transform_13, window_bounds = array<i64: 1, 64>}, {pipeline_mode = #tpu.pipeline_mode<synchronous>, transform_indices = @transform_14, window_bounds = array<i64: 64, 128>}, {pipeline_mode = #tpu.pipeline_mode<synchronous>, transform_indices = @transform_15, window_bounds = array<i64: 1, 128>}, {transform_indices = @transform_16, window_bounds = array<i64: 1, 128, 128>}]} {
    %c0_i32 = arith.constant 0 : i32
    %0 = arith.cmpi eq, %arg1, %c0_i32 : i32
    %1 = arith.extui %0 : i1 to i32
    %c0_i32_0 = arith.constant 0 : i32
    %2 = arith.cmpi ne, %1, %c0_i32_0 : i32
    scf.if %2 {
      %c0_95 = arith.constant 0 : index
      %c0_96 = arith.constant 0 : index
      %c0_97 = arith.constant 0 : index
      %277 = vector.load %arg2[%c0_95, %c0_96, %c0_97] : memref<1x128x64xf32, #tpu.memory_space<vmem>>, vector<1x128x64xf32>
      %278 = vector.shape_cast %277 : vector<1x128x64xf32> to vector<128x64xf32>
      %c0_98 = arith.constant 0 : index
      %c0_99 = arith.constant 0 : index
      %279 = vector.load %arg19[%c0_98, %c0_99] : memref<128x64xf32, #tpu.memory_space<vmem>>, vector<128x64xf32>
      tpu.vector_store %arg19[%c0_98, %c0_99], %278 {strides = array<i32>} : memref<128x64xf32, #tpu.memory_space<vmem>>, vector<128x64xf32>,
    } else {
    }
    %c0 = arith.constant 0 : index
    %c0_1 = arith.constant 0 : index
    %3 = vector.load %arg19[%c0, %c0_1] : memref<128x64xf32, #tpu.memory_space<vmem>>, vector<128x64xf32>
    %4 = tpu.iota {dimensions = array<i32: 0>} : vector<128x128xi32>
    %5 = tpu.iota {dimensions = array<i32: 1>} : vector<128x128xi32>
    %6 = arith.cmpi sge, %4, %5 : vector<128x128xi32>
    %cst = arith.constant 0.000000e+00 : f32
    %cst_2 = arith.constant -1.000000e+09 : f32
    %7 = vector.broadcast %cst : f32 to vector<128x128xf32>
    %8 = vector.broadcast %cst_2 : f32 to vector<128x128xf32>
    %9 = arith.select %6, %7, %8 : vector<128x128xi1>, vector<128x128xf32>
    %c0_3 = arith.constant 0 : index
    %c0_4 = arith.constant 0 : index
    %c0_5 = arith.constant 0 : index
    %10 = vector.load %arg3[%c0_3, %c0_4, %c0_5] : memref<1x1x64xf32, #tpu.memory_space<vmem>>, vector<1x1x64xf32>
    %11 = vector.shape_cast %10 : vector<1x1x64xf32> to vector<1x64xf32>
    %c0_6 = arith.constant 0 : index
    %c0_7 = arith.constant 0 : index
    %c0_8 = arith.constant 0 : index
    %12 = vector.load %arg4[%c0_6, %c0_7, %c0_8] : memref<1x1x64xf32, #tpu.memory_space<vmem>>, vector<1x1x64xf32>
    %13 = vector.shape_cast %12 : vector<1x1x64xf32> to vector<1x64xf32>
    %cst_9 = arith.constant dense<0.000000e+00> : vector<128xf32>
    %14 = vector.multi_reduction <add>, %3, %cst_9 [1] : vector<128x64xf32> to vector<128xf32>
    %15 = vector.shape_cast %14 : vector<128xf32> to vector<128x1xf32>
    %cst_10 = arith.constant 6.400000e+01 : f32
    %16 = vector.broadcast %cst_10 : f32 to vector<128x1xf32>
    %17 = arith.divf %15, %16 : vector<128x1xf32>
    %18 = vector.broadcast %17 : vector<128x1xf32> to vector<128x64xf32>
    %19 = arith.subf %3, %18 : vector<128x64xf32>
    %20 = arith.mulf %19, %19 : vector<128x64xf32>
    %cst_11 = arith.constant dense<0.000000e+00> : vector<128xf32>
    %21 = vector.multi_reduction <add>, %20, %cst_11 [1] : vector<128x64xf32> to vector<128xf32>
    %22 = vector.shape_cast %21 : vector<128xf32> to vector<128x1xf32>
    %cst_12 = arith.constant 6.400000e+01 : f32
    %23 = vector.broadcast %cst_12 : f32 to vector<128x1xf32>
    %24 = arith.divf %22, %23 : vector<128x1xf32>
    %cst_13 = arith.constant 9.99999974E-6 : f32
    %25 = vector.broadcast %cst_13 : f32 to vector<128x1xf32>
    %26 = arith.addf %24, %25 : vector<128x1xf32>
    %27 = math.rsqrt %26 : vector<128x1xf32>
    %28 = vector.broadcast %27 : vector<128x1xf32> to vector<128x64xf32>
    %29 = arith.mulf %19, %28 : vector<128x64xf32>
    %30 = vector.broadcast %11 : vector<1x64xf32> to vector<128x64xf32>
    %31 = arith.mulf %29, %30 : vector<128x64xf32>
    %32 = vector.broadcast %13 : vector<1x64xf32> to vector<128x64xf32>
    %33 = arith.addf %31, %32 : vector<128x64xf32>
    %34 = arith.truncf %33 : vector<128x64xf32> to vector<128x64xbf16>
    %c0_14 = arith.constant 0 : index
    %c0_15 = arith.constant 0 : index
    %c0_16 = arith.constant 0 : index
    %35 = vector.load %arg5[%c0_14, %c0_15, %c0_16] : memref<1x64x192xbf16, #tpu.memory_space<vmem>>, vector<1x64x192xbf16>
    %36 = vector.shape_cast %35 : vector<1x64x192xbf16> to vector<64x192xbf16>
    %cst_17 = arith.constant dense<0.000000e+00> : vector<128x192xf32>
    %37 = tpu.matmul %34, %36, %cst_17 {dimension_numbers = #tpu.dot_dimension_numbers<[1], [0], [0], [1], [0, 0, 1, 1], [], []>} : vector<128x64xbf16>, vector<64x192xbf16>, vector<128x192xf32> -> vector<128x192xf32>
    %38 = vector.extract_strided_slice %37 {offsets = [0, 0], sizes = [128, 64], strides = [1, 1]} : vector<128x192xf32> to vector<128x64xf32>
    %cst_18 = arith.constant 1.250000e-01 : f32
    %39 = vector.broadcast %cst_18 : f32 to vector<128x64xf32>
    %40 = arith.mulf %38, %39 : vector<128x64xf32>
    %41 = arith.truncf %40 : vector<128x64xf32> to vector<128x64xbf16>
    %42 = vector.extract_strided_slice %37 {offsets = [0, 64], sizes = [128, 64], strides = [1, 1]} : vector<128x192xf32> to vector<128x64xf32>
    %43 = tpu.transpose %42, [1, 0] : vector<128x64xf32> -> vector<64x128xf32>
    %44 = vector.extract_strided_slice %37 {offsets = [0, 128], sizes = [128, 64], strides = [1, 1]} : vector<128x192xf32> to vector<128x64xf32>
    %45 = arith.truncf %44 : vector<128x64xf32> to vector<128x64xbf16>
    %c0_19 = arith.constant 0 : index
    %c0_20 = arith.constant 0 : index
    %c0_21 = arith.constant 0 : index
    %46 = vector.load %arg6[%c0_19, %c0_20, %c0_21] : memref<1x64x64xbf16, #tpu.memory_space<vmem>>, vector<1x64x64xbf16>
    %47 = vector.shape_cast %46 : vector<1x64x64xbf16> to vector<64x64xbf16>
    %cst_22 = arith.constant 0.000000e+00 : f32
    %48 = vector.broadcast %cst_22 : f32 to vector<128x64xf32>
    %49 = vector.extract_strided_slice %41 {offsets = [0, 0], sizes = [128, 8], strides = [1, 1]} : vector<128x64xbf16> to vector<128x8xbf16>
    %50 = vector.extract_strided_slice %43 {offsets = [0, 0], sizes = [8, 128], strides = [1, 1]} : vector<64x128xf32> to vector<8x128xf32>
    %51 = arith.truncf %50 : vector<8x128xf32> to vector<8x128xbf16>
    %52 = vector.extract_strided_slice %45 {offsets = [0, 0], sizes = [128, 8], strides = [1, 1]} : vector<128x64xbf16> to vector<128x8xbf16>
    %cst_23 = arith.constant dense<0.000000e+00> : vector<128x128xf32>
    %53 = tpu.matmul %49, %51, %cst_23 {dimension_numbers = #tpu.dot_dimension_numbers<[1], [0], [0], [1], [0, 0, 1, 1], [], []>} : vector<128x8xbf16>, vector<8x128xbf16>, vector<128x128xf32> -> vector<128x128xf32>
    %54 = arith.addf %53, %9 : vector<128x128xf32>
    %cst_24 = arith.constant dense<0xFF800000> : vector<128xf32>
    %55 = vector.multi_reduction <maximumf>, %54, %cst_24 [1] : vector<128x128xf32> to vector<128xf32>
    %56 = vector.shape_cast %55 : vector<128xf32> to vector<128x1xf32>
    %57 = vector.broadcast %56 : vector<128x1xf32> to vector<128x128xf32>
    %58 = arith.subf %54, %57 : vector<128x128xf32>
    %59 = math.exp %58 : vector<128x128xf32>
    %cst_25 = arith.constant dense<0.000000e+00> : vector<128xf32>
    %60 = vector.multi_reduction <add>, %59, %cst_25 [1] : vector<128x128xf32> to vector<128xf32>
    %61 = vector.shape_cast %60 : vector<128xf32> to vector<128x1xf32>
    %62 = arith.truncf %59 : vector<128x128xf32> to vector<128x128xbf16>
    %cst_26 = arith.constant dense<0.000000e+00> : vector<128x8xf32>
    %63 = tpu.matmul %62, %52, %cst_26 {dimension_numbers = #tpu.dot_dimension_numbers<[1], [0], [0], [1], [0, 0, 1, 1], [], []>} : vector<128x128xbf16>, vector<128x8xbf16>, vector<128x8xf32> -> vector<128x8xf32>
    %64 = tpu.reciprocal %61 {approx = true} : vector<128x1xf32> -> vector<128x1xf32>
    %65 = vector.broadcast %64 : vector<128x1xf32> to vector<128x8xf32>
    %66 = arith.mulf %63, %65 : vector<128x8xf32>
    %67 = arith.truncf %66 : vector<128x8xf32> to vector<128x8xbf16>
    %68 = vector.extract_strided_slice %47 {offsets = [0, 0], sizes = [8, 64], strides = [1, 1]} : vector<64x64xbf16> to vector<8x64xbf16>
    %cst_27 = arith.constant dense<0.000000e+00> : vector<128x64xf32>
    %69 = tpu.matmul %67, %68, %cst_27 {dimension_numbers = #tpu.dot_dimension_numbers<[1], [0], [0], [1], [0, 0, 1, 1], [], []>} : vector<128x8xbf16>, vector<8x64xbf16>, vector<128x64xf32> -> vector<128x64xf32>
    %70 = arith.addf %48, %69 : vector<128x64xf32>
    %71 = vector.extract_strided_slice %41 {offsets = [0, 8], sizes = [128, 8], strides = [1, 1]} : vector<128x64xbf16> to vector<128x8xbf16>
    %72 = vector.extract_strided_slice %43 {offsets = [8, 0], sizes = [8, 128], strides = [1, 1]} : vector<64x128xf32> to vector<8x128xf32>
    %73 = arith.truncf %72 : vector<8x128xf32> to vector<8x128xbf16>
    %74 = vector.extract_strided_slice %45 {offsets = [0, 8], sizes = [128, 8], strides = [1, 1]} : vector<128x64xbf16> to vector<128x8xbf16>
    %cst_28 = arith.constant dense<0.000000e+00> : vector<128x128xf32>
    %75 = tpu.matmul %71, %73, %cst_28 {dimension_numbers = #tpu.dot_dimension_numbers<[1], [0], [0], [1], [0, 0, 1, 1], [], []>} : vector<128x8xbf16>, vector<8x128xbf16>, vector<128x128xf32> -> vector<128x128xf32>
    %76 = arith.addf %75, %9 : vector<128x128xf32>
    %cst_29 = arith.constant dense<0xFF800000> : vector<128xf32>
    %77 = vector.multi_reduction <maximumf>, %76, %cst_29 [1] : vector<128x128xf32> to vector<128xf32>
    %78 = vector.shape_cast %77 : vector<128xf32> to vector<128x1xf32>
    %79 = vector.broadcast %78 : vector<128x1xf32> to vector<128x128xf32>
    %80 = arith.subf %76, %79 : vector<128x128xf32>
    %81 = math.exp %80 : vector<128x128xf32>
    %cst_30 = arith.constant dense<0.000000e+00> : vector<128xf32>
    %82 = vector.multi_reduction <add>, %81, %cst_30 [1] : vector<128x128xf32> to vector<128xf32>
    %83 = vector.shape_cast %82 : vector<128xf32> to vector<128x1xf32>
    %84 = arith.truncf %81 : vector<128x128xf32> to vector<128x128xbf16>
    %cst_31 = arith.constant dense<0.000000e+00> : vector<128x8xf32>
    %85 = tpu.matmul %84, %74, %cst_31 {dimension_numbers = #tpu.dot_dimension_numbers<[1], [0], [0], [1], [0, 0, 1, 1], [], []>} : vector<128x128xbf16>, vector<128x8xbf16>, vector<128x8xf32> -> vector<128x8xf32>
    %86 = tpu.reciprocal %83 {approx = true} : vector<128x1xf32> -> vector<128x1xf32>
    %87 = vector.broadcast %86 : vector<128x1xf32> to vector<128x8xf32>
    %88 = arith.mulf %85, %87 : vector<128x8xf32>
    %89 = arith.truncf %88 : vector<128x8xf32> to vector<128x8xbf16>
    %90 = vector.extract_strided_slice %47 {offsets = [8, 0], sizes = [8, 64], strides = [1, 1]} : vector<64x64xbf16> to vector<8x64xbf16>
    %cst_32 = arith.constant dense<0.000000e+00> : vector<128x64xf32>
    %91 = tpu.matmul %89, %90, %cst_32 {dimension_numbers = #tpu.dot_dimension_numbers<[1], [0], [0], [1], [0, 0, 1, 1], [], []>} : vector<128x8xbf16>, vector<8x64xbf16>, vector<128x64xf32> -> vector<128x64xf32>
    %92 = arith.addf %70, %91 : vector<128x64xf32>
    %93 = vector.extract_strided_slice %41 {offsets = [0, 16], sizes = [128, 8], strides = [1, 1]} : vector<128x64xbf16> to vector<128x8xbf16>
    %94 = vector.extract_strided_slice %43 {offsets = [16, 0], sizes = [8, 128], strides = [1, 1]} : vector<64x128xf32> to vector<8x128xf32>
    %95 = arith.truncf %94 : vector<8x128xf32> to vector<8x128xbf16>
    %96 = vector.extract_strided_slice %45 {offsets = [0, 16], sizes = [128, 8], strides = [1, 1]} : vector<128x64xbf16> to vector<128x8xbf16>
    %cst_33 = arith.constant dense<0.000000e+00> : vector<128x128xf32>
    %97 = tpu.matmul %93, %95, %cst_33 {dimension_numbers = #tpu.dot_dimension_numbers<[1], [0], [0], [1], [0, 0, 1, 1], [], []>} : vector<128x8xbf16>, vector<8x128xbf16>, vector<128x128xf32> -> vector<128x128xf32>
    %98 = arith.addf %97, %9 : vector<128x128xf32>
    %cst_34 = arith.constant dense<0xFF800000> : vector<128xf32>
    %99 = vector.multi_reduction <maximumf>, %98, %cst_34 [1] : vector<128x128xf32> to vector<128xf32>
    %100 = vector.shape_cast %99 : vector<128xf32> to vector<128x1xf32>
    %101 = vector.broadcast %100 : vector<128x1xf32> to vector<128x128xf32>
    %102 = arith.subf %98, %101 : vector<128x128xf32>
    %103 = math.exp %102 : vector<128x128xf32>
    %cst_35 = arith.constant dense<0.000000e+00> : vector<128xf32>
    %104 = vector.multi_reduction <add>, %103, %cst_35 [1] : vector<128x128xf32> to vector<128xf32>
    %105 = vector.shape_cast %104 : vector<128xf32> to vector<128x1xf32>
    %106 = arith.truncf %103 : vector<128x128xf32> to vector<128x128xbf16>
    %cst_36 = arith.constant dense<0.000000e+00> : vector<128x8xf32>
    %107 = tpu.matmul %106, %96, %cst_36 {dimension_numbers = #tpu.dot_dimension_numbers<[1], [0], [0], [1], [0, 0, 1, 1], [], []>} : vector<128x128xbf16>, vector<128x8xbf16>, vector<128x8xf32> -> vector<128x8xf32>
    %108 = tpu.reciprocal %105 {approx = true} : vector<128x1xf32> -> vector<128x1xf32>
    %109 = vector.broadcast %108 : vector<128x1xf32> to vector<128x8xf32>
    %110 = arith.mulf %107, %109 : vector<128x8xf32>
    %111 = arith.truncf %110 : vector<128x8xf32> to vector<128x8xbf16>
    %112 = vector.extract_strided_slice %47 {offsets = [16, 0], sizes = [8, 64], strides = [1, 1]} : vector<64x64xbf16> to vector<8x64xbf16>
    %cst_37 = arith.constant dense<0.000000e+00> : vector<128x64xf32>
    %113 = tpu.matmul %111, %112, %cst_37 {dimension_numbers = #tpu.dot_dimension_numbers<[1], [0], [0], [1], [0, 0, 1, 1], [], []>} : vector<128x8xbf16>, vector<8x64xbf16>, vector<128x64xf32> -> vector<128x64xf32>
    %114 = arith.addf %92, %113 : vector<128x64xf32>
    %115 = vector.extract_strided_slice %41 {offsets = [0, 24], sizes = [128, 8], strides = [1, 1]} : vector<128x64xbf16> to vector<128x8xbf16>
    %116 = vector.extract_strided_slice %43 {offsets = [24, 0], sizes = [8, 128], strides = [1, 1]} : vector<64x128xf32> to vector<8x128xf32>
    %117 = arith.truncf %116 : vector<8x128xf32> to vector<8x128xbf16>
    %118 = vector.extract_strided_slice %45 {offsets = [0, 24], sizes = [128, 8], strides = [1, 1]} : vector<128x64xbf16> to vector<128x8xbf16>
    %cst_38 = arith.constant dense<0.000000e+00> : vector<128x128xf32>
    %119 = tpu.matmul %115, %117, %cst_38 {dimension_numbers = #tpu.dot_dimension_numbers<[1], [0], [0], [1], [0, 0, 1, 1], [], []>} : vector<128x8xbf16>, vector<8x128xbf16>, vector<128x128xf32> -> vector<128x128xf32>
    %120 = arith.addf %119, %9 : vector<128x128xf32>
    %cst_39 = arith.constant dense<0xFF800000> : vector<128xf32>
    %121 = vector.multi_reduction <maximumf>, %120, %cst_39 [1] : vector<128x128xf32> to vector<128xf32>
    %122 = vector.shape_cast %121 : vector<128xf32> to vector<128x1xf32>
    %123 = vector.broadcast %122 : vector<128x1xf32> to vector<128x128xf32>
    %124 = arith.subf %120, %123 : vector<128x128xf32>
    %125 = math.exp %124 : vector<128x128xf32>
    %cst_40 = arith.constant dense<0.000000e+00> : vector<128xf32>
    %126 = vector.multi_reduction <add>, %125, %cst_40 [1] : vector<128x128xf32> to vector<128xf32>
    %127 = vector.shape_cast %126 : vector<128xf32> to vector<128x1xf32>
    %128 = arith.truncf %125 : vector<128x128xf32> to vector<128x128xbf16>
    %cst_41 = arith.constant dense<0.000000e+00> : vector<128x8xf32>
    %129 = tpu.matmul %128, %118, %cst_41 {dimension_numbers = #tpu.dot_dimension_numbers<[1], [0], [0], [1], [0, 0, 1, 1], [], []>} : vector<128x128xbf16>, vector<128x8xbf16>, vector<128x8xf32> -> vector<128x8xf32>
    %130 = tpu.reciprocal %127 {approx = true} : vector<128x1xf32> -> vector<128x1xf32>
    %131 = vector.broadcast %130 : vector<128x1xf32> to vector<128x8xf32>
    %132 = arith.mulf %129, %131 : vector<128x8xf32>
    %133 = arith.truncf %132 : vector<128x8xf32> to vector<128x8xbf16>
    %134 = vector.extract_strided_slice %47 {offsets = [24, 0], sizes = [8, 64], strides = [1, 1]} : vector<64x64xbf16> to vector<8x64xbf16>
    %cst_42 = arith.constant dense<0.000000e+00> : vector<128x64xf32>
    %135 = tpu.matmul %133, %134, %cst_42 {dimension_numbers = #tpu.dot_dimension_numbers<[1], [0], [0], [1], [0, 0, 1, 1], [], []>} : vector<128x8xbf16>, vector<8x64xbf16>, vector<128x64xf32> -> vector<128x64xf32>
    %136 = arith.addf %114, %135 : vector<128x64xf32>
    %137 = vector.extract_strided_slice %41 {offsets = [0, 32], sizes = [128, 8], strides = [1, 1]} : vector<128x64xbf16> to vector<128x8xbf16>
    %138 = vector.extract_strided_slice %43 {offsets = [32, 0], sizes = [8, 128], strides = [1, 1]} : vector<64x128xf32> to vector<8x128xf32>
    %139 = arith.truncf %138 : vector<8x128xf32> to vector<8x128xbf16>
    %140 = vector.extract_strided_slice %45 {offsets = [0, 32], sizes = [128, 8], strides = [1, 1]} : vector<128x64xbf16> to vector<128x8xbf16>
    %cst_43 = arith.constant dense<0.000000e+00> : vector<128x128xf32>
    %141 = tpu.matmul %137, %139, %cst_43 {dimension_numbers = #tpu.dot_dimension_numbers<[1], [0], [0], [1], [0, 0, 1, 1], [], []>} : vector<128x8xbf16>, vector<8x128xbf16>, vector<128x128xf32> -> vector<128x128xf32>
    %142 = arith.addf %141, %9 : vector<128x128xf32>
    %cst_44 = arith.constant dense<0xFF800000> : vector<128xf32>
    %143 = vector.multi_reduction <maximumf>, %142, %cst_44 [1] : vector<128x128xf32> to vector<128xf32>
    %144 = vector.shape_cast %143 : vector<128xf32> to vector<128x1xf32>
    %145 = vector.broadcast %144 : vector<128x1xf32> to vector<128x128xf32>
    %146 = arith.subf %142, %145 : vector<128x128xf32>
    %147 = math.exp %146 : vector<128x128xf32>
    %cst_45 = arith.constant dense<0.000000e+00> : vector<128xf32>
    %148 = vector.multi_reduction <add>, %147, %cst_45 [1] : vector<128x128xf32> to vector<128xf32>
    %149 = vector.shape_cast %148 : vector<128xf32> to vector<128x1xf32>
    %150 = arith.truncf %147 : vector<128x128xf32> to vector<128x128xbf16>
    %cst_46 = arith.constant dense<0.000000e+00> : vector<128x8xf32>
    %151 = tpu.matmul %150, %140, %cst_46 {dimension_numbers = #tpu.dot_dimension_numbers<[1], [0], [0], [1], [0, 0, 1, 1], [], []>} : vector<128x128xbf16>, vector<128x8xbf16>, vector<128x8xf32> -> vector<128x8xf32>
    %152 = tpu.reciprocal %149 {approx = true} : vector<128x1xf32> -> vector<128x1xf32>
    %153 = vector.broadcast %152 : vector<128x1xf32> to vector<128x8xf32>
    %154 = arith.mulf %151, %153 : vector<128x8xf32>
    %155 = arith.truncf %154 : vector<128x8xf32> to vector<128x8xbf16>
    %156 = vector.extract_strided_slice %47 {offsets = [32, 0], sizes = [8, 64], strides = [1, 1]} : vector<64x64xbf16> to vector<8x64xbf16>
    %cst_47 = arith.constant dense<0.000000e+00> : vector<128x64xf32>
    %157 = tpu.matmul %155, %156, %cst_47 {dimension_numbers = #tpu.dot_dimension_numbers<[1], [0], [0], [1], [0, 0, 1, 1], [], []>} : vector<128x8xbf16>, vector<8x64xbf16>, vector<128x64xf32> -> vector<128x64xf32>
    %158 = arith.addf %136, %157 : vector<128x64xf32>
    %159 = vector.extract_strided_slice %41 {offsets = [0, 40], sizes = [128, 8], strides = [1, 1]} : vector<128x64xbf16> to vector<128x8xbf16>
    %160 = vector.extract_strided_slice %43 {offsets = [40, 0], sizes = [8, 128], strides = [1, 1]} : vector<64x128xf32> to vector<8x128xf32>
    %161 = arith.truncf %160 : vector<8x128xf32> to vector<8x128xbf16>
    %162 = vector.extract_strided_slice %45 {offsets = [0, 40], sizes = [128, 8], strides = [1, 1]} : vector<128x64xbf16> to vector<128x8xbf16>
    %cst_48 = arith.constant dense<0.000000e+00> : vector<128x128xf32>
    %163 = tpu.matmul %159, %161, %cst_48 {dimension_numbers = #tpu.dot_dimension_numbers<[1], [0], [0], [1], [0, 0, 1, 1], [], []>} : vector<128x8xbf16>, vector<8x128xbf16>, vector<128x128xf32> -> vector<128x128xf32>
    %164 = arith.addf %163, %9 : vector<128x128xf32>
    %cst_49 = arith.constant dense<0xFF800000> : vector<128xf32>
    %165 = vector.multi_reduction <maximumf>, %164, %cst_49 [1] : vector<128x128xf32> to vector<128xf32>
    %166 = vector.shape_cast %165 : vector<128xf32> to vector<128x1xf32>
    %167 = vector.broadcast %166 : vector<128x1xf32> to vector<128x128xf32>
    %168 = arith.subf %164, %167 : vector<128x128xf32>
    %169 = math.exp %168 : vector<128x128xf32>
    %cst_50 = arith.constant dense<0.000000e+00> : vector<128xf32>
    %170 = vector.multi_reduction <add>, %169, %cst_50 [1] : vector<128x128xf32> to vector<128xf32>
    %171 = vector.shape_cast %170 : vector<128xf32> to vector<128x1xf32>
    %172 = arith.truncf %169 : vector<128x128xf32> to vector<128x128xbf16>
    %cst_51 = arith.constant dense<0.000000e+00> : vector<128x8xf32>
    %173 = tpu.matmul %172, %162, %cst_51 {dimension_numbers = #tpu.dot_dimension_numbers<[1], [0], [0], [1], [0, 0, 1, 1], [], []>} : vector<128x128xbf16>, vector<128x8xbf16>, vector<128x8xf32> -> vector<128x8xf32>
    %174 = tpu.reciprocal %171 {approx = true} : vector<128x1xf32> -> vector<128x1xf32>
    %175 = vector.broadcast %174 : vector<128x1xf32> to vector<128x8xf32>
    %176 = arith.mulf %173, %175 : vector<128x8xf32>
    %177 = arith.truncf %176 : vector<128x8xf32> to vector<128x8xbf16>
    %178 = vector.extract_strided_slice %47 {offsets = [40, 0], sizes = [8, 64], strides = [1, 1]} : vector<64x64xbf16> to vector<8x64xbf16>
    %cst_52 = arith.constant dense<0.000000e+00> : vector<128x64xf32>
    %179 = tpu.matmul %177, %178, %cst_52 {dimension_numbers = #tpu.dot_dimension_numbers<[1], [0], [0], [1], [0, 0, 1, 1], [], []>} : vector<128x8xbf16>, vector<8x64xbf16>, vector<128x64xf32> -> vector<128x64xf32>
    %180 = arith.addf %158, %179 : vector<128x64xf32>
    %181 = vector.extract_strided_slice %41 {offsets = [0, 48], sizes = [128, 8], strides = [1, 1]} : vector<128x64xbf16> to vector<128x8xbf16>
    %182 = vector.extract_strided_slice %43 {offsets = [48, 0], sizes = [8, 128], strides = [1, 1]} : vector<64x128xf32> to vector<8x128xf32>
    %183 = arith.truncf %182 : vector<8x128xf32> to vector<8x128xbf16>
    %184 = vector.extract_strided_slice %45 {offsets = [0, 48], sizes = [128, 8], strides = [1, 1]} : vector<128x64xbf16> to vector<128x8xbf16>
    %cst_53 = arith.constant dense<0.000000e+00> : vector<128x128xf32>
    %185 = tpu.matmul %181, %183, %cst_53 {dimension_numbers = #tpu.dot_dimension_numbers<[1], [0], [0], [1], [0, 0, 1, 1], [], []>} : vector<128x8xbf16>, vector<8x128xbf16>, vector<128x128xf32> -> vector<128x128xf32>
    %186 = arith.addf %185, %9 : vector<128x128xf32>
    %cst_54 = arith.constant dense<0xFF800000> : vector<128xf32>
    %187 = vector.multi_reduction <maximumf>, %186, %cst_54 [1] : vector<128x128xf32> to vector<128xf32>
    %188 = vector.shape_cast %187 : vector<128xf32> to vector<128x1xf32>
    %189 = vector.broadcast %188 : vector<128x1xf32> to vector<128x128xf32>
    %190 = arith.subf %186, %189 : vector<128x128xf32>
    %191 = math.exp %190 : vector<128x128xf32>
    %cst_55 = arith.constant dense<0.000000e+00> : vector<128xf32>
    %192 = vector.multi_reduction <add>, %191, %cst_55 [1] : vector<128x128xf32> to vector<128xf32>
    %193 = vector.shape_cast %192 : vector<128xf32> to vector<128x1xf32>
    %194 = arith.truncf %191 : vector<128x128xf32> to vector<128x128xbf16>
    %cst_56 = arith.constant dense<0.000000e+00> : vector<128x8xf32>
    %195 = tpu.matmul %194, %184, %cst_56 {dimension_numbers = #tpu.dot_dimension_numbers<[1], [0], [0], [1], [0, 0, 1, 1], [], []>} : vector<128x128xbf16>, vector<128x8xbf16>, vector<128x8xf32> -> vector<128x8xf32>
    %196 = tpu.reciprocal %193 {approx = true} : vector<128x1xf32> -> vector<128x1xf32>
    %197 = vector.broadcast %196 : vector<128x1xf32> to vector<128x8xf32>
    %198 = arith.mulf %195, %197 : vector<128x8xf32>
    %199 = arith.truncf %198 : vector<128x8xf32> to vector<128x8xbf16>
    %200 = vector.extract_strided_slice %47 {offsets = [48, 0], sizes = [8, 64], strides = [1, 1]} : vector<64x64xbf16> to vector<8x64xbf16>
    %cst_57 = arith.constant dense<0.000000e+00> : vector<128x64xf32>
    %201 = tpu.matmul %199, %200, %cst_57 {dimension_numbers = #tpu.dot_dimension_numbers<[1], [0], [0], [1], [0, 0, 1, 1], [], []>} : vector<128x8xbf16>, vector<8x64xbf16>, vector<128x64xf32> -> vector<128x64xf32>
    %202 = arith.addf %180, %201 : vector<128x64xf32>
    %203 = vector.extract_strided_slice %41 {offsets = [0, 56], sizes = [128, 8], strides = [1, 1]} : vector<128x64xbf16> to vector<128x8xbf16>
    %204 = vector.extract_strided_slice %43 {offsets = [56, 0], sizes = [8, 128], strides = [1, 1]} : vector<64x128xf32> to vector<8x128xf32>
    %205 = arith.truncf %204 : vector<8x128xf32> to vector<8x128xbf16>
    %206 = vector.extract_strided_slice %45 {offsets = [0, 56], sizes = [128, 8], strides = [1, 1]} : vector<128x64xbf16> to vector<128x8xbf16>
    %cst_58 = arith.constant dense<0.000000e+00> : vector<128x128xf32>
    %207 = tpu.matmul %203, %205, %cst_58 {dimension_numbers = #tpu.dot_dimension_numbers<[1], [0], [0], [1], [0, 0, 1, 1], [], []>} : vector<128x8xbf16>, vector<8x128xbf16>, vector<128x128xf32> -> vector<128x128xf32>
    %208 = arith.addf %207, %9 : vector<128x128xf32>
    %cst_59 = arith.constant dense<0xFF800000> : vector<128xf32>
    %209 = vector.multi_reduction <maximumf>, %208, %cst_59 [1] : vector<128x128xf32> to vector<128xf32>
    %210 = vector.shape_cast %209 : vector<128xf32> to vector<128x1xf32>
    %211 = vector.broadcast %210 : vector<128x1xf32> to vector<128x128xf32>
    %212 = arith.subf %208, %211 : vector<128x128xf32>
    %213 = math.exp %212 : vector<128x128xf32>
    %cst_60 = arith.constant dense<0.000000e+00> : vector<128xf32>
    %214 = vector.multi_reduction <add>, %213, %cst_60 [1] : vector<128x128xf32> to vector<128xf32>
    %215 = vector.shape_cast %214 : vector<128xf32> to vector<128x1xf32>
    %216 = arith.truncf %213 : vector<128x128xf32> to vector<128x128xbf16>
    %cst_61 = arith.constant dense<0.000000e+00> : vector<128x8xf32>
    %217 = tpu.matmul %216, %206, %cst_61 {dimension_numbers = #tpu.dot_dimension_numbers<[1], [0], [0], [1], [0, 0, 1, 1], [], []>} : vector<128x128xbf16>, vector<128x8xbf16>, vector<128x8xf32> -> vector<128x8xf32>
    %218 = tpu.reciprocal %215 {approx = true} : vector<128x1xf32> -> vector<128x1xf32>
    %219 = vector.broadcast %218 : vector<128x1xf32> to vector<128x8xf32>
    %220 = arith.mulf %217, %219 : vector<128x8xf32>
    %221 = arith.truncf %220 : vector<128x8xf32> to vector<128x8xbf16>
    %222 = vector.extract_strided_slice %47 {offsets = [56, 0], sizes = [8, 64], strides = [1, 1]} : vector<64x64xbf16> to vector<8x64xbf16>
    %cst_62 = arith.constant dense<0.000000e+00> : vector<128x64xf32>
    %223 = tpu.matmul %221, %222, %cst_62 {dimension_numbers = #tpu.dot_dimension_numbers<[1], [0], [0], [1], [0, 0, 1, 1], [], []>} : vector<128x8xbf16>, vector<8x64xbf16>, vector<128x64xf32> -> vector<128x64xf32>
    %224 = arith.addf %202, %223 : vector<128x64xf32>
    %225 = arith.addf %3, %224 : vector<128x64xf32>
    %c0_63 = arith.constant 0 : index
    %c0_64 = arith.constant 0 : index
    %c0_65 = arith.constant 0 : index
    %226 = vector.load %arg7[%c0_63, %c0_64, %c0_65] : memref<1x1x64xf32, #tpu.memory_space<vmem>>, vector<1x1x64xf32>
    %227 = vector.shape_cast %226 : vector<1x1x64xf32> to vector<1x64xf32>
    %228 = vector.broadcast %227 : vector<1x64xf32> to vector<128x64xf32>
    %229 = arith.addf %225, %228 : vector<128x64xf32>
    %c0_66 = arith.constant 0 : index
    %c0_67 = arith.constant 0 : index
    %c0_68 = arith.constant 0 : index
    %230 = vector.load %arg8[%c0_66, %c0_67, %c0_68] : memref<1x1x64xf32, #tpu.memory_space<vmem>>, vector<1x1x64xf32>
    %231 = vector.shape_cast %230 : vector<1x1x64xf32> to vector<1x64xf32>
    %c0_69 = arith.constant 0 : index
    %c0_70 = arith.constant 0 : index
    %c0_71 = arith.constant 0 : index
    %232 = vector.load %arg9[%c0_69, %c0_70, %c0_71] : memref<1x1x64xf32, #tpu.memory_space<vmem>>, vector<1x1x64xf32>
    %233 = vector.shape_cast %232 : vector<1x1x64xf32> to vector<1x64xf32>
    %cst_72 = arith.constant dense<0.000000e+00> : vector<128xf32>
    %234 = vector.multi_reduction <add>, %229, %cst_72 [1] : vector<128x64xf32> to vector<128xf32>
    %235 = vector.shape_cast %234 : vector<128xf32> to vector<128x1xf32>
    %cst_73 = arith.constant 6.400000e+01 : f32
    %236 = vector.broadcast %cst_73 : f32 to vector<128x1xf32>
    %237 = arith.divf %235, %236 : vector<128x1xf32>
    %238 = vector.broadcast %237 : vector<128x1xf32> to vector<128x64xf32>
    %239 = arith.subf %229, %238 : vector<128x64xf32>
    %240 = arith.mulf %239, %239 : vector<128x64xf32>
    %cst_74 = arith.constant dense<0.000000e+00> : vector<128xf32>
    %241 = vector.multi_reduction <add>, %240, %cst_74 [1] : vector<128x64xf32> to vector<128xf32>
    %242 = vector.shape_cast %241 : vector<128xf32> to vector<128x1xf32>
    %cst_75 = arith.constant 6.400000e+01 : f32
    %243 = vector.broadcast %cst_75 : f32 to vector<128x1xf32>
    %244 = arith.divf %242, %243 : vector<128x1xf32>
    %cst_76 = arith.constant 9.99999974E-6 : f32
    %245 = vector.broadcast %cst_76 : f32 to vector<128x1xf32>
    %246 = arith.addf %244, %245 : vector<128x1xf32>
    %247 = math.rsqrt %246 : vector<128x1xf32>
    %248 = vector.broadcast %247 : vector<128x1xf32> to vector<128x64xf32>
    %249 = arith.mulf %239, %248 : vector<128x64xf32>
    %250 = vector.broadcast %231 : vector<1x64xf32> to vector<128x64xf32>
    %251 = arith.mulf %249, %250 : vector<128x64xf32>
    %252 = vector.broadcast %233 : vector<1x64xf32> to vector<128x64xf32>
    %253 = arith.addf %251, %252 : vector<128x64xf32>
    %254 = arith.truncf %253 : vector<128x64xf32> to vector<128x64xbf16>
    %c0_77 = arith.constant 0 : index
    %c0_78 = arith.constant 0 : index
    %c0_79 = arith.constant 0 : index
    %255 = vector.load %arg10[%c0_77, %c0_78, %c0_79] : memref<1x64x256xbf16, #tpu.memory_space<vmem>>, vector<1x64x256xbf16>
    %256 = vector.shape_cast %255 : vector<1x64x256xbf16> to vector<64x256xbf16>
    %cst_80 = arith.constant dense<0.000000e+00> : vector<128x256xf32>
    %257 = tpu.matmul %254, %256, %cst_80 {dimension_numbers = #tpu.dot_dimension_numbers<[1], [0], [0], [1], [0, 0, 1, 1], [], []>} : vector<128x64xbf16>, vector<64x256xbf16>, vector<128x256xf32> -> vector<128x256xf32>
    %c0_81 = arith.constant 0 : index
    %c0_82 = arith.constant 0 : index
    %c0_83 = arith.constant 0 : index
    %258 = vector.load %arg11[%c0_81, %c0_82, %c0_83] : memref<1x1x256xf32, #tpu.memory_space<vmem>>, vector<1x1x256xf32>
    %259 = vector.shape_cast %258 : vector<1x1x256xf32> to vector<1x256xf32>
    %260 = vector.broadcast %259 : vector<1x256xf32> to vector<128x256xf32>
    %261 = arith.addf %257, %260 : vector<128x256xf32>
    %cst_84 = arith.constant 0.000000e+00 : f32
    %262 = vector.broadcast %cst_84 : f32 to vector<128x256xf32>
    %263 = arith.maximumf %261, %262 : vector<128x256xf32>
    %264 = arith.truncf %263 : vector<128x256xf32> to vector<128x256xbf16>
    %c0_85 = arith.constant 0 : index
    %c0_86 = arith.constant 0 : index
    %c0_87 = arith.constant 0 : index
    %265 = vector.load %arg12[%c0_85, %c0_86, %c0_87] : memref<1x256x64xbf16, #tpu.memory_space<vmem>>, vector<1x256x64xbf16>
    %266 = vector.shape_cast %265 : vector<1x256x64xbf16> to vector<256x64xbf16>
    %cst_88 = arith.constant dense<0.000000e+00> : vector<128x64xf32>
    %267 = tpu.matmul %264, %266, %cst_88 {dimension_numbers = #tpu.dot_dimension_numbers<[1], [0], [0], [1], [0, 0, 1, 1], [], []>} : vector<128x256xbf16>, vector<256x64xbf16>, vector<128x64xf32> -> vector<128x64xf32>
    %c0_89 = arith.constant 0 : index
    %c0_90 = arith.constant 0 : index
    %c0_91 = arith.constant 0 : index
    %268 = vector.load %arg13[%c0_89, %c0_90, %c0_91] : memref<1x1x64xf32, #tpu.memory_space<vmem>>, vector<1x1x64xf32>
    %269 = vector.shape_cast %268 : vector<1x1x64xf32> to vector<1x64xf32>
    %270 = vector.broadcast %269 : vector<1x64xf32> to vector<128x64xf32>
    %271 = arith.addf %267, %270 : vector<128x64xf32>
    %272 = arith.addf %229, %271 : vector<128x64xf32>
    %c0_92 = arith.constant 0 : index
    %c0_93 = arith.constant 0 : index
    %273 = vector.load %arg19[%c0_92, %c0_93] : memref<128x64xf32, #tpu.memory_space<vmem>>, vector<128x64xf32>
    tpu.vector_store %arg19[%c0_92, %c0_93], %272 {strides = array<i32>} : memref<128x64xf32, #tpu.memory_space<vmem>>, vector<128x64xf32>,
    %c7_i32 = arith.constant 7 : i32
    %274 = arith.cmpi eq, %arg1, %c7_i32 : i32
    %275 = arith.extui %274 : i1 to i32
    %c0_i32_94 = arith.constant 0 : i32
    %276 = arith.cmpi ne, %275, %c0_i32_94 : i32
    scf.if %276 {
      %c0_95 = arith.constant 0 : index
      %c0_96 = arith.constant 0 : index
      %277 = vector.load %arg14[%c0_95, %c0_96] : memref<1x64xf32, #tpu.memory_space<vmem>>, vector<1x64xf32>
      %c0_97 = arith.constant 0 : index
      %c0_98 = arith.constant 0 : index
      %278 = vector.load %arg15[%c0_97, %c0_98] : memref<1x64xf32, #tpu.memory_space<vmem>>, vector<1x64xf32>
      %cst_99 = arith.constant dense<0.000000e+00> : vector<128xf32>
      %279 = vector.multi_reduction <add>, %272, %cst_99 [1] : vector<128x64xf32> to vector<128xf32>
      %280 = vector.shape_cast %279 : vector<128xf32> to vector<128x1xf32>
      %cst_100 = arith.constant 6.400000e+01 : f32
      %281 = vector.broadcast %cst_100 : f32 to vector<128x1xf32>
      %282 = arith.divf %280, %281 : vector<128x1xf32>
      %283 = vector.broadcast %282 : vector<128x1xf32> to vector<128x64xf32>
      %284 = arith.subf %272, %283 : vector<128x64xf32>
      %285 = arith.mulf %284, %284 : vector<128x64xf32>
      %cst_101 = arith.constant dense<0.000000e+00> : vector<128xf32>
      %286 = vector.multi_reduction <add>, %285, %cst_101 [1] : vector<128x64xf32> to vector<128xf32>
      %287 = vector.shape_cast %286 : vector<128xf32> to vector<128x1xf32>
      %cst_102 = arith.constant 6.400000e+01 : f32
      %288 = vector.broadcast %cst_102 : f32 to vector<128x1xf32>
      %289 = arith.divf %287, %288 : vector<128x1xf32>
      %cst_103 = arith.constant 9.99999974E-6 : f32
      %290 = vector.broadcast %cst_103 : f32 to vector<128x1xf32>
      %291 = arith.addf %289, %290 : vector<128x1xf32>
      %292 = math.rsqrt %291 : vector<128x1xf32>
      %293 = vector.broadcast %292 : vector<128x1xf32> to vector<128x64xf32>
      %294 = arith.mulf %284, %293 : vector<128x64xf32>
      %295 = vector.broadcast %277 : vector<1x64xf32> to vector<128x64xf32>
      %296 = arith.mulf %294, %295 : vector<128x64xf32>
      %297 = vector.broadcast %278 : vector<1x64xf32> to vector<128x64xf32>
      %298 = arith.addf %296, %297 : vector<128x64xf32>
      %299 = arith.truncf %298 : vector<128x64xf32> to vector<128x64xbf16>
      %c0_104 = arith.constant 0 : index
      %c0_105 = arith.constant 0 : index
      %300 = vector.load %arg16[%c0_104, %c0_105] : memref<64x128xbf16, #tpu.memory_space<vmem>>, vector<64x128xbf16>
      %cst_106 = arith.constant dense<0.000000e+00> : vector<128x128xf32>
      %301 = tpu.matmul %299, %300, %cst_106 {dimension_numbers = #tpu.dot_dimension_numbers<[1], [0], [0], [1], [0, 0, 1, 1], [], []>} : vector<128x64xbf16>, vector<64x128xbf16>, vector<128x128xf32> -> vector<128x128xf32>
      %c0_107 = arith.constant 0 : index
      %c0_108 = arith.constant 0 : index
      %302 = vector.load %arg17[%c0_107, %c0_108] : memref<1x128xf32, #tpu.memory_space<vmem>>, vector<1x128xf32>
      %303 = vector.broadcast %302 : vector<1x128xf32> to vector<128x128xf32>
      %304 = arith.addf %301, %303 : vector<128x128xf32>
      %305 = arith.truncf %304 : vector<128x128xf32> to vector<128x128xbf16>
      %c0_109 = arith.constant 0 : index
      %c0_110 = arith.constant 0 : index
      %c0_111 = arith.constant 0 : index
      %306 = vector.load %arg18[%c0_109, %c0_110, %c0_111] : memref<1x128x128xbf16, #tpu.memory_space<vmem>>, vector<1x128x128xbf16>
      %307 = vector.shape_cast %306 : vector<1x128x128xbf16> to vector<128x128xbf16>
      %308 = vector.shape_cast %305 : vector<128x128xbf16> to vector<1x128x128xbf16>
      tpu.vector_store %arg18[%c0_109, %c0_110, %c0_111], %308 {strides = array<i32>} : memref<1x128x128xbf16, #tpu.memory_space<vmem>>, vector<1x128x128xbf16>,
    } else {
    }
    return
  }
  func.func @transform_0(%arg0: i32, %arg1: i32) -> (i32, i32, i32) {
    %c0_i32 = arith.constant 0 : i32
    %c0_i32_0 = arith.constant 0 : i32
    %c0_i32_1 = arith.constant 0 : i32
    return %arg0, %c0_i32, %c0_i32_0 : i32, i32, i32
  }
  func.func @transform_1(%arg0: i32, %arg1: i32) -> (i32, i32, i32) {
    %c0_i32 = arith.constant 0 : i32
    %c0_i32_0 = arith.constant 0 : i32
    %c0_i32_1 = arith.constant 0 : i32
    return %arg1, %c0_i32, %c0_i32_0 : i32, i32, i32
  }
  func.func @transform_2(%arg0: i32, %arg1: i32) -> (i32, i32, i32) {
    %c0_i32 = arith.constant 0 : i32
    %c0_i32_0 = arith.constant 0 : i32
    %c0_i32_1 = arith.constant 0 : i32
    return %arg1, %c0_i32, %c0_i32_0 : i32, i32, i32
  }
  func.func @transform_3(%arg0: i32, %arg1: i32) -> (i32, i32, i32) {
    %c0_i32 = arith.constant 0 : i32
    %c0_i32_0 = arith.constant 0 : i32
    %c0_i32_1 = arith.constant 0 : i32
    return %arg1, %c0_i32, %c0_i32_0 : i32, i32, i32
  }
  func.func @transform_4(%arg0: i32, %arg1: i32) -> (i32, i32, i32) {
    %c0_i32 = arith.constant 0 : i32
    %c0_i32_0 = arith.constant 0 : i32
    %c0_i32_1 = arith.constant 0 : i32
    return %arg1, %c0_i32, %c0_i32_0 : i32, i32, i32
  }
  func.func @transform_5(%arg0: i32, %arg1: i32) -> (i32, i32, i32) {
    %c0_i32 = arith.constant 0 : i32
    %c0_i32_0 = arith.constant 0 : i32
    %c0_i32_1 = arith.constant 0 : i32
    return %arg1, %c0_i32, %c0_i32_0 : i32, i32, i32
  }
  func.func @transform_6(%arg0: i32, %arg1: i32) -> (i32, i32, i32) {
    %c0_i32 = arith.constant 0 : i32
    %c0_i32_0 = arith.constant 0 : i32
    %c0_i32_1 = arith.constant 0 : i32
    return %arg1, %c0_i32, %c0_i32_0 : i32, i32, i32
  }
  func.func @transform_7(%arg0: i32, %arg1: i32) -> (i32, i32, i32) {
    %c0_i32 = arith.constant 0 : i32
    %c0_i32_0 = arith.constant 0 : i32
    %c0_i32_1 = arith.constant 0 : i32
    return %arg1, %c0_i32, %c0_i32_0 : i32, i32, i32
  }
  func.func @transform_8(%arg0: i32, %arg1: i32) -> (i32, i32, i32) {
    %c0_i32 = arith.constant 0 : i32
    %c0_i32_0 = arith.constant 0 : i32
    %c0_i32_1 = arith.constant 0 : i32
    return %arg1, %c0_i32, %c0_i32_0 : i32, i32, i32
  }
  func.func @transform_9(%arg0: i32, %arg1: i32) -> (i32, i32, i32) {
    %c0_i32 = arith.constant 0 : i32
    %c0_i32_0 = arith.constant 0 : i32
    %c0_i32_1 = arith.constant 0 : i32
    return %arg1, %c0_i32, %c0_i32_0 : i32, i32, i32
  }
  func.func @transform_10(%arg0: i32, %arg1: i32) -> (i32, i32, i32) {
    %c0_i32 = arith.constant 0 : i32
    %c0_i32_0 = arith.constant 0 : i32
    %c0_i32_1 = arith.constant 0 : i32
    return %arg1, %c0_i32, %c0_i32_0 : i32, i32, i32
  }
  func.func @transform_11(%arg0: i32, %arg1: i32) -> (i32, i32, i32) {
    %c0_i32 = arith.constant 0 : i32
    %c0_i32_0 = arith.constant 0 : i32
    %c0_i32_1 = arith.constant 0 : i32
    return %arg1, %c0_i32, %c0_i32_0 : i32, i32, i32
  }
  func.func @transform_12(%arg0: i32, %arg1: i32) -> (i32, i32) {
    %c0_i32 = arith.constant 0 : i32
    %c0_i32_0 = arith.constant 0 : i32
    %c0_i32_1 = arith.constant 0 : i32
    return %c0_i32, %c0_i32_0 : i32, i32
  }
  func.func @transform_13(%arg0: i32, %arg1: i32) -> (i32, i32) {
    %c0_i32 = arith.constant 0 : i32
    %c0_i32_0 = arith.constant 0 : i32
    %c0_i32_1 = arith.constant 0 : i32
    return %c0_i32, %c0_i32_0 : i32, i32
  }
  func.func @transform_14(%arg0: i32, %arg1: i32) -> (i32, i32) {
    %c0_i32 = arith.constant 0 : i32
    %c0_i32_0 = arith.constant 0 : i32
    %c0_i32_1 = arith.constant 0 : i32
    return %c0_i32, %c0_i32_0 : i32, i32
  }
  func.func @transform_15(%arg0: i32, %arg1: i32) -> (i32, i32) {
    %c0_i32 = arith.constant 0 : i32
    %c0_i32_0 = arith.constant 0 : i32
    %c0_i32_1 = arith.constant 0 : i32
    return %c0_i32, %c0_i32_0 : i32, i32
  }
  func.func @transform_16(%arg0: i32, %arg1: i32) -> (i32, i32, i32) {
    %c0_i32 = arith.constant 0 : i32
    %c0_i32_0 = arith.constant 0 : i32
    %c0_i32_1 = arith.constant 0 : i32
    return %arg0, %c0_i32, %c0_i32_0 : i32, i32, i32
  }
}

</mosaic_0001>

<llo_original>
// kernel: heart_gpt_forward.1
$region0: #{heart_gpt_forward.1}
  #allocation0 [shape = 'u32[]', space=smem, size = 0x4, offset = 0x4, fixed_abs, tag = 'smem constant byte address 0x4 - core index']
  #allocation1 [shape = 'u32[72,128]{1,0:T(1,128)}', space=vmem, size = 0x9000, scoped, tag = 'internal scratch']
  #allocation2 [shape = 'f32[128,64]{1,0:T(8,128)}', space=vmem, size = 0x10000, scoped, tag = 'scratch operand']
  %s0 = inlined_call_operand.vmem [shape: f32[2,128,64], index: 0, kind: input, shape index: {}]
  %s1 = inlined_call_operand.vmem [shape: f32[8,1,64], index: 1, kind: input, shape index: {}]
  %s2 = inlined_call_operand.vmem [shape: f32[8,1,64], index: 2, kind: input, shape index: {}]
  %s3 = inlined_call_operand.vmem [shape: bf16[8,64,192], index: 3, kind: input, shape index: {}]
  %s4 = inlined_call_operand.vmem [shape: bf16[8,64,64], index: 4, kind: input, shape index: {}]
  %s5 = inlined_call_operand.vmem [shape: f32[8,1,64], index: 5, kind: input, shape index: {}]
  %s6 = inlined_call_operand.vmem [shape: f32[8,1,64], index: 6, kind: input, shape index: {}]
  %s7 = inlined_call_operand.vmem [shape: f32[8,1,64], index: 7, kind: input, shape index: {}]
  %s8 = inlined_call_operand.vmem [shape: bf16[8,64,256], index: 8, kind: input, shape index: {}]
  %s9 = inlined_call_operand.vmem [shape: f32[8,1,256], index: 9, kind: input, shape index: {}]
  %s10 = inlined_call_operand.vmem [shape: bf16[8,256,64], index: 10, kind: input, shape index: {}]
  %s11 = inlined_call_operand.vmem [shape: f32[8,1,64], index: 11, kind: input, shape index: {}]
  %s12 = inlined_call_operand.vmem [shape: f32[1,64], index: 12, kind: input, shape index: {}]
  %s13 = inlined_call_operand.vmem [shape: f32[1,64], index: 13, kind: input, shape index: {}]
  %s14 = inlined_call_operand.vmem [shape: bf16[64,128], index: 14, kind: input, shape index: {}]
  %s15 = inlined_call_operand.vmem [shape: f32[1,128], index: 15, kind: input, shape index: {}]
  %s16 = inlined_call_operand.vmem [shape: bf16[2,128,128], index: 16, kind: output, shape index: {}]
  %s17 = sld [smem:[#allocation0]]
  $region105: #{heart_gpt_forward.1} parent=0
    _
  %s19 = ssub.s32 1, %s17
  %s20 = scalar_select 0, %s19, %s17
  loop: start=0, step=1, limit=18
  $region2: #{heart_gpt_forward.1} parent=0 // loop_pre_header
    _
  $region3: #{heart_gpt_forward.1} parent=0 // loop_header
    %s22 = sphi 0, %s26
    %p23 = scmp.ge.s32.totalorder %s22, 18
    %s29 = sphi 0, %s41
    %s30 = sphi 0, %s37
    %s31 = sphi 0, %s29
    %s32 = sphi 0, %s30
    %s33 = sphi 0, %s31
    %s34 = sphi 0, %s32
    %s44 = sphi 0, %s46
    %s47 = sphi 0, %s44
    %s48 = sphi 0, %s47
    %s64 = sphi 0, %s48
    %s70 = sphi 0, %s72
    %s73 = sphi 0, %s70
    %s74 = sphi 0, %s73
    %s90 = sphi 0, %s74
    %s96 = sphi 0, %s98
    %s99 = sphi 0, %s96
    %s100 = sphi 0, %s99
    %s116 = sphi 0, %s100
    %s122 = sphi 0, %s124
    %s125 = sphi 0, %s122
    %s126 = sphi 0, %s125
    %s142 = sphi 0, %s126
    %s148 = sphi 0, %s150
    %s151 = sphi 0, %s148
    %s152 = sphi 0, %s151
    %s168 = sphi 0, %s152
    %s174 = sphi 0, %s176
    %s177 = sphi 0, %s174
    %s178 = sphi 0, %s177
    %s194 = sphi 0, %s178
    %s200 = sphi 0, %s202
    %s203 = sphi 0, %s200
    %s204 = sphi 0, %s203
    %s220 = sphi 0, %s204
    %s226 = sphi 0, %s228
    %s229 = sphi 0, %s226
    %s230 = sphi 0, %s229
    %s246 = sphi 0, %s230
    %s252 = sphi 0, %s254
    %s255 = sphi 0, %s252
    %s256 = sphi 0, %s255
    %s272 = sphi 0, %s256
    %s278 = sphi 0, %s280
    %s281 = sphi 0, %s278
    %s282 = sphi 0, %s281
    %s298 = sphi 0, %s282
    %s304 = sphi 0, %s306
    %s307 = sphi 0, %s304
    %s308 = sphi 0, %s307
    %s324 = sphi 0, %s308
    %s330 = sphi 0, %s332
    %s333 = sphi 0, %s330
    %s334 = sphi 0, %s333
    %s350 = sphi 0, %s334
    %s354 = sphi 0, %s354
    %s356 = sphi 0, %s354
    %s357 = sphi 0, %s356
    %s371 = sphi 0, %s357
    %s375 = sphi 0, %s375
    %s377 = sphi 0, %s375
    %s378 = sphi 0, %s377
    %s392 = sphi 0, %s378
    %s396 = sphi 0, %s396
    %s398 = sphi 0, %s396
    %s399 = sphi 0, %s398
    %s413 = sphi 0, %s399
    %s417 = sphi 0, %s417
    %s419 = sphi 0, %s417
    %s420 = sphi 0, %s419
    %s434 = sphi 0, %s420
    %s440 = sphi 0, %s442
    %s443 = sphi 0, %s440
    %s444 = sphi 0, %s443
    %s460 = sphi 0, %s444
  $region4: #{heart_gpt_forward.1} parent=0 // loop_header_branch
    %25 = sbr.rel (%p23) target = $region8
  $region5: #{heart_gpt_forward.1} parent=0 // loop_body
    %s27 = ssub.s32 %s22, 1
    %s28 = ssub.s32 %s22, 2
    %s35 = sadd.s32 1, %s30
    %p36 = scmp.ge.s32.totalorder %s35, 8
    %s37 = scalar_select %p36, 0, %s35
    %s38 = sadd.s32 1, %s29
    %s39 = scalar_select %p36, %s38, %s29
    %p40 = scmp.ge.s32.totalorder %s39, 2
    %s41 = scalar_select %p40, 0, %s39
    %s42 = ssub.s32 %s29, %s41
    %p43 = scmp.eq.s32.totalorder %s42, 0
    %s45 = sadd.s32 %s44, 1
    %s46 = scalar_select %p43, %s44, %s45
    %p49 = pneg %p43
    %p50 = scmp.eq.s32.totalorder %s22, 15
    %p51 = por %p49, %p50
    %p52 = scmp.ne.s32.totalorder %s44, %s47
    %p53 = scmp.eq.s32.totalorder %s22, 0
    %p54 = por %p52, %p53
    %p55 = scmp.ne.s32.totalorder %s44, %s47
    %p56 = scmp.eq.s32.totalorder %s27, 15
    %p57 = por %p55, %p56
    %p58 = scmp.ne.s32.totalorder %s47, %s48
    %p59 = scmp.eq.s32.totalorder %s27, 0
    %p60 = por %p58, %p59
    %p61 = scmp.ne.s32.totalorder %s47, %s48
    %p62 = scmp.eq.s32.totalorder %s28, 15
    %p63 = por %p61, %p62
    %p65 = scmp.ne.s32.totalorder %s48, %s64
    %p66 = scmp.eq.s32.totalorder %s28, 0
    %p67 = por %p65, %p66
    %s68 = ssub.s32 %s30, %s37
    %p69 = scmp.eq.s32.totalorder %s68, 0
    %s71 = sadd.s32 %s70, 1
    %s72 = scalar_select %p69, %s70, %s71
    %p75 = pneg %p69
    %p76 = scmp.eq.s32.totalorder %s22, 15
    %p77 = por %p75, %p76
    %p78 = scmp.ne.s32.totalorder %s70, %s73
    %p79 = scmp.eq.s32.totalorder %s22, 0
    %p80 = por %p78, %p79
    %p81 = scmp.ne.s32.totalorder %s70, %s73
    %p82 = scmp.eq.s32.totalorder %s27, 15
    %p83 = por %p81, %p82
    %p84 = scmp.ne.s32.totalorder %s73, %s74
    %p85 = scmp.eq.s32.totalorder %s27, 0
    %p86 = por %p84, %p85
    %p87 = scmp.ne.s32.totalorder %s73, %s74
    %p88 = scmp.eq.s32.totalorder %s28, 15
    %p89 = por %p87, %p88
    %p91 = scmp.ne.s32.totalorder %s74, %s90
    %p92 = scmp.eq.s32.totalorder %s28, 0
    %p93 = por %p91, %p92
    %s94 = ssub.s32 %s30, %s37
    %p95 = scmp.eq.s32.totalorder %s94, 0
    %s97 = sadd.s32 %s96, 1
    %s98 = scalar_select %p95, %s96, %s97
    %p101 = pneg %p95
    %p102 = scmp.eq.s32.totalorder %s22, 15
    %p103 = por %p101, %p102
    %p104 = scmp.ne.s32.totalorder %s96, %s99
    %p105 = scmp.eq.s32.totalorder %s22, 0
    %p106 = por %p104, %p105
    %p107 = scmp.ne.s32.totalorder %s96, %s99
    %p108 = scmp.eq.s32.totalorder %s27, 15
    %p109 = por %p107, %p108
    %p110 = scmp.ne.s32.totalorder %s99, %s100
    %p111 = scmp.eq.s32.totalorder %s27, 0
    %p112 = por %p110, %p111
    %p113 = scmp.ne.s32.totalorder %s99, %s100
    %p114 = scmp.eq.s32.totalorder %s28, 15
    %p115 = por %p113, %p114
    %p117 = scmp.ne.s32.totalorder %s100, %s116
    %p118 = scmp.eq.s32.totalorder %s28, 0
    %p119 = por %p117, %p118
    %s120 = ssub.s32 %s30, %s37
    %p121 = scmp.eq.s32.totalorder %s120, 0
    %s123 = sadd.s32 %s122, 1
    %s124 = scalar_select %p121, %s122, %s123
    %p127 = pneg %p121
    %p128 = scmp.eq.s32.totalorder %s22, 15
    %p129 = por %p127, %p128
    %p130 = scmp.ne.s32.totalorder %s122, %s125
    %p131 = scmp.eq.s32.totalorder %s22, 0
    %p132 = por %p130, %p131
    %p133 = scmp.ne.s32.totalorder %s122, %s125
    %p134 = scmp.eq.s32.totalorder %s27, 15
    %p135 = por %p133, %p134
    %p136 = scmp.ne.s32.totalorder %s125, %s126
    %p137 = scmp.eq.s32.totalorder %s27, 0
    %p138 = por %p136, %p137
    %p139 = scmp.ne.s32.totalorder %s125, %s126
    %p140 = scmp.eq.s32.totalorder %s28, 15
    %p141 = por %p139, %p140
    %p143 = scmp.ne.s32.totalorder %s126, %s142
    %p144 = scmp.eq.s32.totalorder %s28, 0
    %p145 = por %p143, %p144
    %s146 = ssub.s32 %s30, %s37
    %p147 = scmp.eq.s32.totalorder %s146, 0
    %s149 = sadd.s32 %s148, 1
    %s150 = scalar_select %p147, %s148, %s149
    %p153 = pneg %p147
    %p154 = scmp.eq.s32.totalorder %s22, 15
    %p155 = por %p153, %p154
    %p156 = scmp.ne.s32.totalorder %s148, %s151
    %p157 = scmp.eq.s32.totalorder %s22, 0
    %p158 = por %p156, %p157
    %p159 = scmp.ne.s32.totalorder %s148, %s151
    %p160 = scmp.eq.s32.totalorder %s27, 15
    %p161 = por %p159, %p160
    %p162 = scmp.ne.s32.totalorder %s151, %s152
    %p163 = scmp.eq.s32.totalorder %s27, 0
    %p164 = por %p162, %p163
    %p165 = scmp.ne.s32.totalorder %s151, %s152
    %p166 = scmp.eq.s32.totalorder %s28, 15
    %p167 = por %p165, %p166
    %p169 = scmp.ne.s32.totalorder %s152, %s168
    %p170 = scmp.eq.s32.totalorder %s28, 0
    %p171 = por %p169, %p170
    %s172 = ssub.s32 %s30, %s37
    %p173 = scmp.eq.s32.totalorder %s172, 0
    %s175 = sadd.s32 %s174, 1
    %s176 = scalar_select %p173, %s174, %s175
    %p179 = pneg %p173
    %p180 = scmp.eq.s32.totalorder %s22, 15
    %p181 = por %p179, %p180
    %p182 = scmp.ne.s32.totalorder %s174, %s177
    %p183 = scmp.eq.s32.totalorder %s22, 0
    %p184 = por %p182, %p183
    %p185 = scmp.ne.s32.totalorder %s174, %s177
    %p186 = scmp.eq.s32.totalorder %s27, 15
    %p187 = por %p185, %p186
    %p188 = scmp.ne.s32.totalorder %s177, %s178
    %p189 = scmp.eq.s32.totalorder %s27, 0
    %p190 = por %p188, %p189
    %p191 = scmp.ne.s32.totalorder %s177, %s178
    %p192 = scmp.eq.s32.totalorder %s28, 15
    %p193 = por %p191, %p192
    %p195 = scmp.ne.s32.totalorder %s178, %s194
    %p196 = scmp.eq.s32.totalorder %s28, 0
    %p197 = por %p195, %p196
    %s198 = ssub.s32 %s30, %s37
    %p199 = scmp.eq.s32.totalorder %s198, 0
    %s201 = sadd.s32 %s200, 1
    %s202 = scalar_select %p199, %s200, %s201
    %p205 = pneg %p199
    %p206 = scmp.eq.s32.totalorder %s22, 15
    %p207 = por %p205, %p206
    %p208 = scmp.ne.s32.totalorder %s200, %s203
    %p209 = scmp.eq.s32.totalorder %s22, 0
    %p210 = por %p208, %p209
    %p211 = scmp.ne.s32.totalorder %s200, %s203
    %p212 = scmp.eq.s32.totalorder %s27, 15
    %p213 = por %p211, %p212
    %p214 = scmp.ne.s32.totalorder %s203, %s204
    %p215 = scmp.eq.s32.totalorder %s27, 0
    %p216 = por %p214, %p215
    %p217 = scmp.ne.s32.totalorder %s203, %s204
    %p218 = scmp.eq.s32.totalorder %s28, 15
    %p219 = por %p217, %p218
    %p221 = scmp.ne.s32.totalorder %s204, %s220
    %p222 = scmp.eq.s32.totalorder %s28, 0
    %p223 = por %p221, %p222
    %s224 = ssub.s32 %s30, %s37
    %p225 = scmp.eq.s32.totalorder %s224, 0
    %s227 = sadd.s32 %s226, 1
    %s228 = scalar_select %p225, %s226, %s227
    %p231 = pneg %p225
    %p232 = scmp.eq.s32.totalorder %s22, 15
    %p233 = por %p231, %p232
    %p234 = scmp.ne.s32.totalorder %s226, %s229
    %p235 = scmp.eq.s32.totalorder %s22, 0
    %p236 = por %p234, %p235
    %p237 = scmp.ne.s32.totalorder %s226, %s229
    %p238 = scmp.eq.s32.totalorder %s27, 15
    %p239 = por %p237, %p238
    %p240 = scmp.ne.s32.totalorder %s229, %s230
    %p241 = scmp.eq.s32.totalorder %s27, 0
    %p242 = por %p240, %p241
    %p243 = scmp.ne.s32.totalorder %s229, %s230
    %p244 = scmp.eq.s32.totalorder %s28, 15
    %p245 = por %p243, %p244
    %p247 = scmp.ne.s32.totalorder %s230, %s246
    %p248 = scmp.eq.s32.totalorder %s28, 0
    %p249 = por %p247, %p248
    %s250 = ssub.s32 %s30, %s37
    %p251 = scmp.eq.s32.totalorder %s250, 0
    %s253 = sadd.s32 %s252, 1
    %s254 = scalar_select %p251, %s252, %s253
    %p257 = pneg %p251
    %p258 = scmp.eq.s32.totalorder %s22, 15
    %p259 = por %p257, %p258
    %p260 = scmp.ne.s32.totalorder %s252, %s255
    %p261 = scmp.eq.s32.totalorder %s22, 0
    %p262 = por %p260, %p261
    %p263 = scmp.ne.s32.totalorder %s252, %s255
    %p264 = scmp.eq.s32.totalorder %s27, 15
    %p265 = por %p263, %p264
    %p266 = scmp.ne.s32.totalorder %s255, %s256
    %p267 = scmp.eq.s32.totalorder %s27, 0
    %p268 = por %p266, %p267
    %p269 = scmp.ne.s32.totalorder %s255, %s256
    %p270 = scmp.eq.s32.totalorder %s28, 15
    %p271 = por %p269, %p270
    %p273 = scmp.ne.s32.totalorder %s256, %s272
    %p274 = scmp.eq.s32.totalorder %s28, 0
    %p275 = por %p273, %p274
    %s276 = ssub.s32 %s30, %s37
    %p277 = scmp.eq.s32.totalorder %s276, 0
    %s279 = sadd.s32 %s278, 1
    %s280 = scalar_select %p277, %s278, %s279
    %p283 = pneg %p277
    %p284 = scmp.eq.s32.totalorder %s22, 15
    %p285 = por %p283, %p284
    %p286 = scmp.ne.s32.totalorder %s278, %s281
    %p287 = scmp.eq.s32.totalorder %s22, 0
    %p288 = por %p286, %p287
    %p289 = scmp.ne.s32.totalorder %s278, %s281
    %p290 = scmp.eq.s32.totalorder %s27, 15
    %p291 = por %p289, %p290
    %p292 = scmp.ne.s32.totalorder %s281, %s282
    %p293 = scmp.eq.s32.totalorder %s27, 0
    %p294 = por %p292, %p293
    %p295 = scmp.ne.s32.totalorder %s281, %s282
    %p296 = scmp.eq.s32.totalorder %s28, 15
    %p297 = por %p295, %p296
    %p299 = scmp.ne.s32.totalorder %s282, %s298
    %p300 = scmp.eq.s32.totalorder %s28, 0
    %p301 = por %p299, %p300
    %s302 = ssub.s32 %s30, %s37
    %p303 = scmp.eq.s32.totalorder %s302, 0
    %s305 = sadd.s32 %s304, 1
    %s306 = scalar_select %p303, %s304, %s305
    %p309 = pneg %p303
    %p310 = scmp.eq.s32.totalorder %s22, 15
    %p311 = por %p309, %p310
    %p312 = scmp.ne.s32.totalorder %s304, %s307
    %p313 = scmp.eq.s32.totalorder %s22, 0
    %p314 = por %p312, %p313
    %p315 = scmp.ne.s32.totalorder %s304, %s307
    %p316 = scmp.eq.s32.totalorder %s27, 15
    %p317 = por %p315, %p316
    %p318 = scmp.ne.s32.totalorder %s307, %s308
    %p319 = scmp.eq.s32.totalorder %s27, 0
    %p320 = por %p318, %p319
    %p321 = scmp.ne.s32.totalorder %s307, %s308
    %p322 = scmp.eq.s32.totalorder %s28, 15
    %p323 = por %p321, %p322
    %p325 = scmp.ne.s32.totalorder %s308, %s324
    %p326 = scmp.eq.s32.totalorder %s28, 0
    %p327 = por %p325, %p326
    %s328 = ssub.s32 %s30, %s37
    %p329 = scmp.eq.s32.totalorder %s328, 0
    %s331 = sadd.s32 %s330, 1
    %s332 = scalar_select %p329, %s330, %s331
    %p335 = pneg %p329
    %p336 = scmp.eq.s32.totalorder %s22, 15
    %p337 = por %p335, %p336
    %p338 = scmp.ne.s32.totalorder %s330, %s333
    %p339 = scmp.eq.s32.totalorder %s22, 0
    %p340 = por %p338, %p339
    %p341 = scmp.ne.s32.totalorder %s330, %s333
    %p342 = scmp.eq.s32.totalorder %s27, 15
    %p343 = por %p341, %p342
    %p344 = scmp.ne.s32.totalorder %s333, %s334
    %p345 = scmp.eq.s32.totalorder %s27, 0
    %p346 = por %p344, %p345
    %p347 = scmp.ne.s32.totalorder %s333, %s334
    %p348 = scmp.eq.s32.totalorder %s28, 15
    %p349 = por %p347, %p348
    %p351 = scmp.ne.s32.totalorder %s334, %s350
    %p352 = scmp.eq.s32.totalorder %s28, 0
    %p353 = por %p351, %p352
    %s355 = sadd.s32 %s354, 1
    %p358 = scmp.eq.s32.totalorder %s22, 15
    %p359 = scmp.ne.s32.totalorder %s354, %s356
    %p360 = scmp.eq.s32.totalorder %s22, 0
    %p361 = por %p359, %p360
    %p362 = scmp.ne.s32.totalorder %s354, %s356
    %p363 = scmp.eq.s32.totalorder %s27, 15
    %p364 = por %p362, %p363
    %p365 = scmp.ne.s32.totalorder %s356, %s357
    %p366 = scmp.eq.s32.totalorder %s27, 0
    %p367 = por %p365, %p366
    %p368 = scmp.ne.s32.totalorder %s356, %s357
    %p369 = scmp.eq.s32.totalorder %s28, 15
    %p370 = por %p368, %p369
    %p372 = scmp.ne.s32.totalorder %s357, %s371
    %p373 = scmp.eq.s32.totalorder %s28, 0
    %p374 = por %p372, %p373
    %s376 = sadd.s32 %s375, 1
    %p379 = scmp.eq.s32.totalorder %s22, 15
    %p380 = scmp.ne.s32.totalorder %s375, %s377
    %p381 = scmp.eq.s32.totalorder %s22, 0
    %p382 = por %p380, %p381
    %p383 = scmp.ne.s32.totalorder %s375, %s377
    %p384 = scmp.eq.s32.totalorder %s27, 15
    %p385 = por %p383, %p384
    %p386 = scmp.ne.s32.totalorder %s377, %s378
    %p387 = scmp.eq.s32.totalorder %s27, 0
    %p388 = por %p386, %p387
    %p389 = scmp.ne.s32.totalorder %s377, %s378
    %p390 = scmp.eq.s32.totalorder %s28, 15
    %p391 = por %p389, %p390
    %p393 = scmp.ne.s32.totalorder %s378, %s392
    %p394 = scmp.eq.s32.totalorder %s28, 0
    %p395 = por %p393, %p394
    %s397 = sadd.s32 %s396, 1
    %p400 = scmp.eq.s32.totalorder %s22, 15
    %p401 = scmp.ne.s32.totalorder %s396, %s398
    %p402 = scmp.eq.s32.totalorder %s22, 0
    %p403 = por %p401, %p402
    %p404 = scmp.ne.s32.totalorder %s396, %s398
    %p405 = scmp.eq.s32.totalorder %s27, 15
    %p406 = por %p404, %p405
    %p407 = scmp.ne.s32.totalorder %s398, %s399
    %p408 = scmp.eq.s32.totalorder %s27, 0
    %p409 = por %p407, %p408
    %p410 = scmp.ne.s32.totalorder %s398, %s399
    %p411 = scmp.eq.s32.totalorder %s28, 15
    %p412 = por %p410, %p411
    %p414 = scmp.ne.s32.totalorder %s399, %s413
    %p415 = scmp.eq.s32.totalorder %s28, 0
    %p416 = por %p414, %p415
    %s418 = sadd.s32 %s417, 1
    %p421 = scmp.eq.s32.totalorder %s22, 15
    %p422 = scmp.ne.s32.totalorder %s417, %s419
    %p423 = scmp.eq.s32.totalorder %s22, 0
    %p424 = por %p422, %p423
    %p425 = scmp.ne.s32.totalorder %s417, %s419
    %p426 = scmp.eq.s32.totalorder %s27, 15
    %p427 = por %p425, %p426
    %p428 = scmp.ne.s32.totalorder %s419, %s420
    %p429 = scmp.eq.s32.totalorder %s27, 0
    %p430 = por %p428, %p429
    %p431 = scmp.ne.s32.totalorder %s419, %s420
    %p432 = scmp.eq.s32.totalorder %s28, 15
    %p433 = por %p431, %p432
    %p435 = scmp.ne.s32.totalorder %s420, %s434
    %p436 = scmp.eq.s32.totalorder %s28, 0
    %p437 = por %p435, %p436
    %s438 = ssub.s32 %s29, %s41
    %p439 = scmp.eq.s32.totalorder %s438, 0
    %s441 = sadd.s32 %s440, 1
    %s442 = scalar_select %p439, %s440, %s441
    %p445 = pneg %p439
    %p446 = scmp.eq.s32.totalorder %s22, 15
    %p447 = por %p445, %p446
    %p448 = scmp.ne.s32.totalorder %s440, %s443
    %p449 = scmp.eq.s32.totalorder %s22, 0
    %p450 = por %p448, %p449
    %p451 = scmp.ne.s32.totalorder %s440, %s443
    %p452 = scmp.eq.s32.totalorder %s27, 15
    %p453 = por %p451, %p452
    %p454 = scmp.ne.s32.totalorder %s443, %s444
    %p455 = scmp.eq.s32.totalorder %s27, 0
    %p456 = por %p454, %p455
    %p457 = scmp.ne.s32.totalorder %s443, %s444
    %p458 = scmp.eq.s32.totalorder %s28, 15
    %p459 = por %p457, %p458
    %p461 = scmp.ne.s32.totalorder %s444, %s460
    %p462 = scmp.eq.s32.totalorder %s28, 0
    %p463 = por %p461, %p462
    %p464 = scmp.le.s32.totalorder 1, %s22
    %p465 = scmp.lt.s32.totalorder %s22, 17
    %p466 = pnand %p464, %p465
    %p467 = pneg %p466
    // Predicated region
    $region9: #{heart_gpt_forward.1} parent=5 // pred_check
      _
    $region10: #{heart_gpt_forward.1} parent=5 // pred_check_branch
      %469 = sbr.rel (%p466) target = $region12
    $region11: #{heart_gpt_forward.1} parent=5 // pred_region
      %s470 = ssub.s32 %s22, 1
      // Predicated region
      $region13: #{heart_gpt_forward.1} parent=11 // pred_check
        %p471 = pneg %p367
      $region14: #{heart_gpt_forward.1} parent=11 // pred_check_branch
        %473 = sbr.rel (%p471) target = $region16
      $region15: #{heart_gpt_forward.1} parent=11 // pred_region
        _
      $region16: #{heart_gpt_forward.1} parent=11 // pred_fallthru
        _
      // Predicated region
      $region17: #{heart_gpt_forward.1} parent=11 // pred_check
        %p474 = pneg %p388
      $region18: #{heart_gpt_forward.1} parent=11 // pred_check_branch
        %476 = sbr.rel (%p474) target = $region20
      $region19: #{heart_gpt_forward.1} parent=11 // pred_region
        _
      $region20: #{heart_gpt_forward.1} parent=11 // pred_fallthru
        _
      // Predicated region
      $region21: #{heart_gpt_forward.1} parent=11 // pred_check
        %p477 = pneg %p409
      $region22: #{heart_gpt_forward.1} parent=11 // pred_check_branch
        %479 = sbr.rel (%p477) target = $region24
      $region23: #{heart_gpt_forward.1} parent=11 // pred_region
        _
      $region24: #{heart_gpt_forward.1} parent=11 // pred_fallthru
        _
      // Predicated region
      $region25: #{heart_gpt_forward.1} parent=11 // pred_check
        %p480 = pneg %p430
      $region26: #{heart_gpt_forward.1} parent=11 // pred_check_branch
        %482 = sbr.rel (%p480) target = $region28
      $region27: #{heart_gpt_forward.1} parent=11 // pred_region
        _
      $region28: #{heart_gpt_forward.1} parent=11 // pred_fallthru
        _
    $region12: #{heart_gpt_forward.1} parent=5 // pred_fallthru
      _
    %p483 = scmp.lt.s32.totalorder %s22, 16
    // Predicated region
    $region29: #{heart_gpt_forward.1} parent=5 // pred_check
      %p484 = pneg %p483
    $region30: #{heart_gpt_forward.1} parent=5 // pred_check_branch
      %486 = sbr.rel (%p484) target = $region32
    $region31: #{heart_gpt_forward.1} parent=5 // pred_region
      // Predicated region
      $region33: #{heart_gpt_forward.1} parent=31 // pred_check
        %p487 = pneg %p54
      $region34: #{heart_gpt_forward.1} parent=31 // pred_check_branch
        %489 = sbr.rel (%p487) target = $region36
      $region35: #{heart_gpt_forward.1} parent=31 // pred_region
        %p490 = scmp.lt.s32.totalorder %s29, 1
        %s491 = scalar_select %p490, %s29, 1
        %s492 = smul.addr %s491, 16
        %s493 = smul.addr %s492, 8
        %s494 = scalar_lea.vmem %s0, %s493
      $region36: #{heart_gpt_forward.1} parent=31 // pred_fallthru
        _
      // Predicated region
      $region37: #{heart_gpt_forward.1} parent=31 // pred_check
        %p495 = pneg %p80
      $region38: #{heart_gpt_forward.1} parent=31 // pred_check_branch
        %497 = sbr.rel (%p495) target = $region40
      $region39: #{heart_gpt_forward.1} parent=31 // pred_region
        %p498 = scmp.lt.s32.totalorder %s30, 7
        %s499 = scalar_select %p498, %s30, 7
        %s500 = scalar_lea.vmem %s1, %s499
      $region40: #{heart_gpt_forward.1} parent=31 // pred_fallthru
        _
      // Predicated region
      $region41: #{heart_gpt_forward.1} parent=31 // pred_check
        %p501 = pneg %p106
      $region42: #{heart_gpt_forward.1} parent=31 // pred_check_branch
        %503 = sbr.rel (%p501) target = $region44
      $region43: #{heart_gpt_forward.1} parent=31 // pred_region
        %p504 = scmp.lt.s32.totalorder %s30, 7
        %s505 = scalar_select %p504, %s30, 7
        %s506 = scalar_lea.vmem %s2, %s505
      $region44: #{heart_gpt_forward.1} parent=31 // pred_fallthru
        _
      // Predicated region
      $region45: #{heart_gpt_forward.1} parent=31 // pred_check
        %p507 = pneg %p132
      $region46: #{heart_gpt_forward.1} parent=31 // pred_check_branch
        %509 = sbr.rel (%p507) target = $region48
      $region47: #{heart_gpt_forward.1} parent=31 // pred_region
        %p510 = scmp.lt.s32.totalorder %s30, 7
        %s511 = scalar_select %p510, %s30, 7
        %s512 = smul.addr %s511, 16
        %s513 = smul.addr %s512, 4
        %s514 = scalar_lea.vmem %s3, %s513
      $region48: #{heart_gpt_forward.1} parent=31 // pred_fallthru
        _
      // Predicated region
      $region49: #{heart_gpt_forward.1} parent=31 // pred_check
        %p515 = pneg %p158
      $region50: #{heart_gpt_forward.1} parent=31 // pred_check_branch
        %517 = sbr.rel (%p515) target = $region52
      $region51: #{heart_gpt_forward.1} parent=31 // pred_region
        %p518 = scmp.lt.s32.totalorder %s30, 7
        %s519 = scalar_select %p518, %s30, 7
        %s520 = smul.addr %s519, 8
        %s521 = smul.addr %s520, 4
        %s522 = scalar_lea.vmem %s4, %s521
      $region52: #{heart_gpt_forward.1} parent=31 // pred_fallthru
        _
      // Predicated region
      $region53: #{heart_gpt_forward.1} parent=31 // pred_check
        %p523 = pneg %p184
      $region54: #{heart_gpt_forward.1} parent=31 // pred_check_branch
        %525 = sbr.rel (%p523) target = $region56
      $region55: #{heart_gpt_forward.1} parent=31 // pred_region
        %p526 = scmp.lt.s32.totalorder %s30, 7
        %s527 = scalar_select %p526, %s30, 7
        %s528 = scalar_lea.vmem %s5, %s527
      $region56: #{heart_gpt_forward.1} parent=31 // pred_fallthru
        _
      // Predicated region
      $region57: #{heart_gpt_forward.1} parent=31 // pred_check
        %p529 = pneg %p210
      $region58: #{heart_gpt_forward.1} parent=31 // pred_check_branch
        %531 = sbr.rel (%p529) target = $region60
      $region59: #{heart_gpt_forward.1} parent=31 // pred_region
        %p532 = scmp.lt.s32.totalorder %s30, 7
        %s533 = scalar_select %p532, %s30, 7
        %s534 = scalar_lea.vmem %s6, %s533
      $region60: #{heart_gpt_forward.1} parent=31 // pred_fallthru
        _
      // Predicated region
      $region61: #{heart_gpt_forward.1} parent=31 // pred_check
        %p535 = pneg %p236
      $region62: #{heart_gpt_forward.1} parent=31 // pred_check_branch
        %537 = sbr.rel (%p535) target = $region64
      $region63: #{heart_gpt_forward.1} parent=31 // pred_region
        %p538 = scmp.lt.s32.totalorder %s30, 7
        %s539 = scalar_select %p538, %s30, 7
        %s540 = scalar_lea.vmem %s7, %s539
      $region64: #{heart_gpt_forward.1} parent=31 // pred_fallthru
        _
      // Predicated region
      $region65: #{heart_gpt_forward.1} parent=31 // pred_check
        %p541 = pneg %p262
      $region66: #{heart_gpt_forward.1} parent=31 // pred_check_branch
        %543 = sbr.rel (%p541) target = $region68
      $region67: #{heart_gpt_forward.1} parent=31 // pred_region
        %p544 = scmp.lt.s32.totalorder %s30, 7
        %s545 = scalar_select %p544, %s30, 7
        %s546 = smul.addr %s545, 16
        %s547 = smul.addr %s546, 4
        %s548 = scalar_lea.vmem %s8, %s547
      $region68: #{heart_gpt_forward.1} parent=31 // pred_fallthru
        _
      // Predicated region
      $region69: #{heart_gpt_forward.1} parent=31 // pred_check
        %p549 = pneg %p288
      $region70: #{heart_gpt_forward.1} parent=31 // pred_check_branch
        %551 = sbr.rel (%p549) target = $region72
      $region71: #{heart_gpt_forward.1} parent=31 // pred_region
        %p552 = scmp.lt.s32.totalorder %s30, 7
        %s553 = scalar_select %p552, %s30, 7
        %s554 = smul.addr %s553, 2
        %s555 = scalar_lea.vmem %s9, %s554
      $region72: #{heart_gpt_forward.1} parent=31 // pred_fallthru
        _
      // Predicated region
      $region73: #{heart_gpt_forward.1} parent=31 // pred_check
        %p556 = pneg %p314
      $region74: #{heart_gpt_forward.1} parent=31 // pred_check_branch
        %558 = sbr.rel (%p556) target = $region76
      $region75: #{heart_gpt_forward.1} parent=31 // pred_region
        %p559 = scmp.lt.s32.totalorder %s30, 7
        %s560 = scalar_select %p559, %s30, 7
        %s561 = smul.addr %s560, 32
        %s562 = smul.addr %s561, 4
        %s563 = scalar_lea.vmem %s10, %s562
      $region76: #{heart_gpt_forward.1} parent=31 // pred_fallthru
        _
      // Predicated region
      $region77: #{heart_gpt_forward.1} parent=31 // pred_check
        %p564 = pneg %p340
      $region78: #{heart_gpt_forward.1} parent=31 // pred_check_branch
        %566 = sbr.rel (%p564) target = $region80
      $region79: #{heart_gpt_forward.1} parent=31 // pred_region
        %p567 = scmp.lt.s32.totalorder %s30, 7
        %s568 = scalar_select %p567, %s30, 7
        %s569 = scalar_lea.vmem %s11, %s568
      $region80: #{heart_gpt_forward.1} parent=31 // pred_fallthru
        _
    $region32: #{heart_gpt_forward.1} parent=5 // pred_fallthru
      _
    %p570 = scmp.le.s32.totalorder 1, %s22
    %p571 = scmp.lt.s32.totalorder %s22, 17
    %p572 = pnand %p570, %p571
    %p573 = pneg %p572
    // Predicated region
    $region81: #{heart_gpt_forward.1} parent=5 // pred_check
      _
    $region82: #{heart_gpt_forward.1} parent=5 // pred_check_branch
      %575 = sbr.rel (%p572) target = $region84
    $region83: #{heart_gpt_forward.1} parent=5 // pred_region
      %s576 = ssub.s32 %s22, 1
      %p577 = scmp.lt.s32.totalorder %s31, 1
      %s578 = scalar_select %p577, %s31, 1
      %s579 = smul.addr %s578, 16
      %s580 = smul.addr %s579, 8
      %s581 = scalar_lea.vmem %s0, %s580
      %p582 = pneg %p60
      %p583 = pneg %p57
      %p584 = scmp.lt.s32.totalorder %s32, 7
      %s585 = scalar_select %p584, %s32, 7
      %s586 = scalar_lea.vmem %s1, %s585
      %p587 = pneg %p86
      %p588 = pneg %p83
      %p589 = scmp.lt.s32.totalorder %s32, 7
      %s590 = scalar_select %p589, %s32, 7
      %s591 = scalar_lea.vmem %s2, %s590
      %p592 = pneg %p112
      %p593 = pneg %p109
      %p594 = scmp.lt.s32.totalorder %s32, 7
      %s595 = scalar_select %p594, %s32, 7
      %s596 = smul.addr %s595, 16
      %s597 = smul.addr %s596, 4
      %s598 = scalar_lea.vmem %s3, %s597
      %p599 = pneg %p138
      %p600 = pneg %p135
      %p601 = scmp.lt.s32.totalorder %s32, 7
      %s602 = scalar_select %p601, %s32, 7
      %s603 = smul.addr %s602, 8
      %s604 = smul.addr %s603, 4
      %s605 = scalar_lea.vmem %s4, %s604
      %p606 = pneg %p164
      %p607 = pneg %p161
      %p608 = scmp.lt.s32.totalorder %s32, 7
      %s609 = scalar_select %p608, %s32, 7
      %s610 = scalar_lea.vmem %s5, %s609
      %p611 = pneg %p190
      %p612 = pneg %p187
      %p613 = scmp.lt.s32.totalorder %s32, 7
      %s614 = scalar_select %p613, %s32, 7
      %s615 = scalar_lea.vmem %s6, %s614
      %p616 = pneg %p216
      %p617 = pneg %p213
      %p618 = scmp.lt.s32.totalorder %s32, 7
      %s619 = scalar_select %p618, %s32, 7
      %s620 = scalar_lea.vmem %s7, %s619
      %p621 = pneg %p242
      %p622 = pneg %p239
      %p623 = scmp.lt.s32.totalorder %s32, 7
      %s624 = scalar_select %p623, %s32, 7
      %s625 = smul.addr %s624, 16
      %s626 = smul.addr %s625, 4
      %s627 = scalar_lea.vmem %s8, %s626
      %p628 = pneg %p268
      %p629 = pneg %p265
      %p630 = scmp.lt.s32.totalorder %s32, 7
      %s631 = scalar_select %p630, %s32, 7
      %s632 = smul.addr %s631, 2
      %s633 = scalar_lea.vmem %s9, %s632
      %p634 = pneg %p294
      %p635 = pneg %p291
      %p636 = scmp.lt.s32.totalorder %s32, 7
      %s637 = scalar_select %p636, %s32, 7
      %s638 = smul.addr %s637, 32
      %s639 = smul.addr %s638, 4
      %s640 = scalar_lea.vmem %s10, %s639
      %p641 = pneg %p320
      %p642 = pneg %p317
      %p643 = scmp.lt.s32.totalorder %s32, 7
      %s644 = scalar_select %p643, %s32, 7
      %s645 = scalar_lea.vmem %s11, %s644
      %p646 = pneg %p346
      %p647 = pneg %p343
      %p648 = pneg %p367
      %p649 = pneg %p364
      %p650 = pneg %p388
      %p651 = pneg %p385
      %p652 = pneg %p409
      %p653 = pneg %p406
      %p654 = pneg %p430
      %p655 = pneg %p427
      %p656 = pneg %p456
      %p657 = pneg %p453
      %p658 = scmp.lt.s32.totalorder %s31, 1
      %s659 = scalar_select %p658, %s31, 1
      %s660 = smul.addr %s659, 16
      %s661 = smul.addr %s660, 4
      %s662 = scalar_lea.vmem %s16, %s661
      %p663 = scmp.lt.s32.totalorder %s31, 1
      %s664 = scalar_select %p663, %s31, 1
      %s665 = smul.addr %s664, 16
      %s666 = smul.addr %s665, 8
      %s667 = scalar_lea.vmem %s0, %s666
      %p668 = scmp.lt.s32.totalorder %s32, 7
      %s669 = scalar_select %p668, %s32, 7
      %s670 = scalar_lea.vmem %s1, %s669
      %p671 = scmp.lt.s32.totalorder %s32, 7
      %s672 = scalar_select %p671, %s32, 7
      %s673 = scalar_lea.vmem %s2, %s672
      %p674 = scmp.lt.s32.totalorder %s32, 7
      %s675 = scalar_select %p674, %s32, 7
      %s676 = smul.addr %s675, 16
      %s677 = smul.addr %s676, 4
      %s678 = scalar_lea.vmem %s3, %s677
      %p679 = scmp.lt.s32.totalorder %s32, 7
      %s680 = scalar_select %p679, %s32, 7
      %s681 = smul.addr %s680, 8
      %s682 = smul.addr %s681, 4
      %s683 = scalar_lea.vmem %s4, %s682
      %p684 = scmp.lt.s32.totalorder %s32, 7
      %s685 = scalar_select %p684, %s32, 7
      %s686 = scalar_lea.vmem %s5, %s685
      %p687 = scmp.lt.s32.totalorder %s32, 7
      %s688 = scalar_select %p687, %s32, 7
      %s689 = scalar_lea.vmem %s6, %s688
      %p690 = scmp.lt.s32.totalorder %s32, 7
      %s691 = scalar_select %p690, %s32, 7
      %s692 = scalar_lea.vmem %s7, %s691
      %p693 = scmp.lt.s32.totalorder %s32, 7
      %s694 = scalar_select %p693, %s32, 7
      %s695 = smul.addr %s694, 16
      %s696 = smul.addr %s695, 4
      %s697 = scalar_lea.vmem %s8, %s696
      %p698 = scmp.lt.s32.totalorder %s32, 7
      %s699 = scalar_select %p698, %s32, 7
      %s700 = smul.addr %s699, 2
      %s701 = scalar_lea.vmem %s9, %s700
      %p702 = scmp.lt.s32.totalorder %s32, 7
      %s703 = scalar_select %p702, %s32, 7
      %s704 = smul.addr %s703, 32
      %s705 = smul.addr %s704, 4
      %s706 = scalar_lea.vmem %s10, %s705
      %p707 = scmp.lt.s32.totalorder %s32, 7
      %s708 = scalar_select %p707, %s32, 7
      %s709 = scalar_lea.vmem %s11, %s708
      %p710 = scmp.lt.s32.totalorder %s31, 1
      %s711 = scalar_select %p710, %s31, 1
      %s712 = smul.addr %s711, 16
      %s713 = smul.addr %s712, 4
      %s714 = scalar_lea.vmem %s16, %s713
      %p716 = scmp.eq.s32.totalorder %s32, 0
      // Predicated region
      $region85: #{heart_gpt_forward.1} parent=83 // pred_check
        %p717 = pneg %p716
      $region86: #{heart_gpt_forward.1} parent=83 // pred_check_branch
        %719 = sbr.rel (%p717) target = $region88
      $region87: #{heart_gpt_forward.1} parent=83 // pred_region
        %v720 = vld [vmem:[%s667] sm:$0xff]
        %v721 = vld [vmem:[%s667 + $0x8] sm:$0xff]
        %v722 = vld [vmem:[%s667 + $0x10] sm:$0xff]
        %v723 = vld [vmem:[%s667 + $0x18] sm:$0xff]
        %v724 = vld [vmem:[%s667 + $0x20] sm:$0xff]
        %v725 = vld [vmem:[%s667 + $0x28] sm:$0xff]
        %v726 = vld [vmem:[%s667 + $0x30] sm:$0xff]
        %v727 = vld [vmem:[%s667 + $0x38] sm:$0xff]
        %v728 = vld [vmem:[%s667 + $0x40] sm:$0xff]
        %v729 = vld [vmem:[%s667 + $0x48] sm:$0xff]
        %v730 = vld [vmem:[%s667 + $0x50] sm:$0xff]
        %v731 = vld [vmem:[%s667 + $0x58] sm:$0xff]
        %v732 = vld [vmem:[%s667 + $0x60] sm:$0xff]
        %v733 = vld [vmem:[%s667 + $0x68] sm:$0xff]
        %v734 = vld [vmem:[%s667 + $0x70] sm:$0xff]
        %v735 = vld [vmem:[%s667 + $0x78] sm:$0xff]
        %vm736 = vcmask 523264
        %737 = vst.msk [vmem:[#allocation2] sm:$0xff] %vm736, %v720
        %738 = vst.msk [vmem:[#allocation2 + $0x8] sm:$0xff] %vm736, %v721
        %739 = vst.msk [vmem:[#allocation2 + $0x10] sm:$0xff] %vm736, %v722
        %740 = vst.msk [vmem:[#allocation2 + $0x18] sm:$0xff] %vm736, %v723
        %741 = vst.msk [vmem:[#allocation2 + $0x20] sm:$0xff] %vm736, %v724
        %742 = vst.msk [vmem:[#allocation2 + $0x28] sm:$0xff] %vm736, %v725
        %743 = vst.msk [vmem:[#allocation2 + $0x30] sm:$0xff] %vm736, %v726
        %744 = vst.msk [vmem:[#allocation2 + $0x38] sm:$0xff] %vm736, %v727
        %745 = vst.msk [vmem:[#allocation2 + $0x40] sm:$0xff] %vm736, %v728
        %746 = vst.msk [vmem:[#allocation2 + $0x48] sm:$0xff] %vm736, %v729
        %747 = vst.msk [vmem:[#allocation2 + $0x50] sm:$0xff] %vm736, %v730
        %748 = vst.msk [vmem:[#allocation2 + $0x58] sm:$0xff] %vm736, %v731
        %749 = vst.msk [vmem:[#allocation2 + $0x60] sm:$0xff] %vm736, %v732
        %750 = vst.msk [vmem:[#allocation2 + $0x68] sm:$0xff] %vm736, %v733
        %751 = vst.msk [vmem:[#allocation2 + $0x70] sm:$0xff] %vm736, %v734
        %752 = vst.msk [vmem:[#allocation2 + $0x78] sm:$0xff] %vm736, %v735
      $region88: #{heart_gpt_forward.1} parent=83 // pred_fallthru
        _
      %v753 = vld [vmem:[#allocation2] sm:$0xff]
      %v754 = vld [vmem:[#allocation2 + $0x8] sm:$0xff]
      %v755 = vld [vmem:[#allocation2 + $0x10] sm:$0xff]
      %v756 = vld [vmem:[#allocation2 + $0x18] sm:$0xff]
      %v757 = vld [vmem:[#allocation2 + $0x20] sm:$0xff]
      %v758 = vld [vmem:[#allocation2 + $0x28] sm:$0xff]
      %v759 = vld [vmem:[#allocation2 + $0x30] sm:$0xff]
      %v760 = vld [vmem:[#allocation2 + $0x38] sm:$0xff]
      %v761 = vld [vmem:[#allocation2 + $0x40] sm:$0xff]
      %v762 = vld [vmem:[#allocation2 + $0x48] sm:$0xff]
      %v763 = vld [vmem:[#allocation2 + $0x50] sm:$0xff]
      %v764 = vld [vmem:[#allocation2 + $0x58] sm:$0xff]
      %v765 = vld [vmem:[#allocation2 + $0x60] sm:$0xff]
      %v766 = vld [vmem:[#allocation2 + $0x68] sm:$0xff]
      %v767 = vld [vmem:[#allocation2 + $0x70] sm:$0xff]
      %v768 = vld [vmem:[#allocation2 + $0x78] sm:$0xff]
      %v769 = vlaneseq
      %v770 = vshrl.u32 %v769, 7
      %v771 = vadd.s32 %v770, 8
      %v772 = vadd.s32 %v770, 16
      %v773 = vadd.s32 %v770, 24
      %v774 = vadd.s32 %v770, 32
      %v775 = vadd.s32 %v770, 40
      %v776 = vadd.s32 %v770, 48
      %v777 = vadd.s32 %v770, 56
      %v778 = vadd.s32 %v770, 64
      %v779 = vadd.s32 %v770, 72
      %v780 = vadd.s32 %v770, 80
      %v781 = vadd.s32 %v770, 88
      %v782 = vadd.s32 %v770, 96
      %v783 = vadd.s32 %v770, 104
      %v784 = vadd.s32 %v770, 112
      %v785 = vadd.s32 %v770, 120
      %v786 = vlaneseq
      %v787 = vand.u32 %v786, 127
      %vm788 = vcmp.ge.s32.totalorder %v770, %v787
      %vm789 = vcmp.ge.s32.totalorder %v771, %v787
      %vm790 = vcmp.ge.s32.totalorder %v772, %v787
      %vm791 = vcmp.ge.s32.totalorder %v773, %v787
      %vm792 = vcmp.ge.s32.totalorder %v774, %v787
      %vm793 = vcmp.ge.s32.totalorder %v775, %v787
      %vm794 = vcmp.ge.s32.totalorder %v776, %v787
      %vm795 = vcmp.ge.s32.totalorder %v777, %v787
      %vm796 = vcmp.ge.s32.totalorder %v778, %v787
      %vm797 = vcmp.ge.s32.totalorder %v779, %v787
      %vm798 = vcmp.ge.s32.totalorder %v780, %v787
      %vm799 = vcmp.ge.s32.totalorder %v781, %v787
      %vm800 = vcmp.ge.s32.totalorder %v782, %v787
      %vm801 = vcmp.ge.s32.totalorder %v783, %v787
      %vm802 = vcmp.ge.s32.totalorder %v784, %v787
      %vm803 = vcmp.ge.s32.totalorder %v785, %v787
      %v804 = vsel %vm788, 0.0, -1e+09
      %v805 = vsel %vm789, 0.0, -1e+09
      %v806 = vsel %vm790, 0.0, -1e+09
      %v807 = vsel %vm791, 0.0, -1e+09
      %v808 = vsel %vm792, 0.0, -1e+09
      %v809 = vsel %vm793, 0.0, -1e+09
      %v810 = vsel %vm794, 0.0, -1e+09
      %v811 = vsel %vm795, 0.0, -1e+09
      %v812 = vsel %vm796, 0.0, -1e+09
      %v813 = vsel %vm797, 0.0, -1e+09
      %v814 = vsel %vm798, 0.0, -1e+09
      %v815 = vsel %vm799, 0.0, -1e+09
      %v816 = vsel %vm800, 0.0, -1e+09
      %v817 = vsel %vm801, 0.0, -1e+09
      %v818 = vsel %vm802, 0.0, -1e+09
      %v819 = vsel %vm803, 0.0, -1e+09
      %v820 = vld [vmem:[%s670] sm:$0x1]
      %v821 = vld [vmem:[%s673] sm:$0x1]
      %vm822 = vcmask 523264
      %v823 = vsel %vm822, %v753, 0.0
      %824 = vadd.xlane.f32.xlu0 %v823
      %v825 = vpop.xlane.xlu0 %824
      %v826 = vsel %vm822, %v754, 0.0
      %827 = vadd.xlane.f32.xlu0 %v826
      %v828 = vpop.xlane.xlu0 %827
      %v829 = vsel %vm822, %v755, 0.0
      %830 = vadd.xlane.f32.xlu0 %v829
      %v831 = vpop.xlane.xlu0 %830
      %v832 = vsel %vm822, %v756, 0.0
      %833 = vadd.xlane.f32.xlu0 %v832
      %v834 = vpop.xlane.xlu0 %833
      %v835 = vsel %vm822, %v757, 0.0
      %836 = vadd.xlane.f32.xlu0 %v835
      %v837 = vpop.xlane.xlu0 %836
      %v838 = vsel %vm822, %v758, 0.0
      %839 = vadd.xlane.f32.xlu0 %v838
      %v840 = vpop.xlane.xlu0 %839
      %v841 = vsel %vm822, %v759, 0.0
      %842 = vadd.xlane.f32.xlu0 %v841
      %v843 = vpop.xlane.xlu0 %842
      %v844 = vsel %vm822, %v760, 0.0
      %845 = vadd.xlane.f32.xlu0 %v844
      %v846 = vpop.xlane.xlu0 %845
      %v847 = vsel %vm822, %v761, 0.0
      %848 = vadd.xlane.f32.xlu0 %v847
      %v849 = vpop.xlane.xlu0 %848
      %v850 = vsel %vm822, %v762, 0.0
      %851 = vadd.xlane.f32.xlu0 %v850
      %v852 = vpop.xlane.xlu0 %851
      %v853 = vsel %vm822, %v763, 0.0
      %854 = vadd.xlane.f32.xlu0 %v853
      %v855 = vpop.xlane.xlu0 %854
      %v856 = vsel %vm822, %v764, 0.0
      %857 = vadd.xlane.f32.xlu0 %v856
      %v858 = vpop.xlane.xlu0 %857
      %v859 = vsel %vm822, %v765, 0.0
      %860 = vadd.xlane.f32.xlu0 %v859
      %v861 = vpop.xlane.xlu0 %860
      %v862 = vsel %vm822, %v766, 0.0
      %863 = vadd.xlane.f32.xlu0 %v862
      %v864 = vpop.xlane.xlu0 %863
      %v865 = vsel %vm822, %v767, 0.0
      %866 = vadd.xlane.f32.xlu0 %v865
      %v867 = vpop.xlane.xlu0 %866
      %v868 = vsel %vm822, %v768, 0.0
      %869 = vadd.xlane.f32.xlu0 %v868
      %v870 = vpop.xlane.xlu0 %869
      %v871 = vrcp.pop 64.0
      %v872 = vmul.f32 64.0, %v871
      %v873 = vsub.f32 1.0, %v872
      %v874 = vmul.f32 %v871, %v873
      %v875 = vadd.f32 %v871, %v874
      %vm876 = vweird.f32 %v871
      %v877 = vsel %vm876, %v871, %v875
      %v878 = vmul.f32 %v825, %v877
      %v879 = vmul.f32 %v828, %v877
      %v880 = vmul.f32 %v831, %v877
      %v881 = vmul.f32 %v834, %v877
      %v882 = vmul.f32 %v837, %v877
      %v883 = vmul.f32 %v840, %v877
      %v884 = vmul.f32 %v843, %v877
      %v885 = vmul.f32 %v846, %v877
      %v886 = vmul.f32 %v849, %v877
      %v887 = vmul.f32 %v852, %v877
      %v888 = vmul.f32 %v855, %v877
      %v889 = vmul.f32 %v858, %v877
      %v890 = vmul.f32 %v861, %v877
      %v891 = vmul.f32 %v864, %v877
      %v892 = vmul.f32 %v867, %v877
      %v893 = vmul.f32 %v870, %v877
      %v894 = vsub.f32 %v753, %v878
      %v895 = vsub.f32 %v754, %v879
      %v896 = vsub.f32 %v755, %v880
      %v897 = vsub.f32 %v756, %v881
      %v898 = vsub.f32 %v757, %v882
      %v899 = vsub.f32 %v758, %v883
      %v900 = vsub.f32 %v759, %v884
      %v901 = vsub.f32 %v760, %v885
      %v902 = vsub.f32 %v761, %v886
      %v903 = vsub.f32 %v762, %v887
      %v904 = vsub.f32 %v763, %v888
      %v905 = vsub.f32 %v764, %v889
      %v906 = vsub.f32 %v765, %v890
      %v907 = vsub.f32 %v766, %v891
      %v908 = vsub.f32 %v767, %v892
      %v909 = vsub.f32 %v768, %v893
      %v910 = vmul.f32 %v894, %v894
      %v911 = vmul.f32 %v895, %v895
      %v912 = vmul.f32 %v896, %v896
      %v913 = vmul.f32 %v897, %v897
      %v914 = vmul.f32 %v898, %v898
      %v915 = vmul.f32 %v899, %v899
      %v916 = vmul.f32 %v900, %v900
      %v917 = vmul.f32 %v901, %v901
      %v918 = vmul.f32 %v902, %v902
      %v919 = vmul.f32 %v903, %v903
      %v920 = vmul.f32 %v904, %v904
      %v921 = vmul.f32 %v905, %v905
      %v922 = vmul.f32 %v906, %v906
      %v923 = vmul.f32 %v907, %v907
      %v924 = vmul.f32 %v908, %v908
      %v925 = vmul.f32 %v909, %v909
      %v926 = vsel %vm822, %v910, 0.0
      %927 = vadd.xlane.f32.xlu0 %v926
      %v928 = vpop.xlane.xlu0 %927
      %v929 = vsel %vm822, %v911, 0.0
      %930 = vadd.xlane.f32.xlu0 %v929
      %v931 = vpop.xlane.xlu0 %930
      %v932 = vsel %vm822, %v912, 0.0
      %933 = vadd.xlane.f32.xlu0 %v932
      %v934 = vpop.xlane.xlu0 %933
      %v935 = vsel %vm822, %v913, 0.0
      %936 = vadd.xlane.f32.xlu0 %v935
      %v937 = vpop.xlane.xlu0 %936
      %v938 = vsel %vm822, %v914, 0.0
      %939 = vadd.xlane.f32.xlu0 %v938
      %v940 = vpop.xlane.xlu0 %939
      %v941 = vsel %vm822, %v915, 0.0
      %942 = vadd.xlane.f32.xlu0 %v941
      %v943 = vpop.xlane.xlu0 %942
      %v944 = vsel %vm822, %v916, 0.0
      %945 = vadd.xlane.f32.xlu0 %v944
      %v946 = vpop.xlane.xlu0 %945
      %v947 = vsel %vm822, %v917, 0.0
      %948 = vadd.xlane.f32.xlu0 %v947
      %v949 = vpop.xlane.xlu0 %948
      %v950 = vsel %vm822, %v918, 0.0
      %951 = vadd.xlane.f32.xlu0 %v950
      %v952 = vpop.xlane.xlu0 %951
      %v953 = vsel %vm822, %v919, 0.0
      %954 = vadd.xlane.f32.xlu0 %v953
      %v955 = vpop.xlane.xlu0 %954
      %v956 = vsel %vm822, %v920, 0.0
      %957 = vadd.xlane.f32.xlu0 %v956
      %v958 = vpop.xlane.xlu0 %957
      %v959 = vsel %vm822, %v921, 0.0
      %960 = vadd.xlane.f32.xlu0 %v959
      %v961 = vpop.xlane.xlu0 %960
      %v962 = vsel %vm822, %v922, 0.0
      %963 = vadd.xlane.f32.xlu0 %v962
      %v964 = vpop.xlane.xlu0 %963
      %v965 = vsel %vm822, %v923, 0.0
      %966 = vadd.xlane.f32.xlu0 %v965
      %v967 = vpop.xlane.xlu0 %966
      %v968 = vsel %vm822, %v924, 0.0
      %969 = vadd.xlane.f32.xlu0 %v968
      %v970 = vpop.xlane.xlu0 %969
      %v971 = vsel %vm822, %v925, 0.0
      %972 = vadd.xlane.f32.xlu0 %v971
      %v973 = vpop.xlane.xlu0 %972
      %v974 = vmul.f32 %v928, %v877
      %v975 = vmul.f32 %v931, %v877
      %v976 = vmul.f32 %v934, %v877
      %v977 = vmul.f32 %v937, %v877
      %v978 = vmul.f32 %v940, %v877
      %v979 = vmul.f32 %v943, %v877
      %v980 = vmul.f32 %v946, %v877
      %v981 = vmul.f32 %v949, %v877
      %v982 = vmul.f32 %v952, %v877
      %v983 = vmul.f32 %v955, %v877
      %v984 = vmul.f32 %v958, %v877
      %v985 = vmul.f32 %v961, %v877
      %v986 = vmul.f32 %v964, %v877
      %v987 = vmul.f32 %v967, %v877
      %v988 = vmul.f32 %v970, %v877
      %v989 = vmul.f32 %v973, %v877
      %v990 = vadd.f32 %v974, 1e-05
      %v991 = vadd.f32 %v975, 1e-05
      %v992 = vadd.f32 %v976, 1e-05
      %v993 = vadd.f32 %v977, 1e-05
      %v994 = vadd.f32 %v978, 1e-05
      %v995 = vadd.f32 %v979, 1e-05
      %v996 = vadd.f32 %v980, 1e-05
      %v997 = vadd.f32 %v981, 1e-05
      %v998 = vadd.f32 %v982, 1e-05
      %v999 = vadd.f32 %v983, 1e-05
      %v1000 = vadd.f32 %v984, 1e-05
      %v1001 = vadd.f32 %v985, 1e-05
      %v1002 = vadd.f32 %v986, 1e-05
      %v1003 = vadd.f32 %v987, 1e-05
      %v1004 = vadd.f32 %v988, 1e-05
      %v1005 = vadd.f32 %v989, 1e-05
      %v1006 = vrsqrt.pop %v990
      %v1007 = vmul.f32 %v1006, %v990
      %v1008 = vmul.f32 %v1007, %v1006
      %v1009 = vmul.f32 0.5, %v1008
      %v1010 = vsub.f32 1.5, %v1009
      %v1011 = vmul.f32 %v1006, %v1010
      %vm1012 = vweird.f32 %v990
      %vm1013 = vweird.f32 %v1006
      %vm1014 = vmor %vm1012, %vm1013
      %v1015 = vsel %vm1014, %v1006, %v1011
      %v1016 = vrsqrt.pop %v991
      %v1017 = vmul.f32 %v1016, %v991
      %v1018 = vmul.f32 %v1017, %v1016
      %v1019 = vmul.f32 0.5, %v1018
      %v1020 = vsub.f32 1.5, %v1019
      %v1021 = vmul.f32 %v1016, %v1020
      %vm1022 = vweird.f32 %v991
      %vm1023 = vweird.f32 %v1016
      %vm1024 = vmor %vm1022, %vm1023
      %v1025 = vsel %vm1024, %v1016, %v1021
      %v1026 = vrsqrt.pop %v992
      %v1027 = vmul.f32 %v1026, %v992
      %v1028 = vmul.f32 %v1027, %v1026
      %v1029 = vmul.f32 0.5, %v1028
      %v1030 = vsub.f32 1.5, %v1029
      %v1031 = vmul.f32 %v1026, %v1030
      %vm1032 = vweird.f32 %v992
      %vm1033 = vweird.f32 %v1026
      %vm1034 = vmor %vm1032, %vm1033
      %v1035 = vsel %vm1034, %v1026, %v1031
      %v1036 = vrsqrt.pop %v993
      %v1037 = vmul.f32 %v1036, %v993
      %v1038 = vmul.f32 %v1037, %v1036
      %v1039 = vmul.f32 0.5, %v1038
      %v1040 = vsub.f32 1.5, %v1039
      %v1041 = vmul.f32 %v1036, %v1040
      %vm1042 = vweird.f32 %v993
      %vm1043 = vweird.f32 %v1036
      %vm1044 = vmor %vm1042, %vm1043
      %v1045 = vsel %vm1044, %v1036, %v1041
      %v1046 = vrsqrt.pop %v994
      %v1047 = vmul.f32 %v1046, %v994
      %v1048 = vmul.f32 %v1047, %v1046
      %v1049 = vmul.f32 0.5, %v1048
      %v1050 = vsub.f32 1.5, %v1049
      %v1051 = vmul.f32 %v1046, %v1050
      %vm1052 = vweird.f32 %v994
      %vm1053 = vweird.f32 %v1046
      %vm1054 = vmor %vm1052, %vm1053
      %v1055 = vsel %vm1054, %v1046, %v1051
      %v1056 = vrsqrt.pop %v995
      %v1057 = vmul.f32 %v1056, %v995
      %v1058 = vmul.f32 %v1057, %v1056
      %v1059 = vmul.f32 0.5, %v1058
      %v1060 = vsub.f32 1.5, %v1059
      %v1061 = vmul.f32 %v1056, %v1060
      %vm1062 = vweird.f32 %v995
      %vm1063 = vweird.f32 %v1056
      %vm1064 = vmor %vm1062, %vm1063
      %v1065 = vsel %vm1064, %v1056, %v1061
      %v1066 = vrsqrt.pop %v996
      %v1067 = vmul.f32 %v1066, %v996
      %v1068 = vmul.f32 %v1067, %v1066
      %v1069 = vmul.f32 0.5, %v1068
      %v1070 = vsub.f32 1.5, %v1069
      %v1071 = vmul.f32 %v1066, %v1070
      %vm1072 = vweird.f32 %v996
      %vm1073 = vweird.f32 %v1066
      %vm1074 = vmor %vm1072, %vm1073
      %v1075 = vsel %vm1074, %v1066, %v1071
      %v1076 = vrsqrt.pop %v997
      %v1077 = vmul.f32 %v1076, %v997
      %v1078 = vmul.f32 %v1077, %v1076
      %v1079 = vmul.f32 0.5, %v1078
      %v1080 = vsub.f32 1.5, %v1079
      %v1081 = vmul.f32 %v1076, %v1080
      %vm1082 = vweird.f32 %v997
      %vm1083 = vweird.f32 %v1076
      %vm1084 = vmor %vm1082, %vm1083
      %v1085 = vsel %vm1084, %v1076, %v1081
      %v1086 = vrsqrt.pop %v998
      %v1087 = vmul.f32 %v1086, %v998
      %v1088 = vmul.f32 %v1087, %v1086
      %v1089 = vmul.f32 0.5, %v1088
      %v1090 = vsub.f32 1.5, %v1089
      %v1091 = vmul.f32 %v1086, %v1090
      %vm1092 = vweird.f32 %v998
      %vm1093 = vweird.f32 %v1086
      %vm1094 = vmor %vm1092, %vm1093
      %v1095 = vsel %vm1094, %v1086, %v1091
      %v1096 = vrsqrt.pop %v999
      %v1097 = vmul.f32 %v1096, %v999
      %v1098 = vmul.f32 %v1097, %v1096
      %v1099 = vmul.f32 0.5, %v1098
      %v1100 = vsub.f32 1.5, %v1099
      %v1101 = vmul.f32 %v1096, %v1100
      %vm1102 = vweird.f32 %v999
      %vm1103 = vweird.f32 %v1096
      %vm1104 = vmor %vm1102, %vm1103
      %v1105 = vsel %vm1104, %v1096, %v1101
      %v1106 = vrsqrt.pop %v1000
      %v1107 = vmul.f32 %v1106, %v1000
      %v1108 = vmul.f32 %v1107, %v1106
      %v1109 = vmul.f32 0.5, %v1108
      %v1110 = vsub.f32 1.5, %v1109
      %v1111 = vmul.f32 %v1106, %v1110
      %vm1112 = vweird.f32 %v1000
      %vm1113 = vweird.f32 %v1106
      %vm1114 = vmor %vm1112, %vm1113
      %v1115 = vsel %vm1114, %v1106, %v1111
      %v1116 = vrsqrt.pop %v1001
      %v1117 = vmul.f32 %v1116, %v1001
      %v1118 = vmul.f32 %v1117, %v1116
      %v1119 = vmul.f32 0.5, %v1118
      %v1120 = vsub.f32 1.5, %v1119
      %v1121 = vmul.f32 %v1116, %v1120
      %vm1122 = vweird.f32 %v1001
      %vm1123 = vweird.f32 %v1116
      %vm1124 = vmor %vm1122, %vm1123
      %v1125 = vsel %vm1124, %v1116, %v1121
      %v1126 = vrsqrt.pop %v1002
      %v1127 = vmul.f32 %v1126, %v1002
      %v1128 = vmul.f32 %v1127, %v1126
      %v1129 = vmul.f32 0.5, %v1128
      %v1130 = vsub.f32 1.5, %v1129
      %v1131 = vmul.f32 %v1126, %v1130
      %vm1132 = vweird.f32 %v1002
      %vm1133 = vweird.f32 %v1126
      %vm1134 = vmor %vm1132, %vm1133
      %v1135 = vsel %vm1134, %v1126, %v1131
      %v1136 = vrsqrt.pop %v1003
      %v1137 = vmul.f32 %v1136, %v1003
      %v1138 = vmul.f32 %v1137, %v1136
      %v1139 = vmul.f32 0.5, %v1138
      %v1140 = vsub.f32 1.5, %v1139
      %v1141 = vmul.f32 %v1136, %v1140
      %vm1142 = vweird.f32 %v1003
      %vm1143 = vweird.f32 %v1136
      %vm1144 = vmor %vm1142, %vm1143
      %v1145 = vsel %vm1144, %v1136, %v1141
      %v1146 = vrsqrt.pop %v1004
      %v1147 = vmul.f32 %v1146, %v1004
      %v1148 = vmul.f32 %v1147, %v1146
      %v1149 = vmul.f32 0.5, %v1148
      %v1150 = vsub.f32 1.5, %v1149
      %v1151 = vmul.f32 %v1146, %v1150
      %vm1152 = vweird.f32 %v1004
      %vm1153 = vweird.f32 %v1146
      %vm1154 = vmor %vm1152, %vm1153
      %v1155 = vsel %vm1154, %v1146, %v1151
      %v1156 = vrsqrt.pop %v1005
      %v1157 = vmul.f32 %v1156, %v1005
      %v1158 = vmul.f32 %v1157, %v1156
      %v1159 = vmul.f32 0.5, %v1158
      %v1160 = vsub.f32 1.5, %v1159
      %v1161 = vmul.f32 %v1156, %v1160
      %vm1162 = vweird.f32 %v1005
      %vm1163 = vweird.f32 %v1156
      %vm1164 = vmor %vm1162, %vm1163
      %v1165 = vsel %vm1164, %v1156, %v1161
      %v1166 = vmul.f32 %v894, %v1015
      %v1167 = vmul.f32 %v895, %v1025
      %v1168 = vmul.f32 %v896, %v1035
      %v1169 = vmul.f32 %v897, %v1045
      %v1170 = vmul.f32 %v898, %v1055
      %v1171 = vmul.f32 %v899, %v1065
      %v1172 = vmul.f32 %v900, %v1075
      %v1173 = vmul.f32 %v901, %v1085
      %v1174 = vmul.f32 %v902, %v1095
      %v1175 = vmul.f32 %v903, %v1105
      %v1176 = vmul.f32 %v904, %v1115
      %v1177 = vmul.f32 %v905, %v1125
      %v1178 = vmul.f32 %v906, %v1135
      %v1179 = vmul.f32 %v907, %v1145
      %v1180 = vmul.f32 %v908, %v1155
      %v1181 = vmul.f32 %v909, %v1165
      %v1183 = vperm.slane %v820, 0
      %v1185 = vmul.f32 %v1166, %v1183
      %v1186 = vmul.f32 %v1167, %v1183
      %v1187 = vmul.f32 %v1168, %v1183
      %v1188 = vmul.f32 %v1169, %v1183
      %v1189 = vmul.f32 %v1170, %v1183
      %v1190 = vmul.f32 %v1171, %v1183
      %v1191 = vmul.f32 %v1172, %v1183
      %v1192 = vmul.f32 %v1173, %v1183
      %v1193 = vmul.f32 %v1174, %v1183
      %v1194 = vmul.f32 %v1175, %v1183
      %v1195 = vmul.f32 %v1176, %v1183
      %v1196 = vmul.f32 %v1177, %v1183
      %v1197 = vmul.f32 %v1178, %v1183
      %v1198 = vmul.f32 %v1179, %v1183
      %v1199 = vmul.f32 %v1180, %v1183
      %v1200 = vmul.f32 %v1181, %v1183
      %v1202 = vperm.slane %v821, 0
      %v1204 = vadd.f32 %v1185, %v1202
      %v1205 = vadd.f32 %v1186, %v1202
      %v1206 = vadd.f32 %v1187, %v1202
      %v1207 = vadd.f32 %v1188, %v1202
      %v1208 = vadd.f32 %v1189, %v1202
      %v1209 = vadd.f32 %v1190, %v1202
      %v1210 = vadd.f32 %v1191, %v1202
      %v1211 = vadd.f32 %v1192, %v1202
      %v1212 = vadd.f32 %v1193, %v1202
      %v1213 = vadd.f32 %v1194, %v1202
      %v1214 = vadd.f32 %v1195, %v1202
      %v1215 = vadd.f32 %v1196, %v1202
      %v1216 = vadd.f32 %v1197, %v1202
      %v1217 = vadd.f32 %v1198, %v1202
      %v1218 = vadd.f32 %v1199, %v1202
      %v1219 = vadd.f32 %v1200, %v1202
      %v1220 = vpack.c.bf16 %v1205, %v1204
      %v1221 = vpack.c.bf16 %v1207, %v1206
      %v1222 = vpack.c.bf16 %v1209, %v1208
      %v1223 = vpack.c.bf16 %v1211, %v1210
      %v1224 = vpack.c.bf16 %v1213, %v1212
      %v1225 = vpack.c.bf16 %v1215, %v1214
      %v1226 = vpack.c.bf16 %v1217, %v1216
      %v1227 = vpack.c.bf16 %v1219, %v1218
      %v1228 = vld [vmem:[%s678] sm:$0xff]
      %v1229 = vld [vmem:[%s678 + $0x8] sm:$0xff]
      %v1230 = vld [vmem:[%s678 + $0x10] sm:$0xff]
      %v1231 = vld [vmem:[%s678 + $0x18] sm:$0xff]
      %v1232 = vld [vmem:[%s678 + $0x20] sm:$0xff]
      %v1233 = vld [vmem:[%s678 + $0x28] sm:$0xff]
      %v1234 = vld [vmem:[%s678 + $0x30] sm:$0xff]
      %v1235 = vld [vmem:[%s678 + $0x38] sm:$0xff]
      %v1244 = vunpack.c.l.b16 %v1228
      %v1245 = vunpack.c.h.b16 %v1228
      %v1246 = vunpack.c.l.b16 %v1229
      %v1247 = vunpack.c.h.b16 %v1229
      %v1248 = vunpack.c.l.b16 %v1230
      %v1249 = vunpack.c.h.b16 %v1230
      %v1250 = vunpack.c.l.b16 %v1231
      %v1251 = vunpack.c.h.b16 %v1231
      %v1252 = vunpack.c.l.b16 %v1232
      %v1253 = vunpack.c.h.b16 %v1232
      %v1254 = vunpack.c.l.b16 %v1233
      %v1255 = vunpack.c.h.b16 %v1233
      %v1256 = vunpack.c.l.b16 %v1234
      %v1257 = vunpack.c.h.b16 %v1234
      %v1258 = vunpack.c.l.b16 %v1235
      %v1259 = vunpack.c.h.b16 %v1235
      %v1260 = vpack.c.b16 %v1246, %v1244
      %v1261 = vpack.c.b16 %v1247, %v1245
      %v1262 = vpack.c.b16 %v1250, %v1248
      %v1263 = vpack.c.b16 %v1251, %v1249
      %v1264 = vpack.c.b16 %v1254, %v1252
      %v1265 = vpack.c.b16 %v1255, %v1253
      %v1266 = vpack.c.b16 %v1258, %v1256
      %v1267 = vpack.c.b16 %v1259, %v1257
      %v1277 = vsel %vm822, %v1220, 0
      %v1280 = vsel %vm822, %v1221, 0
      %v1283 = vsel %vm822, %v1222, 0
      %v1286 = vsel %vm822, %v1223, 0
      %v1289 = vsel %vm822, %v1224, 0
      %v1292 = vsel %vm822, %v1225, 0
      %v1295 = vsel %vm822, %v1226, 0
      %v1298 = vsel %vm822, %v1227, 0
      %1300 = vmatpush.bf16.msra.mxu0 0
      %1301 = vmatpush.bf16.msra.mxu0 0
      %1302 = vmatpush.bf16.msra.mxu0 0
      %1303 = vmatpush.bf16.msra.mxu0 0
      %1304 = vmatpush.bf16.msra.mxu0 %v1266
      %1305 = vmatpush.bf16.msra.mxu0 %v1264
      %1306 = vmatpush.bf16.msra.mxu0 %v1262
      %1307 = vmatpush.bf16.msra.mxu0 %v1260
      %1308 = vmatmul.bf16.gmra.mxu0 %v1277
      %v1309 = vpop.f32.mrf.mxu0
      %v1310 = vadd.f32 0.0, %v1309
      %v1311 = vpop.f32.mrf.mxu0
      %v1312 = vadd.f32 0.0, %v1311
      %1313 = vmatmul.bf16.gmra.mxu0 %v1280
      %v1314 = vpop.f32.mrf.mxu0
      %v1315 = vadd.f32 0.0, %v1314
      %v1316 = vpop.f32.mrf.mxu0
      %v1317 = vadd.f32 0.0, %v1316
      %1318 = vmatmul.bf16.gmra.mxu0 %v1283
      %v1319 = vpop.f32.mrf.mxu0
      %v1320 = vadd.f32 0.0, %v1319
      %v1321 = vpop.f32.mrf.mxu0
      %v1322 = vadd.f32 0.0, %v1321
      %1323 = vmatmul.bf16.gmra.mxu0 %v1286
      %v1324 = vpop.f32.mrf.mxu0
      %v1325 = vadd.f32 0.0, %v1324
      %v1326 = vpop.f32.mrf.mxu0
      %v1327 = vadd.f32 0.0, %v1326
      %1328 = vmatmul.bf16.gmra.mxu0 %v1289
      %v1329 = vpop.f32.mrf.mxu0
      %v1330 = vadd.f32 0.0, %v1329
      %v1331 = vpop.f32.mrf.mxu0
      %v1332 = vadd.f32 0.0, %v1331
      %1333 = vmatmul.bf16.gmra.mxu0 %v1292
      %v1334 = vpop.f32.mrf.mxu0
      %v1335 = vadd.f32 0.0, %v1334
      %v1336 = vpop.f32.mrf.mxu0
      %v1337 = vadd.f32 0.0, %v1336
      %1338 = vmatmul.bf16.gmra.mxu0 %v1295
      %v1339 = vpop.f32.mrf.mxu0
      %v1340 = vadd.f32 0.0, %v1339
      %v1341 = vpop.f32.mrf.mxu0
      %v1342 = vadd.f32 0.0, %v1341
      %1343 = vmatmul.bf16.gmra.mxu0 %v1298
      %v1344 = vpop.f32.mrf.mxu0
      %v1345 = vadd.f32 0.0, %v1344
      %v1346 = vpop.f32.mrf.mxu0
      %v1347 = vadd.f32 0.0, %v1346
      %1348 = vdwg.mxu0
      %1349 = vmatpush.bf16.msra.mxu0 0
      %1350 = vmatpush.bf16.msra.mxu0 0
      %1351 = vmatpush.bf16.msra.mxu0 0
      %1352 = vmatpush.bf16.msra.mxu0 0
      %1353 = vmatpush.bf16.msra.mxu0 %v1267
      %1354 = vmatpush.bf16.msra.mxu0 %v1265
      %1355 = vmatpush.bf16.msra.mxu0 %v1263
      %1356 = vmatpush.bf16.msra.mxu0 %v1261
      %1357 = vmatmul.bf16.gmra.mxu0 %v1277
      %v1358 = vpop.f32.mrf.mxu0
      %v1359 = vadd.f32 0.0, %v1358
      %v1360 = vpop.f32.mrf.mxu0
      %v1361 = vadd.f32 0.0, %v1360
      %1362 = vmatmul.bf16.gmra.mxu0 %v1280
      %v1363 = vpop.f32.mrf.mxu0
      %v1364 = vadd.f32 0.0, %v1363
      %v1365 = vpop.f32.mrf.mxu0
      %v1366 = vadd.f32 0.0, %v1365
      %1367 = vmatmul.bf16.gmra.mxu0 %v1283
      %v1368 = vpop.f32.mrf.mxu0
      %v1369 = vadd.f32 0.0, %v1368
      %v1370 = vpop.f32.mrf.mxu0
      %v1371 = vadd.f32 0.0, %v1370
      %1372 = vmatmul.bf16.gmra.mxu0 %v1286
      %v1373 = vpop.f32.mrf.mxu0
      %v1374 = vadd.f32 0.0, %v1373
      %v1375 = vpop.f32.mrf.mxu0
      %v1376 = vadd.f32 0.0, %v1375
      %1377 = vmatmul.bf16.gmra.mxu0 %v1289
      %v1378 = vpop.f32.mrf.mxu0
      %v1379 = vadd.f32 0.0, %v1378
      %v1380 = vpop.f32.mrf.mxu0
      %v1381 = vadd.f32 0.0, %v1380
      %1382 = vmatmul.bf16.gmra.mxu0 %v1292
      %v1383 = vpop.f32.mrf.mxu0
      %v1384 = vadd.f32 0.0, %v1383
      %v1385 = vpop.f32.mrf.mxu0
      %v1386 = vadd.f32 0.0, %v1385
      %1387 = vmatmul.bf16.gmra.mxu0 %v1295
      %v1388 = vpop.f32.mrf.mxu0
      %v1389 = vadd.f32 0.0, %v1388
      %v1390 = vpop.f32.mrf.mxu0
      %v1391 = vadd.f32 0.0, %v1390
      %1392 = vmatmul.bf16.gmra.mxu0 %v1298
      %v1393 = vpop.f32.mrf.mxu0
      %v1394 = vadd.f32 0.0, %v1393
      %v1395 = vpop.f32.mrf.mxu0
      %v1396 = vadd.f32 0.0, %v1395
      %1397 = vdwg.mxu0
      %v1398 = vmul.f32 %v1310, 0.125
      %v1399 = vmul.f32 %v1312, 0.125
      %v1400 = vmul.f32 %v1315, 0.125
      %v1401 = vmul.f32 %v1317, 0.125
      %v1402 = vmul.f32 %v1320, 0.125
      %v1403 = vmul.f32 %v1322, 0.125
      %v1404 = vmul.f32 %v1325, 0.125
      %v1405 = vmul.f32 %v1327, 0.125
      %v1406 = vmul.f32 %v1330, 0.125
      %v1407 = vmul.f32 %v1332, 0.125
      %v1408 = vmul.f32 %v1335, 0.125
      %v1409 = vmul.f32 %v1337, 0.125
      %v1410 = vmul.f32 %v1340, 0.125
      %v1411 = vmul.f32 %v1342, 0.125
      %v1412 = vmul.f32 %v1345, 0.125
      %v1413 = vmul.f32 %v1347, 0.125
      %v1414 = vpack.c.bf16 %v1398, %v1398
      %v1415 = vpack.c.bf16 %v1399, %v1399
      %v1416 = vpack.c.bf16 %v1400, %v1400
      %v1417 = vpack.c.bf16 %v1401, %v1401
      %v1418 = vpack.c.bf16 %v1402, %v1402
      %v1419 = vpack.c.bf16 %v1403, %v1403
      %v1420 = vpack.c.bf16 %v1404, %v1404
      %v1421 = vpack.c.bf16 %v1405, %v1405
      %v1422 = vpack.c.bf16 %v1406, %v1406
      %v1423 = vpack.c.bf16 %v1407, %v1407
      %v1424 = vpack.c.bf16 %v1408, %v1408
      %v1425 = vpack.c.bf16 %v1409, %v1409
      %v1426 = vpack.c.bf16 %v1410, %v1410
      %v1427 = vpack.c.bf16 %v1411, %v1411
      %v1428 = vpack.c.bf16 %v1412, %v1412
      %v1429 = vpack.c.bf16 %v1413, %v1413
      %1446 = vrot.lane.b32.xlu0 %v1310, 64
      %v1447 = vpop.permute.xlu0 %1446
      %1448 = vrot.lane.b32.xlu0 %v1312, 64
      %v1449 = vpop.permute.xlu0 %1448
      %1450 = vrot.lane.b32.xlu0 %v1315, 64
      %v1451 = vpop.permute.xlu0 %1450
      %1452 = vrot.lane.b32.xlu0 %v1317, 64
      %v1453 = vpop.permute.xlu0 %1452
      %1454 = vrot.lane.b32.xlu0 %v1320, 64
      %v1455 = vpop.permute.xlu0 %1454
      %1456 = vrot.lane.b32.xlu0 %v1322, 64
      %v1457 = vpop.permute.xlu0 %1456
      %1458 = vrot.lane.b32.xlu0 %v1325, 64
      %v1459 = vpop.permute.xlu0 %1458
      %1460 = vrot.lane.b32.xlu0 %v1327, 64
      %v1461 = vpop.permute.xlu0 %1460
      %1462 = vrot.lane.b32.xlu0 %v1330, 64
      %v1463 = vpop.permute.xlu0 %1462
      %1464 = vrot.lane.b32.xlu0 %v1332, 64
      %v1465 = vpop.permute.xlu0 %1464
      %1466 = vrot.lane.b32.xlu0 %v1335, 64
      %v1467 = vpop.permute.xlu0 %1466
      %1468 = vrot.lane.b32.xlu0 %v1337, 64
      %v1469 = vpop.permute.xlu0 %1468
      %1470 = vrot.lane.b32.xlu0 %v1340, 64
      %v1471 = vpop.permute.xlu0 %1470
      %1472 = vrot.lane.b32.xlu0 %v1342, 64
      %v1473 = vpop.permute.xlu0 %1472
      %1474 = vrot.lane.b32.xlu0 %v1345, 64
      %v1475 = vpop.permute.xlu0 %1474
      %1476 = vrot.lane.b32.xlu0 %v1347, 64
      %v1477 = vpop.permute.xlu0 %1476
      %1494 = vxpose.xlu0.b32.start [1/16] %v1447, 128
      %1495 = vxpose.xlu0.b32.cont [2/16] %v1449, 128
      %1496 = vxpose.xlu0.b32.cont [3/16] %v1451, 128
      %1497 = vxpose.xlu0.b32.cont [4/16] %v1453, 128
      %1498 = vxpose.xlu0.b32.cont [5/16] %v1455, 128
      %1499 = vxpose.xlu0.b32.cont [6/16] %v1457, 128
      %1500 = vxpose.xlu0.b32.cont [7/16] %v1459, 128
      %1501 = vxpose.xlu0.b32.cont [8/16] %v1461, 128
      %1502 = vxpose.xlu0.b32.cont [9/16] %v1463, 128
      %1503 = vxpose.xlu0.b32.cont [10/16] %v1465, 128
      %1504 = vxpose.xlu0.b32.cont [11/16] %v1467, 128
      %1505 = vxpose.xlu0.b32.cont [12/16] %v1469, 128
      %1506 = vxpose.xlu0.b32.cont [13/16] %v1471, 128
      %1507 = vxpose.xlu0.b32.cont [14/16] %v1473, 128
      %1508 = vxpose.xlu0.b32.cont [15/16] %v1475, 128
      %1509 = vxpose.xlu0.b32.end [16/16] %v1477, 128
      %v1510 = vpop.trf.xlu0
      %v1511 = vpop.trf.xlu0
      %v1512 = vpop.trf.xlu0
      %v1513 = vpop.trf.xlu0
      %v1514 = vpop.trf.xlu0
      %v1515 = vpop.trf.xlu0
      %v1516 = vpop.trf.xlu0
      %v1517 = vpop.trf.xlu0
      %v1518 = vpop.trf.xlu0
      %v1519 = vpop.trf.xlu0
      %v1520 = vpop.trf.xlu0
      %v1521 = vpop.trf.xlu0
      %v1522 = vpop.trf.xlu0
      %v1523 = vpop.trf.xlu0
      %v1524 = vpop.trf.xlu0
      %v1525 = vpop.trf.xlu0
      %v1526 = vpack.c.bf16 %v1359, %v1359
      %v1527 = vpack.c.bf16 %v1361, %v1361
      %v1528 = vpack.c.bf16 %v1364, %v1364
      %v1529 = vpack.c.bf16 %v1366, %v1366
      %v1530 = vpack.c.bf16 %v1369, %v1369
      %v1531 = vpack.c.bf16 %v1371, %v1371
      %v1532 = vpack.c.bf16 %v1374, %v1374
      %v1533 = vpack.c.bf16 %v1376, %v1376
      %v1534 = vpack.c.bf16 %v1379, %v1379
      %v1535 = vpack.c.bf16 %v1381, %v1381
      %v1536 = vpack.c.bf16 %v1384, %v1384
      %v1537 = vpack.c.bf16 %v1386, %v1386
      %v1538 = vpack.c.bf16 %v1389, %v1389
      %v1539 = vpack.c.bf16 %v1391, %v1391
      %v1540 = vpack.c.bf16 %v1394, %v1394
      %v1541 = vpack.c.bf16 %v1396, %v1396
      %v1542 = vld [vmem:[%s683] sm:$0xf]
      %v1543 = vld [vmem:[%s683 + $0x4] sm:$0xf]
      %v1544 = vld [vmem:[%s683 + $0x8] sm:$0xf]
      %v1545 = vld [vmem:[%s683 + $0xc] sm:$0xf]
      %v1546 = vld [vmem:[%s683 + $0x10] sm:$0xf]
      %v1547 = vld [vmem:[%s683 + $0x14] sm:$0xf]
      %v1548 = vld [vmem:[%s683 + $0x18] sm:$0xf]
      %v1549 = vld [vmem:[%s683 + $0x1c] sm:$0xf]
      %v1550 = vpack.c.bf16 %v1510, %v1510
      %v1567 = vunpack.c.l.b16 %v1414
      %v1568 = vunpack.c.l.b16 %v1415
      %v1569 = vunpack.c.l.b16 %v1416
      %v1570 = vunpack.c.l.b16 %v1417
      %v1571 = vunpack.c.l.b16 %v1418
      %v1572 = vunpack.c.l.b16 %v1419
      %v1573 = vunpack.c.l.b16 %v1420
      %v1574 = vunpack.c.l.b16 %v1421
      %v1575 = vunpack.c.l.b16 %v1422
      %v1576 = vunpack.c.l.b16 %v1423
      %v1577 = vunpack.c.l.b16 %v1424
      %v1578 = vunpack.c.l.b16 %v1425
      %v1579 = vunpack.c.l.b16 %v1426
      %v1580 = vunpack.c.l.b16 %v1427
      %v1581 = vunpack.c.l.b16 %v1428
      %v1582 = vunpack.c.l.b16 %v1429
      %v1583 = vpack.c.b16 %v1568, %v1567
      %v1584 = vpack.c.b16 %v1570, %v1569
      %v1585 = vpack.c.b16 %v1572, %v1571
      %v1586 = vpack.c.b16 %v1574, %v1573
      %v1587 = vpack.c.b16 %v1576, %v1575
      %v1588 = vpack.c.b16 %v1578, %v1577
      %v1589 = vpack.c.b16 %v1580, %v1579
      %v1590 = vpack.c.b16 %v1582, %v1581
      %vm1591 = vcmask 64512
      %v1593 = vsel %vm1591, %v1583, 0
      %v1596 = vsel %vm1591, %v1584, 0
      %v1599 = vsel %vm1591, %v1585, 0
      %v1602 = vsel %vm1591, %v1586, 0
      %v1605 = vsel %vm1591, %v1587, 0
      %v1608 = vsel %vm1591, %v1588, 0
      %v1611 = vsel %vm1591, %v1589, 0
      %v1614 = vsel %vm1591, %v1590, 0
      %vm1616 = vcmask 1043456
      %v1618 = vsel %vm1616, %v1550, 0
      %1620 = vmatpush.bf16.msra.mxu0 0
      %1621 = vmatpush.bf16.msra.mxu0 0
      %1622 = vmatpush.bf16.msra.mxu0 0
      %1623 = vmatpush.bf16.msra.mxu0 0
      %1624 = vmatpush.bf16.msra.mxu0 0
      %1625 = vmatpush.bf16.msra.mxu0 0
      %1626 = vmatpush.bf16.msra.mxu0 0
      %1627 = vmatpush.bf16.msra.mxu0 %v1618
      %1628 = vmatmul.bf16.gmra.mxu0 %v1593
      %v1629 = vpop.f32.mrf.mxu0
      %v1630 = vadd.f32 %v804, %v1629
      %v1631 = vpop.f32.mrf.mxu0
      %v1632 = vadd.f32 %v805, %v1631
      %1633 = vmatmul.bf16.gmra.mxu0 %v1596
      %v1634 = vpop.f32.mrf.mxu0
      %v1635 = vadd.f32 %v806, %v1634
      %v1636 = vpop.f32.mrf.mxu0
      %v1637 = vadd.f32 %v807, %v1636
      %1638 = vmatmul.bf16.gmra.mxu0 %v1599
      %v1639 = vpop.f32.mrf.mxu0
      %v1640 = vadd.f32 %v808, %v1639
      %v1641 = vpop.f32.mrf.mxu0
      %v1642 = vadd.f32 %v809, %v1641
      %1643 = vmatmul.bf16.gmra.mxu0 %v1602
      %v1644 = vpop.f32.mrf.mxu0
      %v1645 = vadd.f32 %v810, %v1644
      %v1646 = vpop.f32.mrf.mxu0
      %v1647 = vadd.f32 %v811, %v1646
      %1648 = vmatmul.bf16.gmra.mxu0 %v1605
      %v1649 = vpop.f32.mrf.mxu0
      %v1650 = vadd.f32 %v812, %v1649
      %v1651 = vpop.f32.mrf.mxu0
      %v1652 = vadd.f32 %v813, %v1651
      %1653 = vmatmul.bf16.gmra.mxu0 %v1608
      %v1654 = vpop.f32.mrf.mxu0
      %v1655 = vadd.f32 %v814, %v1654
      %v1656 = vpop.f32.mrf.mxu0
      %v1657 = vadd.f32 %v815, %v1656
      %1658 = vmatmul.bf16.gmra.mxu0 %v1611
      %v1659 = vpop.f32.mrf.mxu0
      %v1660 = vadd.f32 %v816, %v1659
      %v1661 = vpop.f32.mrf.mxu0
      %v1662 = vadd.f32 %v817, %v1661
      %1663 = vmatmul.bf16.gmra.mxu0 %v1614
      %v1664 = vpop.f32.mrf.mxu0
      %v1665 = vadd.f32 %v818, %v1664
      %v1666 = vpop.f32.mrf.mxu0
      %v1667 = vadd.f32 %v819, %v1666
      %1668 = vdwg.mxu0
      %1669 = vmax.xlane.f32.xlu0 %v1630
      %v1670 = vpop.xlane.xlu0 %1669
      %1671 = vmax.xlane.f32.xlu0 %v1632
      %v1672 = vpop.xlane.xlu0 %1671
      %1673 = vmax.xlane.f32.xlu0 %v1635
      %v1674 = vpop.xlane.xlu0 %1673
      %1675 = vmax.xlane.f32.xlu0 %v1637
      %v1676 = vpop.xlane.xlu0 %1675
      %1677 = vmax.xlane.f32.xlu0 %v1640
      %v1678 = vpop.xlane.xlu0 %1677
      %1679 = vmax.xlane.f32.xlu0 %v1642
      %v1680 = vpop.xlane.xlu0 %1679
      %1681 = vmax.xlane.f32.xlu0 %v1645
      %v1682 = vpop.xlane.xlu0 %1681
      %1683 = vmax.xlane.f32.xlu0 %v1647
      %v1684 = vpop.xlane.xlu0 %1683
      %1685 = vmax.xlane.f32.xlu0 %v1650
      %v1686 = vpop.xlane.xlu0 %1685
      %1687 = vmax.xlane.f32.xlu0 %v1652
      %v1688 = vpop.xlane.xlu0 %1687
      %1689 = vmax.xlane.f32.xlu0 %v1655
      %v1690 = vpop.xlane.xlu0 %1689
      %1691 = vmax.xlane.f32.xlu0 %v1657
      %v1692 = vpop.xlane.xlu0 %1691
      %1693 = vmax.xlane.f32.xlu0 %v1660
      %v1694 = vpop.xlane.xlu0 %1693
      %1695 = vmax.xlane.f32.xlu0 %v1662
      %v1696 = vpop.xlane.xlu0 %1695
      %1697 = vmax.xlane.f32.xlu0 %v1665
      %v1698 = vpop.xlane.xlu0 %1697
      %1699 = vmax.xlane.f32.xlu0 %v1667
      %v1700 = vpop.xlane.xlu0 %1699
      %v1701 = vsub.f32 %v1630, %v1670
      %v1702 = vsub.f32 %v1632, %v1672
      %v1703 = vsub.f32 %v1635, %v1674
      %v1704 = vsub.f32 %v1637, %v1676
      %v1705 = vsub.f32 %v1640, %v1678
      %v1706 = vsub.f32 %v1642, %v1680
      %v1707 = vsub.f32 %v1645, %v1682
      %v1708 = vsub.f32 %v1647, %v1684
      %v1709 = vsub.f32 %v1650, %v1686
      %v1710 = vsub.f32 %v1652, %v1688
      %v1711 = vsub.f32 %v1655, %v1690
      %v1712 = vsub.f32 %v1657, %v1692
      %v1713 = vsub.f32 %v1660, %v1694
      %v1714 = vsub.f32 %v1662, %v1696
      %v1715 = vsub.f32 %v1665, %v1698
      %v1716 = vsub.f32 %v1667, %v1700
      %v1717 = vmul.f32 %v1701, 1.442695
      %v1718 = vpow.pop %v1717
      %v1719 = vmul.f32 %v1702, 1.442695
      %v1720 = vpow.pop %v1719
      %v1721 = vmul.f32 %v1703, 1.442695
      %v1722 = vpow.pop %v1721
      %v1723 = vmul.f32 %v1704, 1.442695
      %v1724 = vpow.pop %v1723
      %v1725 = vmul.f32 %v1705, 1.442695
      %v1726 = vpow.pop %v1725
      %v1727 = vmul.f32 %v1706, 1.442695
      %v1728 = vpow.pop %v1727
      %v1729 = vmul.f32 %v1707, 1.442695
      %v1730 = vpow.pop %v1729
      %v1731 = vmul.f32 %v1708, 1.442695
      %v1732 = vpow.pop %v1731
      %v1733 = vmul.f32 %v1709, 1.442695
      %v1734 = vpow.pop %v1733
      %v1735 = vmul.f32 %v1710, 1.442695
      %v1736 = vpow.pop %v1735
      %v1737 = vmul.f32 %v1711, 1.442695
      %v1738 = vpow.pop %v1737
      %v1739 = vmul.f32 %v1712, 1.442695
      %v1740 = vpow.pop %v1739
      %v1741 = vmul.f32 %v1713, 1.442695
      %v1742 = vpow.pop %v1741
      %v1743 = vmul.f32 %v1714, 1.442695
      %v1744 = vpow.pop %v1743
      %v1745 = vmul.f32 %v1715, 1.442695
      %v1746 = vpow.pop %v1745
      %v1747 = vmul.f32 %v1716, 1.442695
      %v1748 = vpow.pop %v1747
      %1749 = vadd.xlane.f32.xlu0 %v1718
      %v1750 = vpop.xlane.xlu0 %1749
      %1751 = vadd.xlane.f32.xlu0 %v1720
      %v1752 = vpop.xlane.xlu0 %1751
      %1753 = vadd.xlane.f32.xlu0 %v1722
      %v1754 = vpop.xlane.xlu0 %1753
      %1755 = vadd.xlane.f32.xlu0 %v1724
      %v1756 = vpop.xlane.xlu0 %1755
      %1757 = vadd.xlane.f32.xlu0 %v1726
      %v1758 = vpop.xlane.xlu0 %1757
      %1759 = vadd.xlane.f32.xlu0 %v1728
      %v1760 = vpop.xlane.xlu0 %1759
      %1761 = vadd.xlane.f32.xlu0 %v1730
      %v1762 = vpop.xlane.xlu0 %1761
      %1763 = vadd.xlane.f32.xlu0 %v1732
      %v1764 = vpop.xlane.xlu0 %1763
      %1765 = vadd.xlane.f32.xlu0 %v1734
      %v1766 = vpop.xlane.xlu0 %1765
      %1767 = vadd.xlane.f32.xlu0 %v1736
      %v1768 = vpop.xlane.xlu0 %1767
      %1769 = vadd.xlane.f32.xlu0 %v1738
      %v1770 = vpop.xlane.xlu0 %1769
      %1771 = vadd.xlane.f32.xlu0 %v1740
      %v1772 = vpop.xlane.xlu0 %1771
      %1773 = vadd.xlane.f32.xlu0 %v1742
      %v1774 = vpop.xlane.xlu0 %1773
      %1775 = vadd.xlane.f32.xlu0 %v1744
      %v1776 = vpop.xlane.xlu0 %1775
      %1777 = vadd.xlane.f32.xlu0 %v1746
      %v1778 = vpop.xlane.xlu0 %1777
      %1779 = vadd.xlane.f32.xlu0 %v1748
      %v1780 = vpop.xlane.xlu0 %1779
      %v1781 = vpack.c.bf16 %v1720, %v1718
      %v1782 = vpack.c.bf16 %v1724, %v1722
      %v1783 = vpack.c.bf16 %v1728, %v1726
      %v1784 = vpack.c.bf16 %v1732, %v1730
      %v1785 = vpack.c.bf16 %v1736, %v1734
      %v1786 = vpack.c.bf16 %v1740, %v1738
      %v1787 = vpack.c.bf16 %v1744, %v1742
      %v1788 = vpack.c.bf16 %v1748, %v1746
      %v1805 = vunpack.c.l.b16 %v1526
      %v1806 = vunpack.c.l.b16 %v1527
      %v1807 = vunpack.c.l.b16 %v1528
      %v1808 = vunpack.c.l.b16 %v1529
      %v1809 = vunpack.c.l.b16 %v1530
      %v1810 = vunpack.c.l.b16 %v1531
      %v1811 = vunpack.c.l.b16 %v1532
      %v1812 = vunpack.c.l.b16 %v1533
      %v1813 = vunpack.c.l.b16 %v1534
      %v1814 = vunpack.c.l.b16 %v1535
      %v1815 = vunpack.c.l.b16 %v1536
      %v1816 = vunpack.c.l.b16 %v1537
      %v1817 = vunpack.c.l.b16 %v1538
      %v1818 = vunpack.c.l.b16 %v1539
      %v1819 = vunpack.c.l.b16 %v1540
      %v1820 = vunpack.c.l.b16 %v1541
      %v1821 = vpack.c.b16 %v1806, %v1805
      %v1822 = vpack.c.b16 %v1808, %v1807
      %v1823 = vpack.c.b16 %v1810, %v1809
      %v1824 = vpack.c.b16 %v1812, %v1811
      %v1825 = vpack.c.b16 %v1814, %v1813
      %v1826 = vpack.c.b16 %v1816, %v1815
      %v1827 = vpack.c.b16 %v1818, %v1817
      %v1828 = vpack.c.b16 %v1820, %v1819
      %1837 = vmatpush.bf16.msra.mxu0 %v1828
      %1838 = vmatpush.bf16.msra.mxu0 %v1827
      %1839 = vmatpush.bf16.msra.mxu0 %v1826
      %1840 = vmatpush.bf16.msra.mxu0 %v1825
      %1841 = vmatpush.bf16.msra.mxu0 %v1824
      %1842 = vmatpush.bf16.msra.mxu0 %v1823
      %1843 = vmatpush.bf16.msra.mxu0 %v1822
      %1844 = vmatpush.bf16.msra.mxu0 %v1821
      %1845 = vmatmul.bf16.gmra.mxu0 %v1781
      %v1846 = vpop.f32.mrf.mxu0
      %v1847 = vadd.f32 0.0, %v1846
      %v1848 = vpop.f32.mrf.mxu0
      %v1849 = vadd.f32 0.0, %v1848
      %1850 = vmatmul.bf16.gmra.mxu0 %v1782
      %v1851 = vpop.f32.mrf.mxu0
      %v1852 = vadd.f32 0.0, %v1851
      %v1853 = vpop.f32.mrf.mxu0
      %v1854 = vadd.f32 0.0, %v1853
      %1855 = vmatmul.bf16.gmra.mxu0 %v1783
      %v1856 = vpop.f32.mrf.mxu0
      %v1857 = vadd.f32 0.0, %v1856
      %v1858 = vpop.f32.mrf.mxu0
      %v1859 = vadd.f32 0.0, %v1858
      %1860 = vmatmul.bf16.gmra.mxu0 %v1784
      %v1861 = vpop.f32.mrf.mxu0
      %v1862 = vadd.f32 0.0, %v1861
      %v1863 = vpop.f32.mrf.mxu0
      %v1864 = vadd.f32 0.0, %v1863
      %1865 = vmatmul.bf16.gmra.mxu0 %v1785
      %v1866 = vpop.f32.mrf.mxu0
      %v1867 = vadd.f32 0.0, %v1866
      %v1868 = vpop.f32.mrf.mxu0
      %v1869 = vadd.f32 0.0, %v1868
      %1870 = vmatmul.bf16.gmra.mxu0 %v1786
      %v1871 = vpop.f32.mrf.mxu0
      %v1872 = vadd.f32 0.0, %v1871
      %v1873 = vpop.f32.mrf.mxu0
      %v1874 = vadd.f32 0.0, %v1873
      %1875 = vmatmul.bf16.gmra.mxu0 %v1787
      %v1876 = vpop.f32.mrf.mxu0
      %v1877 = vadd.f32 0.0, %v1876
      %v1878 = vpop.f32.mrf.mxu0
      %v1879 = vadd.f32 0.0, %v1878
      %1880 = vmatmul.bf16.gmra.mxu0 %v1788
      %v1881 = vpop.f32.mrf.mxu0
      %v1882 = vadd.f32 0.0, %v1881
      %v1883 = vpop.f32.mrf.mxu0
      %v1884 = vadd.f32 0.0, %v1883
      %1885 = vdwg.mxu0
      %v1886 = vrcp.pop %v1750
      %v1887 = vrcp.pop %v1752
      %v1888 = vrcp.pop %v1754
      %v1889 = vrcp.pop %v1756
      %v1890 = vrcp.pop %v1758
      %v1891 = vrcp.pop %v1760
      %v1892 = vrcp.pop %v1762
      %v1893 = vrcp.pop %v1764
      %v1894 = vrcp.pop %v1766
      %v1895 = vrcp.pop %v1768
      %v1896 = vrcp.pop %v1770
      %v1897 = vrcp.pop %v1772
      %v1898 = vrcp.pop %v1774
      %v1899 = vrcp.pop %v1776
      %v1900 = vrcp.pop %v1778
      %v1901 = vrcp.pop %v1780
      %v1902 = vmul.f32 %v1847, %v1886
      %v1903 = vmul.f32 %v1849, %v1887
      %v1904 = vmul.f32 %v1852, %v1888
      %v1905 = vmul.f32 %v1854, %v1889
      %v1906 = vmul.f32 %v1857, %v1890
      %v1907 = vmul.f32 %v1859, %v1891
      %v1908 = vmul.f32 %v1862, %v1892
      %v1909 = vmul.f32 %v1864, %v1893
      %v1910 = vmul.f32 %v1867, %v1894
      %v1911 = vmul.f32 %v1869, %v1895
      %v1912 = vmul.f32 %v1872, %v1896
      %v1913 = vmul.f32 %v1874, %v1897
      %v1914 = vmul.f32 %v1877, %v1898
      %v1915 = vmul.f32 %v1879, %v1899
      %v1916 = vmul.f32 %v1882, %v1900
      %v1917 = vmul.f32 %v1884, %v1901
      %v1918 = vpack.c.bf16 %v1903, %v1902
      %v1919 = vpack.c.bf16 %v1905, %v1904
      %v1920 = vpack.c.bf16 %v1907, %v1906
      %v1921 = vpack.c.bf16 %v1909, %v1908
      %v1922 = vpack.c.bf16 %v1911, %v1910
      %v1923 = vpack.c.bf16 %v1913, %v1912
      %v1924 = vpack.c.bf16 %v1915, %v1914
      %v1925 = vpack.c.bf16 %v1917, %v1916
      %v1926 = vpack.c.bf16 %v1511, %v1511
      %1927 = vrot.lane.b32.xlu0 %v1583, 120
      %v1928 = vpop.permute.xlu0 %1927
      %1929 = vrot.lane.b32.xlu0 %v1584, 120
      %v1930 = vpop.permute.xlu0 %1929
      %1931 = vrot.lane.b32.xlu0 %v1585, 120
      %v1932 = vpop.permute.xlu0 %1931
      %1933 = vrot.lane.b32.xlu0 %v1586, 120
      %v1934 = vpop.permute.xlu0 %1933
      %1935 = vrot.lane.b32.xlu0 %v1587, 120
      %v1936 = vpop.permute.xlu0 %1935
      %1937 = vrot.lane.b32.xlu0 %v1588, 120
      %v1938 = vpop.permute.xlu0 %1937
      %1939 = vrot.lane.b32.xlu0 %v1589, 120
      %v1940 = vpop.permute.xlu0 %1939
      %1941 = vrot.lane.b32.xlu0 %v1590, 120
      %v1942 = vpop.permute.xlu0 %1941
      %v1944 = vsel %vm1591, %v1928, 0
      %v1947 = vsel %vm1591, %v1930, 0
      %v1950 = vsel %vm1591, %v1932, 0
      %v1953 = vsel %vm1591, %v1934, 0
      %v1956 = vsel %vm1591, %v1936, 0
      %v1959 = vsel %vm1591, %v1938, 0
      %v1962 = vsel %vm1591, %v1940, 0
      %v1965 = vsel %vm1591, %v1942, 0
      %v1968 = vsel %vm1616, %v1926, 0
      %1970 = vmatpush.bf16.msra.mxu0 0
      %1971 = vmatpush.bf16.msra.mxu0 0
      %1972 = vmatpush.bf16.msra.mxu0 0
      %1973 = vmatpush.bf16.msra.mxu0 0
      %1974 = vmatpush.bf16.msra.mxu0 0
      %1975 = vmatpush.bf16.msra.mxu0 0
      %1976 = vmatpush.bf16.msra.mxu0 0
      %1977 = vmatpush.bf16.msra.mxu0 %v1968
      %1978 = vmatmul.bf16.gmra.mxu0 %v1944
      %v1979 = vpop.f32.mrf.mxu0
      %v1980 = vadd.f32 %v804, %v1979
      %v1981 = vpop.f32.mrf.mxu0
      %v1982 = vadd.f32 %v805, %v1981
      %1983 = vmatmul.bf16.gmra.mxu0 %v1947
      %v1984 = vpop.f32.mrf.mxu0
      %v1985 = vadd.f32 %v806, %v1984
      %v1986 = vpop.f32.mrf.mxu0
      %v1987 = vadd.f32 %v807, %v1986
      %1988 = vmatmul.bf16.gmra.mxu0 %v1950
      %v1989 = vpop.f32.mrf.mxu0
      %v1990 = vadd.f32 %v808, %v1989
      %v1991 = vpop.f32.mrf.mxu0
      %v1992 = vadd.f32 %v809, %v1991
      %1993 = vmatmul.bf16.gmra.mxu0 %v1953
      %v1994 = vpop.f32.mrf.mxu0
      %v1995 = vadd.f32 %v810, %v1994
      %v1996 = vpop.f32.mrf.mxu0
      %v1997 = vadd.f32 %v811, %v1996
      %1998 = vmatmul.bf16.gmra.mxu0 %v1956
      %v1999 = vpop.f32.mrf.mxu0
      %v2000 = vadd.f32 %v812, %v1999
      %v2001 = vpop.f32.mrf.mxu0
      %v2002 = vadd.f32 %v813, %v2001
      %2003 = vmatmul.bf16.gmra.mxu0 %v1959
      %v2004 = vpop.f32.mrf.mxu0
      %v2005 = vadd.f32 %v814, %v2004
      %v2006 = vpop.f32.mrf.mxu0
      %v2007 = vadd.f32 %v815, %v2006
      %2008 = vmatmul.bf16.gmra.mxu0 %v1962
      %v2009 = vpop.f32.mrf.mxu0
      %v2010 = vadd.f32 %v816, %v2009
      %v2011 = vpop.f32.mrf.mxu0
      %v2012 = vadd.f32 %v817, %v2011
      %2013 = vmatmul.bf16.gmra.mxu0 %v1965
      %v2014 = vpop.f32.mrf.mxu0
      %v2015 = vadd.f32 %v818, %v2014
      %v2016 = vpop.f32.mrf.mxu0
      %v2017 = vadd.f32 %v819, %v2016
      %2018 = vdwg.mxu0
      %2019 = vmax.xlane.f32.xlu0 %v1980
      %v2020 = vpop.xlane.xlu0 %2019
      %2021 = vmax.xlane.f32.xlu0 %v1982
      %v2022 = vpop.xlane.xlu0 %2021
      %2023 = vmax.xlane.f32.xlu0 %v1985
      %v2024 = vpop.xlane.xlu0 %2023
      %2025 = vmax.xlane.f32.xlu0 %v1987
      %v2026 = vpop.xlane.xlu0 %2025
      %2027 = vmax.xlane.f32.xlu0 %v1990
      %v2028 = vpop.xlane.xlu0 %2027
      %2029 = vmax.xlane.f32.xlu0 %v1992
      %v2030 = vpop.xlane.xlu0 %2029
      %2031 = vmax.xlane.f32.xlu0 %v1995
      %v2032 = vpop.xlane.xlu0 %2031
      %2033 = vmax.xlane.f32.xlu0 %v1997
      %v2034 = vpop.xlane.xlu0 %2033
      %2035 = vmax.xlane.f32.xlu0 %v2000
      %v2036 = vpop.xlane.xlu0 %2035
      %2037 = vmax.xlane.f32.xlu0 %v2002
      %v2038 = vpop.xlane.xlu0 %2037
      %2039 = vmax.xlane.f32.xlu0 %v2005
      %v2040 = vpop.xlane.xlu0 %2039
      %2041 = vmax.xlane.f32.xlu0 %v2007
      %v2042 = vpop.xlane.xlu0 %2041
      %2043 = vmax.xlane.f32.xlu0 %v2010
      %v2044 = vpop.xlane.xlu0 %2043
      %2045 = vmax.xlane.f32.xlu0 %v2012
      %v2046 = vpop.xlane.xlu0 %2045
      %2047 = vmax.xlane.f32.xlu0 %v2015
      %v2048 = vpop.xlane.xlu0 %2047
      %2049 = vmax.xlane.f32.xlu0 %v2017
      %v2050 = vpop.xlane.xlu0 %2049
      %v2051 = vsub.f32 %v1980, %v2020
      %v2052 = vsub.f32 %v1982, %v2022
      %v2053 = vsub.f32 %v1985, %v2024
      %v2054 = vsub.f32 %v1987, %v2026
      %v2055 = vsub.f32 %v1990, %v2028
      %v2056 = vsub.f32 %v1992, %v2030
      %v2057 = vsub.f32 %v1995, %v2032
      %v2058 = vsub.f32 %v1997, %v2034
      %v2059 = vsub.f32 %v2000, %v2036
      %v2060 = vsub.f32 %v2002, %v2038
      %v2061 = vsub.f32 %v2005, %v2040
      %v2062 = vsub.f32 %v2007, %v2042
      %v2063 = vsub.f32 %v2010, %v2044
      %v2064 = vsub.f32 %v2012, %v2046
      %v2065 = vsub.f32 %v2015, %v2048
      %v2066 = vsub.f32 %v2017, %v2050
      %v2067 = vmul.f32 %v2051, 1.442695
      %v2068 = vpow.pop %v2067
      %v2069 = vmul.f32 %v2052, 1.442695
      %v2070 = vpow.pop %v2069
      %v2071 = vmul.f32 %v2053, 1.442695
      %v2072 = vpow.pop %v2071
      %v2073 = vmul.f32 %v2054, 1.442695
      %v2074 = vpow.pop %v2073
      %v2075 = vmul.f32 %v2055, 1.442695
      %v2076 = vpow.pop %v2075
      %v2077 = vmul.f32 %v2056, 1.442695
      %v2078 = vpow.pop %v2077
      %v2079 = vmul.f32 %v2057, 1.442695
      %v2080 = vpow.pop %v2079
      %v2081 = vmul.f32 %v2058, 1.442695
      %v2082 = vpow.pop %v2081
      %v2083 = vmul.f32 %v2059, 1.442695
      %v2084 = vpow.pop %v2083
      %v2085 = vmul.f32 %v2060, 1.442695
      %v2086 = vpow.pop %v2085
      %v2087 = vmul.f32 %v2061, 1.442695
      %v2088 = vpow.pop %v2087
      %v2089 = vmul.f32 %v2062, 1.442695
      %v2090 = vpow.pop %v2089
      %v2091 = vmul.f32 %v2063, 1.442695
      %v2092 = vpow.pop %v2091
      %v2093 = vmul.f32 %v2064, 1.442695
      %v2094 = vpow.pop %v2093
      %v2095 = vmul.f32 %v2065, 1.442695
      %v2096 = vpow.pop %v2095
      %v2097 = vmul.f32 %v2066, 1.442695
      %v2098 = vpow.pop %v2097
      %2099 = vadd.xlane.f32.xlu0 %v2068
      %v2100 = vpop.xlane.xlu0 %2099
      %2101 = vadd.xlane.f32.xlu0 %v2070
      %v2102 = vpop.xlane.xlu0 %2101
      %2103 = vadd.xlane.f32.xlu0 %v2072
      %v2104 = vpop.xlane.xlu0 %2103
      %2105 = vadd.xlane.f32.xlu0 %v2074
      %v2106 = vpop.xlane.xlu0 %2105
      %2107 = vadd.xlane.f32.xlu0 %v2076
      %v2108 = vpop.xlane.xlu0 %2107
      %2109 = vadd.xlane.f32.xlu0 %v2078
      %v2110 = vpop.xlane.xlu0 %2109
      %2111 = vadd.xlane.f32.xlu0 %v2080
      %v2112 = vpop.xlane.xlu0 %2111
      %2113 = vadd.xlane.f32.xlu0 %v2082
      %v2114 = vpop.xlane.xlu0 %2113
      %2115 = vadd.xlane.f32.xlu0 %v2084
      %v2116 = vpop.xlane.xlu0 %2115
      %2117 = vadd.xlane.f32.xlu0 %v2086
      %v2118 = vpop.xlane.xlu0 %2117
      %2119 = vadd.xlane.f32.xlu0 %v2088
      %v2120 = vpop.xlane.xlu0 %2119
      %2121 = vadd.xlane.f32.xlu0 %v2090
      %v2122 = vpop.xlane.xlu0 %2121
      %2123 = vadd.xlane.f32.xlu0 %v2092
      %v2124 = vpop.xlane.xlu0 %2123
      %2125 = vadd.xlane.f32.xlu0 %v2094
      %v2126 = vpop.xlane.xlu0 %2125
      %2127 = vadd.xlane.f32.xlu0 %v2096
      %v2128 = vpop.xlane.xlu0 %2127
      %2129 = vadd.xlane.f32.xlu0 %v2098
      %v2130 = vpop.xlane.xlu0 %2129
      %v2131 = vpack.c.bf16 %v2070, %v2068
      %v2132 = vpack.c.bf16 %v2074, %v2072
      %v2133 = vpack.c.bf16 %v2078, %v2076
      %v2134 = vpack.c.bf16 %v2082, %v2080
      %v2135 = vpack.c.bf16 %v2086, %v2084
      %v2136 = vpack.c.bf16 %v2090, %v2088
      %v2137 = vpack.c.bf16 %v2094, %v2092
      %v2138 = vpack.c.bf16 %v2098, %v2096
      %2139 = vrot.lane.b32.xlu0 %v1821, 120
      %v2140 = vpop.permute.xlu0 %2139
      %2141 = vrot.lane.b32.xlu0 %v1822, 120
      %v2142 = vpop.permute.xlu0 %2141
      %2143 = vrot.lane.b32.xlu0 %v1823, 120
      %v2144 = vpop.permute.xlu0 %2143
      %2145 = vrot.lane.b32.xlu0 %v1824, 120
      %v2146 = vpop.permute.xlu0 %2145
      %2147 = vrot.lane.b32.xlu0 %v1825, 120
      %v2148 = vpop.permute.xlu0 %2147
      %2149 = vrot.lane.b32.xlu0 %v1826, 120
      %v2150 = vpop.permute.xlu0 %2149
      %2151 = vrot.lane.b32.xlu0 %v1827, 120
      %v2152 = vpop.permute.xlu0 %2151
      %2153 = vrot.lane.b32.xlu0 %v1828, 120
      %v2154 = vpop.permute.xlu0 %2153
      %2163 = vmatpush.bf16.msra.mxu0 %v2154
      %2164 = vmatpush.bf16.msra.mxu0 %v2152
      %2165 = vmatpush.bf16.msra.mxu0 %v2150
      %2166 = vmatpush.bf16.msra.mxu0 %v2148
      %2167 = vmatpush.bf16.msra.mxu0 %v2146
      %2168 = vmatpush.bf16.msra.mxu0 %v2144
      %2169 = vmatpush.bf16.msra.mxu0 %v2142
      %2170 = vmatpush.bf16.msra.mxu0 %v2140
      %2171 = vmatmul.bf16.gmra.mxu0 %v2131
      %v2172 = vpop.f32.mrf.mxu0
      %v2173 = vadd.f32 0.0, %v2172
      %v2174 = vpop.f32.mrf.mxu0
      %v2175 = vadd.f32 0.0, %v2174
      %2176 = vmatmul.bf16.gmra.mxu0 %v2132
      %v2177 = vpop.f32.mrf.mxu0
      %v2178 = vadd.f32 0.0, %v2177
      %v2179 = vpop.f32.mrf.mxu0
      %v2180 = vadd.f32 0.0, %v2179
      %2181 = vmatmul.bf16.gmra.mxu0 %v2133
      %v2182 = vpop.f32.mrf.mxu0
      %v2183 = vadd.f32 0.0, %v2182
      %v2184 = vpop.f32.mrf.mxu0
      %v2185 = vadd.f32 0.0, %v2184
      %2186 = vmatmul.bf16.gmra.mxu0 %v2134
      %v2187 = vpop.f32.mrf.mxu0
      %v2188 = vadd.f32 0.0, %v2187
      %v2189 = vpop.f32.mrf.mxu0
      %v2190 = vadd.f32 0.0, %v2189
      %2191 = vmatmul.bf16.gmra.mxu0 %v2135
      %v2192 = vpop.f32.mrf.mxu0
      %v2193 = vadd.f32 0.0, %v2192
      %v2194 = vpop.f32.mrf.mxu0
      %v2195 = vadd.f32 0.0, %v2194
      %2196 = vmatmul.bf16.gmra.mxu0 %v2136
      %v2197 = vpop.f32.mrf.mxu0
      %v2198 = vadd.f32 0.0, %v2197
      %v2199 = vpop.f32.mrf.mxu0
      %v2200 = vadd.f32 0.0, %v2199
      %2201 = vmatmul.bf16.gmra.mxu0 %v2137
      %v2202 = vpop.f32.mrf.mxu0
      %v2203 = vadd.f32 0.0, %v2202
      %v2204 = vpop.f32.mrf.mxu0
      %v2205 = vadd.f32 0.0, %v2204
      %2206 = vmatmul.bf16.gmra.mxu0 %v2138
      %v2207 = vpop.f32.mrf.mxu0
      %v2208 = vadd.f32 0.0, %v2207
      %v2209 = vpop.f32.mrf.mxu0
      %v2210 = vadd.f32 0.0, %v2209
      %2211 = vdwg.mxu0
      %v2212 = vrcp.pop %v2100
      %v2213 = vrcp.pop %v2102
      %v2214 = vrcp.pop %v2104
      %v2215 = vrcp.pop %v2106
      %v2216 = vrcp.pop %v2108
      %v2217 = vrcp.pop %v2110
      %v2218 = vrcp.pop %v2112
      %v2219 = vrcp.pop %v2114
      %v2220 = vrcp.pop %v2116
      %v2221 = vrcp.pop %v2118
      %v2222 = vrcp.pop %v2120
      %v2223 = vrcp.pop %v2122
      %v2224 = vrcp.pop %v2124
      %v2225 = vrcp.pop %v2126
      %v2226 = vrcp.pop %v2128
      %v2227 = vrcp.pop %v2130
      %v2228 = vmul.f32 %v2173, %v2212
      %v2229 = vmul.f32 %v2175, %v2213
      %v2230 = vmul.f32 %v2178, %v2214
      %v2231 = vmul.f32 %v2180, %v2215
      %v2232 = vmul.f32 %v2183, %v2216
      %v2233 = vmul.f32 %v2185, %v2217
      %v2234 = vmul.f32 %v2188, %v2218
      %v2235 = vmul.f32 %v2190, %v2219
      %v2236 = vmul.f32 %v2193, %v2220
      %v2237 = vmul.f32 %v2195, %v2221
      %v2238 = vmul.f32 %v2198, %v2222
      %v2239 = vmul.f32 %v2200, %v2223
      %v2240 = vmul.f32 %v2203, %v2224
      %v2241 = vmul.f32 %v2205, %v2225
      %v2242 = vmul.f32 %v2208, %v2226
      %v2243 = vmul.f32 %v2210, %v2227
      %v2244 = vpack.c.bf16 %v2229, %v2228
      %v2245 = vpack.c.bf16 %v2231, %v2230
      %v2246 = vpack.c.bf16 %v2233, %v2232
      %v2247 = vpack.c.bf16 %v2235, %v2234
      %v2248 = vpack.c.bf16 %v2237, %v2236
      %v2249 = vpack.c.bf16 %v2239, %v2238
      %v2250 = vpack.c.bf16 %v2241, %v2240
      %v2251 = vpack.c.bf16 %v2243, %v2242
      %v2253 = vsel %vm1591, %v2244, 0
      %v2256 = vsel %vm1591, %v2245, 0
      %v2259 = vsel %vm1591, %v2246, 0
      %v2262 = vsel %vm1591, %v2247, 0
      %v2265 = vsel %vm1591, %v2248, 0
      %v2268 = vsel %vm1591, %v2249, 0
      %v2271 = vsel %vm1591, %v2250, 0
      %v2274 = vsel %vm1591, %v2251, 0
      %v2277 = vsel %vm1616, %v1543, 0
      %2279 = vmatpush.bf16.msra.mxu0 0
      %2280 = vmatpush.bf16.msra.mxu0 0
      %2281 = vmatpush.bf16.msra.mxu0 0
      %2282 = vmatpush.bf16.msra.mxu0 0
      %2283 = vmatpush.bf16.msra.mxu0 0
      %2284 = vmatpush.bf16.msra.mxu0 0
      %2285 = vmatpush.bf16.msra.mxu0 0
      %2286 = vmatpush.bf16.msra.mxu0 %v2277
      %2287 = vmatmul.bf16.gmra.mxu0 %v2253
      %v2288 = vpop.f32.mrf.mxu0
      %v2289 = vadd.f32 0.0, %v2288
      %v2290 = vpop.f32.mrf.mxu0
      %v2291 = vadd.f32 0.0, %v2290
      %2292 = vmatmul.bf16.gmra.mxu0 %v2256
      %v2293 = vpop.f32.mrf.mxu0
      %v2294 = vadd.f32 0.0, %v2293
      %v2295 = vpop.f32.mrf.mxu0
      %v2296 = vadd.f32 0.0, %v2295
      %2297 = vmatmul.bf16.gmra.mxu0 %v2259
      %v2298 = vpop.f32.mrf.mxu0
      %v2299 = vadd.f32 0.0, %v2298
      %v2300 = vpop.f32.mrf.mxu0
      %v2301 = vadd.f32 0.0, %v2300
      %2302 = vmatmul.bf16.gmra.mxu0 %v2262
      %v2303 = vpop.f32.mrf.mxu0
      %v2304 = vadd.f32 0.0, %v2303
      %v2305 = vpop.f32.mrf.mxu0
      %v2306 = vadd.f32 0.0, %v2305
      %2307 = vmatmul.bf16.gmra.mxu0 %v2265
      %v2308 = vpop.f32.mrf.mxu0
      %v2309 = vadd.f32 0.0, %v2308
      %v2310 = vpop.f32.mrf.mxu0
      %v2311 = vadd.f32 0.0, %v2310
      %2312 = vmatmul.bf16.gmra.mxu0 %v2268
      %v2313 = vpop.f32.mrf.mxu0
      %v2314 = vadd.f32 0.0, %v2313
      %v2315 = vpop.f32.mrf.mxu0
      %v2316 = vadd.f32 0.0, %v2315
      %2317 = vmatmul.bf16.gmra.mxu0 %v2271
      %v2318 = vpop.f32.mrf.mxu0
      %v2319 = vadd.f32 0.0, %v2318
      %v2320 = vpop.f32.mrf.mxu0
      %v2321 = vadd.f32 0.0, %v2320
      %2322 = vmatmul.bf16.gmra.mxu0 %v2274
      %v2323 = vpop.f32.mrf.mxu0
      %v2324 = vadd.f32 0.0, %v2323
      %v2325 = vpop.f32.mrf.mxu0
      %v2326 = vadd.f32 0.0, %v2325
      %2327 = vdwg.mxu0
      %v2329 = vsel %vm1591, %v1918, 0
      %v2332 = vsel %vm1591, %v1919, 0
      %v2335 = vsel %vm1591, %v1920, 0
      %v2338 = vsel %vm1591, %v1921, 0
      %v2341 = vsel %vm1591, %v1922, 0
      %v2344 = vsel %vm1591, %v1923, 0
      %v2347 = vsel %vm1591, %v1924, 0
      %v2350 = vsel %vm1591, %v1925, 0
      %v2353 = vsel %vm1616, %v1542, 0
      %2355 = vmatpush.bf16.msra.mxu0 0
      %2356 = vmatpush.bf16.msra.mxu0 0
      %2357 = vmatpush.bf16.msra.mxu0 0
      %2358 = vmatpush.bf16.msra.mxu0 0
      %2359 = vmatpush.bf16.msra.mxu0 0
      %2360 = vmatpush.bf16.msra.mxu0 0
      %2361 = vmatpush.bf16.msra.mxu0 0
      %2362 = vmatpush.bf16.msra.mxu0 %v2353
      %2363 = vmatmul.bf16.gmra.mxu0 %v2329
      %v2364 = vpop.f32.mrf.mxu0
      %v2365 = vadd.f32 %v2289, %v2364
      %v2366 = vpop.f32.mrf.mxu0
      %v2367 = vadd.f32 %v2291, %v2366
      %2368 = vmatmul.bf16.gmra.mxu0 %v2332
      %v2369 = vpop.f32.mrf.mxu0
      %v2370 = vadd.f32 %v2294, %v2369
      %v2371 = vpop.f32.mrf.mxu0
      %v2372 = vadd.f32 %v2296, %v2371
      %2373 = vmatmul.bf16.gmra.mxu0 %v2335
      %v2374 = vpop.f32.mrf.mxu0
      %v2375 = vadd.f32 %v2299, %v2374
      %v2376 = vpop.f32.mrf.mxu0
      %v2377 = vadd.f32 %v2301, %v2376
      %2378 = vmatmul.bf16.gmra.mxu0 %v2338
      %v2379 = vpop.f32.mrf.mxu0
      %v2380 = vadd.f32 %v2304, %v2379
      %v2381 = vpop.f32.mrf.mxu0
      %v2382 = vadd.f32 %v2306, %v2381
      %2383 = vmatmul.bf16.gmra.mxu0 %v2341
      %v2384 = vpop.f32.mrf.mxu0
      %v2385 = vadd.f32 %v2309, %v2384
      %v2386 = vpop.f32.mrf.mxu0
      %v2387 = vadd.f32 %v2311, %v2386
      %2388 = vmatmul.bf16.gmra.mxu0 %v2344
      %v2389 = vpop.f32.mrf.mxu0
      %v2390 = vadd.f32 %v2314, %v2389
      %v2391 = vpop.f32.mrf.mxu0
      %v2392 = vadd.f32 %v2316, %v2391
      %2393 = vmatmul.bf16.gmra.mxu0 %v2347
      %v2394 = vpop.f32.mrf.mxu0
      %v2395 = vadd.f32 %v2319, %v2394
      %v2396 = vpop.f32.mrf.mxu0
      %v2397 = vadd.f32 %v2321, %v2396
      %2398 = vmatmul.bf16.gmra.mxu0 %v2350
      %v2399 = vpop.f32.mrf.mxu0
      %v2400 = vadd.f32 %v2324, %v2399
      %v2401 = vpop.f32.mrf.mxu0
      %v2402 = vadd.f32 %v2326, %v2401
      %2403 = vdwg.mxu0
      %v2404 = vpack.c.bf16 %v1512, %v1512
      %2405 = vrot.lane.b32.xlu0 %v1583, 112
      %v2406 = vpop.permute.xlu0 %2405
      %2407 = vrot.lane.b32.xlu0 %v1584, 112
      %v2408 = vpop.permute.xlu0 %2407
      %2409 = vrot.lane.b32.xlu0 %v1585, 112
      %v2410 = vpop.permute.xlu0 %2409
      %2411 = vrot.lane.b32.xlu0 %v1586, 112
      %v2412 = vpop.permute.xlu0 %2411
      %2413 = vrot.lane.b32.xlu0 %v1587, 112
      %v2414 = vpop.permute.xlu0 %2413
      %2415 = vrot.lane.b32.xlu0 %v1588, 112
      %v2416 = vpop.permute.xlu0 %2415
      %2417 = vrot.lane.b32.xlu0 %v1589, 112
      %v2418 = vpop.permute.xlu0 %2417
      %2419 = vrot.lane.b32.xlu0 %v1590, 112
      %v2420 = vpop.permute.xlu0 %2419
      %v2422 = vsel %vm1591, %v2406, 0
      %v2425 = vsel %vm1591, %v2408, 0
      %v2428 = vsel %vm1591, %v2410, 0
      %v2431 = vsel %vm1591, %v2412, 0
      %v2434 = vsel %vm1591, %v2414, 0
      %v2437 = vsel %vm1591, %v2416, 0
      %v2440 = vsel %vm1591, %v2418, 0
      %v2443 = vsel %vm1591, %v2420, 0
      %v2446 = vsel %vm1616, %v2404, 0
      %2448 = vmatpush.bf16.msra.mxu0 0
      %2449 = vmatpush.bf16.msra.mxu0 0
      %2450 = vmatpush.bf16.msra.mxu0 0
      %2451 = vmatpush.bf16.msra.mxu0 0
      %2452 = vmatpush.bf16.msra.mxu0 0
      %2453 = vmatpush.bf16.msra.mxu0 0
      %2454 = vmatpush.bf16.msra.mxu0 0
      %2455 = vmatpush.bf16.msra.mxu0 %v2446
      %2456 = vmatmul.bf16.gmra.mxu0 %v2422
      %v2457 = vpop.f32.mrf.mxu0
      %v2458 = vadd.f32 %v804, %v2457
      %v2459 = vpop.f32.mrf.mxu0
      %v2460 = vadd.f32 %v805, %v2459
      %2461 = vmatmul.bf16.gmra.mxu0 %v2425
      %v2462 = vpop.f32.mrf.mxu0
      %v2463 = vadd.f32 %v806, %v2462
      %v2464 = vpop.f32.mrf.mxu0
      %v2465 = vadd.f32 %v807, %v2464
      %2466 = vmatmul.bf16.gmra.mxu0 %v2428
      %v2467 = vpop.f32.mrf.mxu0
      %v2468 = vadd.f32 %v808, %v2467
      %v2469 = vpop.f32.mrf.mxu0
      %v2470 = vadd.f32 %v809, %v2469
      %2471 = vmatmul.bf16.gmra.mxu0 %v2431
      %v2472 = vpop.f32.mrf.mxu0
      %v2473 = vadd.f32 %v810, %v2472
      %v2474 = vpop.f32.mrf.mxu0
      %v2475 = vadd.f32 %v811, %v2474
      %2476 = vmatmul.bf16.gmra.mxu0 %v2434
      %v2477 = vpop.f32.mrf.mxu0
      %v2478 = vadd.f32 %v812, %v2477
      %v2479 = vpop.f32.mrf.mxu0
      %v2480 = vadd.f32 %v813, %v2479
      %2481 = vmatmul.bf16.gmra.mxu0 %v2437
      %v2482 = vpop.f32.mrf.mxu0
      %v2483 = vadd.f32 %v814, %v2482
      %v2484 = vpop.f32.mrf.mxu0
      %v2485 = vadd.f32 %v815, %v2484
      %2486 = vmatmul.bf16.gmra.mxu0 %v2440
      %v2487 = vpop.f32.mrf.mxu0
      %v2488 = vadd.f32 %v816, %v2487
      %v2489 = vpop.f32.mrf.mxu0
      %v2490 = vadd.f32 %v817, %v2489
      %2491 = vmatmul.bf16.gmra.mxu0 %v2443
      %v2492 = vpop.f32.mrf.mxu0
      %v2493 = vadd.f32 %v818, %v2492
      %v2494 = vpop.f32.mrf.mxu0
      %v2495 = vadd.f32 %v819, %v2494
      %2496 = vdwg.mxu0
      %2497 = vmax.xlane.f32.xlu0 %v2458
      %v2498 = vpop.xlane.xlu0 %2497
      %2499 = vmax.xlane.f32.xlu0 %v2460
      %v2500 = vpop.xlane.xlu0 %2499
      %2501 = vmax.xlane.f32.xlu0 %v2463
      %v2502 = vpop.xlane.xlu0 %2501
      %2503 = vmax.xlane.f32.xlu0 %v2465
      %v2504 = vpop.xlane.xlu0 %2503
      %2505 = vmax.xlane.f32.xlu0 %v2468
      %v2506 = vpop.xlane.xlu0 %2505
      %2507 = vmax.xlane.f32.xlu0 %v2470
      %v2508 = vpop.xlane.xlu0 %2507
      %2509 = vmax.xlane.f32.xlu0 %v2473
      %v2510 = vpop.xlane.xlu0 %2509
      %2511 = vmax.xlane.f32.xlu0 %v2475
      %v2512 = vpop.xlane.xlu0 %2511
      %2513 = vmax.xlane.f32.xlu0 %v2478
      %v2514 = vpop.xlane.xlu0 %2513
      %2515 = vmax.xlane.f32.xlu0 %v2480
      %v2516 = vpop.xlane.xlu0 %2515
      %2517 = vmax.xlane.f32.xlu0 %v2483
      %v2518 = vpop.xlane.xlu0 %2517
      %2519 = vmax.xlane.f32.xlu0 %v2485
      %v2520 = vpop.xlane.xlu0 %2519
      %2521 = vmax.xlane.f32.xlu0 %v2488
      %v2522 = vpop.xlane.xlu0 %2521
      %2523 = vmax.xlane.f32.xlu0 %v2490
      %v2524 = vpop.xlane.xlu0 %2523
      %2525 = vmax.xlane.f32.xlu0 %v2493
      %v2526 = vpop.xlane.xlu0 %2525
      %2527 = vmax.xlane.f32.xlu0 %v2495
      %v2528 = vpop.xlane.xlu0 %2527
      %v2529 = vsub.f32 %v2458, %v2498
      %v2530 = vsub.f32 %v2460, %v2500
      %v2531 = vsub.f32 %v2463, %v2502
      %v2532 = vsub.f32 %v2465, %v2504
      %v2533 = vsub.f32 %v2468, %v2506
      %v2534 = vsub.f32 %v2470, %v2508
      %v2535 = vsub.f32 %v2473, %v2510
      %v2536 = vsub.f32 %v2475, %v2512
      %v2537 = vsub.f32 %v2478, %v2514
      %v2538 = vsub.f32 %v2480, %v2516
      %v2539 = vsub.f32 %v2483, %v2518
      %v2540 = vsub.f32 %v2485, %v2520
      %v2541 = vsub.f32 %v2488, %v2522
      %v2542 = vsub.f32 %v2490, %v2524
      %v2543 = vsub.f32 %v2493, %v2526
      %v2544 = vsub.f32 %v2495, %v2528
      %v2545 = vmul.f32 %v2529, 1.442695
      %v2546 = vpow.pop %v2545
      %v2547 = vmul.f32 %v2530, 1.442695
      %v2548 = vpow.pop %v2547
      %v2549 = vmul.f32 %v2531, 1.442695
      %v2550 = vpow.pop %v2549
      %v2551 = vmul.f32 %v2532, 1.442695
      %v2552 = vpow.pop %v2551
      %v2553 = vmul.f32 %v2533, 1.442695
      %v2554 = vpow.pop %v2553
      %v2555 = vmul.f32 %v2534, 1.442695
      %v2556 = vpow.pop %v2555
      %v2557 = vmul.f32 %v2535, 1.442695
      %v2558 = vpow.pop %v2557
      %v2559 = vmul.f32 %v2536, 1.442695
      %v2560 = vpow.pop %v2559
      %v2561 = vmul.f32 %v2537, 1.442695
      %v2562 = vpow.pop %v2561
      %v2563 = vmul.f32 %v2538, 1.442695
      %v2564 = vpow.pop %v2563
      %v2565 = vmul.f32 %v2539, 1.442695
      %v2566 = vpow.pop %v2565
      %v2567 = vmul.f32 %v2540, 1.442695
      %v2568 = vpow.pop %v2567
      %v2569 = vmul.f32 %v2541, 1.442695
      %v2570 = vpow.pop %v2569
      %v2571 = vmul.f32 %v2542, 1.442695
      %v2572 = vpow.pop %v2571
      %v2573 = vmul.f32 %v2543, 1.442695
      %v2574 = vpow.pop %v2573
      %v2575 = vmul.f32 %v2544, 1.442695
      %v2576 = vpow.pop %v2575
      %2577 = vadd.xlane.f32.xlu0 %v2546
      %v2578 = vpop.xlane.xlu0 %2577
      %2579 = vadd.xlane.f32.xlu0 %v2548
      %v2580 = vpop.xlane.xlu0 %2579
      %2581 = vadd.xlane.f32.xlu0 %v2550
      %v2582 = vpop.xlane.xlu0 %2581
      %2583 = vadd.xlane.f32.xlu0 %v2552
      %v2584 = vpop.xlane.xlu0 %2583
      %2585 = vadd.xlane.f32.xlu0 %v2554
      %v2586 = vpop.xlane.xlu0 %2585
      %2587 = vadd.xlane.f32.xlu0 %v2556
      %v2588 = vpop.xlane.xlu0 %2587
      %2589 = vadd.xlane.f32.xlu0 %v2558
      %v2590 = vpop.xlane.xlu0 %2589
      %2591 = vadd.xlane.f32.xlu0 %v2560
      %v2592 = vpop.xlane.xlu0 %2591
      %2593 = vadd.xlane.f32.xlu0 %v2562
      %v2594 = vpop.xlane.xlu0 %2593
      %2595 = vadd.xlane.f32.xlu0 %v2564
      %v2596 = vpop.xlane.xlu0 %2595
      %2597 = vadd.xlane.f32.xlu0 %v2566
      %v2598 = vpop.xlane.xlu0 %2597
      %2599 = vadd.xlane.f32.xlu0 %v2568
      %v2600 = vpop.xlane.xlu0 %2599
      %2601 = vadd.xlane.f32.xlu0 %v2570
      %v2602 = vpop.xlane.xlu0 %2601
      %2603 = vadd.xlane.f32.xlu0 %v2572
      %v2604 = vpop.xlane.xlu0 %2603
      %2605 = vadd.xlane.f32.xlu0 %v2574
      %v2606 = vpop.xlane.xlu0 %2605
      %2607 = vadd.xlane.f32.xlu0 %v2576
      %v2608 = vpop.xlane.xlu0 %2607
      %v2609 = vpack.c.bf16 %v2548, %v2546
      %v2610 = vpack.c.bf16 %v2552, %v2550
      %v2611 = vpack.c.bf16 %v2556, %v2554
      %v2612 = vpack.c.bf16 %v2560, %v2558
      %v2613 = vpack.c.bf16 %v2564, %v2562
      %v2614 = vpack.c.bf16 %v2568, %v2566
      %v2615 = vpack.c.bf16 %v2572, %v2570
      %v2616 = vpack.c.bf16 %v2576, %v2574
      %2617 = vrot.lane.b32.xlu0 %v1821, 112
      %v2618 = vpop.permute.xlu0 %2617
      %2619 = vrot.lane.b32.xlu0 %v1822, 112
      %v2620 = vpop.permute.xlu0 %2619
      %2621 = vrot.lane.b32.xlu0 %v1823, 112
      %v2622 = vpop.permute.xlu0 %2621
      %2623 = vrot.lane.b32.xlu0 %v1824, 112
      %v2624 = vpop.permute.xlu0 %2623
      %2625 = vrot.lane.b32.xlu0 %v1825, 112
      %v2626 = vpop.permute.xlu0 %2625
      %2627 = vrot.lane.b32.xlu0 %v1826, 112
      %v2628 = vpop.permute.xlu0 %2627
      %2629 = vrot.lane.b32.xlu0 %v1827, 112
      %v2630 = vpop.permute.xlu0 %2629
      %2631 = vrot.lane.b32.xlu0 %v1828, 112
      %v2632 = vpop.permute.xlu0 %2631
      %2641 = vmatpush.bf16.msra.mxu0 %v2632
      %2642 = vmatpush.bf16.msra.mxu0 %v2630
      %2643 = vmatpush.bf16.msra.mxu0 %v2628
      %2644 = vmatpush.bf16.msra.mxu0 %v2626
      %2645 = vmatpush.bf16.msra.mxu0 %v2624
      %2646 = vmatpush.bf16.msra.mxu0 %v2622
      %2647 = vmatpush.bf16.msra.mxu0 %v2620
      %2648 = vmatpush.bf16.msra.mxu0 %v2618
      %2649 = vmatmul.bf16.gmra.mxu0 %v2609
      %v2650 = vpop.f32.mrf.mxu0
      %v2651 = vadd.f32 0.0, %v2650
      %v2652 = vpop.f32.mrf.mxu0
      %v2653 = vadd.f32 0.0, %v2652
      %2654 = vmatmul.bf16.gmra.mxu0 %v2610
      %v2655 = vpop.f32.mrf.mxu0
      %v2656 = vadd.f32 0.0, %v2655
      %v2657 = vpop.f32.mrf.mxu0
      %v2658 = vadd.f32 0.0, %v2657
      %2659 = vmatmul.bf16.gmra.mxu0 %v2611
      %v2660 = vpop.f32.mrf.mxu0
      %v2661 = vadd.f32 0.0, %v2660
      %v2662 = vpop.f32.mrf.mxu0
      %v2663 = vadd.f32 0.0, %v2662
      %2664 = vmatmul.bf16.gmra.mxu0 %v2612
      %v2665 = vpop.f32.mrf.mxu0
      %v2666 = vadd.f32 0.0, %v2665
      %v2667 = vpop.f32.mrf.mxu0
      %v2668 = vadd.f32 0.0, %v2667
      %2669 = vmatmul.bf16.gmra.mxu0 %v2613
      %v2670 = vpop.f32.mrf.mxu0
      %v2671 = vadd.f32 0.0, %v2670
      %v2672 = vpop.f32.mrf.mxu0
      %v2673 = vadd.f32 0.0, %v2672
      %2674 = vmatmul.bf16.gmra.mxu0 %v2614
      %v2675 = vpop.f32.mrf.mxu0
      %v2676 = vadd.f32 0.0, %v2675
      %v2677 = vpop.f32.mrf.mxu0
      %v2678 = vadd.f32 0.0, %v2677
      %2679 = vmatmul.bf16.gmra.mxu0 %v2615
      %v2680 = vpop.f32.mrf.mxu0
      %v2681 = vadd.f32 0.0, %v2680
      %v2682 = vpop.f32.mrf.mxu0
      %v2683 = vadd.f32 0.0, %v2682
      %2684 = vmatmul.bf16.gmra.mxu0 %v2616
      %v2685 = vpop.f32.mrf.mxu0
      %v2686 = vadd.f32 0.0, %v2685
      %v2687 = vpop.f32.mrf.mxu0
      %v2688 = vadd.f32 0.0, %v2687
      %2689 = vdwg.mxu0
      %v2690 = vrcp.pop %v2578
      %v2691 = vrcp.pop %v2580
      %v2692 = vrcp.pop %v2582
      %v2693 = vrcp.pop %v2584
      %v2694 = vrcp.pop %v2586
      %v2695 = vrcp.pop %v2588
      %v2696 = vrcp.pop %v2590
      %v2697 = vrcp.pop %v2592
      %v2698 = vrcp.pop %v2594
      %v2699 = vrcp.pop %v2596
      %v2700 = vrcp.pop %v2598
      %v2701 = vrcp.pop %v2600
      %v2702 = vrcp.pop %v2602
      %v2703 = vrcp.pop %v2604
      %v2704 = vrcp.pop %v2606
      %v2705 = vrcp.pop %v2608
      %v2706 = vmul.f32 %v2651, %v2690
      %v2707 = vmul.f32 %v2653, %v2691
      %v2708 = vmul.f32 %v2656, %v2692
      %v2709 = vmul.f32 %v2658, %v2693
      %v2710 = vmul.f32 %v2661, %v2694
      %v2711 = vmul.f32 %v2663, %v2695
      %v2712 = vmul.f32 %v2666, %v2696
      %v2713 = vmul.f32 %v2668, %v2697
      %v2714 = vmul.f32 %v2671, %v2698
      %v2715 = vmul.f32 %v2673, %v2699
      %v2716 = vmul.f32 %v2676, %v2700
      %v2717 = vmul.f32 %v2678, %v2701
      %v2718 = vmul.f32 %v2681, %v2702
      %v2719 = vmul.f32 %v2683, %v2703
      %v2720 = vmul.f32 %v2686, %v2704
      %v2721 = vmul.f32 %v2688, %v2705
      %v2722 = vpack.c.bf16 %v2707, %v2706
      %v2723 = vpack.c.bf16 %v2709, %v2708
      %v2724 = vpack.c.bf16 %v2711, %v2710
      %v2725 = vpack.c.bf16 %v2713, %v2712
      %v2726 = vpack.c.bf16 %v2715, %v2714
      %v2727 = vpack.c.bf16 %v2717, %v2716
      %v2728 = vpack.c.bf16 %v2719, %v2718
      %v2729 = vpack.c.bf16 %v2721, %v2720
      %v2731 = vsel %vm1591, %v2722, 0
      %v2734 = vsel %vm1591, %v2723, 0
      %v2737 = vsel %vm1591, %v2724, 0
      %v2740 = vsel %vm1591, %v2725, 0
      %v2743 = vsel %vm1591, %v2726, 0
      %v2746 = vsel %vm1591, %v2727, 0
      %v2749 = vsel %vm1591, %v2728, 0
      %v2752 = vsel %vm1591, %v2729, 0
      %v2755 = vsel %vm1616, %v1544, 0
      %2757 = vmatpush.bf16.msra.mxu0 0
      %2758 = vmatpush.bf16.msra.mxu0 0
      %2759 = vmatpush.bf16.msra.mxu0 0
      %2760 = vmatpush.bf16.msra.mxu0 0
      %2761 = vmatpush.bf16.msra.mxu0 0
      %2762 = vmatpush.bf16.msra.mxu0 0
      %2763 = vmatpush.bf16.msra.mxu0 0
      %2764 = vmatpush.bf16.msra.mxu0 %v2755
      %2765 = vmatmul.bf16.gmra.mxu0 %v2731
      %v2766 = vpop.f32.mrf.mxu0
      %v2767 = vadd.f32 0.0, %v2766
      %v2768 = vpop.f32.mrf.mxu0
      %v2769 = vadd.f32 0.0, %v2768
      %2770 = vmatmul.bf16.gmra.mxu0 %v2734
      %v2771 = vpop.f32.mrf.mxu0
      %v2772 = vadd.f32 0.0, %v2771
      %v2773 = vpop.f32.mrf.mxu0
      %v2774 = vadd.f32 0.0, %v2773
      %2775 = vmatmul.bf16.gmra.mxu0 %v2737
      %v2776 = vpop.f32.mrf.mxu0
      %v2777 = vadd.f32 0.0, %v2776
      %v2778 = vpop.f32.mrf.mxu0
      %v2779 = vadd.f32 0.0, %v2778
      %2780 = vmatmul.bf16.gmra.mxu0 %v2740
      %v2781 = vpop.f32.mrf.mxu0
      %v2782 = vadd.f32 0.0, %v2781
      %v2783 = vpop.f32.mrf.mxu0
      %v2784 = vadd.f32 0.0, %v2783
      %2785 = vmatmul.bf16.gmra.mxu0 %v2743
      %v2786 = vpop.f32.mrf.mxu0
      %v2787 = vadd.f32 0.0, %v2786
      %v2788 = vpop.f32.mrf.mxu0
      %v2789 = vadd.f32 0.0, %v2788
      %2790 = vmatmul.bf16.gmra.mxu0 %v2746
      %v2791 = vpop.f32.mrf.mxu0
      %v2792 = vadd.f32 0.0, %v2791
      %v2793 = vpop.f32.mrf.mxu0
      %v2794 = vadd.f32 0.0, %v2793
      %2795 = vmatmul.bf16.gmra.mxu0 %v2749
      %v2796 = vpop.f32.mrf.mxu0
      %v2797 = vadd.f32 0.0, %v2796
      %v2798 = vpop.f32.mrf.mxu0
      %v2799 = vadd.f32 0.0, %v2798
      %2800 = vmatmul.bf16.gmra.mxu0 %v2752
      %v2801 = vpop.f32.mrf.mxu0
      %v2802 = vadd.f32 0.0, %v2801
      %v2803 = vpop.f32.mrf.mxu0
      %v2804 = vadd.f32 0.0, %v2803
      %2805 = vdwg.mxu0
      %v2806 = vadd.f32 %v2365, %v2767
      %v2807 = vadd.f32 %v2367, %v2769
      %v2808 = vadd.f32 %v2370, %v2772
      %v2809 = vadd.f32 %v2372, %v2774
      %v2810 = vadd.f32 %v2375, %v2777
      %v2811 = vadd.f32 %v2377, %v2779
      %v2812 = vadd.f32 %v2380, %v2782
      %v2813 = vadd.f32 %v2382, %v2784
      %v2814 = vadd.f32 %v2385, %v2787
      %v2815 = vadd.f32 %v2387, %v2789
      %v2816 = vadd.f32 %v2390, %v2792
      %v2817 = vadd.f32 %v2392, %v2794
      %v2818 = vadd.f32 %v2395, %v2797
      %v2819 = vadd.f32 %v2397, %v2799
      %v2820 = vadd.f32 %v2400, %v2802
      %v2821 = vadd.f32 %v2402, %v2804
      %v2822 = vpack.c.bf16 %v1513, %v1513
      %2823 = vrot.lane.b32.xlu0 %v1583, 104
      %v2824 = vpop.permute.xlu0 %2823
      %2825 = vrot.lane.b32.xlu0 %v1584, 104
      %v2826 = vpop.permute.xlu0 %2825
      %2827 = vrot.lane.b32.xlu0 %v1585, 104
      %v2828 = vpop.permute.xlu0 %2827
      %2829 = vrot.lane.b32.xlu0 %v1586, 104
      %v2830 = vpop.permute.xlu0 %2829
      %2831 = vrot.lane.b32.xlu0 %v1587, 104
      %v2832 = vpop.permute.xlu0 %2831
      %2833 = vrot.lane.b32.xlu0 %v1588, 104
      %v2834 = vpop.permute.xlu0 %2833
      %2835 = vrot.lane.b32.xlu0 %v1589, 104
      %v2836 = vpop.permute.xlu0 %2835
      %2837 = vrot.lane.b32.xlu0 %v1590, 104
      %v2838 = vpop.permute.xlu0 %2837
      %v2840 = vsel %vm1591, %v2824, 0
      %v2843 = vsel %vm1591, %v2826, 0
      %v2846 = vsel %vm1591, %v2828, 0
      %v2849 = vsel %vm1591, %v2830, 0
      %v2852 = vsel %vm1591, %v2832, 0
      %v2855 = vsel %vm1591, %v2834, 0
      %v2858 = vsel %vm1591, %v2836, 0
      %v2861 = vsel %vm1591, %v2838, 0
      %v2864 = vsel %vm1616, %v2822, 0
      %2866 = vmatpush.bf16.msra.mxu0 0
      %2867 = vmatpush.bf16.msra.mxu0 0
      %2868 = vmatpush.bf16.msra.mxu0 0
      %2869 = vmatpush.bf16.msra.mxu0 0
      %2870 = vmatpush.bf16.msra.mxu0 0
      %2871 = vmatpush.bf16.msra.mxu0 0
      %2872 = vmatpush.bf16.msra.mxu0 0
      %2873 = vmatpush.bf16.msra.mxu0 %v2864
      %2874 = vmatmul.bf16.gmra.mxu0 %v2840
      %v2875 = vpop.f32.mrf.mxu0
      %v2876 = vadd.f32 %v804, %v2875
      %v2877 = vpop.f32.mrf.mxu0
      %v2878 = vadd.f32 %v805, %v2877
      %2879 = vmatmul.bf16.gmra.mxu0 %v2843
      %v2880 = vpop.f32.mrf.mxu0
      %v2881 = vadd.f32 %v806, %v2880
      %v2882 = vpop.f32.mrf.mxu0
      %v2883 = vadd.f32 %v807, %v2882
      %2884 = vmatmul.bf16.gmra.mxu0 %v2846
      %v2885 = vpop.f32.mrf.mxu0
      %v2886 = vadd.f32 %v808, %v2885
      %v2887 = vpop.f32.mrf.mxu0
      %v2888 = vadd.f32 %v809, %v2887
      %2889 = vmatmul.bf16.gmra.mxu0 %v2849
      %v2890 = vpop.f32.mrf.mxu0
      %v2891 = vadd.f32 %v810, %v2890
      %v2892 = vpop.f32.mrf.mxu0
      %v2893 = vadd.f32 %v811, %v2892
      %2894 = vmatmul.bf16.gmra.mxu0 %v2852
      %v2895 = vpop.f32.mrf.mxu0
      %v2896 = vadd.f32 %v812, %v2895
      %v2897 = vpop.f32.mrf.mxu0
      %v2898 = vadd.f32 %v813, %v2897
      %2899 = vmatmul.bf16.gmra.mxu0 %v2855
      %v2900 = vpop.f32.mrf.mxu0
      %v2901 = vadd.f32 %v814, %v2900
      %v2902 = vpop.f32.mrf.mxu0
      %v2903 = vadd.f32 %v815, %v2902
      %2904 = vmatmul.bf16.gmra.mxu0 %v2858
      %v2905 = vpop.f32.mrf.mxu0
      %v2906 = vadd.f32 %v816, %v2905
      %v2907 = vpop.f32.mrf.mxu0
      %v2908 = vadd.f32 %v817, %v2907
      %2909 = vmatmul.bf16.gmra.mxu0 %v2861
      %v2910 = vpop.f32.mrf.mxu0
      %v2911 = vadd.f32 %v818, %v2910
      %v2912 = vpop.f32.mrf.mxu0
      %v2913 = vadd.f32 %v819, %v2912
      %2914 = vdwg.mxu0
      %2915 = vmax.xlane.f32.xlu0 %v2876
      %v2916 = vpop.xlane.xlu0 %2915
      %2917 = vmax.xlane.f32.xlu0 %v2878
      %v2918 = vpop.xlane.xlu0 %2917
      %2919 = vmax.xlane.f32.xlu0 %v2881
      %v2920 = vpop.xlane.xlu0 %2919
      %2921 = vmax.xlane.f32.xlu0 %v2883
      %v2922 = vpop.xlane.xlu0 %2921
      %2923 = vmax.xlane.f32.xlu0 %v2886
      %v2924 = vpop.xlane.xlu0 %2923
      %2925 = vmax.xlane.f32.xlu0 %v2888
      %v2926 = vpop.xlane.xlu0 %2925
      %2927 = vmax.xlane.f32.xlu0 %v2891
      %v2928 = vpop.xlane.xlu0 %2927
      %2929 = vmax.xlane.f32.xlu0 %v2893
      %v2930 = vpop.xlane.xlu0 %2929
      %2931 = vmax.xlane.f32.xlu0 %v2896
      %v2932 = vpop.xlane.xlu0 %2931
      %2933 = vmax.xlane.f32.xlu0 %v2898
      %v2934 = vpop.xlane.xlu0 %2933
      %2935 = vmax.xlane.f32.xlu0 %v2901
      %v2936 = vpop.xlane.xlu0 %2935
      %2937 = vmax.xlane.f32.xlu0 %v2903
      %v2938 = vpop.xlane.xlu0 %2937
      %2939 = vmax.xlane.f32.xlu0 %v2906
      %v2940 = vpop.xlane.xlu0 %2939
      %2941 = vmax.xlane.f32.xlu0 %v2908
      %v2942 = vpop.xlane.xlu0 %2941
      %2943 = vmax.xlane.f32.xlu0 %v2911
      %v2944 = vpop.xlane.xlu0 %2943
      %2945 = vmax.xlane.f32.xlu0 %v2913
      %v2946 = vpop.xlane.xlu0 %2945
      %v2947 = vsub.f32 %v2876, %v2916
      %v2948 = vsub.f32 %v2878, %v2918
      %v2949 = vsub.f32 %v2881, %v2920
      %v2950 = vsub.f32 %v2883, %v2922
      %v2951 = vsub.f32 %v2886, %v2924
      %v2952 = vsub.f32 %v2888, %v2926
      %v2953 = vsub.f32 %v2891, %v2928
      %v2954 = vsub.f32 %v2893, %v2930
      %v2955 = vsub.f32 %v2896, %v2932
      %v2956 = vsub.f32 %v2898, %v2934
      %v2957 = vsub.f32 %v2901, %v2936
      %v2958 = vsub.f32 %v2903, %v2938
      %v2959 = vsub.f32 %v2906, %v2940
      %v2960 = vsub.f32 %v2908, %v2942
      %v2961 = vsub.f32 %v2911, %v2944
      %v2962 = vsub.f32 %v2913, %v2946
      %v2963 = vmul.f32 %v2947, 1.442695
      %v2964 = vpow.pop %v2963
      %v2965 = vmul.f32 %v2948, 1.442695
      %v2966 = vpow.pop %v2965
      %v2967 = vmul.f32 %v2949, 1.442695
      %v2968 = vpow.pop %v2967
      %v2969 = vmul.f32 %v2950, 1.442695
      %v2970 = vpow.pop %v2969
      %v2971 = vmul.f32 %v2951, 1.442695
      %v2972 = vpow.pop %v2971
      %v2973 = vmul.f32 %v2952, 1.442695
      %v2974 = vpow.pop %v2973
      %v2975 = vmul.f32 %v2953, 1.442695
      %v2976 = vpow.pop %v2975
      %v2977 = vmul.f32 %v2954, 1.442695
      %v2978 = vpow.pop %v2977
      %v2979 = vmul.f32 %v2955, 1.442695
      %v2980 = vpow.pop %v2979
      %v2981 = vmul.f32 %v2956, 1.442695
      %v2982 = vpow.pop %v2981
      %v2983 = vmul.f32 %v2957, 1.442695
      %v2984 = vpow.pop %v2983
      %v2985 = vmul.f32 %v2958, 1.442695
      %v2986 = vpow.pop %v2985
      %v2987 = vmul.f32 %v2959, 1.442695
      %v2988 = vpow.pop %v2987
      %v2989 = vmul.f32 %v2960, 1.442695
      %v2990 = vpow.pop %v2989
      %v2991 = vmul.f32 %v2961, 1.442695
      %v2992 = vpow.pop %v2991
      %v2993 = vmul.f32 %v2962, 1.442695
      %v2994 = vpow.pop %v2993
      %2995 = vadd.xlane.f32.xlu0 %v2964
      %v2996 = vpop.xlane.xlu0 %2995
      %2997 = vadd.xlane.f32.xlu0 %v2966
      %v2998 = vpop.xlane.xlu0 %2997
      %2999 = vadd.xlane.f32.xlu0 %v2968
      %v3000 = vpop.xlane.xlu0 %2999
      %3001 = vadd.xlane.f32.xlu0 %v2970
      %v3002 = vpop.xlane.xlu0 %3001
      %3003 = vadd.xlane.f32.xlu0 %v2972
      %v3004 = vpop.xlane.xlu0 %3003
      %3005 = vadd.xlane.f32.xlu0 %v2974
      %v3006 = vpop.xlane.xlu0 %3005
      %3007 = vadd.xlane.f32.xlu0 %v2976
      %v3008 = vpop.xlane.xlu0 %3007
      %3009 = vadd.xlane.f32.xlu0 %v2978
      %v3010 = vpop.xlane.xlu0 %3009
      %3011 = vadd.xlane.f32.xlu0 %v2980
      %v3012 = vpop.xlane.xlu0 %3011
      %3013 = vadd.xlane.f32.xlu0 %v2982
      %v3014 = vpop.xlane.xlu0 %3013
      %3015 = vadd.xlane.f32.xlu0 %v2984
      %v3016 = vpop.xlane.xlu0 %3015
      %3017 = vadd.xlane.f32.xlu0 %v2986
      %v3018 = vpop.xlane.xlu0 %3017
      %3019 = vadd.xlane.f32.xlu0 %v2988
      %v3020 = vpop.xlane.xlu0 %3019
      %3021 = vadd.xlane.f32.xlu0 %v2990
      %v3022 = vpop.xlane.xlu0 %3021
      %3023 = vadd.xlane.f32.xlu0 %v2992
      %v3024 = vpop.xlane.xlu0 %3023
      %3025 = vadd.xlane.f32.xlu0 %v2994
      %v3026 = vpop.xlane.xlu0 %3025
      %v3027 = vpack.c.bf16 %v2966, %v2964
      %v3028 = vpack.c.bf16 %v2970, %v2968
      %v3029 = vpack.c.bf16 %v2974, %v2972
      %v3030 = vpack.c.bf16 %v2978, %v2976
      %v3031 = vpack.c.bf16 %v2982, %v2980
      %v3032 = vpack.c.bf16 %v2986, %v2984
      %v3033 = vpack.c.bf16 %v2990, %v2988
      %v3034 = vpack.c.bf16 %v2994, %v2992
      %3035 = vrot.lane.b32.xlu0 %v1821, 104
      %v3036 = vpop.permute.xlu0 %3035
      %3037 = vrot.lane.b32.xlu0 %v1822, 104
      %v3038 = vpop.permute.xlu0 %3037
      %3039 = vrot.lane.b32.xlu0 %v1823, 104
      %v3040 = vpop.permute.xlu0 %3039
      %3041 = vrot.lane.b32.xlu0 %v1824, 104
      %v3042 = vpop.permute.xlu0 %3041
      %3043 = vrot.lane.b32.xlu0 %v1825, 104
      %v3044 = vpop.permute.xlu0 %3043
      %3045 = vrot.lane.b32.xlu0 %v1826, 104
      %v3046 = vpop.permute.xlu0 %3045
      %3047 = vrot.lane.b32.xlu0 %v1827, 104
      %v3048 = vpop.permute.xlu0 %3047
      %3049 = vrot.lane.b32.xlu0 %v1828, 104
      %v3050 = vpop.permute.xlu0 %3049
      %3059 = vmatpush.bf16.msra.mxu0 %v3050
      %3060 = vmatpush.bf16.msra.mxu0 %v3048
      %3061 = vmatpush.bf16.msra.mxu0 %v3046
      %3062 = vmatpush.bf16.msra.mxu0 %v3044
      %3063 = vmatpush.bf16.msra.mxu0 %v3042
      %3064 = vmatpush.bf16.msra.mxu0 %v3040
      %3065 = vmatpush.bf16.msra.mxu0 %v3038
      %3066 = vmatpush.bf16.msra.mxu0 %v3036
      %3067 = vmatmul.bf16.gmra.mxu0 %v3027
      %v3068 = vpop.f32.mrf.mxu0
      %v3069 = vadd.f32 0.0, %v3068
      %v3070 = vpop.f32.mrf.mxu0
      %v3071 = vadd.f32 0.0, %v3070
      %3072 = vmatmul.bf16.gmra.mxu0 %v3028
      %v3073 = vpop.f32.mrf.mxu0
      %v3074 = vadd.f32 0.0, %v3073
      %v3075 = vpop.f32.mrf.mxu0
      %v3076 = vadd.f32 0.0, %v3075
      %3077 = vmatmul.bf16.gmra.mxu0 %v3029
      %v3078 = vpop.f32.mrf.mxu0
      %v3079 = vadd.f32 0.0, %v3078
      %v3080 = vpop.f32.mrf.mxu0
      %v3081 = vadd.f32 0.0, %v3080
      %3082 = vmatmul.bf16.gmra.mxu0 %v3030
      %v3083 = vpop.f32.mrf.mxu0
      %v3084 = vadd.f32 0.0, %v3083
      %v3085 = vpop.f32.mrf.mxu0
      %v3086 = vadd.f32 0.0, %v3085
      %3087 = vmatmul.bf16.gmra.mxu0 %v3031
      %v3088 = vpop.f32.mrf.mxu0
      %v3089 = vadd.f32 0.0, %v3088
      %v3090 = vpop.f32.mrf.mxu0
      %v3091 = vadd.f32 0.0, %v3090
      %3092 = vmatmul.bf16.gmra.mxu0 %v3032
      %v3093 = vpop.f32.mrf.mxu0
      %v3094 = vadd.f32 0.0, %v3093
      %v3095 = vpop.f32.mrf.mxu0
      %v3096 = vadd.f32 0.0, %v3095
      %3097 = vmatmul.bf16.gmra.mxu0 %v3033
      %v3098 = vpop.f32.mrf.mxu0
      %v3099 = vadd.f32 0.0, %v3098
      %v3100 = vpop.f32.mrf.mxu0
      %v3101 = vadd.f32 0.0, %v3100
      %3102 = vmatmul.bf16.gmra.mxu0 %v3034
      %v3103 = vpop.f32.mrf.mxu0
      %v3104 = vadd.f32 0.0, %v3103
      %v3105 = vpop.f32.mrf.mxu0
      %v3106 = vadd.f32 0.0, %v3105
      %3107 = vdwg.mxu0
      %v3108 = vrcp.pop %v2996
      %v3109 = vrcp.pop %v2998
      %v3110 = vrcp.pop %v3000
      %v3111 = vrcp.pop %v3002
      %v3112 = vrcp.pop %v3004
      %v3113 = vrcp.pop %v3006
      %v3114 = vrcp.pop %v3008
      %v3115 = vrcp.pop %v3010
      %v3116 = vrcp.pop %v3012
      %v3117 = vrcp.pop %v3014
      %v3118 = vrcp.pop %v3016
      %v3119 = vrcp.pop %v3018
      %v3120 = vrcp.pop %v3020
      %v3121 = vrcp.pop %v3022
      %v3122 = vrcp.pop %v3024
      %v3123 = vrcp.pop %v3026
      %v3124 = vmul.f32 %v3069, %v3108
      %v3125 = vmul.f32 %v3071, %v3109
      %v3126 = vmul.f32 %v3074, %v3110
      %v3127 = vmul.f32 %v3076, %v3111
      %v3128 = vmul.f32 %v3079, %v3112
      %v3129 = vmul.f32 %v3081, %v3113
      %v3130 = vmul.f32 %v3084, %v3114
      %v3131 = vmul.f32 %v3086, %v3115
      %v3132 = vmul.f32 %v3089, %v3116
      %v3133 = vmul.f32 %v3091, %v3117
      %v3134 = vmul.f32 %v3094, %v3118
      %v3135 = vmul.f32 %v3096, %v3119
      %v3136 = vmul.f32 %v3099, %v3120
      %v3137 = vmul.f32 %v3101, %v3121
      %v3138 = vmul.f32 %v3104, %v3122
      %v3139 = vmul.f32 %v3106, %v3123
      %v3140 = vpack.c.bf16 %v3125, %v3124
      %v3141 = vpack.c.bf16 %v3127, %v3126
      %v3142 = vpack.c.bf16 %v3129, %v3128
      %v3143 = vpack.c.bf16 %v3131, %v3130
      %v3144 = vpack.c.bf16 %v3133, %v3132
      %v3145 = vpack.c.bf16 %v3135, %v3134
      %v3146 = vpack.c.bf16 %v3137, %v3136
      %v3147 = vpack.c.bf16 %v3139, %v3138
      %v3149 = vsel %vm1591, %v3140, 0
      %v3152 = vsel %vm1591, %v3141, 0
      %v3155 = vsel %vm1591, %v3142, 0
      %v3158 = vsel %vm1591, %v3143, 0
      %v3161 = vsel %vm1591, %v3144, 0
      %v3164 = vsel %vm1591, %v3145, 0
      %v3167 = vsel %vm1591, %v3146, 0
      %v3170 = vsel %vm1591, %v3147, 0
      %v3173 = vsel %vm1616, %v1545, 0
      %3175 = vmatpush.bf16.msra.mxu0 0
      %3176 = vmatpush.bf16.msra.mxu0 0
      %3177 = vmatpush.bf16.msra.mxu0 0
      %3178 = vmatpush.bf16.msra.mxu0 0
      %3179 = vmatpush.bf16.msra.mxu0 0
      %3180 = vmatpush.bf16.msra.mxu0 0
      %3181 = vmatpush.bf16.msra.mxu0 0
      %3182 = vmatpush.bf16.msra.mxu0 %v3173
      %3183 = vmatmul.bf16.gmra.mxu0 %v3149
      %v3184 = vpop.f32.mrf.mxu0
      %v3185 = vadd.f32 0.0, %v3184
      %v3186 = vpop.f32.mrf.mxu0
      %v3187 = vadd.f32 0.0, %v3186
      %3188 = vmatmul.bf16.gmra.mxu0 %v3152
      %v3189 = vpop.f32.mrf.mxu0
      %v3190 = vadd.f32 0.0, %v3189
      %v3191 = vpop.f32.mrf.mxu0
      %v3192 = vadd.f32 0.0, %v3191
      %3193 = vmatmul.bf16.gmra.mxu0 %v3155
      %v3194 = vpop.f32.mrf.mxu0
      %v3195 = vadd.f32 0.0, %v3194
      %v3196 = vpop.f32.mrf.mxu0
      %v3197 = vadd.f32 0.0, %v3196
      %3198 = vmatmul.bf16.gmra.mxu0 %v3158
      %v3199 = vpop.f32.mrf.mxu0
      %v3200 = vadd.f32 0.0, %v3199
      %v3201 = vpop.f32.mrf.mxu0
      %v3202 = vadd.f32 0.0, %v3201
      %3203 = vmatmul.bf16.gmra.mxu0 %v3161
      %v3204 = vpop.f32.mrf.mxu0
      %v3205 = vadd.f32 0.0, %v3204
      %v3206 = vpop.f32.mrf.mxu0
      %v3207 = vadd.f32 0.0, %v3206
      %3208 = vmatmul.bf16.gmra.mxu0 %v3164
      %v3209 = vpop.f32.mrf.mxu0
      %v3210 = vadd.f32 0.0, %v3209
      %v3211 = vpop.f32.mrf.mxu0
      %v3212 = vadd.f32 0.0, %v3211
      %3213 = vmatmul.bf16.gmra.mxu0 %v3167
      %v3214 = vpop.f32.mrf.mxu0
      %v3215 = vadd.f32 0.0, %v3214
      %v3216 = vpop.f32.mrf.mxu0
      %v3217 = vadd.f32 0.0, %v3216
      %3218 = vmatmul.bf16.gmra.mxu0 %v3170
      %v3219 = vpop.f32.mrf.mxu0
      %v3220 = vadd.f32 0.0, %v3219
      %v3221 = vpop.f32.mrf.mxu0
      %v3222 = vadd.f32 0.0, %v3221
      %3223 = vdwg.mxu0
      %v3224 = vadd.f32 %v2806, %v3185
      %v3225 = vadd.f32 %v2807, %v3187
      %v3226 = vadd.f32 %v2808, %v3190
      %v3227 = vadd.f32 %v2809, %v3192
      %v3228 = vadd.f32 %v2810, %v3195
      %v3229 = vadd.f32 %v2811, %v3197
      %v3230 = vadd.f32 %v2812, %v3200
      %v3231 = vadd.f32 %v2813, %v3202
      %v3232 = vadd.f32 %v2814, %v3205
      %v3233 = vadd.f32 %v2815, %v3207
      %v3234 = vadd.f32 %v2816, %v3210
      %v3235 = vadd.f32 %v2817, %v3212
      %v3236 = vadd.f32 %v2818, %v3215
      %v3237 = vadd.f32 %v2819, %v3217
      %v3238 = vadd.f32 %v2820, %v3220
      %v3239 = vadd.f32 %v2821, %v3222
      %v3240 = vpack.c.bf16 %v1514, %v1514
      %3241 = vrot.lane.b32.xlu0 %v1583, 96
      %v3242 = vpop.permute.xlu0 %3241
      %3243 = vrot.lane.b32.xlu0 %v1584, 96
      %v3244 = vpop.permute.xlu0 %3243
      %3245 = vrot.lane.b32.xlu0 %v1585, 96
      %v3246 = vpop.permute.xlu0 %3245
      %3247 = vrot.lane.b32.xlu0 %v1586, 96
      %v3248 = vpop.permute.xlu0 %3247
      %3249 = vrot.lane.b32.xlu0 %v1587, 96
      %v3250 = vpop.permute.xlu0 %3249
      %3251 = vrot.lane.b32.xlu0 %v1588, 96
      %v3252 = vpop.permute.xlu0 %3251
      %3253 = vrot.lane.b32.xlu0 %v1589, 96
      %v3254 = vpop.permute.xlu0 %3253
      %3255 = vrot.lane.b32.xlu0 %v1590, 96
      %v3256 = vpop.permute.xlu0 %3255
      %v3258 = vsel %vm1591, %v3242, 0
      %v3261 = vsel %vm1591, %v3244, 0
      %v3264 = vsel %vm1591, %v3246, 0
      %v3267 = vsel %vm1591, %v3248, 0
      %v3270 = vsel %vm1591, %v3250, 0
      %v3273 = vsel %vm1591, %v3252, 0
      %v3276 = vsel %vm1591, %v3254, 0
      %v3279 = vsel %vm1591, %v3256, 0
      %v3282 = vsel %vm1616, %v3240, 0
      %3284 = vmatpush.bf16.msra.mxu0 0
      %3285 = vmatpush.bf16.msra.mxu0 0
      %3286 = vmatpush.bf16.msra.mxu0 0
      %3287 = vmatpush.bf16.msra.mxu0 0
      %3288 = vmatpush.bf16.msra.mxu0 0
      %3289 = vmatpush.bf16.msra.mxu0 0
      %3290 = vmatpush.bf16.msra.mxu0 0
      %3291 = vmatpush.bf16.msra.mxu0 %v3282
      %3292 = vmatmul.bf16.gmra.mxu0 %v3258
      %v3293 = vpop.f32.mrf.mxu0
      %v3294 = vadd.f32 %v804, %v3293
      %v3295 = vpop.f32.mrf.mxu0
      %v3296 = vadd.f32 %v805, %v3295
      %3297 = vmatmul.bf16.gmra.mxu0 %v3261
      %v3298 = vpop.f32.mrf.mxu0
      %v3299 = vadd.f32 %v806, %v3298
      %v3300 = vpop.f32.mrf.mxu0
      %v3301 = vadd.f32 %v807, %v3300
      %3302 = vmatmul.bf16.gmra.mxu0 %v3264
      %v3303 = vpop.f32.mrf.mxu0
      %v3304 = vadd.f32 %v808, %v3303
      %v3305 = vpop.f32.mrf.mxu0
      %v3306 = vadd.f32 %v809, %v3305
      %3307 = vmatmul.bf16.gmra.mxu0 %v3267
      %v3308 = vpop.f32.mrf.mxu0
      %v3309 = vadd.f32 %v810, %v3308
      %v3310 = vpop.f32.mrf.mxu0
      %v3311 = vadd.f32 %v811, %v3310
      %3312 = vmatmul.bf16.gmra.mxu0 %v3270
      %v3313 = vpop.f32.mrf.mxu0
      %v3314 = vadd.f32 %v812, %v3313
      %v3315 = vpop.f32.mrf.mxu0
      %v3316 = vadd.f32 %v813, %v3315
      %3317 = vmatmul.bf16.gmra.mxu0 %v3273
      %v3318 = vpop.f32.mrf.mxu0
      %v3319 = vadd.f32 %v814, %v3318
      %v3320 = vpop.f32.mrf.mxu0
      %v3321 = vadd.f32 %v815, %v3320
      %3322 = vmatmul.bf16.gmra.mxu0 %v3276
      %v3323 = vpop.f32.mrf.mxu0
      %v3324 = vadd.f32 %v816, %v3323
      %v3325 = vpop.f32.mrf.mxu0
      %v3326 = vadd.f32 %v817, %v3325
      %3327 = vmatmul.bf16.gmra.mxu0 %v3279
      %v3328 = vpop.f32.mrf.mxu0
      %v3329 = vadd.f32 %v818, %v3328
      %v3330 = vpop.f32.mrf.mxu0
      %v3331 = vadd.f32 %v819, %v3330
      %3332 = vdwg.mxu0
      %3333 = vmax.xlane.f32.xlu0 %v3294
      %v3334 = vpop.xlane.xlu0 %3333
      %3335 = vmax.xlane.f32.xlu0 %v3296
      %v3336 = vpop.xlane.xlu0 %3335
      %3337 = vmax.xlane.f32.xlu0 %v3299
      %v3338 = vpop.xlane.xlu0 %3337
      %3339 = vmax.xlane.f32.xlu0 %v3301
      %v3340 = vpop.xlane.xlu0 %3339
      %3341 = vmax.xlane.f32.xlu0 %v3304
      %v3342 = vpop.xlane.xlu0 %3341
      %3343 = vmax.xlane.f32.xlu0 %v3306
      %v3344 = vpop.xlane.xlu0 %3343
      %3345 = vmax.xlane.f32.xlu0 %v3309
      %v3346 = vpop.xlane.xlu0 %3345
      %3347 = vmax.xlane.f32.xlu0 %v3311
      %v3348 = vpop.xlane.xlu0 %3347
      %3349 = vmax.xlane.f32.xlu0 %v3314
      %v3350 = vpop.xlane.xlu0 %3349
      %3351 = vmax.xlane.f32.xlu0 %v3316
      %v3352 = vpop.xlane.xlu0 %3351
      %3353 = vmax.xlane.f32.xlu0 %v3319
      %v3354 = vpop.xlane.xlu0 %3353
      %3355 = vmax.xlane.f32.xlu0 %v3321
      %v3356 = vpop.xlane.xlu0 %3355
      %3357 = vmax.xlane.f32.xlu0 %v3324
      %v3358 = vpop.xlane.xlu0 %3357
      %3359 = vmax.xlane.f32.xlu0 %v3326
      %v3360 = vpop.xlane.xlu0 %3359
      %3361 = vmax.xlane.f32.xlu0 %v3329
      %v3362 = vpop.xlane.xlu0 %3361
      %3363 = vmax.xlane.f32.xlu0 %v3331
      %v3364 = vpop.xlane.xlu0 %3363
      %v3365 = vsub.f32 %v3294, %v3334
      %v3366 = vsub.f32 %v3296, %v3336
      %v3367 = vsub.f32 %v3299, %v3338
      %v3368 = vsub.f32 %v3301, %v3340
      %v3369 = vsub.f32 %v3304, %v3342
      %v3370 = vsub.f32 %v3306, %v3344
      %v3371 = vsub.f32 %v3309, %v3346
      %v3372 = vsub.f32 %v3311, %v3348
      %v3373 = vsub.f32 %v3314, %v3350
      %v3374 = vsub.f32 %v3316, %v3352
      %v3375 = vsub.f32 %v3319, %v3354
      %v3376 = vsub.f32 %v3321, %v3356
      %v3377 = vsub.f32 %v3324, %v3358
      %v3378 = vsub.f32 %v3326, %v3360
      %v3379 = vsub.f32 %v3329, %v3362
      %v3380 = vsub.f32 %v3331, %v3364
      %v3381 = vmul.f32 %v3365, 1.442695
      %v3382 = vpow.pop %v3381
      %v3383 = vmul.f32 %v3366, 1.442695
      %v3384 = vpow.pop %v3383
      %v3385 = vmul.f32 %v3367, 1.442695
      %v3386 = vpow.pop %v3385
      %v3387 = vmul.f32 %v3368, 1.442695
      %v3388 = vpow.pop %v3387
      %v3389 = vmul.f32 %v3369, 1.442695
      %v3390 = vpow.pop %v3389
      %v3391 = vmul.f32 %v3370, 1.442695
      %v3392 = vpow.pop %v3391
      %v3393 = vmul.f32 %v3371, 1.442695
      %v3394 = vpow.pop %v3393
      %v3395 = vmul.f32 %v3372, 1.442695
      %v3396 = vpow.pop %v3395
      %v3397 = vmul.f32 %v3373, 1.442695
      %v3398 = vpow.pop %v3397
      %v3399 = vmul.f32 %v3374, 1.442695
      %v3400 = vpow.pop %v3399
      %v3401 = vmul.f32 %v3375, 1.442695
      %v3402 = vpow.pop %v3401
      %v3403 = vmul.f32 %v3376, 1.442695
      %v3404 = vpow.pop %v3403
      %v3405 = vmul.f32 %v3377, 1.442695
      %v3406 = vpow.pop %v3405
      %v3407 = vmul.f32 %v3378, 1.442695
      %v3408 = vpow.pop %v3407
      %v3409 = vmul.f32 %v3379, 1.442695
      %v3410 = vpow.pop %v3409
      %v3411 = vmul.f32 %v3380, 1.442695
      %v3412 = vpow.pop %v3411
      %3413 = vadd.xlane.f32.xlu0 %v3382
      %v3414 = vpop.xlane.xlu0 %3413
      %3415 = vadd.xlane.f32.xlu0 %v3384
      %v3416 = vpop.xlane.xlu0 %3415
      %3417 = vadd.xlane.f32.xlu0 %v3386
      %v3418 = vpop.xlane.xlu0 %3417
      %3419 = vadd.xlane.f32.xlu0 %v3388
      %v3420 = vpop.xlane.xlu0 %3419
      %3421 = vadd.xlane.f32.xlu0 %v3390
      %v3422 = vpop.xlane.xlu0 %3421
      %3423 = vadd.xlane.f32.xlu0 %v3392
      %v3424 = vpop.xlane.xlu0 %3423
      %3425 = vadd.xlane.f32.xlu0 %v3394
      %v3426 = vpop.xlane.xlu0 %3425
      %3427 = vadd.xlane.f32.xlu0 %v3396
      %v3428 = vpop.xlane.xlu0 %3427
      %3429 = vadd.xlane.f32.xlu0 %v3398
      %v3430 = vpop.xlane.xlu0 %3429
      %3431 = vadd.xlane.f32.xlu0 %v3400
      %v3432 = vpop.xlane.xlu0 %3431
      %3433 = vadd.xlane.f32.xlu0 %v3402
      %v3434 = vpop.xlane.xlu0 %3433
      %3435 = vadd.xlane.f32.xlu0 %v3404
      %v3436 = vpop.xlane.xlu0 %3435
      %3437 = vadd.xlane.f32.xlu0 %v3406
      %v3438 = vpop.xlane.xlu0 %3437
      %3439 = vadd.xlane.f32.xlu0 %v3408
      %v3440 = vpop.xlane.xlu0 %3439
      %3441 = vadd.xlane.f32.xlu0 %v3410
      %v3442 = vpop.xlane.xlu0 %3441
      %3443 = vadd.xlane.f32.xlu0 %v3412
      %v3444 = vpop.xlane.xlu0 %3443
      %v3445 = vpack.c.bf16 %v3384, %v3382
      %v3446 = vpack.c.bf16 %v3388, %v3386
      %v3447 = vpack.c.bf16 %v3392, %v3390
      %v3448 = vpack.c.bf16 %v3396, %v3394
      %v3449 = vpack.c.bf16 %v3400, %v3398
      %v3450 = vpack.c.bf16 %v3404, %v3402
      %v3451 = vpack.c.bf16 %v3408, %v3406
      %v3452 = vpack.c.bf16 %v3412, %v3410
      %3453 = vrot.lane.b32.xlu0 %v1821, 96
      %v3454 = vpop.permute.xlu0 %3453
      %3455 = vrot.lane.b32.xlu0 %v1822, 96
      %v3456 = vpop.permute.xlu0 %3455
      %3457 = vrot.lane.b32.xlu0 %v1823, 96
      %v3458 = vpop.permute.xlu0 %3457
      %3459 = vrot.lane.b32.xlu0 %v1824, 96
      %v3460 = vpop.permute.xlu0 %3459
      %3461 = vrot.lane.b32.xlu0 %v1825, 96
      %v3462 = vpop.permute.xlu0 %3461
      %3463 = vrot.lane.b32.xlu0 %v1826, 96
      %v3464 = vpop.permute.xlu0 %3463
      %3465 = vrot.lane.b32.xlu0 %v1827, 96
      %v3466 = vpop.permute.xlu0 %3465
      %3467 = vrot.lane.b32.xlu0 %v1828, 96
      %v3468 = vpop.permute.xlu0 %3467
      %3477 = vmatpush.bf16.msra.mxu0 %v3468
      %3478 = vmatpush.bf16.msra.mxu0 %v3466
      %3479 = vmatpush.bf16.msra.mxu0 %v3464
      %3480 = vmatpush.bf16.msra.mxu0 %v3462
      %3481 = vmatpush.bf16.msra.mxu0 %v3460
      %3482 = vmatpush.bf16.msra.mxu0 %v3458
      %3483 = vmatpush.bf16.msra.mxu0 %v3456
      %3484 = vmatpush.bf16.msra.mxu0 %v3454
      %3485 = vmatmul.bf16.gmra.mxu0 %v3445
      %v3486 = vpop.f32.mrf.mxu0
      %v3487 = vadd.f32 0.0, %v3486
      %v3488 = vpop.f32.mrf.mxu0
      %v3489 = vadd.f32 0.0, %v3488
      %3490 = vmatmul.bf16.gmra.mxu0 %v3446
      %v3491 = vpop.f32.mrf.mxu0
      %v3492 = vadd.f32 0.0, %v3491
      %v3493 = vpop.f32.mrf.mxu0
      %v3494 = vadd.f32 0.0, %v3493
      %3495 = vmatmul.bf16.gmra.mxu0 %v3447
      %v3496 = vpop.f32.mrf.mxu0
      %v3497 = vadd.f32 0.0, %v3496
      %v3498 = vpop.f32.mrf.mxu0
      %v3499 = vadd.f32 0.0, %v3498
      %3500 = vmatmul.bf16.gmra.mxu0 %v3448
      %v3501 = vpop.f32.mrf.mxu0
      %v3502 = vadd.f32 0.0, %v3501
      %v3503 = vpop.f32.mrf.mxu0
      %v3504 = vadd.f32 0.0, %v3503
      %3505 = vmatmul.bf16.gmra.mxu0 %v3449
      %v3506 = vpop.f32.mrf.mxu0
      %v3507 = vadd.f32 0.0, %v3506
      %v3508 = vpop.f32.mrf.mxu0
      %v3509 = vadd.f32 0.0, %v3508
      %3510 = vmatmul.bf16.gmra.mxu0 %v3450
      %v3511 = vpop.f32.mrf.mxu0
      %v3512 = vadd.f32 0.0, %v3511
      %v3513 = vpop.f32.mrf.mxu0
      %v3514 = vadd.f32 0.0, %v3513
      %3515 = vmatmul.bf16.gmra.mxu0 %v3451
      %v3516 = vpop.f32.mrf.mxu0
      %v3517 = vadd.f32 0.0, %v3516
      %v3518 = vpop.f32.mrf.mxu0
      %v3519 = vadd.f32 0.0, %v3518
      %3520 = vmatmul.bf16.gmra.mxu0 %v3452
      %v3521 = vpop.f32.mrf.mxu0
      %v3522 = vadd.f32 0.0, %v3521
      %v3523 = vpop.f32.mrf.mxu0
      %v3524 = vadd.f32 0.0, %v3523
      %3525 = vdwg.mxu0
      %v3526 = vrcp.pop %v3414
      %v3527 = vrcp.pop %v3416
      %v3528 = vrcp.pop %v3418
      %v3529 = vrcp.pop %v3420
      %v3530 = vrcp.pop %v3422
      %v3531 = vrcp.pop %v3424
      %v3532 = vrcp.pop %v3426
      %v3533 = vrcp.pop %v3428
      %v3534 = vrcp.pop %v3430
      %v3535 = vrcp.pop %v3432
      %v3536 = vrcp.pop %v3434
      %v3537 = vrcp.pop %v3436
      %v3538 = vrcp.pop %v3438
      %v3539 = vrcp.pop %v3440
      %v3540 = vrcp.pop %v3442
      %v3541 = vrcp.pop %v3444
      %v3542 = vmul.f32 %v3487, %v3526
      %v3543 = vmul.f32 %v3489, %v3527
      %v3544 = vmul.f32 %v3492, %v3528
      %v3545 = vmul.f32 %v3494, %v3529
      %v3546 = vmul.f32 %v3497, %v3530
      %v3547 = vmul.f32 %v3499, %v3531
      %v3548 = vmul.f32 %v3502, %v3532
      %v3549 = vmul.f32 %v3504, %v3533
      %v3550 = vmul.f32 %v3507, %v3534
      %v3551 = vmul.f32 %v3509, %v3535
      %v3552 = vmul.f32 %v3512, %v3536
      %v3553 = vmul.f32 %v3514, %v3537
      %v3554 = vmul.f32 %v3517, %v3538
      %v3555 = vmul.f32 %v3519, %v3539
      %v3556 = vmul.f32 %v3522, %v3540
      %v3557 = vmul.f32 %v3524, %v3541
      %v3558 = vpack.c.bf16 %v3543, %v3542
      %v3559 = vpack.c.bf16 %v3545, %v3544
      %v3560 = vpack.c.bf16 %v3547, %v3546
      %v3561 = vpack.c.bf16 %v3549, %v3548
      %v3562 = vpack.c.bf16 %v3551, %v3550
      %v3563 = vpack.c.bf16 %v3553, %v3552
      %v3564 = vpack.c.bf16 %v3555, %v3554
      %v3565 = vpack.c.bf16 %v3557, %v3556
      %v3567 = vsel %vm1591, %v3558, 0
      %v3570 = vsel %vm1591, %v3559, 0
      %v3573 = vsel %vm1591, %v3560, 0
      %v3576 = vsel %vm1591, %v3561, 0
      %v3579 = vsel %vm1591, %v3562, 0
      %v3582 = vsel %vm1591, %v3563, 0
      %v3585 = vsel %vm1591, %v3564, 0
      %v3588 = vsel %vm1591, %v3565, 0
      %v3591 = vsel %vm1616, %v1546, 0
      %3593 = vmatpush.bf16.msra.mxu0 0
      %3594 = vmatpush.bf16.msra.mxu0 0
      %3595 = vmatpush.bf16.msra.mxu0 0
      %3596 = vmatpush.bf16.msra.mxu0 0
      %3597 = vmatpush.bf16.msra.mxu0 0
      %3598 = vmatpush.bf16.msra.mxu0 0
      %3599 = vmatpush.bf16.msra.mxu0 0
      %3600 = vmatpush.bf16.msra.mxu0 %v3591
      %3601 = vmatmul.bf16.gmra.mxu0 %v3567
      %v3602 = vpop.f32.mrf.mxu0
      %v3603 = vadd.f32 0.0, %v3602
      %v3604 = vpop.f32.mrf.mxu0
      %v3605 = vadd.f32 0.0, %v3604
      %3606 = vmatmul.bf16.gmra.mxu0 %v3570
      %v3607 = vpop.f32.mrf.mxu0
      %v3608 = vadd.f32 0.0, %v3607
      %v3609 = vpop.f32.mrf.mxu0
      %v3610 = vadd.f32 0.0, %v3609
      %3611 = vmatmul.bf16.gmra.mxu0 %v3573
      %v3612 = vpop.f32.mrf.mxu0
      %v3613 = vadd.f32 0.0, %v3612
      %v3614 = vpop.f32.mrf.mxu0
      %v3615 = vadd.f32 0.0, %v3614
      %3616 = vmatmul.bf16.gmra.mxu0 %v3576
      %v3617 = vpop.f32.mrf.mxu0
      %v3618 = vadd.f32 0.0, %v3617
      %v3619 = vpop.f32.mrf.mxu0
      %v3620 = vadd.f32 0.0, %v3619
      %3621 = vmatmul.bf16.gmra.mxu0 %v3579
      %v3622 = vpop.f32.mrf.mxu0
      %v3623 = vadd.f32 0.0, %v3622
      %v3624 = vpop.f32.mrf.mxu0
      %v3625 = vadd.f32 0.0, %v3624
      %3626 = vmatmul.bf16.gmra.mxu0 %v3582
      %v3627 = vpop.f32.mrf.mxu0
      %v3628 = vadd.f32 0.0, %v3627
      %v3629 = vpop.f32.mrf.mxu0
      %v3630 = vadd.f32 0.0, %v3629
      %3631 = vmatmul.bf16.gmra.mxu0 %v3585
      %v3632 = vpop.f32.mrf.mxu0
      %v3633 = vadd.f32 0.0, %v3632
      %v3634 = vpop.f32.mrf.mxu0
      %v3635 = vadd.f32 0.0, %v3634
      %3636 = vmatmul.bf16.gmra.mxu0 %v3588
      %v3637 = vpop.f32.mrf.mxu0
      %v3638 = vadd.f32 0.0, %v3637
      %v3639 = vpop.f32.mrf.mxu0
      %v3640 = vadd.f32 0.0, %v3639
      %3641 = vdwg.mxu0
      %v3642 = vadd.f32 %v3224, %v3603
      %v3643 = vadd.f32 %v3225, %v3605
      %v3644 = vadd.f32 %v3226, %v3608
      %v3645 = vadd.f32 %v3227, %v3610
      %v3646 = vadd.f32 %v3228, %v3613
      %v3647 = vadd.f32 %v3229, %v3615
      %v3648 = vadd.f32 %v3230, %v3618
      %v3649 = vadd.f32 %v3231, %v3620
      %v3650 = vadd.f32 %v3232, %v3623
      %v3651 = vadd.f32 %v3233, %v3625
      %v3652 = vadd.f32 %v3234, %v3628
      %v3653 = vadd.f32 %v3235, %v3630
      %v3654 = vadd.f32 %v3236, %v3633
      %v3655 = vadd.f32 %v3237, %v3635
      %v3656 = vadd.f32 %v3238, %v3638
      %v3657 = vadd.f32 %v3239, %v3640
      %v3658 = vpack.c.bf16 %v1515, %v1515
      %3659 = vrot.lane.b32.xlu0 %v1583, 88
      %v3660 = vpop.permute.xlu0 %3659
      %3661 = vrot.lane.b32.xlu0 %v1584, 88
      %v3662 = vpop.permute.xlu0 %3661
      %3663 = vrot.lane.b32.xlu0 %v1585, 88
      %v3664 = vpop.permute.xlu0 %3663
      %3665 = vrot.lane.b32.xlu0 %v1586, 88
      %v3666 = vpop.permute.xlu0 %3665
      %3667 = vrot.lane.b32.xlu0 %v1587, 88
      %v3668 = vpop.permute.xlu0 %3667
      %3669 = vrot.lane.b32.xlu0 %v1588, 88
      %v3670 = vpop.permute.xlu0 %3669
      %3671 = vrot.lane.b32.xlu0 %v1589, 88
      %v3672 = vpop.permute.xlu0 %3671
      %3673 = vrot.lane.b32.xlu0 %v1590, 88
      %v3674 = vpop.permute.xlu0 %3673
      %v3676 = vsel %vm1591, %v3660, 0
      %v3679 = vsel %vm1591, %v3662, 0
      %v3682 = vsel %vm1591, %v3664, 0
      %v3685 = vsel %vm1591, %v3666, 0
      %v3688 = vsel %vm1591, %v3668, 0
      %v3691 = vsel %vm1591, %v3670, 0
      %v3694 = vsel %vm1591, %v3672, 0
      %v3697 = vsel %vm1591, %v3674, 0
      %v3700 = vsel %vm1616, %v3658, 0
      %3702 = vmatpush.bf16.msra.mxu0 0
      %3703 = vmatpush.bf16.msra.mxu0 0
      %3704 = vmatpush.bf16.msra.mxu0 0
      %3705 = vmatpush.bf16.msra.mxu0 0
      %3706 = vmatpush.bf16.msra.mxu0 0
      %3707 = vmatpush.bf16.msra.mxu0 0
      %3708 = vmatpush.bf16.msra.mxu0 0
      %3709 = vmatpush.bf16.msra.mxu0 %v3700
      %3710 = vmatmul.bf16.gmra.mxu0 %v3676
      %v3711 = vpop.f32.mrf.mxu0
      %v3712 = vadd.f32 %v804, %v3711
      %v3713 = vpop.f32.mrf.mxu0
      %v3714 = vadd.f32 %v805, %v3713
      %3715 = vmatmul.bf16.gmra.mxu0 %v3679
      %v3716 = vpop.f32.mrf.mxu0
      %v3717 = vadd.f32 %v806, %v3716
      %v3718 = vpop.f32.mrf.mxu0
      %v3719 = vadd.f32 %v807, %v3718
      %3720 = vmatmul.bf16.gmra.mxu0 %v3682
      %v3721 = vpop.f32.mrf.mxu0
      %v3722 = vadd.f32 %v808, %v3721
      %v3723 = vpop.f32.mrf.mxu0
      %v3724 = vadd.f32 %v809, %v3723
      %3725 = vmatmul.bf16.gmra.mxu0 %v3685
      %v3726 = vpop.f32.mrf.mxu0
      %v3727 = vadd.f32 %v810, %v3726
      %v3728 = vpop.f32.mrf.mxu0
      %v3729 = vadd.f32 %v811, %v3728
      %3730 = vmatmul.bf16.gmra.mxu0 %v3688
      %v3731 = vpop.f32.mrf.mxu0
      %v3732 = vadd.f32 %v812, %v3731
      %v3733 = vpop.f32.mrf.mxu0
      %v3734 = vadd.f32 %v813, %v3733
      %3735 = vmatmul.bf16.gmra.mxu0 %v3691
      %v3736 = vpop.f32.mrf.mxu0
      %v3737 = vadd.f32 %v814, %v3736
      %v3738 = vpop.f32.mrf.mxu0
      %v3739 = vadd.f32 %v815, %v3738
      %3740 = vmatmul.bf16.gmra.mxu0 %v3694
      %v3741 = vpop.f32.mrf.mxu0
      %v3742 = vadd.f32 %v816, %v3741
      %v3743 = vpop.f32.mrf.mxu0
      %v3744 = vadd.f32 %v817, %v3743
      %3745 = vmatmul.bf16.gmra.mxu0 %v3697
      %v3746 = vpop.f32.mrf.mxu0
      %v3747 = vadd.f32 %v818, %v3746
      %v3748 = vpop.f32.mrf.mxu0
      %v3749 = vadd.f32 %v819, %v3748
      %3750 = vdwg.mxu0
      %3751 = vmax.xlane.f32.xlu0 %v3712
      %v3752 = vpop.xlane.xlu0 %3751
      %3753 = vmax.xlane.f32.xlu0 %v3714
      %v3754 = vpop.xlane.xlu0 %3753
      %3755 = vmax.xlane.f32.xlu0 %v3717
      %v3756 = vpop.xlane.xlu0 %3755
      %3757 = vmax.xlane.f32.xlu0 %v3719
      %v3758 = vpop.xlane.xlu0 %3757
      %3759 = vmax.xlane.f32.xlu0 %v3722
      %v3760 = vpop.xlane.xlu0 %3759
      %3761 = vmax.xlane.f32.xlu0 %v3724
      %v3762 = vpop.xlane.xlu0 %3761
      %3763 = vmax.xlane.f32.xlu0 %v3727
      %v3764 = vpop.xlane.xlu0 %3763
      %3765 = vmax.xlane.f32.xlu0 %v3729
      %v3766 = vpop.xlane.xlu0 %3765
      %3767 = vmax.xlane.f32.xlu0 %v3732
      %v3768 = vpop.xlane.xlu0 %3767
      %3769 = vmax.xlane.f32.xlu0 %v3734
      %v3770 = vpop.xlane.xlu0 %3769
      %3771 = vmax.xlane.f32.xlu0 %v3737
      %v3772 = vpop.xlane.xlu0 %3771
      %3773 = vmax.xlane.f32.xlu0 %v3739
      %v3774 = vpop.xlane.xlu0 %3773
      %3775 = vmax.xlane.f32.xlu0 %v3742
      %v3776 = vpop.xlane.xlu0 %3775
      %3777 = vmax.xlane.f32.xlu0 %v3744
      %v3778 = vpop.xlane.xlu0 %3777
      %3779 = vmax.xlane.f32.xlu0 %v3747
      %v3780 = vpop.xlane.xlu0 %3779
      %3781 = vmax.xlane.f32.xlu0 %v3749
      %v3782 = vpop.xlane.xlu0 %3781
      %v3783 = vsub.f32 %v3712, %v3752
      %v3784 = vsub.f32 %v3714, %v3754
      %v3785 = vsub.f32 %v3717, %v3756
      %v3786 = vsub.f32 %v3719, %v3758
      %v3787 = vsub.f32 %v3722, %v3760
      %v3788 = vsub.f32 %v3724, %v3762
      %v3789 = vsub.f32 %v3727, %v3764
      %v3790 = vsub.f32 %v3729, %v3766
      %v3791 = vsub.f32 %v3732, %v3768
      %v3792 = vsub.f32 %v3734, %v3770
      %v3793 = vsub.f32 %v3737, %v3772
      %v3794 = vsub.f32 %v3739, %v3774
      %v3795 = vsub.f32 %v3742, %v3776
      %v3796 = vsub.f32 %v3744, %v3778
      %v3797 = vsub.f32 %v3747, %v3780
      %v3798 = vsub.f32 %v3749, %v3782
      %v3799 = vmul.f32 %v3783, 1.442695
      %v3800 = vpow.pop %v3799
      %v3801 = vmul.f32 %v3784, 1.442695
      %v3802 = vpow.pop %v3801
      %v3803 = vmul.f32 %v3785, 1.442695
      %v3804 = vpow.pop %v3803
      %v3805 = vmul.f32 %v3786, 1.442695
      %v3806 = vpow.pop %v3805
      %v3807 = vmul.f32 %v3787, 1.442695
      %v3808 = vpow.pop %v3807
      %v3809 = vmul.f32 %v3788, 1.442695
      %v3810 = vpow.pop %v3809
      %v3811 = vmul.f32 %v3789, 1.442695
      %v3812 = vpow.pop %v3811
      %v3813 = vmul.f32 %v3790, 1.442695
      %v3814 = vpow.pop %v3813
      %v3815 = vmul.f32 %v3791, 1.442695
      %v3816 = vpow.pop %v3815
      %v3817 = vmul.f32 %v3792, 1.442695
      %v3818 = vpow.pop %v3817
      %v3819 = vmul.f32 %v3793, 1.442695
      %v3820 = vpow.pop %v3819
      %v3821 = vmul.f32 %v3794, 1.442695
      %v3822 = vpow.pop %v3821
      %v3823 = vmul.f32 %v3795, 1.442695
      %v3824 = vpow.pop %v3823
      %v3825 = vmul.f32 %v3796, 1.442695
      %v3826 = vpow.pop %v3825
      %v3827 = vmul.f32 %v3797, 1.442695
      %v3828 = vpow.pop %v3827
      %v3829 = vmul.f32 %v3798, 1.442695
      %v3830 = vpow.pop %v3829
      %3831 = vadd.xlane.f32.xlu0 %v3800
      %v3832 = vpop.xlane.xlu0 %3831
      %3833 = vadd.xlane.f32.xlu0 %v3802
      %v3834 = vpop.xlane.xlu0 %3833
      %3835 = vadd.xlane.f32.xlu0 %v3804
      %v3836 = vpop.xlane.xlu0 %3835
      %3837 = vadd.xlane.f32.xlu0 %v3806
      %v3838 = vpop.xlane.xlu0 %3837
      %3839 = vadd.xlane.f32.xlu0 %v3808
      %v3840 = vpop.xlane.xlu0 %3839
      %3841 = vadd.xlane.f32.xlu0 %v3810
      %v3842 = vpop.xlane.xlu0 %3841
      %3843 = vadd.xlane.f32.xlu0 %v3812
      %v3844 = vpop.xlane.xlu0 %3843
      %3845 = vadd.xlane.f32.xlu0 %v3814
      %v3846 = vpop.xlane.xlu0 %3845
      %3847 = vadd.xlane.f32.xlu0 %v3816
      %v3848 = vpop.xlane.xlu0 %3847
      %3849 = vadd.xlane.f32.xlu0 %v3818
      %v3850 = vpop.xlane.xlu0 %3849
      %3851 = vadd.xlane.f32.xlu0 %v3820
      %v3852 = vpop.xlane.xlu0 %3851
      %3853 = vadd.xlane.f32.xlu0 %v3822
      %v3854 = vpop.xlane.xlu0 %3853
      %3855 = vadd.xlane.f32.xlu0 %v3824
      %v3856 = vpop.xlane.xlu0 %3855
      %3857 = vadd.xlane.f32.xlu0 %v3826
      %v3858 = vpop.xlane.xlu0 %3857
      %3859 = vadd.xlane.f32.xlu0 %v3828
      %v3860 = vpop.xlane.xlu0 %3859
      %3861 = vadd.xlane.f32.xlu0 %v3830
      %v3862 = vpop.xlane.xlu0 %3861
      %v3863 = vpack.c.bf16 %v3802, %v3800
      %v3864 = vpack.c.bf16 %v3806, %v3804
      %v3865 = vpack.c.bf16 %v3810, %v3808
      %v3866 = vpack.c.bf16 %v3814, %v3812
      %v3867 = vpack.c.bf16 %v3818, %v3816
      %v3868 = vpack.c.bf16 %v3822, %v3820
      %v3869 = vpack.c.bf16 %v3826, %v3824
      %v3870 = vpack.c.bf16 %v3830, %v3828
      %3871 = vrot.lane.b32.xlu0 %v1821, 88
      %v3872 = vpop.permute.xlu0 %3871
      %3873 = vrot.lane.b32.xlu0 %v1822, 88
      %v3874 = vpop.permute.xlu0 %3873
      %3875 = vrot.lane.b32.xlu0 %v1823, 88
      %v3876 = vpop.permute.xlu0 %3875
      %3877 = vrot.lane.b32.xlu0 %v1824, 88
      %v3878 = vpop.permute.xlu0 %3877
      %3879 = vrot.lane.b32.xlu0 %v1825, 88
      %v3880 = vpop.permute.xlu0 %3879
      %3881 = vrot.lane.b32.xlu0 %v1826, 88
      %v3882 = vpop.permute.xlu0 %3881
      %3883 = vrot.lane.b32.xlu0 %v1827, 88
      %v3884 = vpop.permute.xlu0 %3883
      %3885 = vrot.lane.b32.xlu0 %v1828, 88
      %v3886 = vpop.permute.xlu0 %3885
      %3895 = vmatpush.bf16.msra.mxu0 %v3886
      %3896 = vmatpush.bf16.msra.mxu0 %v3884
      %3897 = vmatpush.bf16.msra.mxu0 %v3882
      %3898 = vmatpush.bf16.msra.mxu0 %v3880
      %3899 = vmatpush.bf16.msra.mxu0 %v3878
      %3900 = vmatpush.bf16.msra.mxu0 %v3876
      %3901 = vmatpush.bf16.msra.mxu0 %v3874
      %3902 = vmatpush.bf16.msra.mxu0 %v3872
      %3903 = vmatmul.bf16.gmra.mxu0 %v3863
      %v3904 = vpop.f32.mrf.mxu0
      %v3905 = vadd.f32 0.0, %v3904
      %v3906 = vpop.f32.mrf.mxu0
      %v3907 = vadd.f32 0.0, %v3906
      %3908 = vmatmul.bf16.gmra.mxu0 %v3864
      %v3909 = vpop.f32.mrf.mxu0
      %v3910 = vadd.f32 0.0, %v3909
      %v3911 = vpop.f32.mrf.mxu0
      %v3912 = vadd.f32 0.0, %v3911
      %3913 = vmatmul.bf16.gmra.mxu0 %v3865
      %v3914 = vpop.f32.mrf.mxu0
      %v3915 = vadd.f32 0.0, %v3914
      %v3916 = vpop.f32.mrf.mxu0
      %v3917 = vadd.f32 0.0, %v3916
      %3918 = vmatmul.bf16.gmra.mxu0 %v3866
      %v3919 = vpop.f32.mrf.mxu0
      %v3920 = vadd.f32 0.0, %v3919
      %v3921 = vpop.f32.mrf.mxu0
      %v3922 = vadd.f32 0.0, %v3921
      %3923 = vmatmul.bf16.gmra.mxu0 %v3867
      %v3924 = vpop.f32.mrf.mxu0
      %v3925 = vadd.f32 0.0, %v3924
      %v3926 = vpop.f32.mrf.mxu0
      %v3927 = vadd.f32 0.0, %v3926
      %3928 = vmatmul.bf16.gmra.mxu0 %v3868
      %v3929 = vpop.f32.mrf.mxu0
      %v3930 = vadd.f32 0.0, %v3929
      %v3931 = vpop.f32.mrf.mxu0
      %v3932 = vadd.f32 0.0, %v3931
      %3933 = vmatmul.bf16.gmra.mxu0 %v3869
      %v3934 = vpop.f32.mrf.mxu0
      %v3935 = vadd.f32 0.0, %v3934
      %v3936 = vpop.f32.mrf.mxu0
      %v3937 = vadd.f32 0.0, %v3936
      %3938 = vmatmul.bf16.gmra.mxu0 %v3870
      %v3939 = vpop.f32.mrf.mxu0
      %v3940 = vadd.f32 0.0, %v3939
      %v3941 = vpop.f32.mrf.mxu0
      %v3942 = vadd.f32 0.0, %v3941
      %3943 = vdwg.mxu0
      %v3944 = vrcp.pop %v3832
      %v3945 = vrcp.pop %v3834
      %v3946 = vrcp.pop %v3836
      %v3947 = vrcp.pop %v3838
      %v3948 = vrcp.pop %v3840
      %v3949 = vrcp.pop %v3842
      %v3950 = vrcp.pop %v3844
      %v3951 = vrcp.pop %v3846
      %v3952 = vrcp.pop %v3848
      %v3953 = vrcp.pop %v3850
      %v3954 = vrcp.pop %v3852
      %v3955 = vrcp.pop %v3854
      %v3956 = vrcp.pop %v3856
      %v3957 = vrcp.pop %v3858
      %v3958 = vrcp.pop %v3860
      %v3959 = vrcp.pop %v3862
      %v3960 = vmul.f32 %v3905, %v3944
      %v3961 = vmul.f32 %v3907, %v3945
      %v3962 = vmul.f32 %v3910, %v3946
      %v3963 = vmul.f32 %v3912, %v3947
      %v3964 = vmul.f32 %v3915, %v3948
      %v3965 = vmul.f32 %v3917, %v3949
      %v3966 = vmul.f32 %v3920, %v3950
      %v3967 = vmul.f32 %v3922, %v3951
      %v3968 = vmul.f32 %v3925, %v3952
      %v3969 = vmul.f32 %v3927, %v3953
      %v3970 = vmul.f32 %v3930, %v3954
      %v3971 = vmul.f32 %v3932, %v3955
      %v3972 = vmul.f32 %v3935, %v3956
      %v3973 = vmul.f32 %v3937, %v3957
      %v3974 = vmul.f32 %v3940, %v3958
      %v3975 = vmul.f32 %v3942, %v3959
      %v3976 = vpack.c.bf16 %v3961, %v3960
      %v3977 = vpack.c.bf16 %v3963, %v3962
      %v3978 = vpack.c.bf16 %v3965, %v3964
      %v3979 = vpack.c.bf16 %v3967, %v3966
      %v3980 = vpack.c.bf16 %v3969, %v3968
      %v3981 = vpack.c.bf16 %v3971, %v3970
      %v3982 = vpack.c.bf16 %v3973, %v3972
      %v3983 = vpack.c.bf16 %v3975, %v3974
      %v3985 = vsel %vm1591, %v3976, 0
      %v3988 = vsel %vm1591, %v3977, 0
      %v3991 = vsel %vm1591, %v3978, 0
      %v3994 = vsel %vm1591, %v3979, 0
      %v3997 = vsel %vm1591, %v3980, 0
      %v4000 = vsel %vm1591, %v3981, 0
      %v4003 = vsel %vm1591, %v3982, 0
      %v4006 = vsel %vm1591, %v3983, 0
      %v4009 = vsel %vm1616, %v1547, 0
      %4011 = vmatpush.bf16.msra.mxu0 0
      %4012 = vmatpush.bf16.msra.mxu0 0
      %4013 = vmatpush.bf16.msra.mxu0 0
      %4014 = vmatpush.bf16.msra.mxu0 0
      %4015 = vmatpush.bf16.msra.mxu0 0
      %4016 = vmatpush.bf16.msra.mxu0 0
      %4017 = vmatpush.bf16.msra.mxu0 0
      %4018 = vmatpush.bf16.msra.mxu0 %v4009
      %4019 = vmatmul.bf16.gmra.mxu0 %v3985
      %v4020 = vpop.f32.mrf.mxu0
      %v4021 = vadd.f32 0.0, %v4020
      %v4022 = vpop.f32.mrf.mxu0
      %v4023 = vadd.f32 0.0, %v4022
      %4024 = vmatmul.bf16.gmra.mxu0 %v3988
      %v4025 = vpop.f32.mrf.mxu0
      %v4026 = vadd.f32 0.0, %v4025
      %v4027 = vpop.f32.mrf.mxu0
      %v4028 = vadd.f32 0.0, %v4027
      %4029 = vmatmul.bf16.gmra.mxu0 %v3991
      %v4030 = vpop.f32.mrf.mxu0
      %v4031 = vadd.f32 0.0, %v4030
      %v4032 = vpop.f32.mrf.mxu0
      %v4033 = vadd.f32 0.0, %v4032
      %4034 = vmatmul.bf16.gmra.mxu0 %v3994
      %v4035 = vpop.f32.mrf.mxu0
      %v4036 = vadd.f32 0.0, %v4035
      %v4037 = vpop.f32.mrf.mxu0
      %v4038 = vadd.f32 0.0, %v4037
      %4039 = vmatmul.bf16.gmra.mxu0 %v3997
      %v4040 = vpop.f32.mrf.mxu0
      %v4041 = vadd.f32 0.0, %v4040
      %v4042 = vpop.f32.mrf.mxu0
      %v4043 = vadd.f32 0.0, %v4042
      %4044 = vmatmul.bf16.gmra.mxu0 %v4000
      %v4045 = vpop.f32.mrf.mxu0
      %v4046 = vadd.f32 0.0, %v4045
      %v4047 = vpop.f32.mrf.mxu0
      %v4048 = vadd.f32 0.0, %v4047
      %4049 = vmatmul.bf16.gmra.mxu0 %v4003
      %v4050 = vpop.f32.mrf.mxu0
      %v4051 = vadd.f32 0.0, %v4050
      %v4052 = vpop.f32.mrf.mxu0
      %v4053 = vadd.f32 0.0, %v4052
      %4054 = vmatmul.bf16.gmra.mxu0 %v4006
      %v4055 = vpop.f32.mrf.mxu0
      %v4056 = vadd.f32 0.0, %v4055
      %v4057 = vpop.f32.mrf.mxu0
      %v4058 = vadd.f32 0.0, %v4057
      %4059 = vdwg.mxu0
      %v4060 = vadd.f32 %v3642, %v4021
      %v4061 = vadd.f32 %v3643, %v4023
      %v4062 = vadd.f32 %v3644, %v4026
      %v4063 = vadd.f32 %v3645, %v4028
      %v4064 = vadd.f32 %v3646, %v4031
      %v4065 = vadd.f32 %v3647, %v4033
      %v4066 = vadd.f32 %v3648, %v4036
      %v4067 = vadd.f32 %v3649, %v4038
      %v4068 = vadd.f32 %v3650, %v4041
      %v4069 = vadd.f32 %v3651, %v4043
      %v4070 = vadd.f32 %v3652, %v4046
      %v4071 = vadd.f32 %v3653, %v4048
      %v4072 = vadd.f32 %v3654, %v4051
      %v4073 = vadd.f32 %v3655, %v4053
      %v4074 = vadd.f32 %v3656, %v4056
      %v4075 = vadd.f32 %v3657, %v4058
      %v4076 = vpack.c.bf16 %v1516, %v1516
      %4077 = vrot.lane.b32.xlu0 %v1583, 80
      %v4078 = vpop.permute.xlu0 %4077
      %4079 = vrot.lane.b32.xlu0 %v1584, 80
      %v4080 = vpop.permute.xlu0 %4079
      %4081 = vrot.lane.b32.xlu0 %v1585, 80
      %v4082 = vpop.permute.xlu0 %4081
      %4083 = vrot.lane.b32.xlu0 %v1586, 80
      %v4084 = vpop.permute.xlu0 %4083
      %4085 = vrot.lane.b32.xlu0 %v1587, 80
      %v4086 = vpop.permute.xlu0 %4085
      %4087 = vrot.lane.b32.xlu0 %v1588, 80
      %v4088 = vpop.permute.xlu0 %4087
      %4089 = vrot.lane.b32.xlu0 %v1589, 80
      %v4090 = vpop.permute.xlu0 %4089
      %4091 = vrot.lane.b32.xlu0 %v1590, 80
      %v4092 = vpop.permute.xlu0 %4091
      %v4094 = vsel %vm1591, %v4078, 0
      %v4097 = vsel %vm1591, %v4080, 0
      %v4100 = vsel %vm1591, %v4082, 0
      %v4103 = vsel %vm1591, %v4084, 0
      %v4106 = vsel %vm1591, %v4086, 0
      %v4109 = vsel %vm1591, %v4088, 0
      %v4112 = vsel %vm1591, %v4090, 0
      %v4115 = vsel %vm1591, %v4092, 0
      %v4118 = vsel %vm1616, %v4076, 0
      %4120 = vmatpush.bf16.msra.mxu0 0
      %4121 = vmatpush.bf16.msra.mxu0 0
      %4122 = vmatpush.bf16.msra.mxu0 0
      %4123 = vmatpush.bf16.msra.mxu0 0
      %4124 = vmatpush.bf16.msra.mxu0 0
      %4125 = vmatpush.bf16.msra.mxu0 0
      %4126 = vmatpush.bf16.msra.mxu0 0
      %4127 = vmatpush.bf16.msra.mxu0 %v4118
      %4128 = vmatmul.bf16.gmra.mxu0 %v4094
      %v4129 = vpop.f32.mrf.mxu0
      %v4130 = vadd.f32 %v804, %v4129
      %v4131 = vpop.f32.mrf.mxu0
      %v4132 = vadd.f32 %v805, %v4131
      %4133 = vmatmul.bf16.gmra.mxu0 %v4097
      %v4134 = vpop.f32.mrf.mxu0
      %v4135 = vadd.f32 %v806, %v4134
      %v4136 = vpop.f32.mrf.mxu0
      %v4137 = vadd.f32 %v807, %v4136
      %4138 = vmatmul.bf16.gmra.mxu0 %v4100
      %v4139 = vpop.f32.mrf.mxu0
      %v4140 = vadd.f32 %v808, %v4139
      %v4141 = vpop.f32.mrf.mxu0
      %v4142 = vadd.f32 %v809, %v4141
      %4143 = vmatmul.bf16.gmra.mxu0 %v4103
      %v4144 = vpop.f32.mrf.mxu0
      %v4145 = vadd.f32 %v810, %v4144
      %v4146 = vpop.f32.mrf.mxu0
      %v4147 = vadd.f32 %v811, %v4146
      %4148 = vmatmul.bf16.gmra.mxu0 %v4106
      %v4149 = vpop.f32.mrf.mxu0
      %v4150 = vadd.f32 %v812, %v4149
      %v4151 = vpop.f32.mrf.mxu0
      %v4152 = vadd.f32 %v813, %v4151
      %4153 = vmatmul.bf16.gmra.mxu0 %v4109
      %v4154 = vpop.f32.mrf.mxu0
      %v4155 = vadd.f32 %v814, %v4154
      %v4156 = vpop.f32.mrf.mxu0
      %v4157 = vadd.f32 %v815, %v4156
      %4158 = vmatmul.bf16.gmra.mxu0 %v4112
      %v4159 = vpop.f32.mrf.mxu0
      %v4160 = vadd.f32 %v816, %v4159
      %v4161 = vpop.f32.mrf.mxu0
      %v4162 = vadd.f32 %v817, %v4161
      %4163 = vmatmul.bf16.gmra.mxu0 %v4115
      %v4164 = vpop.f32.mrf.mxu0
      %v4165 = vadd.f32 %v818, %v4164
      %v4166 = vpop.f32.mrf.mxu0
      %v4167 = vadd.f32 %v819, %v4166
      %4168 = vdwg.mxu0
      %4169 = vmax.xlane.f32.xlu0 %v4130
      %v4170 = vpop.xlane.xlu0 %4169
      %4171 = vmax.xlane.f32.xlu0 %v4132
      %v4172 = vpop.xlane.xlu0 %4171
      %4173 = vmax.xlane.f32.xlu0 %v4135
      %v4174 = vpop.xlane.xlu0 %4173
      %4175 = vmax.xlane.f32.xlu0 %v4137
      %v4176 = vpop.xlane.xlu0 %4175
      %4177 = vmax.xlane.f32.xlu0 %v4140
      %v4178 = vpop.xlane.xlu0 %4177
      %4179 = vmax.xlane.f32.xlu0 %v4142
      %v4180 = vpop.xlane.xlu0 %4179
      %4181 = vmax.xlane.f32.xlu0 %v4145
      %v4182 = vpop.xlane.xlu0 %4181
      %4183 = vmax.xlane.f32.xlu0 %v4147
      %v4184 = vpop.xlane.xlu0 %4183
      %4185 = vmax.xlane.f32.xlu0 %v4150
      %v4186 = vpop.xlane.xlu0 %4185
      %4187 = vmax.xlane.f32.xlu0 %v4152
      %v4188 = vpop.xlane.xlu0 %4187
      %4189 = vmax.xlane.f32.xlu0 %v4155
      %v4190 = vpop.xlane.xlu0 %4189
      %4191 = vmax.xlane.f32.xlu0 %v4157
      %v4192 = vpop.xlane.xlu0 %4191
      %4193 = vmax.xlane.f32.xlu0 %v4160
      %v4194 = vpop.xlane.xlu0 %4193
      %4195 = vmax.xlane.f32.xlu0 %v4162
      %v4196 = vpop.xlane.xlu0 %4195
      %4197 = vmax.xlane.f32.xlu0 %v4165
      %v4198 = vpop.xlane.xlu0 %4197
      %4199 = vmax.xlane.f32.xlu0 %v4167
      %v4200 = vpop.xlane.xlu0 %4199
      %v4201 = vsub.f32 %v4130, %v4170
      %v4202 = vsub.f32 %v4132, %v4172
      %v4203 = vsub.f32 %v4135, %v4174
      %v4204 = vsub.f32 %v4137, %v4176
      %v4205 = vsub.f32 %v4140, %v4178
      %v4206 = vsub.f32 %v4142, %v4180
      %v4207 = vsub.f32 %v4145, %v4182
      %v4208 = vsub.f32 %v4147, %v4184
      %v4209 = vsub.f32 %v4150, %v4186
      %v4210 = vsub.f32 %v4152, %v4188
      %v4211 = vsub.f32 %v4155, %v4190
      %v4212 = vsub.f32 %v4157, %v4192
      %v4213 = vsub.f32 %v4160, %v4194
      %v4214 = vsub.f32 %v4162, %v4196
      %v4215 = vsub.f32 %v4165, %v4198
      %v4216 = vsub.f32 %v4167, %v4200
      %v4217 = vmul.f32 %v4201, 1.442695
      %v4218 = vpow.pop %v4217
      %v4219 = vmul.f32 %v4202, 1.442695
      %v4220 = vpow.pop %v4219
      %v4221 = vmul.f32 %v4203, 1.442695
      %v4222 = vpow.pop %v4221
      %v4223 = vmul.f32 %v4204, 1.442695
      %v4224 = vpow.pop %v4223
      %v4225 = vmul.f32 %v4205, 1.442695
      %v4226 = vpow.pop %v4225
      %v4227 = vmul.f32 %v4206, 1.442695
      %v4228 = vpow.pop %v4227
      %v4229 = vmul.f32 %v4207, 1.442695
      %v4230 = vpow.pop %v4229
      %v4231 = vmul.f32 %v4208, 1.442695
      %v4232 = vpow.pop %v4231
      %v4233 = vmul.f32 %v4209, 1.442695
      %v4234 = vpow.pop %v4233
      %v4235 = vmul.f32 %v4210, 1.442695
      %v4236 = vpow.pop %v4235
      %v4237 = vmul.f32 %v4211, 1.442695
      %v4238 = vpow.pop %v4237
      %v4239 = vmul.f32 %v4212, 1.442695
      %v4240 = vpow.pop %v4239
      %v4241 = vmul.f32 %v4213, 1.442695
      %v4242 = vpow.pop %v4241
      %v4243 = vmul.f32 %v4214, 1.442695
      %v4244 = vpow.pop %v4243
      %v4245 = vmul.f32 %v4215, 1.442695
      %v4246 = vpow.pop %v4245
      %v4247 = vmul.f32 %v4216, 1.442695
      %v4248 = vpow.pop %v4247
      %4249 = vadd.xlane.f32.xlu0 %v4218
      %v4250 = vpop.xlane.xlu0 %4249
      %4251 = vadd.xlane.f32.xlu0 %v4220
      %v4252 = vpop.xlane.xlu0 %4251
      %4253 = vadd.xlane.f32.xlu0 %v4222
      %v4254 = vpop.xlane.xlu0 %4253
      %4255 = vadd.xlane.f32.xlu0 %v4224
      %v4256 = vpop.xlane.xlu0 %4255
      %4257 = vadd.xlane.f32.xlu0 %v4226
      %v4258 = vpop.xlane.xlu0 %4257
      %4259 = vadd.xlane.f32.xlu0 %v4228
      %v4260 = vpop.xlane.xlu0 %4259
      %4261 = vadd.xlane.f32.xlu0 %v4230
      %v4262 = vpop.xlane.xlu0 %4261
      %4263 = vadd.xlane.f32.xlu0 %v4232
      %v4264 = vpop.xlane.xlu0 %4263
      %4265 = vadd.xlane.f32.xlu0 %v4234
      %v4266 = vpop.xlane.xlu0 %4265
      %4267 = vadd.xlane.f32.xlu0 %v4236
      %v4268 = vpop.xlane.xlu0 %4267
      %4269 = vadd.xlane.f32.xlu0 %v4238
      %v4270 = vpop.xlane.xlu0 %4269
      %4271 = vadd.xlane.f32.xlu0 %v4240
      %v4272 = vpop.xlane.xlu0 %4271
      %4273 = vadd.xlane.f32.xlu0 %v4242
      %v4274 = vpop.xlane.xlu0 %4273
      %4275 = vadd.xlane.f32.xlu0 %v4244
      %v4276 = vpop.xlane.xlu0 %4275
      %4277 = vadd.xlane.f32.xlu0 %v4246
      %v4278 = vpop.xlane.xlu0 %4277
      %4279 = vadd.xlane.f32.xlu0 %v4248
      %v4280 = vpop.xlane.xlu0 %4279
      %v4281 = vpack.c.bf16 %v4220, %v4218
      %v4282 = vpack.c.bf16 %v4224, %v4222
      %v4283 = vpack.c.bf16 %v4228, %v4226
      %v4284 = vpack.c.bf16 %v4232, %v4230
      %v4285 = vpack.c.bf16 %v4236, %v4234
      %v4286 = vpack.c.bf16 %v4240, %v4238
      %v4287 = vpack.c.bf16 %v4244, %v4242
      %v4288 = vpack.c.bf16 %v4248, %v4246
      %4289 = vrot.lane.b32.xlu0 %v1821, 80
      %v4290 = vpop.permute.xlu0 %4289
      %4291 = vrot.lane.b32.xlu0 %v1822, 80
      %v4292 = vpop.permute.xlu0 %4291
      %4293 = vrot.lane.b32.xlu0 %v1823, 80
      %v4294 = vpop.permute.xlu0 %4293
      %4295 = vrot.lane.b32.xlu0 %v1824, 80
      %v4296 = vpop.permute.xlu0 %4295
      %4297 = vrot.lane.b32.xlu0 %v1825, 80
      %v4298 = vpop.permute.xlu0 %4297
      %4299 = vrot.lane.b32.xlu0 %v1826, 80
      %v4300 = vpop.permute.xlu0 %4299
      %4301 = vrot.lane.b32.xlu0 %v1827, 80
      %v4302 = vpop.permute.xlu0 %4301
      %4303 = vrot.lane.b32.xlu0 %v1828, 80
      %v4304 = vpop.permute.xlu0 %4303
      %4313 = vmatpush.bf16.msra.mxu0 %v4304
      %4314 = vmatpush.bf16.msra.mxu0 %v4302
      %4315 = vmatpush.bf16.msra.mxu0 %v4300
      %4316 = vmatpush.bf16.msra.mxu0 %v4298
      %4317 = vmatpush.bf16.msra.mxu0 %v4296
      %4318 = vmatpush.bf16.msra.mxu0 %v4294
      %4319 = vmatpush.bf16.msra.mxu0 %v4292
      %4320 = vmatpush.bf16.msra.mxu0 %v4290
      %4321 = vmatmul.bf16.gmra.mxu0 %v4281
      %v4322 = vpop.f32.mrf.mxu0
      %v4323 = vadd.f32 0.0, %v4322
      %v4324 = vpop.f32.mrf.mxu0
      %v4325 = vadd.f32 0.0, %v4324
      %4326 = vmatmul.bf16.gmra.mxu0 %v4282
      %v4327 = vpop.f32.mrf.mxu0
      %v4328 = vadd.f32 0.0, %v4327
      %v4329 = vpop.f32.mrf.mxu0
      %v4330 = vadd.f32 0.0, %v4329
      %4331 = vmatmul.bf16.gmra.mxu0 %v4283
      %v4332 = vpop.f32.mrf.mxu0
      %v4333 = vadd.f32 0.0, %v4332
      %v4334 = vpop.f32.mrf.mxu0
      %v4335 = vadd.f32 0.0, %v4334
      %4336 = vmatmul.bf16.gmra.mxu0 %v4284
      %v4337 = vpop.f32.mrf.mxu0
      %v4338 = vadd.f32 0.0, %v4337
      %v4339 = vpop.f32.mrf.mxu0
      %v4340 = vadd.f32 0.0, %v4339
      %4341 = vmatmul.bf16.gmra.mxu0 %v4285
      %v4342 = vpop.f32.mrf.mxu0
      %v4343 = vadd.f32 0.0, %v4342
      %v4344 = vpop.f32.mrf.mxu0
      %v4345 = vadd.f32 0.0, %v4344
      %4346 = vmatmul.bf16.gmra.mxu0 %v4286
      %v4347 = vpop.f32.mrf.mxu0
      %v4348 = vadd.f32 0.0, %v4347
      %v4349 = vpop.f32.mrf.mxu0
      %v4350 = vadd.f32 0.0, %v4349
      %4351 = vmatmul.bf16.gmra.mxu0 %v4287
      %v4352 = vpop.f32.mrf.mxu0
      %v4353 = vadd.f32 0.0, %v4352
      %v4354 = vpop.f32.mrf.mxu0
      %v4355 = vadd.f32 0.0, %v4354
      %4356 = vmatmul.bf16.gmra.mxu0 %v4288
      %v4357 = vpop.f32.mrf.mxu0
      %v4358 = vadd.f32 0.0, %v4357
      %v4359 = vpop.f32.mrf.mxu0
      %v4360 = vadd.f32 0.0, %v4359
      %4361 = vdwg.mxu0
      %v4362 = vrcp.pop %v4250
      %v4363 = vrcp.pop %v4252
      %v4364 = vrcp.pop %v4254
      %v4365 = vrcp.pop %v4256
      %v4366 = vrcp.pop %v4258
      %v4367 = vrcp.pop %v4260
      %v4368 = vrcp.pop %v4262
      %v4369 = vrcp.pop %v4264
      %v4370 = vrcp.pop %v4266
      %v4371 = vrcp.pop %v4268
      %v4372 = vrcp.pop %v4270
      %v4373 = vrcp.pop %v4272
      %v4374 = vrcp.pop %v4274
      %v4375 = vrcp.pop %v4276
      %v4376 = vrcp.pop %v4278
      %v4377 = vrcp.pop %v4280
      %v4378 = vmul.f32 %v4323, %v4362
      %v4379 = vmul.f32 %v4325, %v4363
      %v4380 = vmul.f32 %v4328, %v4364
      %v4381 = vmul.f32 %v4330, %v4365
      %v4382 = vmul.f32 %v4333, %v4366
      %v4383 = vmul.f32 %v4335, %v4367
      %v4384 = vmul.f32 %v4338, %v4368
      %v4385 = vmul.f32 %v4340, %v4369
      %v4386 = vmul.f32 %v4343, %v4370
      %v4387 = vmul.f32 %v4345, %v4371
      %v4388 = vmul.f32 %v4348, %v4372
      %v4389 = vmul.f32 %v4350, %v4373
      %v4390 = vmul.f32 %v4353, %v4374
      %v4391 = vmul.f32 %v4355, %v4375
      %v4392 = vmul.f32 %v4358, %v4376
      %v4393 = vmul.f32 %v4360, %v4377
      %v4394 = vpack.c.bf16 %v4379, %v4378
      %v4395 = vpack.c.bf16 %v4381, %v4380
      %v4396 = vpack.c.bf16 %v4383, %v4382
      %v4397 = vpack.c.bf16 %v4385, %v4384
      %v4398 = vpack.c.bf16 %v4387, %v4386
      %v4399 = vpack.c.bf16 %v4389, %v4388
      %v4400 = vpack.c.bf16 %v4391, %v4390
      %v4401 = vpack.c.bf16 %v4393, %v4392
      %v4403 = vsel %vm1591, %v4394, 0
      %v4406 = vsel %vm1591, %v4395, 0
      %v4409 = vsel %vm1591, %v4396, 0
      %v4412 = vsel %vm1591, %v4397, 0
      %v4415 = vsel %vm1591, %v4398, 0
      %v4418 = vsel %vm1591, %v4399, 0
      %v4421 = vsel %vm1591, %v4400, 0
      %v4424 = vsel %vm1591, %v4401, 0
      %v4427 = vsel %vm1616, %v1548, 0
      %4429 = vmatpush.bf16.msra.mxu0 0
      %4430 = vmatpush.bf16.msra.mxu0 0
      %4431 = vmatpush.bf16.msra.mxu0 0
      %4432 = vmatpush.bf16.msra.mxu0 0
      %4433 = vmatpush.bf16.msra.mxu0 0
      %4434 = vmatpush.bf16.msra.mxu0 0
      %4435 = vmatpush.bf16.msra.mxu0 0
      %4436 = vmatpush.bf16.msra.mxu0 %v4427
      %4437 = vmatmul.bf16.gmra.mxu0 %v4403
      %v4438 = vpop.f32.mrf.mxu0
      %v4439 = vadd.f32 0.0, %v4438
      %v4440 = vpop.f32.mrf.mxu0
      %v4441 = vadd.f32 0.0, %v4440
      %4442 = vmatmul.bf16.gmra.mxu0 %v4406
      %v4443 = vpop.f32.mrf.mxu0
      %v4444 = vadd.f32 0.0, %v4443
      %v4445 = vpop.f32.mrf.mxu0
      %v4446 = vadd.f32 0.0, %v4445
      %4447 = vmatmul.bf16.gmra.mxu0 %v4409
      %v4448 = vpop.f32.mrf.mxu0
      %v4449 = vadd.f32 0.0, %v4448
      %v4450 = vpop.f32.mrf.mxu0
      %v4451 = vadd.f32 0.0, %v4450
      %4452 = vmatmul.bf16.gmra.mxu0 %v4412
      %v4453 = vpop.f32.mrf.mxu0
      %v4454 = vadd.f32 0.0, %v4453
      %v4455 = vpop.f32.mrf.mxu0
      %v4456 = vadd.f32 0.0, %v4455
      %4457 = vmatmul.bf16.gmra.mxu0 %v4415
      %v4458 = vpop.f32.mrf.mxu0
      %v4459 = vadd.f32 0.0, %v4458
      %v4460 = vpop.f32.mrf.mxu0
      %v4461 = vadd.f32 0.0, %v4460
      %4462 = vmatmul.bf16.gmra.mxu0 %v4418
      %v4463 = vpop.f32.mrf.mxu0
      %v4464 = vadd.f32 0.0, %v4463
      %v4465 = vpop.f32.mrf.mxu0
      %v4466 = vadd.f32 0.0, %v4465
      %4467 = vmatmul.bf16.gmra.mxu0 %v4421
      %v4468 = vpop.f32.mrf.mxu0
      %v4469 = vadd.f32 0.0, %v4468
      %v4470 = vpop.f32.mrf.mxu0
      %v4471 = vadd.f32 0.0, %v4470
      %4472 = vmatmul.bf16.gmra.mxu0 %v4424
      %v4473 = vpop.f32.mrf.mxu0
      %v4474 = vadd.f32 0.0, %v4473
      %v4475 = vpop.f32.mrf.mxu0
      %v4476 = vadd.f32 0.0, %v4475
      %4477 = vdwg.mxu0
      %v4478 = vadd.f32 %v4060, %v4439
      %v4479 = vadd.f32 %v4061, %v4441
      %v4480 = vadd.f32 %v4062, %v4444
      %v4481 = vadd.f32 %v4063, %v4446
      %v4482 = vadd.f32 %v4064, %v4449
      %v4483 = vadd.f32 %v4065, %v4451
      %v4484 = vadd.f32 %v4066, %v4454
      %v4485 = vadd.f32 %v4067, %v4456
      %v4486 = vadd.f32 %v4068, %v4459
      %v4487 = vadd.f32 %v4069, %v4461
      %v4488 = vadd.f32 %v4070, %v4464
      %v4489 = vadd.f32 %v4071, %v4466
      %v4490 = vadd.f32 %v4072, %v4469
      %v4491 = vadd.f32 %v4073, %v4471
      %v4492 = vadd.f32 %v4074, %v4474
      %v4493 = vadd.f32 %v4075, %v4476
      %v4494 = vpack.c.bf16 %v1517, %v1517
      %4495 = vrot.lane.b32.xlu0 %v1583, 72
      %v4496 = vpop.permute.xlu0 %4495
      %4497 = vrot.lane.b32.xlu0 %v1584, 72
      %v4498 = vpop.permute.xlu0 %4497
      %4499 = vrot.lane.b32.xlu0 %v1585, 72
      %v4500 = vpop.permute.xlu0 %4499
      %4501 = vrot.lane.b32.xlu0 %v1586, 72
      %v4502 = vpop.permute.xlu0 %4501
      %4503 = vrot.lane.b32.xlu0 %v1587, 72
      %v4504 = vpop.permute.xlu0 %4503
      %4505 = vrot.lane.b32.xlu0 %v1588, 72
      %v4506 = vpop.permute.xlu0 %4505
      %4507 = vrot.lane.b32.xlu0 %v1589, 72
      %v4508 = vpop.permute.xlu0 %4507
      %4509 = vrot.lane.b32.xlu0 %v1590, 72
      %v4510 = vpop.permute.xlu0 %4509
      %v4512 = vsel %vm1591, %v4496, 0
      %v4515 = vsel %vm1591, %v4498, 0
      %v4518 = vsel %vm1591, %v4500, 0
      %v4521 = vsel %vm1591, %v4502, 0
      %v4524 = vsel %vm1591, %v4504, 0
      %v4527 = vsel %vm1591, %v4506, 0
      %v4530 = vsel %vm1591, %v4508, 0
      %v4533 = vsel %vm1591, %v4510, 0
      %v4536 = vsel %vm1616, %v4494, 0
      %4538 = vmatpush.bf16.msra.mxu0 0
      %4539 = vmatpush.bf16.msra.mxu0 0
      %4540 = vmatpush.bf16.msra.mxu0 0
      %4541 = vmatpush.bf16.msra.mxu0 0
      %4542 = vmatpush.bf16.msra.mxu0 0
      %4543 = vmatpush.bf16.msra.mxu0 0
      %4544 = vmatpush.bf16.msra.mxu0 0
      %4545 = vmatpush.bf16.msra.mxu0 %v4536
      %4546 = vmatmul.bf16.gmra.mxu0 %v4512
      %v4547 = vpop.f32.mrf.mxu0
      %v4548 = vadd.f32 %v804, %v4547
      %v4549 = vpop.f32.mrf.mxu0
      %v4550 = vadd.f32 %v805, %v4549
      %4551 = vmatmul.bf16.gmra.mxu0 %v4515
      %v4552 = vpop.f32.mrf.mxu0
      %v4553 = vadd.f32 %v806, %v4552
      %v4554 = vpop.f32.mrf.mxu0
      %v4555 = vadd.f32 %v807, %v4554
      %4556 = vmatmul.bf16.gmra.mxu0 %v4518
      %v4557 = vpop.f32.mrf.mxu0
      %v4558 = vadd.f32 %v808, %v4557
      %v4559 = vpop.f32.mrf.mxu0
      %v4560 = vadd.f32 %v809, %v4559
      %4561 = vmatmul.bf16.gmra.mxu0 %v4521
      %v4562 = vpop.f32.mrf.mxu0
      %v4563 = vadd.f32 %v810, %v4562
      %v4564 = vpop.f32.mrf.mxu0
      %v4565 = vadd.f32 %v811, %v4564
      %4566 = vmatmul.bf16.gmra.mxu0 %v4524
      %v4567 = vpop.f32.mrf.mxu0
      %v4568 = vadd.f32 %v812, %v4567
      %v4569 = vpop.f32.mrf.mxu0
      %v4570 = vadd.f32 %v813, %v4569
      %4571 = vmatmul.bf16.gmra.mxu0 %v4527
      %v4572 = vpop.f32.mrf.mxu0
      %v4573 = vadd.f32 %v814, %v4572
      %v4574 = vpop.f32.mrf.mxu0
      %v4575 = vadd.f32 %v815, %v4574
      %4576 = vmatmul.bf16.gmra.mxu0 %v4530
      %v4577 = vpop.f32.mrf.mxu0
      %v4578 = vadd.f32 %v816, %v4577
      %v4579 = vpop.f32.mrf.mxu0
      %v4580 = vadd.f32 %v817, %v4579
      %4581 = vmatmul.bf16.gmra.mxu0 %v4533
      %v4582 = vpop.f32.mrf.mxu0
      %v4583 = vadd.f32 %v818, %v4582
      %v4584 = vpop.f32.mrf.mxu0
      %v4585 = vadd.f32 %v819, %v4584
      %4586 = vdwg.mxu0
      %4587 = vmax.xlane.f32.xlu0 %v4548
      %v4588 = vpop.xlane.xlu0 %4587
      %4589 = vmax.xlane.f32.xlu0 %v4550
      %v4590 = vpop.xlane.xlu0 %4589
      %4591 = vmax.xlane.f32.xlu0 %v4553
      %v4592 = vpop.xlane.xlu0 %4591
      %4593 = vmax.xlane.f32.xlu0 %v4555
      %v4594 = vpop.xlane.xlu0 %4593
      %4595 = vmax.xlane.f32.xlu0 %v4558
      %v4596 = vpop.xlane.xlu0 %4595
      %4597 = vmax.xlane.f32.xlu0 %v4560
      %v4598 = vpop.xlane.xlu0 %4597
      %4599 = vmax.xlane.f32.xlu0 %v4563
      %v4600 = vpop.xlane.xlu0 %4599
      %4601 = vmax.xlane.f32.xlu0 %v4565
      %v4602 = vpop.xlane.xlu0 %4601
      %4603 = vmax.xlane.f32.xlu0 %v4568
      %v4604 = vpop.xlane.xlu0 %4603
      %4605 = vmax.xlane.f32.xlu0 %v4570
      %v4606 = vpop.xlane.xlu0 %4605
      %4607 = vmax.xlane.f32.xlu0 %v4573
      %v4608 = vpop.xlane.xlu0 %4607
      %4609 = vmax.xlane.f32.xlu0 %v4575
      %v4610 = vpop.xlane.xlu0 %4609
      %4611 = vmax.xlane.f32.xlu0 %v4578
      %v4612 = vpop.xlane.xlu0 %4611
      %4613 = vmax.xlane.f32.xlu0 %v4580
      %v4614 = vpop.xlane.xlu0 %4613
      %4615 = vmax.xlane.f32.xlu0 %v4583
      %v4616 = vpop.xlane.xlu0 %4615
      %4617 = vmax.xlane.f32.xlu0 %v4585
      %v4618 = vpop.xlane.xlu0 %4617
      %v4619 = vsub.f32 %v4548, %v4588
      %v4620 = vsub.f32 %v4550, %v4590
      %v4621 = vsub.f32 %v4553, %v4592
      %v4622 = vsub.f32 %v4555, %v4594
      %v4623 = vsub.f32 %v4558, %v4596
      %v4624 = vsub.f32 %v4560, %v4598
      %v4625 = vsub.f32 %v4563, %v4600
      %v4626 = vsub.f32 %v4565, %v4602
      %v4627 = vsub.f32 %v4568, %v4604
      %v4628 = vsub.f32 %v4570, %v4606
      %v4629 = vsub.f32 %v4573, %v4608
      %v4630 = vsub.f32 %v4575, %v4610
      %v4631 = vsub.f32 %v4578, %v4612
      %v4632 = vsub.f32 %v4580, %v4614
      %v4633 = vsub.f32 %v4583, %v4616
      %v4634 = vsub.f32 %v4585, %v4618
      %v4635 = vmul.f32 %v4619, 1.442695
      %v4636 = vpow.pop %v4635
      %v4637 = vmul.f32 %v4620, 1.442695
      %v4638 = vpow.pop %v4637
      %v4639 = vmul.f32 %v4621, 1.442695
      %v4640 = vpow.pop %v4639
      %v4641 = vmul.f32 %v4622, 1.442695
      %v4642 = vpow.pop %v4641
      %v4643 = vmul.f32 %v4623, 1.442695
      %v4644 = vpow.pop %v4643
      %v4645 = vmul.f32 %v4624, 1.442695
      %v4646 = vpow.pop %v4645
      %v4647 = vmul.f32 %v4625, 1.442695
      %v4648 = vpow.pop %v4647
      %v4649 = vmul.f32 %v4626, 1.442695
      %v4650 = vpow.pop %v4649
      %v4651 = vmul.f32 %v4627, 1.442695
      %v4652 = vpow.pop %v4651
      %v4653 = vmul.f32 %v4628, 1.442695
      %v4654 = vpow.pop %v4653
      %v4655 = vmul.f32 %v4629, 1.442695
      %v4656 = vpow.pop %v4655
      %v4657 = vmul.f32 %v4630, 1.442695
      %v4658 = vpow.pop %v4657
      %v4659 = vmul.f32 %v4631, 1.442695
      %v4660 = vpow.pop %v4659
      %v4661 = vmul.f32 %v4632, 1.442695
      %v4662 = vpow.pop %v4661
      %v4663 = vmul.f32 %v4633, 1.442695
      %v4664 = vpow.pop %v4663
      %v4665 = vmul.f32 %v4634, 1.442695
      %v4666 = vpow.pop %v4665
      %4667 = vadd.xlane.f32.xlu0 %v4636
      %v4668 = vpop.xlane.xlu0 %4667
      %4669 = vadd.xlane.f32.xlu0 %v4638
      %v4670 = vpop.xlane.xlu0 %4669
      %4671 = vadd.xlane.f32.xlu0 %v4640
      %v4672 = vpop.xlane.xlu0 %4671
      %4673 = vadd.xlane.f32.xlu0 %v4642
      %v4674 = vpop.xlane.xlu0 %4673
      %4675 = vadd.xlane.f32.xlu0 %v4644
      %v4676 = vpop.xlane.xlu0 %4675
      %4677 = vadd.xlane.f32.xlu0 %v4646
      %v4678 = vpop.xlane.xlu0 %4677
      %4679 = vadd.xlane.f32.xlu0 %v4648
      %v4680 = vpop.xlane.xlu0 %4679
      %4681 = vadd.xlane.f32.xlu0 %v4650
      %v4682 = vpop.xlane.xlu0 %4681
      %4683 = vadd.xlane.f32.xlu0 %v4652
      %v4684 = vpop.xlane.xlu0 %4683
      %4685 = vadd.xlane.f32.xlu0 %v4654
      %v4686 = vpop.xlane.xlu0 %4685
      %4687 = vadd.xlane.f32.xlu0 %v4656
      %v4688 = vpop.xlane.xlu0 %4687
      %4689 = vadd.xlane.f32.xlu0 %v4658
      %v4690 = vpop.xlane.xlu0 %4689
      %4691 = vadd.xlane.f32.xlu0 %v4660
      %v4692 = vpop.xlane.xlu0 %4691
      %4693 = vadd.xlane.f32.xlu0 %v4662
      %v4694 = vpop.xlane.xlu0 %4693
      %4695 = vadd.xlane.f32.xlu0 %v4664
      %v4696 = vpop.xlane.xlu0 %4695
      %4697 = vadd.xlane.f32.xlu0 %v4666
      %v4698 = vpop.xlane.xlu0 %4697
      %v4699 = vpack.c.bf16 %v4638, %v4636
      %v4700 = vpack.c.bf16 %v4642, %v4640
      %v4701 = vpack.c.bf16 %v4646, %v4644
      %v4702 = vpack.c.bf16 %v4650, %v4648
      %v4703 = vpack.c.bf16 %v4654, %v4652
      %v4704 = vpack.c.bf16 %v4658, %v4656
      %v4705 = vpack.c.bf16 %v4662, %v4660
      %v4706 = vpack.c.bf16 %v4666, %v4664
      %4707 = vrot.lane.b32.xlu0 %v1821, 72
      %v4708 = vpop.permute.xlu0 %4707
      %4709 = vrot.lane.b32.xlu0 %v1822, 72
      %v4710 = vpop.permute.xlu0 %4709
      %4711 = vrot.lane.b32.xlu0 %v1823, 72
      %v4712 = vpop.permute.xlu0 %4711
      %4713 = vrot.lane.b32.xlu0 %v1824, 72
      %v4714 = vpop.permute.xlu0 %4713
      %4715 = vrot.lane.b32.xlu0 %v1825, 72
      %v4716 = vpop.permute.xlu0 %4715
      %4717 = vrot.lane.b32.xlu0 %v1826, 72
      %v4718 = vpop.permute.xlu0 %4717
      %4719 = vrot.lane.b32.xlu0 %v1827, 72
      %v4720 = vpop.permute.xlu0 %4719
      %4721 = vrot.lane.b32.xlu0 %v1828, 72
      %v4722 = vpop.permute.xlu0 %4721
      %4731 = vmatpush.bf16.msra.mxu0 %v4722
      %4732 = vmatpush.bf16.msra.mxu0 %v4720
      %4733 = vmatpush.bf16.msra.mxu0 %v4718
      %4734 = vmatpush.bf16.msra.mxu0 %v4716
      %4735 = vmatpush.bf16.msra.mxu0 %v4714
      %4736 = vmatpush.bf16.msra.mxu0 %v4712
      %4737 = vmatpush.bf16.msra.mxu0 %v4710
      %4738 = vmatpush.bf16.msra.mxu0 %v4708
      %4739 = vmatmul.bf16.gmra.mxu0 %v4699
      %v4740 = vpop.f32.mrf.mxu0
      %v4741 = vadd.f32 0.0, %v4740
      %v4742 = vpop.f32.mrf.mxu0
      %v4743 = vadd.f32 0.0, %v4742
      %4744 = vmatmul.bf16.gmra.mxu0 %v4700
      %v4745 = vpop.f32.mrf.mxu0
      %v4746 = vadd.f32 0.0, %v4745
      %v4747 = vpop.f32.mrf.mxu0
      %v4748 = vadd.f32 0.0, %v4747
      %4749 = vmatmul.bf16.gmra.mxu0 %v4701
      %v4750 = vpop.f32.mrf.mxu0
      %v4751 = vadd.f32 0.0, %v4750
      %v4752 = vpop.f32.mrf.mxu0
      %v4753 = vadd.f32 0.0, %v4752
      %4754 = vmatmul.bf16.gmra.mxu0 %v4702
      %v4755 = vpop.f32.mrf.mxu0
      %v4756 = vadd.f32 0.0, %v4755
      %v4757 = vpop.f32.mrf.mxu0
      %v4758 = vadd.f32 0.0, %v4757
      %4759 = vmatmul.bf16.gmra.mxu0 %v4703
      %v4760 = vpop.f32.mrf.mxu0
      %v4761 = vadd.f32 0.0, %v4760
      %v4762 = vpop.f32.mrf.mxu0
      %v4763 = vadd.f32 0.0, %v4762
      %4764 = vmatmul.bf16.gmra.mxu0 %v4704
      %v4765 = vpop.f32.mrf.mxu0
      %v4766 = vadd.f32 0.0, %v4765
      %v4767 = vpop.f32.mrf.mxu0
      %v4768 = vadd.f32 0.0, %v4767
      %4769 = vmatmul.bf16.gmra.mxu0 %v4705
      %v4770 = vpop.f32.mrf.mxu0
      %v4771 = vadd.f32 0.0, %v4770
      %v4772 = vpop.f32.mrf.mxu0
      %v4773 = vadd.f32 0.0, %v4772
      %4774 = vmatmul.bf16.gmra.mxu0 %v4706
      %v4775 = vpop.f32.mrf.mxu0
      %v4776 = vadd.f32 0.0, %v4775
      %v4777 = vpop.f32.mrf.mxu0
      %v4778 = vadd.f32 0.0, %v4777
      %4779 = vdwg.mxu0
      %v4780 = vrcp.pop %v4668
      %v4781 = vrcp.pop %v4670
      %v4782 = vrcp.pop %v4672
      %v4783 = vrcp.pop %v4674
      %v4784 = vrcp.pop %v4676
      %v4785 = vrcp.pop %v4678
      %v4786 = vrcp.pop %v4680
      %v4787 = vrcp.pop %v4682
      %v4788 = vrcp.pop %v4684
      %v4789 = vrcp.pop %v4686
      %v4790 = vrcp.pop %v4688
      %v4791 = vrcp.pop %v4690
      %v4792 = vrcp.pop %v4692
      %v4793 = vrcp.pop %v4694
      %v4794 = vrcp.pop %v4696
      %v4795 = vrcp.pop %v4698
      %v4796 = vmul.f32 %v4741, %v4780
      %v4797 = vmul.f32 %v4743, %v4781
      %v4798 = vmul.f32 %v4746, %v4782
      %v4799 = vmul.f32 %v4748, %v4783
      %v4800 = vmul.f32 %v4751, %v4784
      %v4801 = vmul.f32 %v4753, %v4785
      %v4802 = vmul.f32 %v4756, %v4786
      %v4803 = vmul.f32 %v4758, %v4787
      %v4804 = vmul.f32 %v4761, %v4788
      %v4805 = vmul.f32 %v4763, %v4789
      %v4806 = vmul.f32 %v4766, %v4790
      %v4807 = vmul.f32 %v4768, %v4791
      %v4808 = vmul.f32 %v4771, %v4792
      %v4809 = vmul.f32 %v4773, %v4793
      %v4810 = vmul.f32 %v4776, %v4794
      %v4811 = vmul.f32 %v4778, %v4795
      %v4812 = vpack.c.bf16 %v4797, %v4796
      %v4813 = vpack.c.bf16 %v4799, %v4798
      %v4814 = vpack.c.bf16 %v4801, %v4800
      %v4815 = vpack.c.bf16 %v4803, %v4802
      %v4816 = vpack.c.bf16 %v4805, %v4804
      %v4817 = vpack.c.bf16 %v4807, %v4806
      %v4818 = vpack.c.bf16 %v4809, %v4808
      %v4819 = vpack.c.bf16 %v4811, %v4810
      %v4821 = vsel %vm1591, %v4812, 0
      %v4824 = vsel %vm1591, %v4813, 0
      %v4827 = vsel %vm1591, %v4814, 0
      %v4830 = vsel %vm1591, %v4815, 0
      %v4833 = vsel %vm1591, %v4816, 0
      %v4836 = vsel %vm1591, %v4817, 0
      %v4839 = vsel %vm1591, %v4818, 0
      %v4842 = vsel %vm1591, %v4819, 0
      %v4845 = vsel %vm1616, %v1549, 0
      %4847 = vmatpush.bf16.msra.mxu0 0
      %4848 = vmatpush.bf16.msra.mxu0 0
      %4849 = vmatpush.bf16.msra.mxu0 0
      %4850 = vmatpush.bf16.msra.mxu0 0
      %4851 = vmatpush.bf16.msra.mxu0 0
      %4852 = vmatpush.bf16.msra.mxu0 0
      %4853 = vmatpush.bf16.msra.mxu0 0
      %4854 = vmatpush.bf16.msra.mxu0 %v4845
      %4855 = vmatmul.bf16.gmra.mxu0 %v4821
      %v4856 = vpop.f32.mrf.mxu0
      %v4857 = vadd.f32 0.0, %v4856
      %v4858 = vpop.f32.mrf.mxu0
      %v4859 = vadd.f32 0.0, %v4858
      %4860 = vmatmul.bf16.gmra.mxu0 %v4824
      %v4861 = vpop.f32.mrf.mxu0
      %v4862 = vadd.f32 0.0, %v4861
      %v4863 = vpop.f32.mrf.mxu0
      %v4864 = vadd.f32 0.0, %v4863
      %4865 = vmatmul.bf16.gmra.mxu0 %v4827
      %v4866 = vpop.f32.mrf.mxu0
      %v4867 = vadd.f32 0.0, %v4866
      %v4868 = vpop.f32.mrf.mxu0
      %v4869 = vadd.f32 0.0, %v4868
      %4870 = vmatmul.bf16.gmra.mxu0 %v4830
      %v4871 = vpop.f32.mrf.mxu0
      %v4872 = vadd.f32 0.0, %v4871
      %v4873 = vpop.f32.mrf.mxu0
      %v4874 = vadd.f32 0.0, %v4873
      %4875 = vmatmul.bf16.gmra.mxu0 %v4833
      %v4876 = vpop.f32.mrf.mxu0
      %v4877 = vadd.f32 0.0, %v4876
      %v4878 = vpop.f32.mrf.mxu0
      %v4879 = vadd.f32 0.0, %v4878
      %4880 = vmatmul.bf16.gmra.mxu0 %v4836
      %v4881 = vpop.f32.mrf.mxu0
      %v4882 = vadd.f32 0.0, %v4881
      %v4883 = vpop.f32.mrf.mxu0
      %v4884 = vadd.f32 0.0, %v4883
      %4885 = vmatmul.bf16.gmra.mxu0 %v4839
      %v4886 = vpop.f32.mrf.mxu0
      %v4887 = vadd.f32 0.0, %v4886
      %v4888 = vpop.f32.mrf.mxu0
      %v4889 = vadd.f32 0.0, %v4888
      %4890 = vmatmul.bf16.gmra.mxu0 %v4842
      %v4891 = vpop.f32.mrf.mxu0
      %v4892 = vadd.f32 0.0, %v4891
      %v4893 = vpop.f32.mrf.mxu0
      %v4894 = vadd.f32 0.0, %v4893
      %4895 = vdwg.mxu0
      %v4896 = vadd.f32 %v4478, %v4857
      %v4897 = vadd.f32 %v4479, %v4859
      %v4898 = vadd.f32 %v4480, %v4862
      %v4899 = vadd.f32 %v4481, %v4864
      %v4900 = vadd.f32 %v4482, %v4867
      %v4901 = vadd.f32 %v4483, %v4869
      %v4902 = vadd.f32 %v4484, %v4872
      %v4903 = vadd.f32 %v4485, %v4874
      %v4904 = vadd.f32 %v4486, %v4877
      %v4905 = vadd.f32 %v4487, %v4879
      %v4906 = vadd.f32 %v4488, %v4882
      %v4907 = vadd.f32 %v4489, %v4884
      %v4908 = vadd.f32 %v4490, %v4887
      %v4909 = vadd.f32 %v4491, %v4889
      %v4910 = vadd.f32 %v4492, %v4892
      %v4911 = vadd.f32 %v4493, %v4894
      %v4912 = vadd.f32 %v753, %v4896
      %v4913 = vadd.f32 %v754, %v4897
      %v4914 = vadd.f32 %v755, %v4898
      %v4915 = vadd.f32 %v756, %v4899
      %v4916 = vadd.f32 %v757, %v4900
      %v4917 = vadd.f32 %v758, %v4901
      %v4918 = vadd.f32 %v759, %v4902
      %v4919 = vadd.f32 %v760, %v4903
      %v4920 = vadd.f32 %v761, %v4904
      %v4921 = vadd.f32 %v762, %v4905
      %v4922 = vadd.f32 %v763, %v4906
      %v4923 = vadd.f32 %v764, %v4907
      %v4924 = vadd.f32 %v765, %v4908
      %v4925 = vadd.f32 %v766, %v4909
      %v4926 = vadd.f32 %v767, %v4910
      %v4927 = vadd.f32 %v768, %v4911
      %v4928 = vld [vmem:[%s686] sm:$0x1]
      %v4930 = vperm.slane %v4928, 0
      %v4932 = vadd.f32 %v4912, %v4930
      %v4933 = vadd.f32 %v4913, %v4930
      %v4934 = vadd.f32 %v4914, %v4930
      %v4935 = vadd.f32 %v4915, %v4930
      %v4936 = vadd.f32 %v4916, %v4930
      %v4937 = vadd.f32 %v4917, %v4930
      %v4938 = vadd.f32 %v4918, %v4930
      %v4939 = vadd.f32 %v4919, %v4930
      %v4940 = vadd.f32 %v4920, %v4930
      %v4941 = vadd.f32 %v4921, %v4930
      %v4942 = vadd.f32 %v4922, %v4930
      %v4943 = vadd.f32 %v4923, %v4930
      %v4944 = vadd.f32 %v4924, %v4930
      %v4945 = vadd.f32 %v4925, %v4930
      %v4946 = vadd.f32 %v4926, %v4930
      %v4947 = vadd.f32 %v4927, %v4930
      %v4948 = vld [vmem:[%s689] sm:$0x1]
      %v4949 = vld [vmem:[%s692] sm:$0x1]
      %v4950 = vsel %vm822, %v4932, 0.0
      %4951 = vadd.xlane.f32.xlu0 %v4950
      %v4952 = vpop.xlane.xlu0 %4951
      %v4953 = vsel %vm822, %v4933, 0.0
      %4954 = vadd.xlane.f32.xlu0 %v4953
      %v4955 = vpop.xlane.xlu0 %4954
      %v4956 = vsel %vm822, %v4934, 0.0
      %4957 = vadd.xlane.f32.xlu0 %v4956
      %v4958 = vpop.xlane.xlu0 %4957
      %v4959 = vsel %vm822, %v4935, 0.0
      %4960 = vadd.xlane.f32.xlu0 %v4959
      %v4961 = vpop.xlane.xlu0 %4960
      %v4962 = vsel %vm822, %v4936, 0.0
      %4963 = vadd.xlane.f32.xlu0 %v4962
      %v4964 = vpop.xlane.xlu0 %4963
      %v4965 = vsel %vm822, %v4937, 0.0
      %4966 = vadd.xlane.f32.xlu0 %v4965
      %v4967 = vpop.xlane.xlu0 %4966
      %v4968 = vsel %vm822, %v4938, 0.0
      %4969 = vadd.xlane.f32.xlu0 %v4968
      %v4970 = vpop.xlane.xlu0 %4969
      %v4971 = vsel %vm822, %v4939, 0.0
      %4972 = vadd.xlane.f32.xlu0 %v4971
      %v4973 = vpop.xlane.xlu0 %4972
      %v4974 = vsel %vm822, %v4940, 0.0
      %4975 = vadd.xlane.f32.xlu0 %v4974
      %v4976 = vpop.xlane.xlu0 %4975
      %v4977 = vsel %vm822, %v4941, 0.0
      %4978 = vadd.xlane.f32.xlu0 %v4977
      %v4979 = vpop.xlane.xlu0 %4978
      %v4980 = vsel %vm822, %v4942, 0.0
      %4981 = vadd.xlane.f32.xlu0 %v4980
      %v4982 = vpop.xlane.xlu0 %4981
      %v4983 = vsel %vm822, %v4943, 0.0
      %4984 = vadd.xlane.f32.xlu0 %v4983
      %v4985 = vpop.xlane.xlu0 %4984
      %v4986 = vsel %vm822, %v4944, 0.0
      %4987 = vadd.xlane.f32.xlu0 %v4986
      %v4988 = vpop.xlane.xlu0 %4987
      %v4989 = vsel %vm822, %v4945, 0.0
      %4990 = vadd.xlane.f32.xlu0 %v4989
      %v4991 = vpop.xlane.xlu0 %4990
      %v4992 = vsel %vm822, %v4946, 0.0
      %4993 = vadd.xlane.f32.xlu0 %v4992
      %v4994 = vpop.xlane.xlu0 %4993
      %v4995 = vsel %vm822, %v4947, 0.0
      %4996 = vadd.xlane.f32.xlu0 %v4995
      %v4997 = vpop.xlane.xlu0 %4996
      %v4998 = vmul.f32 %v4952, %v877
      %v4999 = vmul.f32 %v4955, %v877
      %v5000 = vmul.f32 %v4958, %v877
      %v5001 = vmul.f32 %v4961, %v877
      %v5002 = vmul.f32 %v4964, %v877
      %v5003 = vmul.f32 %v4967, %v877
      %v5004 = vmul.f32 %v4970, %v877
      %v5005 = vmul.f32 %v4973, %v877
      %v5006 = vmul.f32 %v4976, %v877
      %v5007 = vmul.f32 %v4979, %v877
      %v5008 = vmul.f32 %v4982, %v877
      %v5009 = vmul.f32 %v4985, %v877
      %v5010 = vmul.f32 %v4988, %v877
      %v5011 = vmul.f32 %v4991, %v877
      %v5012 = vmul.f32 %v4994, %v877
      %v5013 = vmul.f32 %v4997, %v877
      %v5014 = vsub.f32 %v4932, %v4998
      %v5015 = vsub.f32 %v4933, %v4999
      %v5016 = vsub.f32 %v4934, %v5000
      %v5017 = vsub.f32 %v4935, %v5001
      %v5018 = vsub.f32 %v4936, %v5002
      %v5019 = vsub.f32 %v4937, %v5003
      %v5020 = vsub.f32 %v4938, %v5004
      %v5021 = vsub.f32 %v4939, %v5005
      %v5022 = vsub.f32 %v4940, %v5006
      %v5023 = vsub.f32 %v4941, %v5007
      %v5024 = vsub.f32 %v4942, %v5008
      %v5025 = vsub.f32 %v4943, %v5009
      %v5026 = vsub.f32 %v4944, %v5010
      %v5027 = vsub.f32 %v4945, %v5011
      %v5028 = vsub.f32 %v4946, %v5012
      %v5029 = vsub.f32 %v4947, %v5013
      %v5030 = vmul.f32 %v5014, %v5014
      %v5031 = vmul.f32 %v5015, %v5015
      %v5032 = vmul.f32 %v5016, %v5016
      %v5033 = vmul.f32 %v5017, %v5017
      %v5034 = vmul.f32 %v5018, %v5018
      %v5035 = vmul.f32 %v5019, %v5019
      %v5036 = vmul.f32 %v5020, %v5020
      %v5037 = vmul.f32 %v5021, %v5021
      %v5038 = vmul.f32 %v5022, %v5022
      %v5039 = vmul.f32 %v5023, %v5023
      %v5040 = vmul.f32 %v5024, %v5024
      %v5041 = vmul.f32 %v5025, %v5025
      %v5042 = vmul.f32 %v5026, %v5026
      %v5043 = vmul.f32 %v5027, %v5027
      %v5044 = vmul.f32 %v5028, %v5028
      %v5045 = vmul.f32 %v5029, %v5029
      %v5046 = vsel %vm822, %v5030, 0.0
      %5047 = vadd.xlane.f32.xlu0 %v5046
      %v5048 = vpop.xlane.xlu0 %5047
      %v5049 = vsel %vm822, %v5031, 0.0
      %5050 = vadd.xlane.f32.xlu0 %v5049
      %v5051 = vpop.xlane.xlu0 %5050
      %v5052 = vsel %vm822, %v5032, 0.0
      %5053 = vadd.xlane.f32.xlu0 %v5052
      %v5054 = vpop.xlane.xlu0 %5053
      %v5055 = vsel %vm822, %v5033, 0.0
      %5056 = vadd.xlane.f32.xlu0 %v5055
      %v5057 = vpop.xlane.xlu0 %5056
      %v5058 = vsel %vm822, %v5034, 0.0
      %5059 = vadd.xlane.f32.xlu0 %v5058
      %v5060 = vpop.xlane.xlu0 %5059
      %v5061 = vsel %vm822, %v5035, 0.0
      %5062 = vadd.xlane.f32.xlu0 %v5061
      %v5063 = vpop.xlane.xlu0 %5062
      %v5064 = vsel %vm822, %v5036, 0.0
      %5065 = vadd.xlane.f32.xlu0 %v5064
      %v5066 = vpop.xlane.xlu0 %5065
      %v5067 = vsel %vm822, %v5037, 0.0
      %5068 = vadd.xlane.f32.xlu0 %v5067
      %v5069 = vpop.xlane.xlu0 %5068
      %v5070 = vsel %vm822, %v5038, 0.0
      %5071 = vadd.xlane.f32.xlu0 %v5070
      %v5072 = vpop.xlane.xlu0 %5071
      %v5073 = vsel %vm822, %v5039, 0.0
      %5074 = vadd.xlane.f32.xlu0 %v5073
      %v5075 = vpop.xlane.xlu0 %5074
      %v5076 = vsel %vm822, %v5040, 0.0
      %5077 = vadd.xlane.f32.xlu0 %v5076
      %v5078 = vpop.xlane.xlu0 %5077
      %v5079 = vsel %vm822, %v5041, 0.0
      %5080 = vadd.xlane.f32.xlu0 %v5079
      %v5081 = vpop.xlane.xlu0 %5080
      %v5082 = vsel %vm822, %v5042, 0.0
      %5083 = vadd.xlane.f32.xlu0 %v5082
      %v5084 = vpop.xlane.xlu0 %5083
      %v5085 = vsel %vm822, %v5043, 0.0
      %5086 = vadd.xlane.f32.xlu0 %v5085
      %v5087 = vpop.xlane.xlu0 %5086
      %v5088 = vsel %vm822, %v5044, 0.0
      %5089 = vadd.xlane.f32.xlu0 %v5088
      %v5090 = vpop.xlane.xlu0 %5089
      %v5091 = vsel %vm822, %v5045, 0.0
      %5092 = vadd.xlane.f32.xlu0 %v5091
      %v5093 = vpop.xlane.xlu0 %5092
      %v5094 = vmul.f32 %v5048, %v877
      %v5095 = vmul.f32 %v5051, %v877
      %v5096 = vmul.f32 %v5054, %v877
      %v5097 = vmul.f32 %v5057, %v877
      %v5098 = vmul.f32 %v5060, %v877
      %v5099 = vmul.f32 %v5063, %v877
      %v5100 = vmul.f32 %v5066, %v877
      %v5101 = vmul.f32 %v5069, %v877
      %v5102 = vmul.f32 %v5072, %v877
      %v5103 = vmul.f32 %v5075, %v877
      %v5104 = vmul.f32 %v5078, %v877
      %v5105 = vmul.f32 %v5081, %v877
      %v5106 = vmul.f32 %v5084, %v877
      %v5107 = vmul.f32 %v5087, %v877
      %v5108 = vmul.f32 %v5090, %v877
      %v5109 = vmul.f32 %v5093, %v877
      %v5110 = vadd.f32 %v5094, 1e-05
      %v5111 = vadd.f32 %v5095, 1e-05
      %v5112 = vadd.f32 %v5096, 1e-05
      %v5113 = vadd.f32 %v5097, 1e-05
      %v5114 = vadd.f32 %v5098, 1e-05
      %v5115 = vadd.f32 %v5099, 1e-05
      %v5116 = vadd.f32 %v5100, 1e-05
      %v5117 = vadd.f32 %v5101, 1e-05
      %v5118 = vadd.f32 %v5102, 1e-05
      %v5119 = vadd.f32 %v5103, 1e-05
      %v5120 = vadd.f32 %v5104, 1e-05
      %v5121 = vadd.f32 %v5105, 1e-05
      %v5122 = vadd.f32 %v5106, 1e-05
      %v5123 = vadd.f32 %v5107, 1e-05
      %v5124 = vadd.f32 %v5108, 1e-05
      %v5125 = vadd.f32 %v5109, 1e-05
      %v5126 = vrsqrt.pop %v5110
      %v5127 = vmul.f32 %v5126, %v5110
      %v5128 = vmul.f32 %v5127, %v5126
      %v5129 = vmul.f32 0.5, %v5128
      %v5130 = vsub.f32 1.5, %v5129
      %v5131 = vmul.f32 %v5126, %v5130
      %vm5132 = vweird.f32 %v5110
      %vm5133 = vweird.f32 %v5126
      %vm5134 = vmor %vm5132, %vm5133
      %v5135 = vsel %vm5134, %v5126, %v5131
      %v5136 = vrsqrt.pop %v5111
      %v5137 = vmul.f32 %v5136, %v5111
      %v5138 = vmul.f32 %v5137, %v5136
      %v5139 = vmul.f32 0.5, %v5138
      %v5140 = vsub.f32 1.5, %v5139
      %v5141 = vmul.f32 %v5136, %v5140
      %vm5142 = vweird.f32 %v5111
      %vm5143 = vweird.f32 %v5136
      %vm5144 = vmor %vm5142, %vm5143
      %v5145 = vsel %vm5144, %v5136, %v5141
      %v5146 = vrsqrt.pop %v5112
      %v5147 = vmul.f32 %v5146, %v5112
      %v5148 = vmul.f32 %v5147, %v5146
      %v5149 = vmul.f32 0.5, %v5148
      %v5150 = vsub.f32 1.5, %v5149
      %v5151 = vmul.f32 %v5146, %v5150
      %vm5152 = vweird.f32 %v5112
      %vm5153 = vweird.f32 %v5146
      %vm5154 = vmor %vm5152, %vm5153
      %v5155 = vsel %vm5154, %v5146, %v5151
      %v5156 = vrsqrt.pop %v5113
      %v5157 = vmul.f32 %v5156, %v5113
      %v5158 = vmul.f32 %v5157, %v5156
      %v5159 = vmul.f32 0.5, %v5158
      %v5160 = vsub.f32 1.5, %v5159
      %v5161 = vmul.f32 %v5156, %v5160
      %vm5162 = vweird.f32 %v5113
      %vm5163 = vweird.f32 %v5156
      %vm5164 = vmor %vm5162, %vm5163
      %v5165 = vsel %vm5164, %v5156, %v5161
      %v5166 = vrsqrt.pop %v5114
      %v5167 = vmul.f32 %v5166, %v5114
      %v5168 = vmul.f32 %v5167, %v5166
      %v5169 = vmul.f32 0.5, %v5168
      %v5170 = vsub.f32 1.5, %v5169
      %v5171 = vmul.f32 %v5166, %v5170
      %vm5172 = vweird.f32 %v5114
      %vm5173 = vweird.f32 %v5166
      %vm5174 = vmor %vm5172, %vm5173
      %v5175 = vsel %vm5174, %v5166, %v5171
      %v5176 = vrsqrt.pop %v5115
      %v5177 = vmul.f32 %v5176, %v5115
      %v5178 = vmul.f32 %v5177, %v5176
      %v5179 = vmul.f32 0.5, %v5178
      %v5180 = vsub.f32 1.5, %v5179
      %v5181 = vmul.f32 %v5176, %v5180
      %vm5182 = vweird.f32 %v5115
      %vm5183 = vweird.f32 %v5176
      %vm5184 = vmor %vm5182, %vm5183
      %v5185 = vsel %vm5184, %v5176, %v5181
      %v5186 = vrsqrt.pop %v5116
      %v5187 = vmul.f32 %v5186, %v5116
      %v5188 = vmul.f32 %v5187, %v5186
      %v5189 = vmul.f32 0.5, %v5188
      %v5190 = vsub.f32 1.5, %v5189
      %v5191 = vmul.f32 %v5186, %v5190
      %vm5192 = vweird.f32 %v5116
      %vm5193 = vweird.f32 %v5186
      %vm5194 = vmor %vm5192, %vm5193
      %v5195 = vsel %vm5194, %v5186, %v5191
      %v5196 = vrsqrt.pop %v5117
      %v5197 = vmul.f32 %v5196, %v5117
      %v5198 = vmul.f32 %v5197, %v5196
      %v5199 = vmul.f32 0.5, %v5198
      %v5200 = vsub.f32 1.5, %v5199
      %v5201 = vmul.f32 %v5196, %v5200
      %vm5202 = vweird.f32 %v5117
      %vm5203 = vweird.f32 %v5196
      %vm5204 = vmor %vm5202, %vm5203
      %v5205 = vsel %vm5204, %v5196, %v5201
      %v5206 = vrsqrt.pop %v5118
      %v5207 = vmul.f32 %v5206, %v5118
      %v5208 = vmul.f32 %v5207, %v5206
      %v5209 = vmul.f32 0.5, %v5208
      %v5210 = vsub.f32 1.5, %v5209
      %v5211 = vmul.f32 %v5206, %v5210
      %vm5212 = vweird.f32 %v5118
      %vm5213 = vweird.f32 %v5206
      %vm5214 = vmor %vm5212, %vm5213
      %v5215 = vsel %vm5214, %v5206, %v5211
      %v5216 = vrsqrt.pop %v5119
      %v5217 = vmul.f32 %v5216, %v5119
      %v5218 = vmul.f32 %v5217, %v5216
      %v5219 = vmul.f32 0.5, %v5218
      %v5220 = vsub.f32 1.5, %v5219
      %v5221 = vmul.f32 %v5216, %v5220
      %vm5222 = vweird.f32 %v5119
      %vm5223 = vweird.f32 %v5216
      %vm5224 = vmor %vm5222, %vm5223
      %v5225 = vsel %vm5224, %v5216, %v5221
      %v5226 = vrsqrt.pop %v5120
      %v5227 = vmul.f32 %v5226, %v5120
      %v5228 = vmul.f32 %v5227, %v5226
      %v5229 = vmul.f32 0.5, %v5228
      %v5230 = vsub.f32 1.5, %v5229
      %v5231 = vmul.f32 %v5226, %v5230
      %vm5232 = vweird.f32 %v5120
      %vm5233 = vweird.f32 %v5226
      %vm5234 = vmor %vm5232, %vm5233
      %v5235 = vsel %vm5234, %v5226, %v5231
      %v5236 = vrsqrt.pop %v5121
      %v5237 = vmul.f32 %v5236, %v5121
      %v5238 = vmul.f32 %v5237, %v5236
      %v5239 = vmul.f32 0.5, %v5238
      %v5240 = vsub.f32 1.5, %v5239
      %v5241 = vmul.f32 %v5236, %v5240
      %vm5242 = vweird.f32 %v5121
      %vm5243 = vweird.f32 %v5236
      %vm5244 = vmor %vm5242, %vm5243
      %v5245 = vsel %vm5244, %v5236, %v5241
      %v5246 = vrsqrt.pop %v5122
      %v5247 = vmul.f32 %v5246, %v5122
      %v5248 = vmul.f32 %v5247, %v5246
      %v5249 = vmul.f32 0.5, %v5248
      %v5250 = vsub.f32 1.5, %v5249
      %v5251 = vmul.f32 %v5246, %v5250
      %vm5252 = vweird.f32 %v5122
      %vm5253 = vweird.f32 %v5246
      %vm5254 = vmor %vm5252, %vm5253
      %v5255 = vsel %vm5254, %v5246, %v5251
      %v5256 = vrsqrt.pop %v5123
      %v5257 = vmul.f32 %v5256, %v5123
      %v5258 = vmul.f32 %v5257, %v5256
      %v5259 = vmul.f32 0.5, %v5258
      %v5260 = vsub.f32 1.5, %v5259
      %v5261 = vmul.f32 %v5256, %v5260
      %vm5262 = vweird.f32 %v5123
      %vm5263 = vweird.f32 %v5256
      %vm5264 = vmor %vm5262, %vm5263
      %v5265 = vsel %vm5264, %v5256, %v5261
      %v5266 = vrsqrt.pop %v5124
      %v5267 = vmul.f32 %v5266, %v5124
      %v5268 = vmul.f32 %v5267, %v5266
      %v5269 = vmul.f32 0.5, %v5268
      %v5270 = vsub.f32 1.5, %v5269
      %v5271 = vmul.f32 %v5266, %v5270
      %vm5272 = vweird.f32 %v5124
      %vm5273 = vweird.f32 %v5266
      %vm5274 = vmor %vm5272, %vm5273
      %v5275 = vsel %vm5274, %v5266, %v5271
      %v5276 = vrsqrt.pop %v5125
      %v5277 = vmul.f32 %v5276, %v5125
      %v5278 = vmul.f32 %v5277, %v5276
      %v5279 = vmul.f32 0.5, %v5278
      %v5280 = vsub.f32 1.5, %v5279
      %v5281 = vmul.f32 %v5276, %v5280
      %vm5282 = vweird.f32 %v5125
      %vm5283 = vweird.f32 %v5276
      %vm5284 = vmor %vm5282, %vm5283
      %v5285 = vsel %vm5284, %v5276, %v5281
      %v5286 = vmul.f32 %v5014, %v5135
      %v5287 = vmul.f32 %v5015, %v5145
      %v5288 = vmul.f32 %v5016, %v5155
      %v5289 = vmul.f32 %v5017, %v5165
      %v5290 = vmul.f32 %v5018, %v5175
      %v5291 = vmul.f32 %v5019, %v5185
      %v5292 = vmul.f32 %v5020, %v5195
      %v5293 = vmul.f32 %v5021, %v5205
      %v5294 = vmul.f32 %v5022, %v5215
      %v5295 = vmul.f32 %v5023, %v5225
      %v5296 = vmul.f32 %v5024, %v5235
      %v5297 = vmul.f32 %v5025, %v5245
      %v5298 = vmul.f32 %v5026, %v5255
      %v5299 = vmul.f32 %v5027, %v5265
      %v5300 = vmul.f32 %v5028, %v5275
      %v5301 = vmul.f32 %v5029, %v5285
      %v5303 = vperm.slane %v4948, 0
      %v5305 = vmul.f32 %v5286, %v5303
      %v5306 = vmul.f32 %v5287, %v5303
      %v5307 = vmul.f32 %v5288, %v5303
      %v5308 = vmul.f32 %v5289, %v5303
      %v5309 = vmul.f32 %v5290, %v5303
      %v5310 = vmul.f32 %v5291, %v5303
      %v5311 = vmul.f32 %v5292, %v5303
      %v5312 = vmul.f32 %v5293, %v5303
      %v5313 = vmul.f32 %v5294, %v5303
      %v5314 = vmul.f32 %v5295, %v5303
      %v5315 = vmul.f32 %v5296, %v5303
      %v5316 = vmul.f32 %v5297, %v5303
      %v5317 = vmul.f32 %v5298, %v5303
      %v5318 = vmul.f32 %v5299, %v5303
      %v5319 = vmul.f32 %v5300, %v5303
      %v5320 = vmul.f32 %v5301, %v5303
      %v5322 = vperm.slane %v4949, 0
      %v5324 = vadd.f32 %v5305, %v5322
      %v5325 = vadd.f32 %v5306, %v5322
      %v5326 = vadd.f32 %v5307, %v5322
      %v5327 = vadd.f32 %v5308, %v5322
      %v5328 = vadd.f32 %v5309, %v5322
      %v5329 = vadd.f32 %v5310, %v5322
      %v5330 = vadd.f32 %v5311, %v5322
      %v5331 = vadd.f32 %v5312, %v5322
      %v5332 = vadd.f32 %v5313, %v5322
      %v5333 = vadd.f32 %v5314, %v5322
      %v5334 = vadd.f32 %v5315, %v5322
      %v5335 = vadd.f32 %v5316, %v5322
      %v5336 = vadd.f32 %v5317, %v5322
      %v5337 = vadd.f32 %v5318, %v5322
      %v5338 = vadd.f32 %v5319, %v5322
      %v5339 = vadd.f32 %v5320, %v5322
      %v5340 = vpack.c.bf16 %v5325, %v5324
      %v5341 = vpack.c.bf16 %v5327, %v5326
      %v5342 = vpack.c.bf16 %v5329, %v5328
      %v5343 = vpack.c.bf16 %v5331, %v5330
      %v5344 = vpack.c.bf16 %v5333, %v5332
      %v5345 = vpack.c.bf16 %v5335, %v5334
      %v5346 = vpack.c.bf16 %v5337, %v5336
      %v5347 = vpack.c.bf16 %v5339, %v5338
      %v5348 = vld [vmem:[%s697] sm:$0xff]
      %v5349 = vld [vmem:[%s697 + $0x8] sm:$0xff]
      %v5350 = vld [vmem:[%s697 + $0x10] sm:$0xff]
      %v5351 = vld [vmem:[%s697 + $0x18] sm:$0xff]
      %v5352 = vld [vmem:[%s697 + $0x20] sm:$0xff]
      %v5353 = vld [vmem:[%s697 + $0x28] sm:$0xff]
      %v5354 = vld [vmem:[%s697 + $0x30] sm:$0xff]
      %v5355 = vld [vmem:[%s697 + $0x38] sm:$0xff]
      %v5356 = vld [vmem:[%s701] sm:$0x3]
      %v5358 = vperm.slane %v5356, 0
      %v5359 = vperm.slane %v5356, 1
      %v5370 = vunpack.c.l.b16 %v5348
      %v5371 = vunpack.c.h.b16 %v5348
      %v5372 = vunpack.c.l.b16 %v5349
      %v5373 = vunpack.c.h.b16 %v5349
      %v5374 = vunpack.c.l.b16 %v5350
      %v5375 = vunpack.c.h.b16 %v5350
      %v5376 = vunpack.c.l.b16 %v5351
      %v5377 = vunpack.c.h.b16 %v5351
      %v5378 = vunpack.c.l.b16 %v5352
      %v5379 = vunpack.c.h.b16 %v5352
      %v5380 = vunpack.c.l.b16 %v5353
      %v5381 = vunpack.c.h.b16 %v5353
      %v5382 = vunpack.c.l.b16 %v5354
      %v5383 = vunpack.c.h.b16 %v5354
      %v5384 = vunpack.c.l.b16 %v5355
      %v5385 = vunpack.c.h.b16 %v5355
      %v5386 = vpack.c.b16 %v5372, %v5370
      %v5387 = vpack.c.b16 %v5373, %v5371
      %v5388 = vpack.c.b16 %v5376, %v5374
      %v5389 = vpack.c.b16 %v5377, %v5375
      %v5390 = vpack.c.b16 %v5380, %v5378
      %v5391 = vpack.c.b16 %v5381, %v5379
      %v5392 = vpack.c.b16 %v5384, %v5382
      %v5393 = vpack.c.b16 %v5385, %v5383
      %v5403 = vsel %vm822, %v5340, 0
      %v5406 = vsel %vm822, %v5341, 0
      %v5409 = vsel %vm822, %v5342, 0
      %v5412 = vsel %vm822, %v5343, 0
      %v5415 = vsel %vm822, %v5344, 0
      %v5418 = vsel %vm822, %v5345, 0
      %v5421 = vsel %vm822, %v5346, 0
      %v5424 = vsel %vm822, %v5347, 0
      %5426 = vmatpush.bf16.msra.mxu0 0
      %5427 = vmatpush.bf16.msra.mxu0 0
      %5428 = vmatpush.bf16.msra.mxu0 0
      %5429 = vmatpush.bf16.msra.mxu0 0
      %5430 = vmatpush.bf16.msra.mxu0 %v5392
      %5431 = vmatpush.bf16.msra.mxu0 %v5390
      %5432 = vmatpush.bf16.msra.mxu0 %v5388
      %5433 = vmatpush.bf16.msra.mxu0 %v5386
      %5434 = vmatmul.bf16.gmra.mxu0 %v5403
      %v5435 = vpop.f32.mrf.mxu0
      %v5436 = vadd.f32 %v5358, %v5435
      %v5437 = vpop.f32.mrf.mxu0
      %v5438 = vadd.f32 %v5358, %v5437
      %5439 = vmatmul.bf16.gmra.mxu0 %v5406
      %v5440 = vpop.f32.mrf.mxu0
      %v5441 = vadd.f32 %v5358, %v5440
      %v5442 = vpop.f32.mrf.mxu0
      %v5443 = vadd.f32 %v5358, %v5442
      %5444 = vmatmul.bf16.gmra.mxu0 %v5409
      %v5445 = vpop.f32.mrf.mxu0
      %v5446 = vadd.f32 %v5358, %v5445
      %v5447 = vpop.f32.mrf.mxu0
      %v5448 = vadd.f32 %v5358, %v5447
      %5449 = vmatmul.bf16.gmra.mxu0 %v5412
      %v5450 = vpop.f32.mrf.mxu0
      %v5451 = vadd.f32 %v5358, %v5450
      %v5452 = vpop.f32.mrf.mxu0
      %v5453 = vadd.f32 %v5358, %v5452
      %5454 = vmatmul.bf16.gmra.mxu0 %v5415
      %v5455 = vpop.f32.mrf.mxu0
      %v5456 = vadd.f32 %v5358, %v5455
      %v5457 = vpop.f32.mrf.mxu0
      %v5458 = vadd.f32 %v5358, %v5457
      %5459 = vmatmul.bf16.gmra.mxu0 %v5418
      %v5460 = vpop.f32.mrf.mxu0
      %v5461 = vadd.f32 %v5358, %v5460
      %v5462 = vpop.f32.mrf.mxu0
      %v5463 = vadd.f32 %v5358, %v5462
      %5464 = vmatmul.bf16.gmra.mxu0 %v5421
      %v5465 = vpop.f32.mrf.mxu0
      %v5466 = vadd.f32 %v5358, %v5465
      %v5467 = vpop.f32.mrf.mxu0
      %v5468 = vadd.f32 %v5358, %v5467
      %5469 = vmatmul.bf16.gmra.mxu0 %v5424
      %v5470 = vpop.f32.mrf.mxu0
      %v5471 = vadd.f32 %v5358, %v5470
      %v5472 = vpop.f32.mrf.mxu0
      %v5473 = vadd.f32 %v5358, %v5472
      %5474 = vdwg.mxu0
      %5475 = vmatpush.bf16.msra.mxu0 0
      %5476 = vmatpush.bf16.msra.mxu0 0
      %5477 = vmatpush.bf16.msra.mxu0 0
      %5478 = vmatpush.bf16.msra.mxu0 0
      %5479 = vmatpush.bf16.msra.mxu0 %v5393
      %5480 = vmatpush.bf16.msra.mxu0 %v5391
      %5481 = vmatpush.bf16.msra.mxu0 %v5389
      %5482 = vmatpush.bf16.msra.mxu0 %v5387
      %5483 = vmatmul.bf16.gmra.mxu0 %v5403
      %v5484 = vpop.f32.mrf.mxu0
      %v5485 = vadd.f32 %v5359, %v5484
      %v5486 = vpop.f32.mrf.mxu0
      %v5487 = vadd.f32 %v5359, %v5486
      %5488 = vmatmul.bf16.gmra.mxu0 %v5406
      %v5489 = vpop.f32.mrf.mxu0
      %v5490 = vadd.f32 %v5359, %v5489
      %v5491 = vpop.f32.mrf.mxu0
      %v5492 = vadd.f32 %v5359, %v5491
      %5493 = vmatmul.bf16.gmra.mxu0 %v5409
      %v5494 = vpop.f32.mrf.mxu0
      %v5495 = vadd.f32 %v5359, %v5494
      %v5496 = vpop.f32.mrf.mxu0
      %v5497 = vadd.f32 %v5359, %v5496
      %5498 = vmatmul.bf16.gmra.mxu0 %v5412
      %v5499 = vpop.f32.mrf.mxu0
      %v5500 = vadd.f32 %v5359, %v5499
      %v5501 = vpop.f32.mrf.mxu0
      %v5502 = vadd.f32 %v5359, %v5501
      %5503 = vmatmul.bf16.gmra.mxu0 %v5415
      %v5504 = vpop.f32.mrf.mxu0
      %v5505 = vadd.f32 %v5359, %v5504
      %v5506 = vpop.f32.mrf.mxu0
      %v5507 = vadd.f32 %v5359, %v5506
      %5508 = vmatmul.bf16.gmra.mxu0 %v5418
      %v5509 = vpop.f32.mrf.mxu0
      %v5510 = vadd.f32 %v5359, %v5509
      %v5511 = vpop.f32.mrf.mxu0
      %v5512 = vadd.f32 %v5359, %v5511
      %5513 = vmatmul.bf16.gmra.mxu0 %v5421
      %v5514 = vpop.f32.mrf.mxu0
      %v5515 = vadd.f32 %v5359, %v5514
      %v5516 = vpop.f32.mrf.mxu0
      %v5517 = vadd.f32 %v5359, %v5516
      %5518 = vmatmul.bf16.gmra.mxu0 %v5424
      %v5519 = vpop.f32.mrf.mxu0
      %v5520 = vadd.f32 %v5359, %v5519
      %v5521 = vpop.f32.mrf.mxu0
      %v5522 = vadd.f32 %v5359, %v5521
      %5523 = vdwg.mxu0
      %v5524 = vmax.f32 %v5436, 0.0
      %v5525 = vmax.f32 %v5485, 0.0
      %v5526 = vmax.f32 %v5438, 0.0
      %v5527 = vmax.f32 %v5487, 0.0
      %v5528 = vmax.f32 %v5441, 0.0
      %v5529 = vmax.f32 %v5490, 0.0
      %v5530 = vmax.f32 %v5443, 0.0
      %v5531 = vmax.f32 %v5492, 0.0
      %v5532 = vmax.f32 %v5446, 0.0
      %v5533 = vmax.f32 %v5495, 0.0
      %v5534 = vmax.f32 %v5448, 0.0
      %v5535 = vmax.f32 %v5497, 0.0
      %v5536 = vmax.f32 %v5451, 0.0
      %v5537 = vmax.f32 %v5500, 0.0
      %v5538 = vmax.f32 %v5453, 0.0
      %v5539 = vmax.f32 %v5502, 0.0
      %v5540 = vmax.f32 %v5456, 0.0
      %v5541 = vmax.f32 %v5505, 0.0
      %v5542 = vmax.f32 %v5458, 0.0
      %v5543 = vmax.f32 %v5507, 0.0
      %v5544 = vmax.f32 %v5461, 0.0
      %v5545 = vmax.f32 %v5510, 0.0
      %v5546 = vmax.f32 %v5463, 0.0
      %v5547 = vmax.f32 %v5512, 0.0
      %v5548 = vmax.f32 %v5466, 0.0
      %v5549 = vmax.f32 %v5515, 0.0
      %v5550 = vmax.f32 %v5468, 0.0
      %v5551 = vmax.f32 %v5517, 0.0
      %v5552 = vmax.f32 %v5471, 0.0
      %v5553 = vmax.f32 %v5520, 0.0
      %v5554 = vmax.f32 %v5473, 0.0
      %v5555 = vmax.f32 %v5522, 0.0
      %v5556 = vpack.c.bf16 %v5526, %v5524
      %v5557 = vpack.c.bf16 %v5527, %v5525
      %v5558 = vpack.c.bf16 %v5530, %v5528
      %v5559 = vpack.c.bf16 %v5531, %v5529
      %v5560 = vpack.c.bf16 %v5534, %v5532
      %v5561 = vpack.c.bf16 %v5535, %v5533
      %v5562 = vpack.c.bf16 %v5538, %v5536
      %v5563 = vpack.c.bf16 %v5539, %v5537
      %v5564 = vpack.c.bf16 %v5542, %v5540
      %v5565 = vpack.c.bf16 %v5543, %v5541
      %v5566 = vpack.c.bf16 %v5546, %v5544
      %v5567 = vpack.c.bf16 %v5547, %v5545
      %v5568 = vpack.c.bf16 %v5550, %v5548
      %v5569 = vpack.c.bf16 %v5551, %v5549
      %v5570 = vpack.c.bf16 %v5554, %v5552
      %v5571 = vpack.c.bf16 %v5555, %v5553
      %v5572 = vld [vmem:[%s706] sm:$0xf]
      %v5573 = vld [vmem:[%s706 + $0x4] sm:$0xf]
      %v5574 = vld [vmem:[%s706 + $0x8] sm:$0xf]
      %v5575 = vld [vmem:[%s706 + $0xc] sm:$0xf]
      %v5576 = vld [vmem:[%s706 + $0x10] sm:$0xf]
      %v5577 = vld [vmem:[%s706 + $0x14] sm:$0xf]
      %v5578 = vld [vmem:[%s706 + $0x18] sm:$0xf]
      %v5579 = vld [vmem:[%s706 + $0x1c] sm:$0xf]
      %v5580 = vld [vmem:[%s706 + $0x20] sm:$0xf]
      %v5581 = vld [vmem:[%s706 + $0x24] sm:$0xf]
      %v5582 = vld [vmem:[%s706 + $0x28] sm:$0xf]
      %v5583 = vld [vmem:[%s706 + $0x2c] sm:$0xf]
      %v5584 = vld [vmem:[%s706 + $0x30] sm:$0xf]
      %v5585 = vld [vmem:[%s706 + $0x34] sm:$0xf]
      %v5586 = vld [vmem:[%s706 + $0x38] sm:$0xf]
      %v5587 = vld [vmem:[%s706 + $0x3c] sm:$0xf]
      %v5588 = vld [vmem:[%s706 + $0x40] sm:$0xf]
      %v5589 = vld [vmem:[%s706 + $0x44] sm:$0xf]
      %v5590 = vld [vmem:[%s706 + $0x48] sm:$0xf]
      %v5591 = vld [vmem:[%s706 + $0x4c] sm:$0xf]
      %v5592 = vld [vmem:[%s706 + $0x50] sm:$0xf]
      %v5593 = vld [vmem:[%s706 + $0x54] sm:$0xf]
      %v5594 = vld [vmem:[%s706 + $0x58] sm:$0xf]
      %v5595 = vld [vmem:[%s706 + $0x5c] sm:$0xf]
      %v5596 = vld [vmem:[%s706 + $0x60] sm:$0xf]
      %v5597 = vld [vmem:[%s706 + $0x64] sm:$0xf]
      %v5598 = vld [vmem:[%s706 + $0x68] sm:$0xf]
      %v5599 = vld [vmem:[%s706 + $0x6c] sm:$0xf]
      %v5600 = vld [vmem:[%s706 + $0x70] sm:$0xf]
      %v5601 = vld [vmem:[%s706 + $0x74] sm:$0xf]
      %v5602 = vld [vmem:[%s706 + $0x78] sm:$0xf]
      %v5603 = vld [vmem:[%s706 + $0x7c] sm:$0xf]
      %v5604 = vld [vmem:[%s709] sm:$0x1]
      %v5606 = vperm.slane %v5604, 0
      %v5640 = vunpack.c.l.b16 %v5572
      %v5641 = vunpack.c.l.b16 %v5573
      %v5642 = vunpack.c.l.b16 %v5574
      %v5643 = vunpack.c.l.b16 %v5575
      %v5644 = vunpack.c.l.b16 %v5576
      %v5645 = vunpack.c.l.b16 %v5577
      %v5646 = vunpack.c.l.b16 %v5578
      %v5647 = vunpack.c.l.b16 %v5579
      %v5648 = vunpack.c.l.b16 %v5580
      %v5649 = vunpack.c.l.b16 %v5581
      %v5650 = vunpack.c.l.b16 %v5582
      %v5651 = vunpack.c.l.b16 %v5583
      %v5652 = vunpack.c.l.b16 %v5584
      %v5653 = vunpack.c.l.b16 %v5585
      %v5654 = vunpack.c.l.b16 %v5586
      %v5655 = vunpack.c.l.b16 %v5587
      %v5656 = vunpack.c.l.b16 %v5588
      %v5657 = vunpack.c.l.b16 %v5589
      %v5658 = vunpack.c.l.b16 %v5590
      %v5659 = vunpack.c.l.b16 %v5591
      %v5660 = vunpack.c.l.b16 %v5592
      %v5661 = vunpack.c.l.b16 %v5593
      %v5662 = vunpack.c.l.b16 %v5594
      %v5663 = vunpack.c.l.b16 %v5595
      %v5664 = vunpack.c.l.b16 %v5596
      %v5665 = vunpack.c.l.b16 %v5597
      %v5666 = vunpack.c.l.b16 %v5598
      %v5667 = vunpack.c.l.b16 %v5599
      %v5668 = vunpack.c.l.b16 %v5600
      %v5669 = vunpack.c.l.b16 %v5601
      %v5670 = vunpack.c.l.b16 %v5602
      %v5671 = vunpack.c.l.b16 %v5603
      %v5672 = vpack.c.b16 %v5641, %v5640
      %v5673 = vpack.c.b16 %v5643, %v5642
      %v5674 = vpack.c.b16 %v5645, %v5644
      %v5675 = vpack.c.b16 %v5647, %v5646
      %v5676 = vpack.c.b16 %v5649, %v5648
      %v5677 = vpack.c.b16 %v5651, %v5650
      %v5678 = vpack.c.b16 %v5653, %v5652
      %v5679 = vpack.c.b16 %v5655, %v5654
      %v5680 = vpack.c.b16 %v5657, %v5656
      %v5681 = vpack.c.b16 %v5659, %v5658
      %v5682 = vpack.c.b16 %v5661, %v5660
      %v5683 = vpack.c.b16 %v5663, %v5662
      %v5684 = vpack.c.b16 %v5665, %v5664
      %v5685 = vpack.c.b16 %v5667, %v5666
      %v5686 = vpack.c.b16 %v5669, %v5668
      %v5687 = vpack.c.b16 %v5671, %v5670
      %5704 = vmatpush.bf16.msra.mxu0 %v5679
      %5705 = vmatpush.bf16.msra.mxu0 %v5678
      %5706 = vmatpush.bf16.msra.mxu0 %v5677
      %5707 = vmatpush.bf16.msra.mxu0 %v5676
      %5708 = vmatpush.bf16.msra.mxu0 %v5675
      %5709 = vmatpush.bf16.msra.mxu0 %v5674
      %5710 = vmatpush.bf16.msra.mxu0 %v5673
      %5711 = vmatpush.bf16.msra.mxu0 %v5672
      %5712 = vmatmul.bf16.gmra.mxu0 %v5556
      %v5713 = vpop.f32.mrf.mxu0
      %v5714 = vadd.f32 %v5606, %v5713
      %v5715 = vpop.f32.mrf.mxu0
      %v5716 = vadd.f32 %v5606, %v5715
      %5717 = vmatmul.bf16.gmra.mxu0 %v5558
      %v5718 = vpop.f32.mrf.mxu0
      %v5719 = vadd.f32 %v5606, %v5718
      %v5720 = vpop.f32.mrf.mxu0
      %v5721 = vadd.f32 %v5606, %v5720
      %5722 = vmatmul.bf16.gmra.mxu0 %v5560
      %v5723 = vpop.f32.mrf.mxu0
      %v5724 = vadd.f32 %v5606, %v5723
      %v5725 = vpop.f32.mrf.mxu0
      %v5726 = vadd.f32 %v5606, %v5725
      %5727 = vmatmul.bf16.gmra.mxu0 %v5562
      %v5728 = vpop.f32.mrf.mxu0
      %v5729 = vadd.f32 %v5606, %v5728
      %v5730 = vpop.f32.mrf.mxu0
      %v5731 = vadd.f32 %v5606, %v5730
      %5732 = vmatmul.bf16.gmra.mxu0 %v5564
      %v5733 = vpop.f32.mrf.mxu0
      %v5734 = vadd.f32 %v5606, %v5733
      %v5735 = vpop.f32.mrf.mxu0
      %v5736 = vadd.f32 %v5606, %v5735
      %5737 = vmatmul.bf16.gmra.mxu0 %v5566
      %v5738 = vpop.f32.mrf.mxu0
      %v5739 = vadd.f32 %v5606, %v5738
      %v5740 = vpop.f32.mrf.mxu0
      %v5741 = vadd.f32 %v5606, %v5740
      %5742 = vmatmul.bf16.gmra.mxu0 %v5568
      %v5743 = vpop.f32.mrf.mxu0
      %v5744 = vadd.f32 %v5606, %v5743
      %v5745 = vpop.f32.mrf.mxu0
      %v5746 = vadd.f32 %v5606, %v5745
      %5747 = vmatmul.bf16.gmra.mxu0 %v5570
      %v5748 = vpop.f32.mrf.mxu0
      %v5749 = vadd.f32 %v5606, %v5748
      %v5750 = vpop.f32.mrf.mxu0
      %v5751 = vadd.f32 %v5606, %v5750
      %5752 = vdwg.mxu0
      %5753 = vmatpush.bf16.msra.mxu0 %v5687
      %5754 = vmatpush.bf16.msra.mxu0 %v5686
      %5755 = vmatpush.bf16.msra.mxu0 %v5685
      %5756 = vmatpush.bf16.msra.mxu0 %v5684
      %5757 = vmatpush.bf16.msra.mxu0 %v5683
      %5758 = vmatpush.bf16.msra.mxu0 %v5682
      %5759 = vmatpush.bf16.msra.mxu0 %v5681
      %5760 = vmatpush.bf16.msra.mxu0 %v5680
      %5761 = vmatmul.bf16.gmra.mxu0 %v5557
      %v5762 = vpop.f32.mrf.mxu0
      %v5763 = vadd.f32 %v5714, %v5762
      %v5764 = vpop.f32.mrf.mxu0
      %v5765 = vadd.f32 %v5716, %v5764
      %5766 = vmatmul.bf16.gmra.mxu0 %v5559
      %v5767 = vpop.f32.mrf.mxu0
      %v5768 = vadd.f32 %v5719, %v5767
      %v5769 = vpop.f32.mrf.mxu0
      %v5770 = vadd.f32 %v5721, %v5769
      %5771 = vmatmul.bf16.gmra.mxu0 %v5561
      %v5772 = vpop.f32.mrf.mxu0
      %v5773 = vadd.f32 %v5724, %v5772
      %v5774 = vpop.f32.mrf.mxu0
      %v5775 = vadd.f32 %v5726, %v5774
      %5776 = vmatmul.bf16.gmra.mxu0 %v5563
      %v5777 = vpop.f32.mrf.mxu0
      %v5778 = vadd.f32 %v5729, %v5777
      %v5779 = vpop.f32.mrf.mxu0
      %v5780 = vadd.f32 %v5731, %v5779
      %5781 = vmatmul.bf16.gmra.mxu0 %v5565
      %v5782 = vpop.f32.mrf.mxu0
      %v5783 = vadd.f32 %v5734, %v5782
      %v5784 = vpop.f32.mrf.mxu0
      %v5785 = vadd.f32 %v5736, %v5784
      %5786 = vmatmul.bf16.gmra.mxu0 %v5567
      %v5787 = vpop.f32.mrf.mxu0
      %v5788 = vadd.f32 %v5739, %v5787
      %v5789 = vpop.f32.mrf.mxu0
      %v5790 = vadd.f32 %v5741, %v5789
      %5791 = vmatmul.bf16.gmra.mxu0 %v5569
      %v5792 = vpop.f32.mrf.mxu0
      %v5793 = vadd.f32 %v5744, %v5792
      %v5794 = vpop.f32.mrf.mxu0
      %v5795 = vadd.f32 %v5746, %v5794
      %5796 = vmatmul.bf16.gmra.mxu0 %v5571
      %v5797 = vpop.f32.mrf.mxu0
      %v5798 = vadd.f32 %v5749, %v5797
      %v5799 = vpop.f32.mrf.mxu0
      %v5800 = vadd.f32 %v5751, %v5799
      %5801 = vdwg.mxu0
      %v5802 = vadd.f32 %v4932, %v5763
      %v5803 = vadd.f32 %v4933, %v5765
      %v5804 = vadd.f32 %v4934, %v5768
      %v5805 = vadd.f32 %v4935, %v5770
      %v5806 = vadd.f32 %v4936, %v5773
      %v5807 = vadd.f32 %v4937, %v5775
      %v5808 = vadd.f32 %v4938, %v5778
      %v5809 = vadd.f32 %v4939, %v5780
      %v5810 = vadd.f32 %v4940, %v5783
      %v5811 = vadd.f32 %v4941, %v5785
      %v5812 = vadd.f32 %v4942, %v5788
      %v5813 = vadd.f32 %v4943, %v5790
      %v5814 = vadd.f32 %v4944, %v5793
      %v5815 = vadd.f32 %v4945, %v5795
      %v5816 = vadd.f32 %v4946, %v5798
      %v5817 = vadd.f32 %v4947, %v5800
      %5818 = vst.msk [vmem:[#allocation2] sm:$0xff] %vm822, %v5802
      %5819 = vst.msk [vmem:[#allocation2 + $0x8] sm:$0xff] %vm822, %v5803
      %5820 = vst.msk [vmem:[#allocation2 + $0x10] sm:$0xff] %vm822, %v5804
      %5821 = vst.msk [vmem:[#allocation2 + $0x18] sm:$0xff] %vm822, %v5805
      %5822 = vst.msk [vmem:[#allocation2 + $0x20] sm:$0xff] %vm822, %v5806
      %5823 = vst.msk [vmem:[#allocation2 + $0x28] sm:$0xff] %vm822, %v5807
      %5824 = vst.msk [vmem:[#allocation2 + $0x30] sm:$0xff] %vm822, %v5808
      %5825 = vst.msk [vmem:[#allocation2 + $0x38] sm:$0xff] %vm822, %v5809
      %5826 = vst.msk [vmem:[#allocation2 + $0x40] sm:$0xff] %vm822, %v5810
      %5827 = vst.msk [vmem:[#allocation2 + $0x48] sm:$0xff] %vm822, %v5811
      %5828 = vst.msk [vmem:[#allocation2 + $0x50] sm:$0xff] %vm822, %v5812
      %5829 = vst.msk [vmem:[#allocation2 + $0x58] sm:$0xff] %vm822, %v5813
      %5830 = vst.msk [vmem:[#allocation2 + $0x60] sm:$0xff] %vm822, %v5814
      %5831 = vst.msk [vmem:[#allocation2 + $0x68] sm:$0xff] %vm822, %v5815
      %5832 = vst.msk [vmem:[#allocation2 + $0x70] sm:$0xff] %vm822, %v5816
      %5833 = vst.msk [vmem:[#allocation2 + $0x78] sm:$0xff] %vm822, %v5817
      %p5834 = scmp.eq.s32.totalorder %s32, 7
      // Predicated region
      $region89: #{heart_gpt_forward.1} parent=83 // pred_check
        %p5835 = pneg %p5834
      $region90: #{heart_gpt_forward.1} parent=83 // pred_check_branch
        %5837 = sbr.rel (%p5835) target = $region92
      $region91: #{heart_gpt_forward.1} parent=83 // pred_region
        %v5838 = vld [vmem:[%s12] sm:$0x1]
        %v5839 = vld [vmem:[%s13] sm:$0x1]
        %v5840 = vsel %vm822, %v5802, 0.0
        %5841 = vadd.xlane.f32.xlu0 %v5840
        %v5842 = vpop.xlane.xlu0 %5841
        %v5843 = vsel %vm822, %v5803, 0.0
        %5844 = vadd.xlane.f32.xlu0 %v5843
        %v5845 = vpop.xlane.xlu0 %5844
        %v5846 = vsel %vm822, %v5804, 0.0
        %5847 = vadd.xlane.f32.xlu0 %v5846
        %v5848 = vpop.xlane.xlu0 %5847
        %v5849 = vsel %vm822, %v5805, 0.0
        %5850 = vadd.xlane.f32.xlu0 %v5849
        %v5851 = vpop.xlane.xlu0 %5850
        %v5852 = vsel %vm822, %v5806, 0.0
        %5853 = vadd.xlane.f32.xlu0 %v5852
        %v5854 = vpop.xlane.xlu0 %5853
        %v5855 = vsel %vm822, %v5807, 0.0
        %5856 = vadd.xlane.f32.xlu0 %v5855
        %v5857 = vpop.xlane.xlu0 %5856
        %v5858 = vsel %vm822, %v5808, 0.0
        %5859 = vadd.xlane.f32.xlu0 %v5858
        %v5860 = vpop.xlane.xlu0 %5859
        %v5861 = vsel %vm822, %v5809, 0.0
        %5862 = vadd.xlane.f32.xlu0 %v5861
        %v5863 = vpop.xlane.xlu0 %5862
        %v5864 = vsel %vm822, %v5810, 0.0
        %5865 = vadd.xlane.f32.xlu0 %v5864
        %v5866 = vpop.xlane.xlu0 %5865
        %v5867 = vsel %vm822, %v5811, 0.0
        %5868 = vadd.xlane.f32.xlu0 %v5867
        %v5869 = vpop.xlane.xlu0 %5868
        %v5870 = vsel %vm822, %v5812, 0.0
        %5871 = vadd.xlane.f32.xlu0 %v5870
        %v5872 = vpop.xlane.xlu0 %5871
        %v5873 = vsel %vm822, %v5813, 0.0
        %5874 = vadd.xlane.f32.xlu0 %v5873
        %v5875 = vpop.xlane.xlu0 %5874
        %v5876 = vsel %vm822, %v5814, 0.0
        %5877 = vadd.xlane.f32.xlu0 %v5876
        %v5878 = vpop.xlane.xlu0 %5877
        %v5879 = vsel %vm822, %v5815, 0.0
        %5880 = vadd.xlane.f32.xlu0 %v5879
        %v5881 = vpop.xlane.xlu0 %5880
        %v5882 = vsel %vm822, %v5816, 0.0
        %5883 = vadd.xlane.f32.xlu0 %v5882
        %v5884 = vpop.xlane.xlu0 %5883
        %v5885 = vsel %vm822, %v5817, 0.0
        %5886 = vadd.xlane.f32.xlu0 %v5885
        %v5887 = vpop.xlane.xlu0 %5886
        %v5888 = vmul.f32 %v5842, %v877
        %v5889 = vmul.f32 %v5845, %v877
        %v5890 = vmul.f32 %v5848, %v877
        %v5891 = vmul.f32 %v5851, %v877
        %v5892 = vmul.f32 %v5854, %v877
        %v5893 = vmul.f32 %v5857, %v877
        %v5894 = vmul.f32 %v5860, %v877
        %v5895 = vmul.f32 %v5863, %v877
        %v5896 = vmul.f32 %v5866, %v877
        %v5897 = vmul.f32 %v5869, %v877
        %v5898 = vmul.f32 %v5872, %v877
        %v5899 = vmul.f32 %v5875, %v877
        %v5900 = vmul.f32 %v5878, %v877
        %v5901 = vmul.f32 %v5881, %v877
        %v5902 = vmul.f32 %v5884, %v877
        %v5903 = vmul.f32 %v5887, %v877
        %v5904 = vsub.f32 %v5802, %v5888
        %v5905 = vsub.f32 %v5803, %v5889
        %v5906 = vsub.f32 %v5804, %v5890
        %v5907 = vsub.f32 %v5805, %v5891
        %v5908 = vsub.f32 %v5806, %v5892
        %v5909 = vsub.f32 %v5807, %v5893
        %v5910 = vsub.f32 %v5808, %v5894
        %v5911 = vsub.f32 %v5809, %v5895
        %v5912 = vsub.f32 %v5810, %v5896
        %v5913 = vsub.f32 %v5811, %v5897
        %v5914 = vsub.f32 %v5812, %v5898
        %v5915 = vsub.f32 %v5813, %v5899
        %v5916 = vsub.f32 %v5814, %v5900
        %v5917 = vsub.f32 %v5815, %v5901
        %v5918 = vsub.f32 %v5816, %v5902
        %v5919 = vsub.f32 %v5817, %v5903
        %v5920 = vmul.f32 %v5904, %v5904
        %v5921 = vmul.f32 %v5905, %v5905
        %v5922 = vmul.f32 %v5906, %v5906
        %v5923 = vmul.f32 %v5907, %v5907
        %v5924 = vmul.f32 %v5908, %v5908
        %v5925 = vmul.f32 %v5909, %v5909
        %v5926 = vmul.f32 %v5910, %v5910
        %v5927 = vmul.f32 %v5911, %v5911
        %v5928 = vmul.f32 %v5912, %v5912
        %v5929 = vmul.f32 %v5913, %v5913
        %v5930 = vmul.f32 %v5914, %v5914
        %v5931 = vmul.f32 %v5915, %v5915
        %v5932 = vmul.f32 %v5916, %v5916
        %v5933 = vmul.f32 %v5917, %v5917
        %v5934 = vmul.f32 %v5918, %v5918
        %v5935 = vmul.f32 %v5919, %v5919
        %v5936 = vsel %vm822, %v5920, 0.0
        %5937 = vadd.xlane.f32.xlu0 %v5936
        %v5938 = vpop.xlane.xlu0 %5937
        %v5939 = vsel %vm822, %v5921, 0.0
        %5940 = vadd.xlane.f32.xlu0 %v5939
        %v5941 = vpop.xlane.xlu0 %5940
        %v5942 = vsel %vm822, %v5922, 0.0
        %5943 = vadd.xlane.f32.xlu0 %v5942
        %v5944 = vpop.xlane.xlu0 %5943
        %v5945 = vsel %vm822, %v5923, 0.0
        %5946 = vadd.xlane.f32.xlu0 %v5945
        %v5947 = vpop.xlane.xlu0 %5946
        %v5948 = vsel %vm822, %v5924, 0.0
        %5949 = vadd.xlane.f32.xlu0 %v5948
        %v5950 = vpop.xlane.xlu0 %5949
        %v5951 = vsel %vm822, %v5925, 0.0
        %5952 = vadd.xlane.f32.xlu0 %v5951
        %v5953 = vpop.xlane.xlu0 %5952
        %v5954 = vsel %vm822, %v5926, 0.0
        %5955 = vadd.xlane.f32.xlu0 %v5954
        %v5956 = vpop.xlane.xlu0 %5955
        %v5957 = vsel %vm822, %v5927, 0.0
        %5958 = vadd.xlane.f32.xlu0 %v5957
        %v5959 = vpop.xlane.xlu0 %5958
        %v5960 = vsel %vm822, %v5928, 0.0
        %5961 = vadd.xlane.f32.xlu0 %v5960
        %v5962 = vpop.xlane.xlu0 %5961
        %v5963 = vsel %vm822, %v5929, 0.0
        %5964 = vadd.xlane.f32.xlu0 %v5963
        %v5965 = vpop.xlane.xlu0 %5964
        %v5966 = vsel %vm822, %v5930, 0.0
        %5967 = vadd.xlane.f32.xlu0 %v5966
        %v5968 = vpop.xlane.xlu0 %5967
        %v5969 = vsel %vm822, %v5931, 0.0
        %5970 = vadd.xlane.f32.xlu0 %v5969
        %v5971 = vpop.xlane.xlu0 %5970
        %v5972 = vsel %vm822, %v5932, 0.0
        %5973 = vadd.xlane.f32.xlu0 %v5972
        %v5974 = vpop.xlane.xlu0 %5973
        %v5975 = vsel %vm822, %v5933, 0.0
        %5976 = vadd.xlane.f32.xlu0 %v5975
        %v5977 = vpop.xlane.xlu0 %5976
        %v5978 = vsel %vm822, %v5934, 0.0
        %5979 = vadd.xlane.f32.xlu0 %v5978
        %v5980 = vpop.xlane.xlu0 %5979
        %v5981 = vsel %vm822, %v5935, 0.0
        %5982 = vadd.xlane.f32.xlu0 %v5981
        %v5983 = vpop.xlane.xlu0 %5982
        %v5984 = vmul.f32 %v5938, %v877
        %v5985 = vmul.f32 %v5941, %v877
        %v5986 = vmul.f32 %v5944, %v877
        %v5987 = vmul.f32 %v5947, %v877
        %v5988 = vmul.f32 %v5950, %v877
        %v5989 = vmul.f32 %v5953, %v877
        %v5990 = vmul.f32 %v5956, %v877
        %v5991 = vmul.f32 %v5959, %v877
        %v5992 = vmul.f32 %v5962, %v877
        %v5993 = vmul.f32 %v5965, %v877
        %v5994 = vmul.f32 %v5968, %v877
        %v5995 = vmul.f32 %v5971, %v877
        %v5996 = vmul.f32 %v5974, %v877
        %v5997 = vmul.f32 %v5977, %v877
        %v5998 = vmul.f32 %v5980, %v877
        %v5999 = vmul.f32 %v5983, %v877
        %v6000 = vadd.f32 %v5984, 1e-05
        %v6001 = vadd.f32 %v5985, 1e-05
        %v6002 = vadd.f32 %v5986, 1e-05
        %v6003 = vadd.f32 %v5987, 1e-05
        %v6004 = vadd.f32 %v5988, 1e-05
        %v6005 = vadd.f32 %v5989, 1e-05
        %v6006 = vadd.f32 %v5990, 1e-05
        %v6007 = vadd.f32 %v5991, 1e-05
        %v6008 = vadd.f32 %v5992, 1e-05
        %v6009 = vadd.f32 %v5993, 1e-05
        %v6010 = vadd.f32 %v5994, 1e-05
        %v6011 = vadd.f32 %v5995, 1e-05
        %v6012 = vadd.f32 %v5996, 1e-05
        %v6013 = vadd.f32 %v5997, 1e-05
        %v6014 = vadd.f32 %v5998, 1e-05
        %v6015 = vadd.f32 %v5999, 1e-05
        %v6016 = vrsqrt.pop %v6000
        %v6017 = vmul.f32 %v6016, %v6000
        %v6018 = vmul.f32 %v6017, %v6016
        %v6019 = vmul.f32 0.5, %v6018
        %v6020 = vsub.f32 1.5, %v6019
        %v6021 = vmul.f32 %v6016, %v6020
        %vm6022 = vweird.f32 %v6000
        %vm6023 = vweird.f32 %v6016
        %vm6024 = vmor %vm6022, %vm6023
        %v6025 = vsel %vm6024, %v6016, %v6021
        %v6026 = vrsqrt.pop %v6001
        %v6027 = vmul.f32 %v6026, %v6001
        %v6028 = vmul.f32 %v6027, %v6026
        %v6029 = vmul.f32 0.5, %v6028
        %v6030 = vsub.f32 1.5, %v6029
        %v6031 = vmul.f32 %v6026, %v6030
        %vm6032 = vweird.f32 %v6001
        %vm6033 = vweird.f32 %v6026
        %vm6034 = vmor %vm6032, %vm6033
        %v6035 = vsel %vm6034, %v6026, %v6031
        %v6036 = vrsqrt.pop %v6002
        %v6037 = vmul.f32 %v6036, %v6002
        %v6038 = vmul.f32 %v6037, %v6036
        %v6039 = vmul.f32 0.5, %v6038
        %v6040 = vsub.f32 1.5, %v6039
        %v6041 = vmul.f32 %v6036, %v6040
        %vm6042 = vweird.f32 %v6002
        %vm6043 = vweird.f32 %v6036
        %vm6044 = vmor %vm6042, %vm6043
        %v6045 = vsel %vm6044, %v6036, %v6041
        %v6046 = vrsqrt.pop %v6003
        %v6047 = vmul.f32 %v6046, %v6003
        %v6048 = vmul.f32 %v6047, %v6046
        %v6049 = vmul.f32 0.5, %v6048
        %v6050 = vsub.f32 1.5, %v6049
        %v6051 = vmul.f32 %v6046, %v6050
        %vm6052 = vweird.f32 %v6003
        %vm6053 = vweird.f32 %v6046
        %vm6054 = vmor %vm6052, %vm6053
        %v6055 = vsel %vm6054, %v6046, %v6051
        %v6056 = vrsqrt.pop %v6004
        %v6057 = vmul.f32 %v6056, %v6004
        %v6058 = vmul.f32 %v6057, %v6056
        %v6059 = vmul.f32 0.5, %v6058
        %v6060 = vsub.f32 1.5, %v6059
        %v6061 = vmul.f32 %v6056, %v6060
        %vm6062 = vweird.f32 %v6004
        %vm6063 = vweird.f32 %v6056
        %vm6064 = vmor %vm6062, %vm6063
        %v6065 = vsel %vm6064, %v6056, %v6061
        %v6066 = vrsqrt.pop %v6005
        %v6067 = vmul.f32 %v6066, %v6005
        %v6068 = vmul.f32 %v6067, %v6066
        %v6069 = vmul.f32 0.5, %v6068
        %v6070 = vsub.f32 1.5, %v6069
        %v6071 = vmul.f32 %v6066, %v6070
        %vm6072 = vweird.f32 %v6005
        %vm6073 = vweird.f32 %v6066
        %vm6074 = vmor %vm6072, %vm6073
        %v6075 = vsel %vm6074, %v6066, %v6071
        %v6076 = vrsqrt.pop %v6006
        %v6077 = vmul.f32 %v6076, %v6006
        %v6078 = vmul.f32 %v6077, %v6076
        %v6079 = vmul.f32 0.5, %v6078
        %v6080 = vsub.f32 1.5, %v6079
        %v6081 = vmul.f32 %v6076, %v6080
        %vm6082 = vweird.f32 %v6006
        %vm6083 = vweird.f32 %v6076
        %vm6084 = vmor %vm6082, %vm6083
        %v6085 = vsel %vm6084, %v6076, %v6081
        %v6086 = vrsqrt.pop %v6007
        %v6087 = vmul.f32 %v6086, %v6007
        %v6088 = vmul.f32 %v6087, %v6086
        %v6089 = vmul.f32 0.5, %v6088
        %v6090 = vsub.f32 1.5, %v6089
        %v6091 = vmul.f32 %v6086, %v6090
        %vm6092 = vweird.f32 %v6007
        %vm6093 = vweird.f32 %v6086
        %vm6094 = vmor %vm6092, %vm6093
        %v6095 = vsel %vm6094, %v6086, %v6091
        %v6096 = vrsqrt.pop %v6008
        %v6097 = vmul.f32 %v6096, %v6008
        %v6098 = vmul.f32 %v6097, %v6096
        %v6099 = vmul.f32 0.5, %v6098
        %v6100 = vsub.f32 1.5, %v6099
        %v6101 = vmul.f32 %v6096, %v6100
        %vm6102 = vweird.f32 %v6008
        %vm6103 = vweird.f32 %v6096
        %vm6104 = vmor %vm6102, %vm6103
        %v6105 = vsel %vm6104, %v6096, %v6101
        %v6106 = vrsqrt.pop %v6009
        %v6107 = vmul.f32 %v6106, %v6009
        %v6108 = vmul.f32 %v6107, %v6106
        %v6109 = vmul.f32 0.5, %v6108
        %v6110 = vsub.f32 1.5, %v6109
        %v6111 = vmul.f32 %v6106, %v6110
        %vm6112 = vweird.f32 %v6009
        %vm6113 = vweird.f32 %v6106
        %vm6114 = vmor %vm6112, %vm6113
        %v6115 = vsel %vm6114, %v6106, %v6111
        %v6116 = vrsqrt.pop %v6010
        %v6117 = vmul.f32 %v6116, %v6010
        %v6118 = vmul.f32 %v6117, %v6116
        %v6119 = vmul.f32 0.5, %v6118
        %v6120 = vsub.f32 1.5, %v6119
        %v6121 = vmul.f32 %v6116, %v6120
        %vm6122 = vweird.f32 %v6010
        %vm6123 = vweird.f32 %v6116
        %vm6124 = vmor %vm6122, %vm6123
        %v6125 = vsel %vm6124, %v6116, %v6121
        %v6126 = vrsqrt.pop %v6011
        %v6127 = vmul.f32 %v6126, %v6011
        %v6128 = vmul.f32 %v6127, %v6126
        %v6129 = vmul.f32 0.5, %v6128
        %v6130 = vsub.f32 1.5, %v6129
        %v6131 = vmul.f32 %v6126, %v6130
        %vm6132 = vweird.f32 %v6011
        %vm6133 = vweird.f32 %v6126
        %vm6134 = vmor %vm6132, %vm6133
        %v6135 = vsel %vm6134, %v6126, %v6131
        %v6136 = vrsqrt.pop %v6012
        %v6137 = vmul.f32 %v6136, %v6012
        %v6138 = vmul.f32 %v6137, %v6136
        %v6139 = vmul.f32 0.5, %v6138
        %v6140 = vsub.f32 1.5, %v6139
        %v6141 = vmul.f32 %v6136, %v6140
        %vm6142 = vweird.f32 %v6012
        %vm6143 = vweird.f32 %v6136
        %vm6144 = vmor %vm6142, %vm6143
        %v6145 = vsel %vm6144, %v6136, %v6141
        %v6146 = vrsqrt.pop %v6013
        %v6147 = vmul.f32 %v6146, %v6013
        %v6148 = vmul.f32 %v6147, %v6146
        %v6149 = vmul.f32 0.5, %v6148
        %v6150 = vsub.f32 1.5, %v6149
        %v6151 = vmul.f32 %v6146, %v6150
        %vm6152 = vweird.f32 %v6013
        %vm6153 = vweird.f32 %v6146
        %vm6154 = vmor %vm6152, %vm6153
        %v6155 = vsel %vm6154, %v6146, %v6151
        %v6156 = vrsqrt.pop %v6014
        %v6157 = vmul.f32 %v6156, %v6014
        %v6158 = vmul.f32 %v6157, %v6156
        %v6159 = vmul.f32 0.5, %v6158
        %v6160 = vsub.f32 1.5, %v6159
        %v6161 = vmul.f32 %v6156, %v6160
        %vm6162 = vweird.f32 %v6014
        %vm6163 = vweird.f32 %v6156
        %vm6164 = vmor %vm6162, %vm6163
        %v6165 = vsel %vm6164, %v6156, %v6161
        %v6166 = vrsqrt.pop %v6015
        %v6167 = vmul.f32 %v6166, %v6015
        %v6168 = vmul.f32 %v6167, %v6166
        %v6169 = vmul.f32 0.5, %v6168
        %v6170 = vsub.f32 1.5, %v6169
        %v6171 = vmul.f32 %v6166, %v6170
        %vm6172 = vweird.f32 %v6015
        %vm6173 = vweird.f32 %v6166
        %vm6174 = vmor %vm6172, %vm6173
        %v6175 = vsel %vm6174, %v6166, %v6171
        %v6176 = vmul.f32 %v5904, %v6025
        %v6177 = vmul.f32 %v5905, %v6035
        %v6178 = vmul.f32 %v5906, %v6045
        %v6179 = vmul.f32 %v5907, %v6055
        %v6180 = vmul.f32 %v5908, %v6065
        %v6181 = vmul.f32 %v5909, %v6075
        %v6182 = vmul.f32 %v5910, %v6085
        %v6183 = vmul.f32 %v5911, %v6095
        %v6184 = vmul.f32 %v5912, %v6105
        %v6185 = vmul.f32 %v5913, %v6115
        %v6186 = vmul.f32 %v5914, %v6125
        %v6187 = vmul.f32 %v5915, %v6135
        %v6188 = vmul.f32 %v5916, %v6145
        %v6189 = vmul.f32 %v5917, %v6155
        %v6190 = vmul.f32 %v5918, %v6165
        %v6191 = vmul.f32 %v5919, %v6175
        %v6193 = vperm.slane %v5838, 0
        %v6195 = vmul.f32 %v6176, %v6193
        %v6196 = vmul.f32 %v6177, %v6193
        %v6197 = vmul.f32 %v6178, %v6193
        %v6198 = vmul.f32 %v6179, %v6193
        %v6199 = vmul.f32 %v6180, %v6193
        %v6200 = vmul.f32 %v6181, %v6193
        %v6201 = vmul.f32 %v6182, %v6193
        %v6202 = vmul.f32 %v6183, %v6193
        %v6203 = vmul.f32 %v6184, %v6193
        %v6204 = vmul.f32 %v6185, %v6193
        %v6205 = vmul.f32 %v6186, %v6193
        %v6206 = vmul.f32 %v6187, %v6193
        %v6207 = vmul.f32 %v6188, %v6193
        %v6208 = vmul.f32 %v6189, %v6193
        %v6209 = vmul.f32 %v6190, %v6193
        %v6210 = vmul.f32 %v6191, %v6193
        %v6212 = vperm.slane %v5839, 0
        %v6214 = vadd.f32 %v6195, %v6212
        %v6215 = vadd.f32 %v6196, %v6212
        %v6216 = vadd.f32 %v6197, %v6212
        %v6217 = vadd.f32 %v6198, %v6212
        %v6218 = vadd.f32 %v6199, %v6212
        %v6219 = vadd.f32 %v6200, %v6212
        %v6220 = vadd.f32 %v6201, %v6212
        %v6221 = vadd.f32 %v6202, %v6212
        %v6222 = vadd.f32 %v6203, %v6212
        %v6223 = vadd.f32 %v6204, %v6212
        %v6224 = vadd.f32 %v6205, %v6212
        %v6225 = vadd.f32 %v6206, %v6212
        %v6226 = vadd.f32 %v6207, %v6212
        %v6227 = vadd.f32 %v6208, %v6212
        %v6228 = vadd.f32 %v6209, %v6212
        %v6229 = vadd.f32 %v6210, %v6212
        %v6230 = vpack.c.bf16 %v6215, %v6214
        %v6231 = vpack.c.bf16 %v6217, %v6216
        %v6232 = vpack.c.bf16 %v6219, %v6218
        %v6233 = vpack.c.bf16 %v6221, %v6220
        %v6234 = vpack.c.bf16 %v6223, %v6222
        %v6235 = vpack.c.bf16 %v6225, %v6224
        %v6236 = vpack.c.bf16 %v6227, %v6226
        %v6237 = vpack.c.bf16 %v6229, %v6228
        %v6238 = vld [vmem:[%s14] sm:$0xf]
        %v6239 = vld [vmem:[%s14 + $0x4] sm:$0xf]
        %v6240 = vld [vmem:[%s14 + $0x8] sm:$0xf]
        %v6241 = vld [vmem:[%s14 + $0xc] sm:$0xf]
        %v6242 = vld [vmem:[%s14 + $0x10] sm:$0xf]
        %v6243 = vld [vmem:[%s14 + $0x14] sm:$0xf]
        %v6244 = vld [vmem:[%s14 + $0x18] sm:$0xf]
        %v6245 = vld [vmem:[%s14 + $0x1c] sm:$0xf]
        %v6246 = vld [vmem:[%s15] sm:$0x1]
        %v6248 = vperm.slane %v6246, 0
        %v6258 = vunpack.c.l.b16 %v6238
        %v6259 = vunpack.c.l.b16 %v6239
        %v6260 = vunpack.c.l.b16 %v6240
        %v6261 = vunpack.c.l.b16 %v6241
        %v6262 = vunpack.c.l.b16 %v6242
        %v6263 = vunpack.c.l.b16 %v6243
        %v6264 = vunpack.c.l.b16 %v6244
        %v6265 = vunpack.c.l.b16 %v6245
        %v6266 = vpack.c.b16 %v6259, %v6258
        %v6267 = vpack.c.b16 %v6261, %v6260
        %v6268 = vpack.c.b16 %v6263, %v6262
        %v6269 = vpack.c.b16 %v6265, %v6264
        %v6275 = vsel %vm822, %v6230, 0
        %v6278 = vsel %vm822, %v6231, 0
        %v6281 = vsel %vm822, %v6232, 0
        %v6284 = vsel %vm822, %v6233, 0
        %v6287 = vsel %vm822, %v6234, 0
        %v6290 = vsel %vm822, %v6235, 0
        %v6293 = vsel %vm822, %v6236, 0
        %v6296 = vsel %vm822, %v6237, 0
        %6298 = vmatpush.bf16.msra.mxu0 0
        %6299 = vmatpush.bf16.msra.mxu0 0
        %6300 = vmatpush.bf16.msra.mxu0 0
        %6301 = vmatpush.bf16.msra.mxu0 0
        %6302 = vmatpush.bf16.msra.mxu0 %v6269
        %6303 = vmatpush.bf16.msra.mxu0 %v6268
        %6304 = vmatpush.bf16.msra.mxu0 %v6267
        %6305 = vmatpush.bf16.msra.mxu0 %v6266
        %6306 = vmatmul.bf16.gmra.mxu0 %v6275
        %v6307 = vpop.f32.mrf.mxu0
        %v6308 = vadd.f32 %v6248, %v6307
        %v6309 = vpop.f32.mrf.mxu0
        %v6310 = vadd.f32 %v6248, %v6309
        %6311 = vmatmul.bf16.gmra.mxu0 %v6278
        %v6312 = vpop.f32.mrf.mxu0
        %v6313 = vadd.f32 %v6248, %v6312
        %v6314 = vpop.f32.mrf.mxu0
        %v6315 = vadd.f32 %v6248, %v6314
        %6316 = vmatmul.bf16.gmra.mxu0 %v6281
        %v6317 = vpop.f32.mrf.mxu0
        %v6318 = vadd.f32 %v6248, %v6317
        %v6319 = vpop.f32.mrf.mxu0
        %v6320 = vadd.f32 %v6248, %v6319
        %6321 = vmatmul.bf16.gmra.mxu0 %v6284
        %v6322 = vpop.f32.mrf.mxu0
        %v6323 = vadd.f32 %v6248, %v6322
        %v6324 = vpop.f32.mrf.mxu0
        %v6325 = vadd.f32 %v6248, %v6324
        %6326 = vmatmul.bf16.gmra.mxu0 %v6287
        %v6327 = vpop.f32.mrf.mxu0
        %v6328 = vadd.f32 %v6248, %v6327
        %v6329 = vpop.f32.mrf.mxu0
        %v6330 = vadd.f32 %v6248, %v6329
        %6331 = vmatmul.bf16.gmra.mxu0 %v6290
        %v6332 = vpop.f32.mrf.mxu0
        %v6333 = vadd.f32 %v6248, %v6332
        %v6334 = vpop.f32.mrf.mxu0
        %v6335 = vadd.f32 %v6248, %v6334
        %6336 = vmatmul.bf16.gmra.mxu0 %v6293
        %v6337 = vpop.f32.mrf.mxu0
        %v6338 = vadd.f32 %v6248, %v6337
        %v6339 = vpop.f32.mrf.mxu0
        %v6340 = vadd.f32 %v6248, %v6339
        %6341 = vmatmul.bf16.gmra.mxu0 %v6296
        %v6342 = vpop.f32.mrf.mxu0
        %v6343 = vadd.f32 %v6248, %v6342
        %v6344 = vpop.f32.mrf.mxu0
        %v6345 = vadd.f32 %v6248, %v6344
        %6346 = vdwg.mxu0
        %v6347 = vpack.c.bf16 %v6308, %v6308
        %v6348 = vpack.c.bf16 %v6310, %v6310
        %v6349 = vpack.c.bf16 %v6313, %v6313
        %v6350 = vpack.c.bf16 %v6315, %v6315
        %v6351 = vpack.c.bf16 %v6318, %v6318
        %v6352 = vpack.c.bf16 %v6320, %v6320
        %v6353 = vpack.c.bf16 %v6323, %v6323
        %v6354 = vpack.c.bf16 %v6325, %v6325
        %v6355 = vpack.c.bf16 %v6328, %v6328
        %v6356 = vpack.c.bf16 %v6330, %v6330
        %v6357 = vpack.c.bf16 %v6333, %v6333
        %v6358 = vpack.c.bf16 %v6335, %v6335
        %v6359 = vpack.c.bf16 %v6338, %v6338
        %v6360 = vpack.c.bf16 %v6340, %v6340
        %v6361 = vpack.c.bf16 %v6343, %v6343
        %v6362 = vpack.c.bf16 %v6345, %v6345
        %6363 = vst [vmem:[%s714] sm:$0xf] %v6347
        %6364 = vst [vmem:[%s714 + $0x4] sm:$0xf] %v6348
        %6365 = vst [vmem:[%s714 + $0x8] sm:$0xf] %v6349
        %6366 = vst [vmem:[%s714 + $0xc] sm:$0xf] %v6350
        %6367 = vst [vmem:[%s714 + $0x10] sm:$0xf] %v6351
        %6368 = vst [vmem:[%s714 + $0x14] sm:$0xf] %v6352
        %6369 = vst [vmem:[%s714 + $0x18] sm:$0xf] %v6353
        %6370 = vst [vmem:[%s714 + $0x1c] sm:$0xf] %v6354
        %6371 = vst [vmem:[%s714 + $0x20] sm:$0xf] %v6355
        %6372 = vst [vmem:[%s714 + $0x24] sm:$0xf] %v6356
        %6373 = vst [vmem:[%s714 + $0x28] sm:$0xf] %v6357
        %6374 = vst [vmem:[%s714 + $0x2c] sm:$0xf] %v6358
        %6375 = vst [vmem:[%s714 + $0x30] sm:$0xf] %v6359
        %6376 = vst [vmem:[%s714 + $0x34] sm:$0xf] %v6360
        %6377 = vst [vmem:[%s714 + $0x38] sm:$0xf] %v6361
        %6378 = vst [vmem:[%s714 + $0x3c] sm:$0xf] %v6362
      $region92: #{heart_gpt_forward.1} parent=83 // pred_fallthru
        _
      %p6379 = scmp.lt.s32.totalorder %s31, 1
      %s6380 = scalar_select %p6379, %s31, 1
      %s6381 = smul.addr %s6380, 16
      %s6382 = smul.addr %s6381, 4
      %s6383 = scalar_lea.vmem %s16, %s6382
      // Predicated region
      $region93: #{heart_gpt_forward.1} parent=83 // pred_check
        %p6384 = pneg %p453
      $region94: #{heart_gpt_forward.1} parent=83 // pred_check_branch
        %6386 = sbr.rel (%p6384) target = $region96
      $region95: #{heart_gpt_forward.1} parent=83 // pred_region
        _
      $region96: #{heart_gpt_forward.1} parent=83 // pred_fallthru
        _
    $region84: #{heart_gpt_forward.1} parent=5 // pred_fallthru
      _
    %p6387 = scmp.le.s32.totalorder 2, %s22
    // Predicated region
    $region97: #{heart_gpt_forward.1} parent=5 // pred_check
      %p6388 = pneg %p6387
    $region98: #{heart_gpt_forward.1} parent=5 // pred_check_branch
      %6390 = sbr.rel (%p6388) target = $region100
    $region99: #{heart_gpt_forward.1} parent=5 // pred_region
      %s6391 = ssub.s32 %s22, 2
      // Predicated region
      $region101: #{heart_gpt_forward.1} parent=99 // pred_check
        %p6392 = pneg %p459
      $region102: #{heart_gpt_forward.1} parent=99 // pred_check_branch
        %6394 = sbr.rel (%p6392) target = $region104
      $region103: #{heart_gpt_forward.1} parent=99 // pred_region
        %p6395 = scmp.lt.s32.totalorder %s33, 1
        %s6396 = scalar_select %p6395, %s33, 1
        %s6397 = smul.addr %s6396, 16
        %s6398 = smul.addr %s6397, 4
        %s6399 = scalar_lea.vmem %s16, %s6398
      $region104: #{heart_gpt_forward.1} parent=99 // pred_fallthru
        _
    $region100: #{heart_gpt_forward.1} parent=5 // pred_fallthru
      _
  $region6: #{heart_gpt_forward.1} parent=0 // loop_footer
    %s26 = sadd.s32 1, %s22
  $region7: #{heart_gpt_forward.1} parent=0 // loop_footer_branch
    %21 = sbr.rel target = $region3
  $region8: #{heart_gpt_forward.1} parent=0 // loop_exit
    _

</llo_original>
